<compile_context>
chip_gen: v5e
topology: v5e:2x2
jax: 0.10.0
libtpu: 0.0.40
codegen_flags: <defaults>
</compile_context>

<pallas_src>
import functools

import jax
import jax.numpy as jnp
from jax.experimental import pallas as pl
from jax.experimental.pallas import tpu as pltpu


def _ac_msa_kernel(qkv_ref, wt_ref, bias_ref, scale_ref, o_ref, *,
                   num_heads, head_dim, c):
    """One grid step = G (batch, group) tiles.

    qkv_ref:  (G, gs, 3C)  shuffled + padded qkv slab
    wt_ref:   (C, C)       proj weight, already transposed (in, out)
    bias_ref: (1, C)       proj bias
    scale_ref:(1, 1) SMEM  exp(clamp(logit_scale))
    o_ref:    (G, gs, C)   projected attention output
    """
    scale = scale_ref[0, 0]                        # f32 scalar from SMEM
    qkv = qkv_ref[...]                             # (G, gs, 3C), single load

    head_outs = []
    for h in range(num_heads):                     # num_heads is small; unrolled
        qo = h * head_dim
        ko = c + h * head_dim
        vo = 2 * c + h * head_dim
        # Fold the logit scale into q (cheaper than scaling the (gs, gs) tile).
        q = qkv[:, :, qo:qo + head_dim] * scale    # (G, gs, hd)
        k = qkv[:, :, ko:ko + head_dim]            # (G, gs, hd)
        v = qkv[:, :, vo:vo + head_dim]            # (G, gs, hd)

        # scores, batched over the G groups -> (G, gs, gs), f32 acc on MXU
        s = jnp.einsum('gqd,gkd->gqk', q, k,
                       preferred_element_type=jnp.float32)

        # numerically-stable softmax; normalization deferred past attn @ v
        s = s - jnp.max(s, axis=-1, keepdims=True)
        p = jnp.exp(s)
        denom = jnp.sum(p, axis=-1, keepdims=True)           # (G, gs, 1)

        out_h = jnp.einsum('gqk,gkd->gqd', p.astype(v.dtype), v,
                           preferred_element_type=jnp.float32)  # (G, gs, hd)
        out_h = out_h * (1.0 / denom)
        head_outs.append(out_h)

    # (G, gs, C): re-assemble heads, then ONE projection matmul (contraction C)
    y = jnp.concatenate(head_outs, axis=-1)
    proj = jnp.einsum('gqc,cd->gqd', y.astype(wt_ref.dtype), wt_ref[...],
                      preferred_element_type=jnp.float32)
    proj = proj + bias_ref[...].astype(jnp.float32)
    o_ref[...] = proj.astype(o_ref.dtype)


@functools.partial(jax.jit, static_argnames=("num_heads", "category_size"))
def ac_msa(qkv, sim, logit_scale, proj_weight, proj_bias, *,
           num_heads=4, category_size=128):
    """qkv: (B, N, 3C); sim: (B, N, M); proj_weight: torch layout (C_out, C_in)."""
    b, n, c3 = qkv.shape
    c = c3 // 3
    head_dim = c // num_heads
    gs = min(n, category_size)
    ng = (n + gs - 1) // gs
    pad_n = ng * gs - n

    # ---------------- glue (plain JAX / XLA): category sort & shuffle --------
    tk_id = jnp.argmax(sim, axis=-1)                      # (B, N)
    sort_idx = jnp.argsort(tk_id, axis=-1)                # (B, N)
    inv_idx = jnp.argsort(sort_idx, axis=-1)              # inverse permutation
    shuffled = jnp.take_along_axis(qkv, sort_idx[..., None], axis=1)
    if pad_n > 0:                                          # reflect-pad tail
        tail = jnp.flip(shuffled[:, n - pad_n:n, :], axis=1)
        shuffled = jnp.concatenate([shuffled, tail], axis=1)
    n_groups = b * ng
    groups = shuffled.reshape(n_groups, gs, c3)            # (B*ng, gs, 3C)

    # clamp + exp of the learnable logit scale (matches torch)
    scale = jnp.exp(jnp.minimum(logit_scale, jnp.log(1.0 / 0.01)))
    scale = scale.reshape(1, 1).astype(jnp.float32)

    wt = proj_weight.T                                     # (C_in, C_out)
    bias2d = proj_bias.reshape(1, c)

    # groups processed per grid step (amortize per-step overhead, bigger DMAs)
    gps = next(g for g in range(min(8, n_groups), 0, -1) if n_groups % g == 0)
    n_steps = n_groups // gps

    kernel = functools.partial(_ac_msa_kernel,
                               num_heads=num_heads, head_dim=head_dim, c=c)

    itemsize = jnp.dtype(qkv.dtype).itemsize
    flops = n_groups * (4 * gs * gs * c + 2 * gs * c * c)
    bytes_accessed = (groups.size + n_groups * gs * c + c * c + c) * itemsize

    out = pl.pallas_call(
        kernel,
        out_shape=jax.ShapeDtypeStruct((n_groups, gs, c), qkv.dtype),
        grid_spec=pltpu.PrefetchScalarGridSpec(
            num_scalar_prefetch=0,
            grid=(n_steps,),
            in_specs=[
                pl.BlockSpec((gps, gs, c3), lambda i: (i, 0, 0)),  # qkv groups
                pl.BlockSpec((c, c), lambda i: (0, 0)),            # proj W^T
                pl.BlockSpec((1, c), lambda i: (0, 0)),            # proj bias
                pl.BlockSpec(memory_space=pltpu.MemorySpace.SMEM),  # scale
            ],
            out_specs=pl.BlockSpec((gps, gs, c), lambda i: (i, 0, 0)),
        ),
        compiler_params=pltpu.CompilerParams(
            dimension_semantics=("parallel",)),
        cost_estimate=pl.CostEstimate(
            flops=flops,
            transcendentals=n_groups * num_heads * gs * gs,
            bytes_accessed=bytes_accessed),
    )(groups, wt, bias2d, scale)

    # un-pad and un-shuffle (projection already applied in-kernel; it is
    # per-token so it commutes with the permutation).
    y = out.reshape(b, ng * gs, c)[:, :n, :]
    return jnp.take_along_axis(y, inv_idx[..., None], axis=1)


def reference(qkv, sim, logit_scale, proj_weight, proj_bias, *,
              num_heads, category_size):
    """Pure-JAX reference mirroring the PyTorch forward."""
    b, n, c3 = qkv.shape
    c = c3 // 3
    gs = min(n, category_size)
    ng = (n + gs - 1) // gs
    pad_n = ng * gs - n
    tk_id = jnp.argmax(sim, axis=-1)
    sort_idx = jnp.argsort(tk_id, axis=-1)
    inv_idx = jnp.argsort(sort_idx, axis=-1)
    shuffled = jnp.take_along_axis(qkv, sort_idx[..., None], axis=1)
    if pad_n > 0:
        tail = jnp.flip(shuffled[:, n - pad_n:n, :], axis=1)
        shuffled = jnp.concatenate([shuffled, tail], axis=1)
    y = shuffled.reshape(b, ng, gs, 3, num_heads, c // num_heads)
    y = jnp.transpose(y, (3, 0, 1, 4, 2, 5))       # (3, B, ng, H, gs, hd)
    q, k, v = y[0], y[1], y[2]
    attn = q @ jnp.swapaxes(k, -2, -1)
    scale = jnp.exp(jnp.minimum(logit_scale, jnp.log(1.0 / 0.01)))
    attn = attn * scale
    attn = jax.nn.softmax(attn, axis=-1)
    out = attn @ v                                  # (B, ng, H, gs, hd)
    out = jnp.transpose(out, (0, 1, 3, 2, 4)).reshape(b, ng * gs, c)[:, :n, :]
    out = jnp.take_along_axis(out, inv_idx[..., None], axis=1)
    return out @ proj_weight.T + proj_bias


if __name__ == "__main__":
    # Small shapes consistent with the module:
    # dim C=32, heads=4 (head_dim=8), H=W=16 -> N=256, num_tokens M=64,
    # category_size=128 -> gs=128, ng=2.
    B, C, H, W = 2, 32, 16, 16
    NUM_HEADS, NUM_TOKENS, CATEGORY_SIZE = 4, 64, 128
    N = H * W

    key = jax.random.PRNGKey(0)
    k1, k2, k3, k4 = jax.random.split(key, 4)

    qkv = jax.random.normal(k1, (B, N, 3 * C), dtype=jnp.float32)
    sim = jax.random.normal(k2, (B, N, NUM_TOKENS), dtype=jnp.float32)
    # Deterministic synthetic parameters (module defaults where applicable):
    logit_scale = jnp.log(10.0 * jnp.ones((1, 1), dtype=jnp.float32))
    proj_weight = 0.05 * jax.random.normal(k3, (C, C), dtype=jnp.float32)
    proj_bias = 0.01 * jax.random.normal(k4, (C,), dtype=jnp.float32)

    out = ac_msa(qkv, sim, logit_scale, proj_weight, proj_bias,
                 num_heads=NUM_HEADS, category_size=CATEGORY_SIZE)
    out = jax.block_until_ready(out)

    ref = reference(qkv, sim, logit_scale, proj_weight, proj_bias,
                    num_heads=NUM_HEADS, category_size=CATEGORY_SIZE)
    assert out.shape == (B, N, C), out.shape
    max_err = float(jnp.max(jnp.abs(out - ref)))
    assert jnp.allclose(out, ref, atol=1e-3, rtol=1e-3), max_err

    print("KERNEL_OK")
</pallas_src>

<mosaic_0001>
module attributes {stable_mosaic.version = 11 : i64} {
  func.func @_ac_msa_kernel(%arg0: i32, %arg1: memref<4x128x96xf32, #tpu.memory_space<vmem>>, %arg2: memref<32x32xf32, #tpu.memory_space<vmem>>, %arg3: memref<1x32xf32, #tpu.memory_space<vmem>>, %arg4: memref<1x1xf32, #tpu.memory_space<smem>>, %arg5: memref<4x128x32xf32, #tpu.memory_space<vmem>>) attributes {dimension_semantics = [#tpu.dimension_semantics<parallel>], iteration_bounds = array<i64: 1>, scalar_prefetch = 0 : i64, scratch_operands = 0 : i64, tpu.core_type = #tpu.core_type<tc>, window_params = [{transform_indices = @transform_0, window_bounds = array<i64: 4, 128, 96>}, {pipeline_mode = #tpu.pipeline_mode<synchronous>, transform_indices = @transform_1, window_bounds = array<i64: 32, 32>}, {pipeline_mode = #tpu.pipeline_mode<synchronous>, transform_indices = @transform_2, window_bounds = array<i64: 1, 32>}, {transform_indices = @transform_3, window_bounds = array<i64: 1, 1>}, {transform_indices = @transform_4, window_bounds = array<i64: 4, 128, 32>}]} {
    %c0 = arith.constant 0 : index
    %c0_0 = arith.constant 0 : index
    %0 = memref.load %arg4[%c0, %c0_0] : memref<1x1xf32, #tpu.memory_space<smem>>
    %c0_1 = arith.constant 0 : index
    %c0_2 = arith.constant 0 : index
    %c0_3 = arith.constant 0 : index
    %1 = vector.load %arg1[%c0_1, %c0_2, %c0_3] : memref<4x128x96xf32, #tpu.memory_space<vmem>>, vector<4x128x96xf32>
    %2 = vector.extract_strided_slice %1 {offsets = [0, 0, 0], sizes = [4, 128, 8], strides = [1, 1, 1]} : vector<4x128x96xf32> to vector<4x128x8xf32>
    %3 = vector.broadcast %0 : f32 to vector<4x128x8xf32>
    %4 = arith.mulf %2, %3 : vector<4x128x8xf32>
    %5 = vector.extract_strided_slice %1 {offsets = [0, 0, 32], sizes = [4, 128, 8], strides = [1, 1, 1]} : vector<4x128x96xf32> to vector<4x128x8xf32>
    %6 = vector.extract_strided_slice %1 {offsets = [0, 0, 64], sizes = [4, 128, 8], strides = [1, 1, 1]} : vector<4x128x96xf32> to vector<4x128x8xf32>
    "tpu.trace_start"() <{level = 10 : i32, message = "gqd,gkd->gqk"}> : () -> ()
    %cst = arith.constant dense<0.000000e+00> : vector<4x128x128xf32>
    %7 = tpu.matmul %4, %5, %cst {dimension_numbers = #tpu.dot_dimension_numbers<[2], [2], [1], [1], [0, 0, 0, 1, 1, 1], [0], [0]>} : vector<4x128x8xf32>, vector<4x128x8xf32>, vector<4x128x128xf32> -> vector<4x128x128xf32>
    "tpu.trace_stop"() : () -> ()
    %cst_4 = arith.constant dense<0xFF800000> : vector<4x128xf32>
    %8 = vector.multi_reduction <maximumf>, %7, %cst_4 [2] : vector<4x128x128xf32> to vector<4x128xf32>
    %9 = vector.shape_cast %8 : vector<4x128xf32> to vector<4x128x1xf32>
    %10 = vector.broadcast %9 : vector<4x128x1xf32> to vector<4x128x128xf32>
    %11 = arith.subf %7, %10 : vector<4x128x128xf32>
    %12 = math.exp %11 : vector<4x128x128xf32>
    %cst_5 = arith.constant dense<0.000000e+00> : vector<4x128xf32>
    %13 = vector.multi_reduction <add>, %12, %cst_5 [2] : vector<4x128x128xf32> to vector<4x128xf32>
    %14 = vector.shape_cast %13 : vector<4x128xf32> to vector<4x128x1xf32>
    "tpu.trace_start"() <{level = 10 : i32, message = "gqk,gkd->gqd"}> : () -> ()
    %cst_6 = arith.constant dense<0.000000e+00> : vector<4x128x8xf32>
    %15 = tpu.matmul %12, %6, %cst_6 {dimension_numbers = #tpu.dot_dimension_numbers<[2], [1], [1], [2], [0, 0, 0, 1, 1, 2], [0], [0]>} : vector<4x128x128xf32>, vector<4x128x8xf32>, vector<4x128x8xf32> -> vector<4x128x8xf32>
    "tpu.trace_stop"() : () -> ()
    %cst_7 = arith.constant 1.000000e+00 : f32
    %16 = vector.broadcast %cst_7 : f32 to vector<4x128x1xf32>
    %17 = arith.divf %16, %14 : vector<4x128x1xf32>
    %18 = vector.broadcast %17 : vector<4x128x1xf32> to vector<4x128x8xf32>
    %19 = arith.mulf %15, %18 : vector<4x128x8xf32>
    %20 = vector.extract_strided_slice %1 {offsets = [0, 0, 8], sizes = [4, 128, 8], strides = [1, 1, 1]} : vector<4x128x96xf32> to vector<4x128x8xf32>
    %21 = vector.broadcast %0 : f32 to vector<4x128x8xf32>
    %22 = arith.mulf %20, %21 : vector<4x128x8xf32>
    %23 = vector.extract_strided_slice %1 {offsets = [0, 0, 40], sizes = [4, 128, 8], strides = [1, 1, 1]} : vector<4x128x96xf32> to vector<4x128x8xf32>
    %24 = vector.extract_strided_slice %1 {offsets = [0, 0, 72], sizes = [4, 128, 8], strides = [1, 1, 1]} : vector<4x128x96xf32> to vector<4x128x8xf32>
    "tpu.trace_start"() <{level = 10 : i32, message = "gqd,gkd->gqk"}> : () -> ()
    %cst_8 = arith.constant dense<0.000000e+00> : vector<4x128x128xf32>
    %25 = tpu.matmul %22, %23, %cst_8 {dimension_numbers = #tpu.dot_dimension_numbers<[2], [2], [1], [1], [0, 0, 0, 1, 1, 1], [0], [0]>} : vector<4x128x8xf32>, vector<4x128x8xf32>, vector<4x128x128xf32> -> vector<4x128x128xf32>
    "tpu.trace_stop"() : () -> ()
    %cst_9 = arith.constant dense<0xFF800000> : vector<4x128xf32>
    %26 = vector.multi_reduction <maximumf>, %25, %cst_9 [2] : vector<4x128x128xf32> to vector<4x128xf32>
    %27 = vector.shape_cast %26 : vector<4x128xf32> to vector<4x128x1xf32>
    %28 = vector.broadcast %27 : vector<4x128x1xf32> to vector<4x128x128xf32>
    %29 = arith.subf %25, %28 : vector<4x128x128xf32>
    %30 = math.exp %29 : vector<4x128x128xf32>
    %cst_10 = arith.constant dense<0.000000e+00> : vector<4x128xf32>
    %31 = vector.multi_reduction <add>, %30, %cst_10 [2] : vector<4x128x128xf32> to vector<4x128xf32>
    %32 = vector.shape_cast %31 : vector<4x128xf32> to vector<4x128x1xf32>
    "tpu.trace_start"() <{level = 10 : i32, message = "gqk,gkd->gqd"}> : () -> ()
    %cst_11 = arith.constant dense<0.000000e+00> : vector<4x128x8xf32>
    %33 = tpu.matmul %30, %24, %cst_11 {dimension_numbers = #tpu.dot_dimension_numbers<[2], [1], [1], [2], [0, 0, 0, 1, 1, 2], [0], [0]>} : vector<4x128x128xf32>, vector<4x128x8xf32>, vector<4x128x8xf32> -> vector<4x128x8xf32>
    "tpu.trace_stop"() : () -> ()
    %cst_12 = arith.constant 1.000000e+00 : f32
    %34 = vector.broadcast %cst_12 : f32 to vector<4x128x1xf32>
    %35 = arith.divf %34, %32 : vector<4x128x1xf32>
    %36 = vector.broadcast %35 : vector<4x128x1xf32> to vector<4x128x8xf32>
    %37 = arith.mulf %33, %36 : vector<4x128x8xf32>
    %38 = vector.extract_strided_slice %1 {offsets = [0, 0, 16], sizes = [4, 128, 8], strides = [1, 1, 1]} : vector<4x128x96xf32> to vector<4x128x8xf32>
    %39 = vector.broadcast %0 : f32 to vector<4x128x8xf32>
    %40 = arith.mulf %38, %39 : vector<4x128x8xf32>
    %41 = vector.extract_strided_slice %1 {offsets = [0, 0, 48], sizes = [4, 128, 8], strides = [1, 1, 1]} : vector<4x128x96xf32> to vector<4x128x8xf32>
    %42 = vector.extract_strided_slice %1 {offsets = [0, 0, 80], sizes = [4, 128, 8], strides = [1, 1, 1]} : vector<4x128x96xf32> to vector<4x128x8xf32>
    "tpu.trace_start"() <{level = 10 : i32, message = "gqd,gkd->gqk"}> : () -> ()
    %cst_13 = arith.constant dense<0.000000e+00> : vector<4x128x128xf32>
    %43 = tpu.matmul %40, %41, %cst_13 {dimension_numbers = #tpu.dot_dimension_numbers<[2], [2], [1], [1], [0, 0, 0, 1, 1, 1], [0], [0]>} : vector<4x128x8xf32>, vector<4x128x8xf32>, vector<4x128x128xf32> -> vector<4x128x128xf32>
    "tpu.trace_stop"() : () -> ()
    %cst_14 = arith.constant dense<0xFF800000> : vector<4x128xf32>
    %44 = vector.multi_reduction <maximumf>, %43, %cst_14 [2] : vector<4x128x128xf32> to vector<4x128xf32>
    %45 = vector.shape_cast %44 : vector<4x128xf32> to vector<4x128x1xf32>
    %46 = vector.broadcast %45 : vector<4x128x1xf32> to vector<4x128x128xf32>
    %47 = arith.subf %43, %46 : vector<4x128x128xf32>
    %48 = math.exp %47 : vector<4x128x128xf32>
    %cst_15 = arith.constant dense<0.000000e+00> : vector<4x128xf32>
    %49 = vector.multi_reduction <add>, %48, %cst_15 [2] : vector<4x128x128xf32> to vector<4x128xf32>
    %50 = vector.shape_cast %49 : vector<4x128xf32> to vector<4x128x1xf32>
    "tpu.trace_start"() <{level = 10 : i32, message = "gqk,gkd->gqd"}> : () -> ()
    %cst_16 = arith.constant dense<0.000000e+00> : vector<4x128x8xf32>
    %51 = tpu.matmul %48, %42, %cst_16 {dimension_numbers = #tpu.dot_dimension_numbers<[2], [1], [1], [2], [0, 0, 0, 1, 1, 2], [0], [0]>} : vector<4x128x128xf32>, vector<4x128x8xf32>, vector<4x128x8xf32> -> vector<4x128x8xf32>
    "tpu.trace_stop"() : () -> ()
    %cst_17 = arith.constant 1.000000e+00 : f32
    %52 = vector.broadcast %cst_17 : f32 to vector<4x128x1xf32>
    %53 = arith.divf %52, %50 : vector<4x128x1xf32>
    %54 = vector.broadcast %53 : vector<4x128x1xf32> to vector<4x128x8xf32>
    %55 = arith.mulf %51, %54 : vector<4x128x8xf32>
    %56 = vector.extract_strided_slice %1 {offsets = [0, 0, 24], sizes = [4, 128, 8], strides = [1, 1, 1]} : vector<4x128x96xf32> to vector<4x128x8xf32>
    %57 = vector.broadcast %0 : f32 to vector<4x128x8xf32>
    %58 = arith.mulf %56, %57 : vector<4x128x8xf32>
    %59 = vector.extract_strided_slice %1 {offsets = [0, 0, 56], sizes = [4, 128, 8], strides = [1, 1, 1]} : vector<4x128x96xf32> to vector<4x128x8xf32>
    %60 = vector.extract_strided_slice %1 {offsets = [0, 0, 88], sizes = [4, 128, 8], strides = [1, 1, 1]} : vector<4x128x96xf32> to vector<4x128x8xf32>
    "tpu.trace_start"() <{level = 10 : i32, message = "gqd,gkd->gqk"}> : () -> ()
    %cst_18 = arith.constant dense<0.000000e+00> : vector<4x128x128xf32>
    %61 = tpu.matmul %58, %59, %cst_18 {dimension_numbers = #tpu.dot_dimension_numbers<[2], [2], [1], [1], [0, 0, 0, 1, 1, 1], [0], [0]>} : vector<4x128x8xf32>, vector<4x128x8xf32>, vector<4x128x128xf32> -> vector<4x128x128xf32>
    "tpu.trace_stop"() : () -> ()
    %cst_19 = arith.constant dense<0xFF800000> : vector<4x128xf32>
    %62 = vector.multi_reduction <maximumf>, %61, %cst_19 [2] : vector<4x128x128xf32> to vector<4x128xf32>
    %63 = vector.shape_cast %62 : vector<4x128xf32> to vector<4x128x1xf32>
    %64 = vector.broadcast %63 : vector<4x128x1xf32> to vector<4x128x128xf32>
    %65 = arith.subf %61, %64 : vector<4x128x128xf32>
    %66 = math.exp %65 : vector<4x128x128xf32>
    %cst_20 = arith.constant dense<0.000000e+00> : vector<4x128xf32>
    %67 = vector.multi_reduction <add>, %66, %cst_20 [2] : vector<4x128x128xf32> to vector<4x128xf32>
    %68 = vector.shape_cast %67 : vector<4x128xf32> to vector<4x128x1xf32>
    "tpu.trace_start"() <{level = 10 : i32, message = "gqk,gkd->gqd"}> : () -> ()
    %cst_21 = arith.constant dense<0.000000e+00> : vector<4x128x8xf32>
    %69 = tpu.matmul %66, %60, %cst_21 {dimension_numbers = #tpu.dot_dimension_numbers<[2], [1], [1], [2], [0, 0, 0, 1, 1, 2], [0], [0]>} : vector<4x128x128xf32>, vector<4x128x8xf32>, vector<4x128x8xf32> -> vector<4x128x8xf32>
    "tpu.trace_stop"() : () -> ()
    %cst_22 = arith.constant 1.000000e+00 : f32
    %70 = vector.broadcast %cst_22 : f32 to vector<4x128x1xf32>
    %71 = arith.divf %70, %68 : vector<4x128x1xf32>
    %72 = vector.broadcast %71 : vector<4x128x1xf32> to vector<4x128x8xf32>
    %73 = arith.mulf %69, %72 : vector<4x128x8xf32>
    %74 = tpu.concatenate %19, %37, %55, %73 in 2 : vector<4x128x8xf32>, vector<4x128x8xf32>, vector<4x128x8xf32>, vector<4x128x8xf32> -> vector<4x128x32xf32>
    %c0_23 = arith.constant 0 : index
    %c0_24 = arith.constant 0 : index
    %75 = vector.load %arg2[%c0_23, %c0_24] : memref<32x32xf32, #tpu.memory_space<vmem>>, vector<32x32xf32>
    "tpu.trace_start"() <{level = 10 : i32, message = "gqc,cd->gqd"}> : () -> ()
    %cst_25 = arith.constant dense<0.000000e+00> : vector<4x128x32xf32>
    %76 = tpu.matmul %74, %75, %cst_25 {dimension_numbers = #tpu.dot_dimension_numbers<[2], [0], [0, 1], [1], [0, 0, 0, 1, 1, 1], [], []>} : vector<4x128x32xf32>, vector<32x32xf32>, vector<4x128x32xf32> -> vector<4x128x32xf32>
    "tpu.trace_stop"() : () -> ()
    %c0_26 = arith.constant 0 : index
    %c0_27 = arith.constant 0 : index
    %77 = vector.load %arg3[%c0_26, %c0_27] : memref<1x32xf32, #tpu.memory_space<vmem>>, vector<1x32xf32>
    %78 = vector.shape_cast %77 : vector<1x32xf32> to vector<1x1x32xf32>
    %79 = vector.broadcast %78 : vector<1x1x32xf32> to vector<4x128x32xf32>
    %80 = arith.addf %76, %79 : vector<4x128x32xf32>
    %c0_28 = arith.constant 0 : index
    %c0_29 = arith.constant 0 : index
    %c0_30 = arith.constant 0 : index
    %81 = vector.load %arg5[%c0_28, %c0_29, %c0_30] : memref<4x128x32xf32, #tpu.memory_space<vmem>>, vector<4x128x32xf32>
    tpu.vector_store %arg5[%c0_28, %c0_29, %c0_30], %80 {strides = array<i32>} : memref<4x128x32xf32, #tpu.memory_space<vmem>>, vector<4x128x32xf32>,
    return
  }
  func.func @transform_0(%arg0: i32) -> (i32, i32, i32) {
    %c0_i32 = arith.constant 0 : i32
    %c0_i32_0 = arith.constant 0 : i32
    %c0_i32_1 = arith.constant 0 : i32
    return %arg0, %c0_i32, %c0_i32_0 : i32, i32, i32
  }
  func.func @transform_1(%arg0: i32) -> (i32, i32) {
    %c0_i32 = arith.constant 0 : i32
    %c0_i32_0 = arith.constant 0 : i32
    %c0_i32_1 = arith.constant 0 : i32
    return %c0_i32, %c0_i32_0 : i32, i32
  }
  func.func @transform_2(%arg0: i32) -> (i32, i32) {
    %c0_i32 = arith.constant 0 : i32
    %c0_i32_0 = arith.constant 0 : i32
    %c0_i32_1 = arith.constant 0 : i32
    return %c0_i32, %c0_i32_0 : i32, i32
  }
  func.func @transform_3(%arg0: i32) -> (i32, i32) {
    %c0_i32 = arith.constant 0 : i32
    %c0_i32_0 = arith.constant 0 : i32
    %c0_i32_1 = arith.constant 0 : i32
    return %c0_i32, %c0_i32_0 : i32, i32
  }
  func.func @transform_4(%arg0: i32) -> (i32, i32, i32) {
    %c0_i32 = arith.constant 0 : i32
    %c0_i32_0 = arith.constant 0 : i32
    %c0_i32_1 = arith.constant 0 : i32
    return %arg0, %c0_i32, %c0_i32_0 : i32, i32, i32
  }
}

</mosaic_0001>

<llo_original>
// kernel: ac_msa.1
$region0: #{ac_msa.1}
  #allocation0 [shape = 'u32[]', space=smem, size = 0x4, offset = 0x4, fixed_abs, tag = 'smem constant byte address 0x4 - core index']
  #allocation1 [shape = 'u32[72,128]{1,0:T(1,128)}', space=vmem, size = 0x9000, scoped, tag = 'internal scratch']
  #allocation2 [shape = 'f32[1,1]{1,0:T(1,128)S(6)}', space=smem, size = 0x200, scoped, tag = 'scoped memory for ac_msa.1']
  %s0 = inlined_call_operand.vmem [shape: f32[4,128,96], index: 0, kind: input, shape index: {}]
  %s1 = inlined_call_operand.vmem [shape: f32[32,32], index: 1, kind: input, shape index: {}]
  %s2 = inlined_call_operand.vmem [shape: f32[1,32], index: 2, kind: input, shape index: {}]
  %s3 = inlined_call_operand.<no memory space> [shape: f32[1,1], index: 3, kind: input, shape index: {}]
  %s4 = inlined_call_operand.vmem [shape: f32[4,128,32], index: 4, kind: output, shape index: {}]
  %s5 = sld [smem:[#allocation0]]
  $region26: #{ac_msa.1} parent=0
    _
  %s7 = ssub.s32 1, %s5
  %s8 = scalar_select 0, %s7, %s5
  %9 = sst [smem:[#allocation2]] %s3
  // Predicated region
  $region2: #{ac_msa.1} parent=0 // pred_check
    _
  $region3: #{ac_msa.1} parent=0 // pred_check_branch
    %11 = sbr.rel (0) target = $region5
  $region4: #{ac_msa.1} parent=0 // pred_region
    _
  $region5: #{ac_msa.1} parent=0 // pred_fallthru
    _
  // Predicated region
  $region6: #{ac_msa.1} parent=0 // pred_check
    _
  $region7: #{ac_msa.1} parent=0 // pred_check_branch
    %13 = sbr.rel (0) target = $region9
  $region8: #{ac_msa.1} parent=0 // pred_region
    _
  $region9: #{ac_msa.1} parent=0 // pred_fallthru
    _
  // Predicated region
  $region10: #{ac_msa.1} parent=0 // pred_check
    _
  $region11: #{ac_msa.1} parent=0 // pred_check_branch
    %15 = sbr.rel (0) target = $region13
  $region12: #{ac_msa.1} parent=0 // pred_region
    _
  $region13: #{ac_msa.1} parent=0 // pred_fallthru
    _
  // Predicated region
  $region14: #{ac_msa.1} parent=0 // pred_check
    _
  $region15: #{ac_msa.1} parent=0 // pred_check_branch
    %17 = sbr.rel (0) target = $region17
  $region16: #{ac_msa.1} parent=0 // pred_region
    _
  $region17: #{ac_msa.1} parent=0 // pred_fallthru
    _
  %s18 = sld [smem:[#allocation2]]
  %v19 = vld [vmem:[%s0] sm:$0xff]
  %v20 = vld [vmem:[%s0 + $0x8] sm:$0xff]
  %v21 = vld [vmem:[%s0 + $0x10] sm:$0xff]
  %v22 = vld [vmem:[%s0 + $0x18] sm:$0xff]
  %v23 = vld [vmem:[%s0 + $0x20] sm:$0xff]
  %v24 = vld [vmem:[%s0 + $0x28] sm:$0xff]
  %v25 = vld [vmem:[%s0 + $0x30] sm:$0xff]
  %v26 = vld [vmem:[%s0 + $0x38] sm:$0xff]
  %v27 = vld [vmem:[%s0 + $0x40] sm:$0xff]
  %v28 = vld [vmem:[%s0 + $0x48] sm:$0xff]
  %v29 = vld [vmem:[%s0 + $0x50] sm:$0xff]
  %v30 = vld [vmem:[%s0 + $0x58] sm:$0xff]
  %v31 = vld [vmem:[%s0 + $0x60] sm:$0xff]
  %v32 = vld [vmem:[%s0 + $0x68] sm:$0xff]
  %v33 = vld [vmem:[%s0 + $0x70] sm:$0xff]
  %v34 = vld [vmem:[%s0 + $0x78] sm:$0xff]
  %v35 = vld [vmem:[%s0 + $0x80] sm:$0xff]
  %v36 = vld [vmem:[%s0 + $0x88] sm:$0xff]
  %v37 = vld [vmem:[%s0 + $0x90] sm:$0xff]
  %v38 = vld [vmem:[%s0 + $0x98] sm:$0xff]
  %v39 = vld [vmem:[%s0 + $0xa0] sm:$0xff]
  %v40 = vld [vmem:[%s0 + $0xa8] sm:$0xff]
  %v41 = vld [vmem:[%s0 + $0xb0] sm:$0xff]
  %v42 = vld [vmem:[%s0 + $0xb8] sm:$0xff]
  %v43 = vld [vmem:[%s0 + $0xc0] sm:$0xff]
  %v44 = vld [vmem:[%s0 + $0xc8] sm:$0xff]
  %v45 = vld [vmem:[%s0 + $0xd0] sm:$0xff]
  %v46 = vld [vmem:[%s0 + $0xd8] sm:$0xff]
  %v47 = vld [vmem:[%s0 + $0xe0] sm:$0xff]
  %v48 = vld [vmem:[%s0 + $0xe8] sm:$0xff]
  %v49 = vld [vmem:[%s0 + $0xf0] sm:$0xff]
  %v50 = vld [vmem:[%s0 + $0xf8] sm:$0xff]
  %v51 = vld [vmem:[%s0 + $0x100] sm:$0xff]
  %v52 = vld [vmem:[%s0 + $0x108] sm:$0xff]
  %v53 = vld [vmem:[%s0 + $0x110] sm:$0xff]
  %v54 = vld [vmem:[%s0 + $0x118] sm:$0xff]
  %v55 = vld [vmem:[%s0 + $0x120] sm:$0xff]
  %v56 = vld [vmem:[%s0 + $0x128] sm:$0xff]
  %v57 = vld [vmem:[%s0 + $0x130] sm:$0xff]
  %v58 = vld [vmem:[%s0 + $0x138] sm:$0xff]
  %v59 = vld [vmem:[%s0 + $0x140] sm:$0xff]
  %v60 = vld [vmem:[%s0 + $0x148] sm:$0xff]
  %v61 = vld [vmem:[%s0 + $0x150] sm:$0xff]
  %v62 = vld [vmem:[%s0 + $0x158] sm:$0xff]
  %v63 = vld [vmem:[%s0 + $0x160] sm:$0xff]
  %v64 = vld [vmem:[%s0 + $0x168] sm:$0xff]
  %v65 = vld [vmem:[%s0 + $0x170] sm:$0xff]
  %v66 = vld [vmem:[%s0 + $0x178] sm:$0xff]
  %v67 = vld [vmem:[%s0 + $0x180] sm:$0xff]
  %v68 = vld [vmem:[%s0 + $0x188] sm:$0xff]
  %v69 = vld [vmem:[%s0 + $0x190] sm:$0xff]
  %v70 = vld [vmem:[%s0 + $0x198] sm:$0xff]
  %v71 = vld [vmem:[%s0 + $0x1a0] sm:$0xff]
  %v72 = vld [vmem:[%s0 + $0x1a8] sm:$0xff]
  %v73 = vld [vmem:[%s0 + $0x1b0] sm:$0xff]
  %v74 = vld [vmem:[%s0 + $0x1b8] sm:$0xff]
  %v75 = vld [vmem:[%s0 + $0x1c0] sm:$0xff]
  %v76 = vld [vmem:[%s0 + $0x1c8] sm:$0xff]
  %v77 = vld [vmem:[%s0 + $0x1d0] sm:$0xff]
  %v78 = vld [vmem:[%s0 + $0x1d8] sm:$0xff]
  %v79 = vld [vmem:[%s0 + $0x1e0] sm:$0xff]
  %v80 = vld [vmem:[%s0 + $0x1e8] sm:$0xff]
  %v81 = vld [vmem:[%s0 + $0x1f0] sm:$0xff]
  %v82 = vld [vmem:[%s0 + $0x1f8] sm:$0xff]
  %v83 = vstv %s18
  %v84 = vmul.f32 %v19, %v83
  %v85 = vmul.f32 %v20, %v83
  %v86 = vmul.f32 %v21, %v83
  %v87 = vmul.f32 %v22, %v83
  %v88 = vmul.f32 %v23, %v83
  %v89 = vmul.f32 %v24, %v83
  %v90 = vmul.f32 %v25, %v83
  %v91 = vmul.f32 %v26, %v83
  %v92 = vmul.f32 %v27, %v83
  %v93 = vmul.f32 %v28, %v83
  %v94 = vmul.f32 %v29, %v83
  %v95 = vmul.f32 %v30, %v83
  %v96 = vmul.f32 %v31, %v83
  %v97 = vmul.f32 %v32, %v83
  %v98 = vmul.f32 %v33, %v83
  %v99 = vmul.f32 %v34, %v83
  %v100 = vmul.f32 %v35, %v83
  %v101 = vmul.f32 %v36, %v83
  %v102 = vmul.f32 %v37, %v83
  %v103 = vmul.f32 %v38, %v83
  %v104 = vmul.f32 %v39, %v83
  %v105 = vmul.f32 %v40, %v83
  %v106 = vmul.f32 %v41, %v83
  %v107 = vmul.f32 %v42, %v83
  %v108 = vmul.f32 %v43, %v83
  %v109 = vmul.f32 %v44, %v83
  %v110 = vmul.f32 %v45, %v83
  %v111 = vmul.f32 %v46, %v83
  %v112 = vmul.f32 %v47, %v83
  %v113 = vmul.f32 %v48, %v83
  %v114 = vmul.f32 %v49, %v83
  %v115 = vmul.f32 %v50, %v83
  %v116 = vmul.f32 %v51, %v83
  %v117 = vmul.f32 %v52, %v83
  %v118 = vmul.f32 %v53, %v83
  %v119 = vmul.f32 %v54, %v83
  %v120 = vmul.f32 %v55, %v83
  %v121 = vmul.f32 %v56, %v83
  %v122 = vmul.f32 %v57, %v83
  %v123 = vmul.f32 %v58, %v83
  %v124 = vmul.f32 %v59, %v83
  %v125 = vmul.f32 %v60, %v83
  %v126 = vmul.f32 %v61, %v83
  %v127 = vmul.f32 %v62, %v83
  %v128 = vmul.f32 %v63, %v83
  %v129 = vmul.f32 %v64, %v83
  %v130 = vmul.f32 %v65, %v83
  %v131 = vmul.f32 %v66, %v83
  %v132 = vmul.f32 %v67, %v83
  %v133 = vmul.f32 %v68, %v83
  %v134 = vmul.f32 %v69, %v83
  %v135 = vmul.f32 %v70, %v83
  %v136 = vmul.f32 %v71, %v83
  %v137 = vmul.f32 %v72, %v83
  %v138 = vmul.f32 %v73, %v83
  %v139 = vmul.f32 %v74, %v83
  %v140 = vmul.f32 %v75, %v83
  %v141 = vmul.f32 %v76, %v83
  %v142 = vmul.f32 %v77, %v83
  %v143 = vmul.f32 %v78, %v83
  %v144 = vmul.f32 %v79, %v83
  %v145 = vmul.f32 %v80, %v83
  %v146 = vmul.f32 %v81, %v83
  %v147 = vmul.f32 %v82, %v83
  %164 = vrot.lane.b32.xlu0 %v19, 96
  %v165 = vpop.permute.xlu0 %164
  %166 = vrot.lane.b32.xlu0 %v20, 96
  %v167 = vpop.permute.xlu0 %166
  %168 = vrot.lane.b32.xlu0 %v21, 96
  %v169 = vpop.permute.xlu0 %168
  %170 = vrot.lane.b32.xlu0 %v22, 96
  %v171 = vpop.permute.xlu0 %170
  %172 = vrot.lane.b32.xlu0 %v23, 96
  %v173 = vpop.permute.xlu0 %172
  %174 = vrot.lane.b32.xlu0 %v24, 96
  %v175 = vpop.permute.xlu0 %174
  %176 = vrot.lane.b32.xlu0 %v25, 96
  %v177 = vpop.permute.xlu0 %176
  %178 = vrot.lane.b32.xlu0 %v26, 96
  %v179 = vpop.permute.xlu0 %178
  %180 = vrot.lane.b32.xlu0 %v27, 96
  %v181 = vpop.permute.xlu0 %180
  %182 = vrot.lane.b32.xlu0 %v28, 96
  %v183 = vpop.permute.xlu0 %182
  %184 = vrot.lane.b32.xlu0 %v29, 96
  %v185 = vpop.permute.xlu0 %184
  %186 = vrot.lane.b32.xlu0 %v30, 96
  %v187 = vpop.permute.xlu0 %186
  %188 = vrot.lane.b32.xlu0 %v31, 96
  %v189 = vpop.permute.xlu0 %188
  %190 = vrot.lane.b32.xlu0 %v32, 96
  %v191 = vpop.permute.xlu0 %190
  %192 = vrot.lane.b32.xlu0 %v33, 96
  %v193 = vpop.permute.xlu0 %192
  %194 = vrot.lane.b32.xlu0 %v34, 96
  %v195 = vpop.permute.xlu0 %194
  %vm196 = vcmask 64512
  %v198 = vsel %vm196, %v84, 0
  %v201 = vsel %vm196, %v85, 0
  %v204 = vsel %vm196, %v86, 0
  %v207 = vsel %vm196, %v87, 0
  %v210 = vsel %vm196, %v88, 0
  %v213 = vsel %vm196, %v89, 0
  %v216 = vsel %vm196, %v90, 0
  %v219 = vsel %vm196, %v91, 0
  %v222 = vsel %vm196, %v92, 0
  %v225 = vsel %vm196, %v93, 0
  %v228 = vsel %vm196, %v94, 0
  %v231 = vsel %vm196, %v95, 0
  %v234 = vsel %vm196, %v96, 0
  %v237 = vsel %vm196, %v97, 0
  %v240 = vsel %vm196, %v98, 0
  %v243 = vsel %vm196, %v99, 0
  %v245 = vsel %vm196, %v165, 0
  %v247 = vsel %vm196, %v167, 0
  %v249 = vsel %vm196, %v169, 0
  %v251 = vsel %vm196, %v171, 0
  %v253 = vsel %vm196, %v173, 0
  %v255 = vsel %vm196, %v175, 0
  %v257 = vsel %vm196, %v177, 0
  %v259 = vsel %vm196, %v179, 0
  %v261 = vsel %vm196, %v181, 0
  %v263 = vsel %vm196, %v183, 0
  %v265 = vsel %vm196, %v185, 0
  %v267 = vsel %vm196, %v187, 0
  %v269 = vsel %vm196, %v189, 0
  %v271 = vsel %vm196, %v191, 0
  %v273 = vsel %vm196, %v193, 0
  %v275 = vsel %vm196, %v195, 0
  %277 = vmatpush.xpose.msra.mxu0 %v275
  %278 = vmatpush.xpose.msra.mxu0 %v273
  %279 = vmatpush.xpose.msra.mxu0 %v271
  %280 = vmatpush.xpose.msra.mxu0 %v269
  %281 = vmatpush.xpose.msra.mxu0 %v267
  %282 = vmatpush.xpose.msra.mxu0 %v265
  %283 = vmatpush.xpose.msra.mxu0 %v263
  %284 = vmatpush.xpose.msra.mxu0 %v261
  %285 = vmatpush.xpose.msra.mxu0 %v259
  %286 = vmatpush.xpose.msra.mxu0 %v257
  %287 = vmatpush.xpose.msra.mxu0 %v255
  %288 = vmatpush.xpose.msra.mxu0 %v253
  %289 = vmatpush.xpose.msra.mxu0 %v251
  %290 = vmatpush.xpose.msra.mxu0 %v249
  %291 = vmatpush.xpose.msra.mxu0 %v247
  %292 = vmatpush.xpose.msra.mxu0 %v245
  %293 = vmatmul.f32.gmra.mxu0 %v198
  %v294 = vpop.f32.mrf.mxu0
  %v295 = vadd.f32 0.0, %v294
  %296 = vmatmul.f32.gmra.mxu0 %v201
  %v297 = vpop.f32.mrf.mxu0
  %v298 = vadd.f32 0.0, %v297
  %299 = vmatmul.f32.gmra.mxu0 %v204
  %v300 = vpop.f32.mrf.mxu0
  %v301 = vadd.f32 0.0, %v300
  %302 = vmatmul.f32.gmra.mxu0 %v207
  %v303 = vpop.f32.mrf.mxu0
  %v304 = vadd.f32 0.0, %v303
  %305 = vmatmul.f32.gmra.mxu0 %v210
  %v306 = vpop.f32.mrf.mxu0
  %v307 = vadd.f32 0.0, %v306
  %308 = vmatmul.f32.gmra.mxu0 %v213
  %v309 = vpop.f32.mrf.mxu0
  %v310 = vadd.f32 0.0, %v309
  %311 = vmatmul.f32.gmra.mxu0 %v216
  %v312 = vpop.f32.mrf.mxu0
  %v313 = vadd.f32 0.0, %v312
  %314 = vmatmul.f32.gmra.mxu0 %v219
  %v315 = vpop.f32.mrf.mxu0
  %v316 = vadd.f32 0.0, %v315
  %317 = vmatmul.f32.gmra.mxu0 %v222
  %v318 = vpop.f32.mrf.mxu0
  %v319 = vadd.f32 0.0, %v318
  %320 = vmatmul.f32.gmra.mxu0 %v225
  %v321 = vpop.f32.mrf.mxu0
  %v322 = vadd.f32 0.0, %v321
  %323 = vmatmul.f32.gmra.mxu0 %v228
  %v324 = vpop.f32.mrf.mxu0
  %v325 = vadd.f32 0.0, %v324
  %326 = vmatmul.f32.gmra.mxu0 %v231
  %v327 = vpop.f32.mrf.mxu0
  %v328 = vadd.f32 0.0, %v327
  %329 = vmatmul.f32.gmra.mxu0 %v234
  %v330 = vpop.f32.mrf.mxu0
  %v331 = vadd.f32 0.0, %v330
  %332 = vmatmul.f32.gmra.mxu0 %v237
  %v333 = vpop.f32.mrf.mxu0
  %v334 = vadd.f32 0.0, %v333
  %335 = vmatmul.f32.gmra.mxu0 %v240
  %v336 = vpop.f32.mrf.mxu0
  %v337 = vadd.f32 0.0, %v336
  %338 = vmatmul.f32.gmra.mxu0 %v243
  %v339 = vpop.f32.mrf.mxu0
  %v340 = vadd.f32 0.0, %v339
  %341 = vdwg.mxu0
  %358 = vrot.lane.b32.xlu0 %v35, 96
  %v359 = vpop.permute.xlu0 %358
  %360 = vrot.lane.b32.xlu0 %v36, 96
  %v361 = vpop.permute.xlu0 %360
  %362 = vrot.lane.b32.xlu0 %v37, 96
  %v363 = vpop.permute.xlu0 %362
  %364 = vrot.lane.b32.xlu0 %v38, 96
  %v365 = vpop.permute.xlu0 %364
  %366 = vrot.lane.b32.xlu0 %v39, 96
  %v367 = vpop.permute.xlu0 %366
  %368 = vrot.lane.b32.xlu0 %v40, 96
  %v369 = vpop.permute.xlu0 %368
  %370 = vrot.lane.b32.xlu0 %v41, 96
  %v371 = vpop.permute.xlu0 %370
  %372 = vrot.lane.b32.xlu0 %v42, 96
  %v373 = vpop.permute.xlu0 %372
  %374 = vrot.lane.b32.xlu0 %v43, 96
  %v375 = vpop.permute.xlu0 %374
  %376 = vrot.lane.b32.xlu0 %v44, 96
  %v377 = vpop.permute.xlu0 %376
  %378 = vrot.lane.b32.xlu0 %v45, 96
  %v379 = vpop.permute.xlu0 %378
  %380 = vrot.lane.b32.xlu0 %v46, 96
  %v381 = vpop.permute.xlu0 %380
  %382 = vrot.lane.b32.xlu0 %v47, 96
  %v383 = vpop.permute.xlu0 %382
  %384 = vrot.lane.b32.xlu0 %v48, 96
  %v385 = vpop.permute.xlu0 %384
  %386 = vrot.lane.b32.xlu0 %v49, 96
  %v387 = vpop.permute.xlu0 %386
  %388 = vrot.lane.b32.xlu0 %v50, 96
  %v389 = vpop.permute.xlu0 %388
  %v391 = vsel %vm196, %v100, 0
  %v394 = vsel %vm196, %v101, 0
  %v397 = vsel %vm196, %v102, 0
  %v400 = vsel %vm196, %v103, 0
  %v403 = vsel %vm196, %v104, 0
  %v406 = vsel %vm196, %v105, 0
  %v409 = vsel %vm196, %v106, 0
  %v412 = vsel %vm196, %v107, 0
  %v415 = vsel %vm196, %v108, 0
  %v418 = vsel %vm196, %v109, 0
  %v421 = vsel %vm196, %v110, 0
  %v424 = vsel %vm196, %v111, 0
  %v427 = vsel %vm196, %v112, 0
  %v430 = vsel %vm196, %v113, 0
  %v433 = vsel %vm196, %v114, 0
  %v436 = vsel %vm196, %v115, 0
  %v438 = vsel %vm196, %v359, 0
  %v440 = vsel %vm196, %v361, 0
  %v442 = vsel %vm196, %v363, 0
  %v444 = vsel %vm196, %v365, 0
  %v446 = vsel %vm196, %v367, 0
  %v448 = vsel %vm196, %v369, 0
  %v450 = vsel %vm196, %v371, 0
  %v452 = vsel %vm196, %v373, 0
  %v454 = vsel %vm196, %v375, 0
  %v456 = vsel %vm196, %v377, 0
  %v458 = vsel %vm196, %v379, 0
  %v460 = vsel %vm196, %v381, 0
  %v462 = vsel %vm196, %v383, 0
  %v464 = vsel %vm196, %v385, 0
  %v466 = vsel %vm196, %v387, 0
  %v468 = vsel %vm196, %v389, 0
  %470 = vmatpush.xpose.msra.mxu0 %v468
  %471 = vmatpush.xpose.msra.mxu0 %v466
  %472 = vmatpush.xpose.msra.mxu0 %v464
  %473 = vmatpush.xpose.msra.mxu0 %v462
  %474 = vmatpush.xpose.msra.mxu0 %v460
  %475 = vmatpush.xpose.msra.mxu0 %v458
  %476 = vmatpush.xpose.msra.mxu0 %v456
  %477 = vmatpush.xpose.msra.mxu0 %v454
  %478 = vmatpush.xpose.msra.mxu0 %v452
  %479 = vmatpush.xpose.msra.mxu0 %v450
  %480 = vmatpush.xpose.msra.mxu0 %v448
  %481 = vmatpush.xpose.msra.mxu0 %v446
  %482 = vmatpush.xpose.msra.mxu0 %v444
  %483 = vmatpush.xpose.msra.mxu0 %v442
  %484 = vmatpush.xpose.msra.mxu0 %v440
  %485 = vmatpush.xpose.msra.mxu0 %v438
  %486 = vmatmul.f32.gmra.mxu0 %v391
  %v487 = vpop.f32.mrf.mxu0
  %v488 = vadd.f32 0.0, %v487
  %489 = vmatmul.f32.gmra.mxu0 %v394
  %v490 = vpop.f32.mrf.mxu0
  %v491 = vadd.f32 0.0, %v490
  %492 = vmatmul.f32.gmra.mxu0 %v397
  %v493 = vpop.f32.mrf.mxu0
  %v494 = vadd.f32 0.0, %v493
  %495 = vmatmul.f32.gmra.mxu0 %v400
  %v496 = vpop.f32.mrf.mxu0
  %v497 = vadd.f32 0.0, %v496
  %498 = vmatmul.f32.gmra.mxu0 %v403
  %v499 = vpop.f32.mrf.mxu0
  %v500 = vadd.f32 0.0, %v499
  %501 = vmatmul.f32.gmra.mxu0 %v406
  %v502 = vpop.f32.mrf.mxu0
  %v503 = vadd.f32 0.0, %v502
  %504 = vmatmul.f32.gmra.mxu0 %v409
  %v505 = vpop.f32.mrf.mxu0
  %v506 = vadd.f32 0.0, %v505
  %507 = vmatmul.f32.gmra.mxu0 %v412
  %v508 = vpop.f32.mrf.mxu0
  %v509 = vadd.f32 0.0, %v508
  %510 = vmatmul.f32.gmra.mxu0 %v415
  %v511 = vpop.f32.mrf.mxu0
  %v512 = vadd.f32 0.0, %v511
  %513 = vmatmul.f32.gmra.mxu0 %v418
  %v514 = vpop.f32.mrf.mxu0
  %v515 = vadd.f32 0.0, %v514
  %516 = vmatmul.f32.gmra.mxu0 %v421
  %v517 = vpop.f32.mrf.mxu0
  %v518 = vadd.f32 0.0, %v517
  %519 = vmatmul.f32.gmra.mxu0 %v424
  %v520 = vpop.f32.mrf.mxu0
  %v521 = vadd.f32 0.0, %v520
  %522 = vmatmul.f32.gmra.mxu0 %v427
  %v523 = vpop.f32.mrf.mxu0
  %v524 = vadd.f32 0.0, %v523
  %525 = vmatmul.f32.gmra.mxu0 %v430
  %v526 = vpop.f32.mrf.mxu0
  %v527 = vadd.f32 0.0, %v526
  %528 = vmatmul.f32.gmra.mxu0 %v433
  %v529 = vpop.f32.mrf.mxu0
  %v530 = vadd.f32 0.0, %v529
  %531 = vmatmul.f32.gmra.mxu0 %v436
  %v532 = vpop.f32.mrf.mxu0
  %v533 = vadd.f32 0.0, %v532
  %534 = vdwg.mxu0
  %551 = vrot.lane.b32.xlu0 %v51, 96
  %v552 = vpop.permute.xlu0 %551
  %553 = vrot.lane.b32.xlu0 %v52, 96
  %v554 = vpop.permute.xlu0 %553
  %555 = vrot.lane.b32.xlu0 %v53, 96
  %v556 = vpop.permute.xlu0 %555
  %557 = vrot.lane.b32.xlu0 %v54, 96
  %v558 = vpop.permute.xlu0 %557
  %559 = vrot.lane.b32.xlu0 %v55, 96
  %v560 = vpop.permute.xlu0 %559
  %561 = vrot.lane.b32.xlu0 %v56, 96
  %v562 = vpop.permute.xlu0 %561
  %563 = vrot.lane.b32.xlu0 %v57, 96
  %v564 = vpop.permute.xlu0 %563
  %565 = vrot.lane.b32.xlu0 %v58, 96
  %v566 = vpop.permute.xlu0 %565
  %567 = vrot.lane.b32.xlu0 %v59, 96
  %v568 = vpop.permute.xlu0 %567
  %569 = vrot.lane.b32.xlu0 %v60, 96
  %v570 = vpop.permute.xlu0 %569
  %571 = vrot.lane.b32.xlu0 %v61, 96
  %v572 = vpop.permute.xlu0 %571
  %573 = vrot.lane.b32.xlu0 %v62, 96
  %v574 = vpop.permute.xlu0 %573
  %575 = vrot.lane.b32.xlu0 %v63, 96
  %v576 = vpop.permute.xlu0 %575
  %577 = vrot.lane.b32.xlu0 %v64, 96
  %v578 = vpop.permute.xlu0 %577
  %579 = vrot.lane.b32.xlu0 %v65, 96
  %v580 = vpop.permute.xlu0 %579
  %581 = vrot.lane.b32.xlu0 %v66, 96
  %v582 = vpop.permute.xlu0 %581
  %v584 = vsel %vm196, %v116, 0
  %v587 = vsel %vm196, %v117, 0
  %v590 = vsel %vm196, %v118, 0
  %v593 = vsel %vm196, %v119, 0
  %v596 = vsel %vm196, %v120, 0
  %v599 = vsel %vm196, %v121, 0
  %v602 = vsel %vm196, %v122, 0
  %v605 = vsel %vm196, %v123, 0
  %v608 = vsel %vm196, %v124, 0
  %v611 = vsel %vm196, %v125, 0
  %v614 = vsel %vm196, %v126, 0
  %v617 = vsel %vm196, %v127, 0
  %v620 = vsel %vm196, %v128, 0
  %v623 = vsel %vm196, %v129, 0
  %v626 = vsel %vm196, %v130, 0
  %v629 = vsel %vm196, %v131, 0
  %v631 = vsel %vm196, %v552, 0
  %v633 = vsel %vm196, %v554, 0
  %v635 = vsel %vm196, %v556, 0
  %v637 = vsel %vm196, %v558, 0
  %v639 = vsel %vm196, %v560, 0
  %v641 = vsel %vm196, %v562, 0
  %v643 = vsel %vm196, %v564, 0
  %v645 = vsel %vm196, %v566, 0
  %v647 = vsel %vm196, %v568, 0
  %v649 = vsel %vm196, %v570, 0
  %v651 = vsel %vm196, %v572, 0
  %v653 = vsel %vm196, %v574, 0
  %v655 = vsel %vm196, %v576, 0
  %v657 = vsel %vm196, %v578, 0
  %v659 = vsel %vm196, %v580, 0
  %v661 = vsel %vm196, %v582, 0
  %663 = vmatpush.xpose.msra.mxu0 %v661
  %664 = vmatpush.xpose.msra.mxu0 %v659
  %665 = vmatpush.xpose.msra.mxu0 %v657
  %666 = vmatpush.xpose.msra.mxu0 %v655
  %667 = vmatpush.xpose.msra.mxu0 %v653
  %668 = vmatpush.xpose.msra.mxu0 %v651
  %669 = vmatpush.xpose.msra.mxu0 %v649
  %670 = vmatpush.xpose.msra.mxu0 %v647
  %671 = vmatpush.xpose.msra.mxu0 %v645
  %672 = vmatpush.xpose.msra.mxu0 %v643
  %673 = vmatpush.xpose.msra.mxu0 %v641
  %674 = vmatpush.xpose.msra.mxu0 %v639
  %675 = vmatpush.xpose.msra.mxu0 %v637
  %676 = vmatpush.xpose.msra.mxu0 %v635
  %677 = vmatpush.xpose.msra.mxu0 %v633
  %678 = vmatpush.xpose.msra.mxu0 %v631
  %679 = vmatmul.f32.gmra.mxu0 %v584
  %v680 = vpop.f32.mrf.mxu0
  %v681 = vadd.f32 0.0, %v680
  %682 = vmatmul.f32.gmra.mxu0 %v587
  %v683 = vpop.f32.mrf.mxu0
  %v684 = vadd.f32 0.0, %v683
  %685 = vmatmul.f32.gmra.mxu0 %v590
  %v686 = vpop.f32.mrf.mxu0
  %v687 = vadd.f32 0.0, %v686
  %688 = vmatmul.f32.gmra.mxu0 %v593
  %v689 = vpop.f32.mrf.mxu0
  %v690 = vadd.f32 0.0, %v689
  %691 = vmatmul.f32.gmra.mxu0 %v596
  %v692 = vpop.f32.mrf.mxu0
  %v693 = vadd.f32 0.0, %v692
  %694 = vmatmul.f32.gmra.mxu0 %v599
  %v695 = vpop.f32.mrf.mxu0
  %v696 = vadd.f32 0.0, %v695
  %697 = vmatmul.f32.gmra.mxu0 %v602
  %v698 = vpop.f32.mrf.mxu0
  %v699 = vadd.f32 0.0, %v698
  %700 = vmatmul.f32.gmra.mxu0 %v605
  %v701 = vpop.f32.mrf.mxu0
  %v702 = vadd.f32 0.0, %v701
  %703 = vmatmul.f32.gmra.mxu0 %v608
  %v704 = vpop.f32.mrf.mxu0
  %v705 = vadd.f32 0.0, %v704
  %706 = vmatmul.f32.gmra.mxu0 %v611
  %v707 = vpop.f32.mrf.mxu0
  %v708 = vadd.f32 0.0, %v707
  %709 = vmatmul.f32.gmra.mxu0 %v614
  %v710 = vpop.f32.mrf.mxu0
  %v711 = vadd.f32 0.0, %v710
  %712 = vmatmul.f32.gmra.mxu0 %v617
  %v713 = vpop.f32.mrf.mxu0
  %v714 = vadd.f32 0.0, %v713
  %715 = vmatmul.f32.gmra.mxu0 %v620
  %v716 = vpop.f32.mrf.mxu0
  %v717 = vadd.f32 0.0, %v716
  %718 = vmatmul.f32.gmra.mxu0 %v623
  %v719 = vpop.f32.mrf.mxu0
  %v720 = vadd.f32 0.0, %v719
  %721 = vmatmul.f32.gmra.mxu0 %v626
  %v722 = vpop.f32.mrf.mxu0
  %v723 = vadd.f32 0.0, %v722
  %724 = vmatmul.f32.gmra.mxu0 %v629
  %v725 = vpop.f32.mrf.mxu0
  %v726 = vadd.f32 0.0, %v725
  %727 = vdwg.mxu0
  %744 = vrot.lane.b32.xlu0 %v67, 96
  %v745 = vpop.permute.xlu0 %744
  %746 = vrot.lane.b32.xlu0 %v68, 96
  %v747 = vpop.permute.xlu0 %746
  %748 = vrot.lane.b32.xlu0 %v69, 96
  %v749 = vpop.permute.xlu0 %748
  %750 = vrot.lane.b32.xlu0 %v70, 96
  %v751 = vpop.permute.xlu0 %750
  %752 = vrot.lane.b32.xlu0 %v71, 96
  %v753 = vpop.permute.xlu0 %752
  %754 = vrot.lane.b32.xlu0 %v72, 96
  %v755 = vpop.permute.xlu0 %754
  %756 = vrot.lane.b32.xlu0 %v73, 96
  %v757 = vpop.permute.xlu0 %756
  %758 = vrot.lane.b32.xlu0 %v74, 96
  %v759 = vpop.permute.xlu0 %758
  %760 = vrot.lane.b32.xlu0 %v75, 96
  %v761 = vpop.permute.xlu0 %760
  %762 = vrot.lane.b32.xlu0 %v76, 96
  %v763 = vpop.permute.xlu0 %762
  %764 = vrot.lane.b32.xlu0 %v77, 96
  %v765 = vpop.permute.xlu0 %764
  %766 = vrot.lane.b32.xlu0 %v78, 96
  %v767 = vpop.permute.xlu0 %766
  %768 = vrot.lane.b32.xlu0 %v79, 96
  %v769 = vpop.permute.xlu0 %768
  %770 = vrot.lane.b32.xlu0 %v80, 96
  %v771 = vpop.permute.xlu0 %770
  %772 = vrot.lane.b32.xlu0 %v81, 96
  %v773 = vpop.permute.xlu0 %772
  %774 = vrot.lane.b32.xlu0 %v82, 96
  %v775 = vpop.permute.xlu0 %774
  %v777 = vsel %vm196, %v132, 0
  %v780 = vsel %vm196, %v133, 0
  %v783 = vsel %vm196, %v134, 0
  %v786 = vsel %vm196, %v135, 0
  %v789 = vsel %vm196, %v136, 0
  %v792 = vsel %vm196, %v137, 0
  %v795 = vsel %vm196, %v138, 0
  %v798 = vsel %vm196, %v139, 0
  %v801 = vsel %vm196, %v140, 0
  %v804 = vsel %vm196, %v141, 0
  %v807 = vsel %vm196, %v142, 0
  %v810 = vsel %vm196, %v143, 0
  %v813 = vsel %vm196, %v144, 0
  %v816 = vsel %vm196, %v145, 0
  %v819 = vsel %vm196, %v146, 0
  %v822 = vsel %vm196, %v147, 0
  %v824 = vsel %vm196, %v745, 0
  %v826 = vsel %vm196, %v747, 0
  %v828 = vsel %vm196, %v749, 0
  %v830 = vsel %vm196, %v751, 0
  %v832 = vsel %vm196, %v753, 0
  %v834 = vsel %vm196, %v755, 0
  %v836 = vsel %vm196, %v757, 0
  %v838 = vsel %vm196, %v759, 0
  %v840 = vsel %vm196, %v761, 0
  %v842 = vsel %vm196, %v763, 0
  %v844 = vsel %vm196, %v765, 0
  %v846 = vsel %vm196, %v767, 0
  %v848 = vsel %vm196, %v769, 0
  %v850 = vsel %vm196, %v771, 0
  %v852 = vsel %vm196, %v773, 0
  %v854 = vsel %vm196, %v775, 0
  %856 = vmatpush.xpose.msra.mxu0 %v854
  %857 = vmatpush.xpose.msra.mxu0 %v852
  %858 = vmatpush.xpose.msra.mxu0 %v850
  %859 = vmatpush.xpose.msra.mxu0 %v848
  %860 = vmatpush.xpose.msra.mxu0 %v846
  %861 = vmatpush.xpose.msra.mxu0 %v844
  %862 = vmatpush.xpose.msra.mxu0 %v842
  %863 = vmatpush.xpose.msra.mxu0 %v840
  %864 = vmatpush.xpose.msra.mxu0 %v838
  %865 = vmatpush.xpose.msra.mxu0 %v836
  %866 = vmatpush.xpose.msra.mxu0 %v834
  %867 = vmatpush.xpose.msra.mxu0 %v832
  %868 = vmatpush.xpose.msra.mxu0 %v830
  %869 = vmatpush.xpose.msra.mxu0 %v828
  %870 = vmatpush.xpose.msra.mxu0 %v826
  %871 = vmatpush.xpose.msra.mxu0 %v824
  %872 = vmatmul.f32.gmra.mxu0 %v777
  %v873 = vpop.f32.mrf.mxu0
  %v874 = vadd.f32 0.0, %v873
  %875 = vmatmul.f32.gmra.mxu0 %v780
  %v876 = vpop.f32.mrf.mxu0
  %v877 = vadd.f32 0.0, %v876
  %878 = vmatmul.f32.gmra.mxu0 %v783
  %v879 = vpop.f32.mrf.mxu0
  %v880 = vadd.f32 0.0, %v879
  %881 = vmatmul.f32.gmra.mxu0 %v786
  %v882 = vpop.f32.mrf.mxu0
  %v883 = vadd.f32 0.0, %v882
  %884 = vmatmul.f32.gmra.mxu0 %v789
  %v885 = vpop.f32.mrf.mxu0
  %v886 = vadd.f32 0.0, %v885
  %887 = vmatmul.f32.gmra.mxu0 %v792
  %v888 = vpop.f32.mrf.mxu0
  %v889 = vadd.f32 0.0, %v888
  %890 = vmatmul.f32.gmra.mxu0 %v795
  %v891 = vpop.f32.mrf.mxu0
  %v892 = vadd.f32 0.0, %v891
  %893 = vmatmul.f32.gmra.mxu0 %v798
  %v894 = vpop.f32.mrf.mxu0
  %v895 = vadd.f32 0.0, %v894
  %896 = vmatmul.f32.gmra.mxu0 %v801
  %v897 = vpop.f32.mrf.mxu0
  %v898 = vadd.f32 0.0, %v897
  %899 = vmatmul.f32.gmra.mxu0 %v804
  %v900 = vpop.f32.mrf.mxu0
  %v901 = vadd.f32 0.0, %v900
  %902 = vmatmul.f32.gmra.mxu0 %v807
  %v903 = vpop.f32.mrf.mxu0
  %v904 = vadd.f32 0.0, %v903
  %905 = vmatmul.f32.gmra.mxu0 %v810
  %v906 = vpop.f32.mrf.mxu0
  %v907 = vadd.f32 0.0, %v906
  %908 = vmatmul.f32.gmra.mxu0 %v813
  %v909 = vpop.f32.mrf.mxu0
  %v910 = vadd.f32 0.0, %v909
  %911 = vmatmul.f32.gmra.mxu0 %v816
  %v912 = vpop.f32.mrf.mxu0
  %v913 = vadd.f32 0.0, %v912
  %914 = vmatmul.f32.gmra.mxu0 %v819
  %v915 = vpop.f32.mrf.mxu0
  %v916 = vadd.f32 0.0, %v915
  %917 = vmatmul.f32.gmra.mxu0 %v822
  %v918 = vpop.f32.mrf.mxu0
  %v919 = vadd.f32 0.0, %v918
  %920 = vdwg.mxu0
  %921 = vmax.xlane.f32.xlu0 %v295
  %v922 = vpop.xlane.xlu0 %921
  %923 = vmax.xlane.f32.xlu0 %v298
  %v924 = vpop.xlane.xlu0 %923
  %925 = vmax.xlane.f32.xlu0 %v301
  %v926 = vpop.xlane.xlu0 %925
  %927 = vmax.xlane.f32.xlu0 %v304
  %v928 = vpop.xlane.xlu0 %927
  %929 = vmax.xlane.f32.xlu0 %v307
  %v930 = vpop.xlane.xlu0 %929
  %931 = vmax.xlane.f32.xlu0 %v310
  %v932 = vpop.xlane.xlu0 %931
  %933 = vmax.xlane.f32.xlu0 %v313
  %v934 = vpop.xlane.xlu0 %933
  %935 = vmax.xlane.f32.xlu0 %v316
  %v936 = vpop.xlane.xlu0 %935
  %937 = vmax.xlane.f32.xlu0 %v319
  %v938 = vpop.xlane.xlu0 %937
  %939 = vmax.xlane.f32.xlu0 %v322
  %v940 = vpop.xlane.xlu0 %939
  %941 = vmax.xlane.f32.xlu0 %v325
  %v942 = vpop.xlane.xlu0 %941
  %943 = vmax.xlane.f32.xlu0 %v328
  %v944 = vpop.xlane.xlu0 %943
  %945 = vmax.xlane.f32.xlu0 %v331
  %v946 = vpop.xlane.xlu0 %945
  %947 = vmax.xlane.f32.xlu0 %v334
  %v948 = vpop.xlane.xlu0 %947
  %949 = vmax.xlane.f32.xlu0 %v337
  %v950 = vpop.xlane.xlu0 %949
  %951 = vmax.xlane.f32.xlu0 %v340
  %v952 = vpop.xlane.xlu0 %951
  %953 = vmax.xlane.f32.xlu0 %v488
  %v954 = vpop.xlane.xlu0 %953
  %955 = vmax.xlane.f32.xlu0 %v491
  %v956 = vpop.xlane.xlu0 %955
  %957 = vmax.xlane.f32.xlu0 %v494
  %v958 = vpop.xlane.xlu0 %957
  %959 = vmax.xlane.f32.xlu0 %v497
  %v960 = vpop.xlane.xlu0 %959
  %961 = vmax.xlane.f32.xlu0 %v500
  %v962 = vpop.xlane.xlu0 %961
  %963 = vmax.xlane.f32.xlu0 %v503
  %v964 = vpop.xlane.xlu0 %963
  %965 = vmax.xlane.f32.xlu0 %v506
  %v966 = vpop.xlane.xlu0 %965
  %967 = vmax.xlane.f32.xlu0 %v509
  %v968 = vpop.xlane.xlu0 %967
  %969 = vmax.xlane.f32.xlu0 %v512
  %v970 = vpop.xlane.xlu0 %969
  %971 = vmax.xlane.f32.xlu0 %v515
  %v972 = vpop.xlane.xlu0 %971
  %973 = vmax.xlane.f32.xlu0 %v518
  %v974 = vpop.xlane.xlu0 %973
  %975 = vmax.xlane.f32.xlu0 %v521
  %v976 = vpop.xlane.xlu0 %975
  %977 = vmax.xlane.f32.xlu0 %v524
  %v978 = vpop.xlane.xlu0 %977
  %979 = vmax.xlane.f32.xlu0 %v527
  %v980 = vpop.xlane.xlu0 %979
  %981 = vmax.xlane.f32.xlu0 %v530
  %v982 = vpop.xlane.xlu0 %981
  %983 = vmax.xlane.f32.xlu0 %v533
  %v984 = vpop.xlane.xlu0 %983
  %985 = vmax.xlane.f32.xlu0 %v681
  %v986 = vpop.xlane.xlu0 %985
  %987 = vmax.xlane.f32.xlu0 %v684
  %v988 = vpop.xlane.xlu0 %987
  %989 = vmax.xlane.f32.xlu0 %v687
  %v990 = vpop.xlane.xlu0 %989
  %991 = vmax.xlane.f32.xlu0 %v690
  %v992 = vpop.xlane.xlu0 %991
  %993 = vmax.xlane.f32.xlu0 %v693
  %v994 = vpop.xlane.xlu0 %993
  %995 = vmax.xlane.f32.xlu0 %v696
  %v996 = vpop.xlane.xlu0 %995
  %997 = vmax.xlane.f32.xlu0 %v699
  %v998 = vpop.xlane.xlu0 %997
  %999 = vmax.xlane.f32.xlu0 %v702
  %v1000 = vpop.xlane.xlu0 %999
  %1001 = vmax.xlane.f32.xlu0 %v705
  %v1002 = vpop.xlane.xlu0 %1001
  %1003 = vmax.xlane.f32.xlu0 %v708
  %v1004 = vpop.xlane.xlu0 %1003
  %1005 = vmax.xlane.f32.xlu0 %v711
  %v1006 = vpop.xlane.xlu0 %1005
  %1007 = vmax.xlane.f32.xlu0 %v714
  %v1008 = vpop.xlane.xlu0 %1007
  %1009 = vmax.xlane.f32.xlu0 %v717
  %v1010 = vpop.xlane.xlu0 %1009
  %1011 = vmax.xlane.f32.xlu0 %v720
  %v1012 = vpop.xlane.xlu0 %1011
  %1013 = vmax.xlane.f32.xlu0 %v723
  %v1014 = vpop.xlane.xlu0 %1013
  %1015 = vmax.xlane.f32.xlu0 %v726
  %v1016 = vpop.xlane.xlu0 %1015
  %1017 = vmax.xlane.f32.xlu0 %v874
  %v1018 = vpop.xlane.xlu0 %1017
  %1019 = vmax.xlane.f32.xlu0 %v877
  %v1020 = vpop.xlane.xlu0 %1019
  %1021 = vmax.xlane.f32.xlu0 %v880
  %v1022 = vpop.xlane.xlu0 %1021
  %1023 = vmax.xlane.f32.xlu0 %v883
  %v1024 = vpop.xlane.xlu0 %1023
  %1025 = vmax.xlane.f32.xlu0 %v886
  %v1026 = vpop.xlane.xlu0 %1025
  %1027 = vmax.xlane.f32.xlu0 %v889
  %v1028 = vpop.xlane.xlu0 %1027
  %1029 = vmax.xlane.f32.xlu0 %v892
  %v1030 = vpop.xlane.xlu0 %1029
  %1031 = vmax.xlane.f32.xlu0 %v895
  %v1032 = vpop.xlane.xlu0 %1031
  %1033 = vmax.xlane.f32.xlu0 %v898
  %v1034 = vpop.xlane.xlu0 %1033
  %1035 = vmax.xlane.f32.xlu0 %v901
  %v1036 = vpop.xlane.xlu0 %1035
  %1037 = vmax.xlane.f32.xlu0 %v904
  %v1038 = vpop.xlane.xlu0 %1037
  %1039 = vmax.xlane.f32.xlu0 %v907
  %v1040 = vpop.xlane.xlu0 %1039
  %1041 = vmax.xlane.f32.xlu0 %v910
  %v1042 = vpop.xlane.xlu0 %1041
  %1043 = vmax.xlane.f32.xlu0 %v913
  %v1044 = vpop.xlane.xlu0 %1043
  %1045 = vmax.xlane.f32.xlu0 %v916
  %v1046 = vpop.xlane.xlu0 %1045
  %1047 = vmax.xlane.f32.xlu0 %v919
  %v1048 = vpop.xlane.xlu0 %1047
  %v1049 = vsub.f32 %v295, %v922
  %v1050 = vsub.f32 %v298, %v924
  %v1051 = vsub.f32 %v301, %v926
  %v1052 = vsub.f32 %v304, %v928
  %v1053 = vsub.f32 %v307, %v930
  %v1054 = vsub.f32 %v310, %v932
  %v1055 = vsub.f32 %v313, %v934
  %v1056 = vsub.f32 %v316, %v936
  %v1057 = vsub.f32 %v319, %v938
  %v1058 = vsub.f32 %v322, %v940
  %v1059 = vsub.f32 %v325, %v942
  %v1060 = vsub.f32 %v328, %v944
  %v1061 = vsub.f32 %v331, %v946
  %v1062 = vsub.f32 %v334, %v948
  %v1063 = vsub.f32 %v337, %v950
  %v1064 = vsub.f32 %v340, %v952
  %v1065 = vsub.f32 %v488, %v954
  %v1066 = vsub.f32 %v491, %v956
  %v1067 = vsub.f32 %v494, %v958
  %v1068 = vsub.f32 %v497, %v960
  %v1069 = vsub.f32 %v500, %v962
  %v1070 = vsub.f32 %v503, %v964
  %v1071 = vsub.f32 %v506, %v966
  %v1072 = vsub.f32 %v509, %v968
  %v1073 = vsub.f32 %v512, %v970
  %v1074 = vsub.f32 %v515, %v972
  %v1075 = vsub.f32 %v518, %v974
  %v1076 = vsub.f32 %v521, %v976
  %v1077 = vsub.f32 %v524, %v978
  %v1078 = vsub.f32 %v527, %v980
  %v1079 = vsub.f32 %v530, %v982
  %v1080 = vsub.f32 %v533, %v984
  %v1081 = vsub.f32 %v681, %v986
  %v1082 = vsub.f32 %v684, %v988
  %v1083 = vsub.f32 %v687, %v990
  %v1084 = vsub.f32 %v690, %v992
  %v1085 = vsub.f32 %v693, %v994
  %v1086 = vsub.f32 %v696, %v996
  %v1087 = vsub.f32 %v699, %v998
  %v1088 = vsub.f32 %v702, %v1000
  %v1089 = vsub.f32 %v705, %v1002
  %v1090 = vsub.f32 %v708, %v1004
  %v1091 = vsub.f32 %v711, %v1006
  %v1092 = vsub.f32 %v714, %v1008
  %v1093 = vsub.f32 %v717, %v1010
  %v1094 = vsub.f32 %v720, %v1012
  %v1095 = vsub.f32 %v723, %v1014
  %v1096 = vsub.f32 %v726, %v1016
  %v1097 = vsub.f32 %v874, %v1018
  %v1098 = vsub.f32 %v877, %v1020
  %v1099 = vsub.f32 %v880, %v1022
  %v1100 = vsub.f32 %v883, %v1024
  %v1101 = vsub.f32 %v886, %v1026
  %v1102 = vsub.f32 %v889, %v1028
  %v1103 = vsub.f32 %v892, %v1030
  %v1104 = vsub.f32 %v895, %v1032
  %v1105 = vsub.f32 %v898, %v1034
  %v1106 = vsub.f32 %v901, %v1036
  %v1107 = vsub.f32 %v904, %v1038
  %v1108 = vsub.f32 %v907, %v1040
  %v1109 = vsub.f32 %v910, %v1042
  %v1110 = vsub.f32 %v913, %v1044
  %v1111 = vsub.f32 %v916, %v1046
  %v1112 = vsub.f32 %v919, %v1048
  %v1113 = vmul.f32 %v1049, 1.442695
  %v1114 = vpow.pop %v1113
  %v1115 = vmul.f32 %v1050, 1.442695
  %v1116 = vpow.pop %v1115
  %v1117 = vmul.f32 %v1051, 1.442695
  %v1118 = vpow.pop %v1117
  %v1119 = vmul.f32 %v1052, 1.442695
  %v1120 = vpow.pop %v1119
  %v1121 = vmul.f32 %v1053, 1.442695
  %v1122 = vpow.pop %v1121
  %v1123 = vmul.f32 %v1054, 1.442695
  %v1124 = vpow.pop %v1123
  %v1125 = vmul.f32 %v1055, 1.442695
  %v1126 = vpow.pop %v1125
  %v1127 = vmul.f32 %v1056, 1.442695
  %v1128 = vpow.pop %v1127
  %v1129 = vmul.f32 %v1057, 1.442695
  %v1130 = vpow.pop %v1129
  %v1131 = vmul.f32 %v1058, 1.442695
  %v1132 = vpow.pop %v1131
  %v1133 = vmul.f32 %v1059, 1.442695
  %v1134 = vpow.pop %v1133
  %v1135 = vmul.f32 %v1060, 1.442695
  %v1136 = vpow.pop %v1135
  %v1137 = vmul.f32 %v1061, 1.442695
  %v1138 = vpow.pop %v1137
  %v1139 = vmul.f32 %v1062, 1.442695
  %v1140 = vpow.pop %v1139
  %v1141 = vmul.f32 %v1063, 1.442695
  %v1142 = vpow.pop %v1141
  %v1143 = vmul.f32 %v1064, 1.442695
  %v1144 = vpow.pop %v1143
  %v1145 = vmul.f32 %v1065, 1.442695
  %v1146 = vpow.pop %v1145
  %v1147 = vmul.f32 %v1066, 1.442695
  %v1148 = vpow.pop %v1147
  %v1149 = vmul.f32 %v1067, 1.442695
  %v1150 = vpow.pop %v1149
  %v1151 = vmul.f32 %v1068, 1.442695
  %v1152 = vpow.pop %v1151
  %v1153 = vmul.f32 %v1069, 1.442695
  %v1154 = vpow.pop %v1153
  %v1155 = vmul.f32 %v1070, 1.442695
  %v1156 = vpow.pop %v1155
  %v1157 = vmul.f32 %v1071, 1.442695
  %v1158 = vpow.pop %v1157
  %v1159 = vmul.f32 %v1072, 1.442695
  %v1160 = vpow.pop %v1159
  %v1161 = vmul.f32 %v1073, 1.442695
  %v1162 = vpow.pop %v1161
  %v1163 = vmul.f32 %v1074, 1.442695
  %v1164 = vpow.pop %v1163
  %v1165 = vmul.f32 %v1075, 1.442695
  %v1166 = vpow.pop %v1165
  %v1167 = vmul.f32 %v1076, 1.442695
  %v1168 = vpow.pop %v1167
  %v1169 = vmul.f32 %v1077, 1.442695
  %v1170 = vpow.pop %v1169
  %v1171 = vmul.f32 %v1078, 1.442695
  %v1172 = vpow.pop %v1171
  %v1173 = vmul.f32 %v1079, 1.442695
  %v1174 = vpow.pop %v1173
  %v1175 = vmul.f32 %v1080, 1.442695
  %v1176 = vpow.pop %v1175
  %v1177 = vmul.f32 %v1081, 1.442695
  %v1178 = vpow.pop %v1177
  %v1179 = vmul.f32 %v1082, 1.442695
  %v1180 = vpow.pop %v1179
  %v1181 = vmul.f32 %v1083, 1.442695
  %v1182 = vpow.pop %v1181
  %v1183 = vmul.f32 %v1084, 1.442695
  %v1184 = vpow.pop %v1183
  %v1185 = vmul.f32 %v1085, 1.442695
  %v1186 = vpow.pop %v1185
  %v1187 = vmul.f32 %v1086, 1.442695
  %v1188 = vpow.pop %v1187
  %v1189 = vmul.f32 %v1087, 1.442695
  %v1190 = vpow.pop %v1189
  %v1191 = vmul.f32 %v1088, 1.442695
  %v1192 = vpow.pop %v1191
  %v1193 = vmul.f32 %v1089, 1.442695
  %v1194 = vpow.pop %v1193
  %v1195 = vmul.f32 %v1090, 1.442695
  %v1196 = vpow.pop %v1195
  %v1197 = vmul.f32 %v1091, 1.442695
  %v1198 = vpow.pop %v1197
  %v1199 = vmul.f32 %v1092, 1.442695
  %v1200 = vpow.pop %v1199
  %v1201 = vmul.f32 %v1093, 1.442695
  %v1202 = vpow.pop %v1201
  %v1203 = vmul.f32 %v1094, 1.442695
  %v1204 = vpow.pop %v1203
  %v1205 = vmul.f32 %v1095, 1.442695
  %v1206 = vpow.pop %v1205
  %v1207 = vmul.f32 %v1096, 1.442695
  %v1208 = vpow.pop %v1207
  %v1209 = vmul.f32 %v1097, 1.442695
  %v1210 = vpow.pop %v1209
  %v1211 = vmul.f32 %v1098, 1.442695
  %v1212 = vpow.pop %v1211
  %v1213 = vmul.f32 %v1099, 1.442695
  %v1214 = vpow.pop %v1213
  %v1215 = vmul.f32 %v1100, 1.442695
  %v1216 = vpow.pop %v1215
  %v1217 = vmul.f32 %v1101, 1.442695
  %v1218 = vpow.pop %v1217
  %v1219 = vmul.f32 %v1102, 1.442695
  %v1220 = vpow.pop %v1219
  %v1221 = vmul.f32 %v1103, 1.442695
  %v1222 = vpow.pop %v1221
  %v1223 = vmul.f32 %v1104, 1.442695
  %v1224 = vpow.pop %v1223
  %v1225 = vmul.f32 %v1105, 1.442695
  %v1226 = vpow.pop %v1225
  %v1227 = vmul.f32 %v1106, 1.442695
  %v1228 = vpow.pop %v1227
  %v1229 = vmul.f32 %v1107, 1.442695
  %v1230 = vpow.pop %v1229
  %v1231 = vmul.f32 %v1108, 1.442695
  %v1232 = vpow.pop %v1231
  %v1233 = vmul.f32 %v1109, 1.442695
  %v1234 = vpow.pop %v1233
  %v1235 = vmul.f32 %v1110, 1.442695
  %v1236 = vpow.pop %v1235
  %v1237 = vmul.f32 %v1111, 1.442695
  %v1238 = vpow.pop %v1237
  %v1239 = vmul.f32 %v1112, 1.442695
  %v1240 = vpow.pop %v1239
  %1241 = vadd.xlane.f32.xlu0 %v1114
  %v1242 = vpop.xlane.xlu0 %1241
  %1243 = vadd.xlane.f32.xlu0 %v1116
  %v1244 = vpop.xlane.xlu0 %1243
  %1245 = vadd.xlane.f32.xlu0 %v1118
  %v1246 = vpop.xlane.xlu0 %1245
  %1247 = vadd.xlane.f32.xlu0 %v1120
  %v1248 = vpop.xlane.xlu0 %1247
  %1249 = vadd.xlane.f32.xlu0 %v1122
  %v1250 = vpop.xlane.xlu0 %1249
  %1251 = vadd.xlane.f32.xlu0 %v1124
  %v1252 = vpop.xlane.xlu0 %1251
  %1253 = vadd.xlane.f32.xlu0 %v1126
  %v1254 = vpop.xlane.xlu0 %1253
  %1255 = vadd.xlane.f32.xlu0 %v1128
  %v1256 = vpop.xlane.xlu0 %1255
  %1257 = vadd.xlane.f32.xlu0 %v1130
  %v1258 = vpop.xlane.xlu0 %1257
  %1259 = vadd.xlane.f32.xlu0 %v1132
  %v1260 = vpop.xlane.xlu0 %1259
  %1261 = vadd.xlane.f32.xlu0 %v1134
  %v1262 = vpop.xlane.xlu0 %1261
  %1263 = vadd.xlane.f32.xlu0 %v1136
  %v1264 = vpop.xlane.xlu0 %1263
  %1265 = vadd.xlane.f32.xlu0 %v1138
  %v1266 = vpop.xlane.xlu0 %1265
  %1267 = vadd.xlane.f32.xlu0 %v1140
  %v1268 = vpop.xlane.xlu0 %1267
  %1269 = vadd.xlane.f32.xlu0 %v1142
  %v1270 = vpop.xlane.xlu0 %1269
  %1271 = vadd.xlane.f32.xlu0 %v1144
  %v1272 = vpop.xlane.xlu0 %1271
  %1273 = vadd.xlane.f32.xlu0 %v1146
  %v1274 = vpop.xlane.xlu0 %1273
  %1275 = vadd.xlane.f32.xlu0 %v1148
  %v1276 = vpop.xlane.xlu0 %1275
  %1277 = vadd.xlane.f32.xlu0 %v1150
  %v1278 = vpop.xlane.xlu0 %1277
  %1279 = vadd.xlane.f32.xlu0 %v1152
  %v1280 = vpop.xlane.xlu0 %1279
  %1281 = vadd.xlane.f32.xlu0 %v1154
  %v1282 = vpop.xlane.xlu0 %1281
  %1283 = vadd.xlane.f32.xlu0 %v1156
  %v1284 = vpop.xlane.xlu0 %1283
  %1285 = vadd.xlane.f32.xlu0 %v1158
  %v1286 = vpop.xlane.xlu0 %1285
  %1287 = vadd.xlane.f32.xlu0 %v1160
  %v1288 = vpop.xlane.xlu0 %1287
  %1289 = vadd.xlane.f32.xlu0 %v1162
  %v1290 = vpop.xlane.xlu0 %1289
  %1291 = vadd.xlane.f32.xlu0 %v1164
  %v1292 = vpop.xlane.xlu0 %1291
  %1293 = vadd.xlane.f32.xlu0 %v1166
  %v1294 = vpop.xlane.xlu0 %1293
  %1295 = vadd.xlane.f32.xlu0 %v1168
  %v1296 = vpop.xlane.xlu0 %1295
  %1297 = vadd.xlane.f32.xlu0 %v1170
  %v1298 = vpop.xlane.xlu0 %1297
  %1299 = vadd.xlane.f32.xlu0 %v1172
  %v1300 = vpop.xlane.xlu0 %1299
  %1301 = vadd.xlane.f32.xlu0 %v1174
  %v1302 = vpop.xlane.xlu0 %1301
  %1303 = vadd.xlane.f32.xlu0 %v1176
  %v1304 = vpop.xlane.xlu0 %1303
  %1305 = vadd.xlane.f32.xlu0 %v1178
  %v1306 = vpop.xlane.xlu0 %1305
  %1307 = vadd.xlane.f32.xlu0 %v1180
  %v1308 = vpop.xlane.xlu0 %1307
  %1309 = vadd.xlane.f32.xlu0 %v1182
  %v1310 = vpop.xlane.xlu0 %1309
  %1311 = vadd.xlane.f32.xlu0 %v1184
  %v1312 = vpop.xlane.xlu0 %1311
  %1313 = vadd.xlane.f32.xlu0 %v1186
  %v1314 = vpop.xlane.xlu0 %1313
  %1315 = vadd.xlane.f32.xlu0 %v1188
  %v1316 = vpop.xlane.xlu0 %1315
  %1317 = vadd.xlane.f32.xlu0 %v1190
  %v1318 = vpop.xlane.xlu0 %1317
  %1319 = vadd.xlane.f32.xlu0 %v1192
  %v1320 = vpop.xlane.xlu0 %1319
  %1321 = vadd.xlane.f32.xlu0 %v1194
  %v1322 = vpop.xlane.xlu0 %1321
  %1323 = vadd.xlane.f32.xlu0 %v1196
  %v1324 = vpop.xlane.xlu0 %1323
  %1325 = vadd.xlane.f32.xlu0 %v1198
  %v1326 = vpop.xlane.xlu0 %1325
  %1327 = vadd.xlane.f32.xlu0 %v1200
  %v1328 = vpop.xlane.xlu0 %1327
  %1329 = vadd.xlane.f32.xlu0 %v1202
  %v1330 = vpop.xlane.xlu0 %1329
  %1331 = vadd.xlane.f32.xlu0 %v1204
  %v1332 = vpop.xlane.xlu0 %1331
  %1333 = vadd.xlane.f32.xlu0 %v1206
  %v1334 = vpop.xlane.xlu0 %1333
  %1335 = vadd.xlane.f32.xlu0 %v1208
  %v1336 = vpop.xlane.xlu0 %1335
  %1337 = vadd.xlane.f32.xlu0 %v1210
  %v1338 = vpop.xlane.xlu0 %1337
  %1339 = vadd.xlane.f32.xlu0 %v1212
  %v1340 = vpop.xlane.xlu0 %1339
  %1341 = vadd.xlane.f32.xlu0 %v1214
  %v1342 = vpop.xlane.xlu0 %1341
  %1343 = vadd.xlane.f32.xlu0 %v1216
  %v1344 = vpop.xlane.xlu0 %1343
  %1345 = vadd.xlane.f32.xlu0 %v1218
  %v1346 = vpop.xlane.xlu0 %1345
  %1347 = vadd.xlane.f32.xlu0 %v1220
  %v1348 = vpop.xlane.xlu0 %1347
  %1349 = vadd.xlane.f32.xlu0 %v1222
  %v1350 = vpop.xlane.xlu0 %1349
  %1351 = vadd.xlane.f32.xlu0 %v1224
  %v1352 = vpop.xlane.xlu0 %1351
  %1353 = vadd.xlane.f32.xlu0 %v1226
  %v1354 = vpop.xlane.xlu0 %1353
  %1355 = vadd.xlane.f32.xlu0 %v1228
  %v1356 = vpop.xlane.xlu0 %1355
  %1357 = vadd.xlane.f32.xlu0 %v1230
  %v1358 = vpop.xlane.xlu0 %1357
  %1359 = vadd.xlane.f32.xlu0 %v1232
  %v1360 = vpop.xlane.xlu0 %1359
  %1361 = vadd.xlane.f32.xlu0 %v1234
  %v1362 = vpop.xlane.xlu0 %1361
  %1363 = vadd.xlane.f32.xlu0 %v1236
  %v1364 = vpop.xlane.xlu0 %1363
  %1365 = vadd.xlane.f32.xlu0 %v1238
  %v1366 = vpop.xlane.xlu0 %1365
  %1367 = vadd.xlane.f32.xlu0 %v1240
  %v1368 = vpop.xlane.xlu0 %1367
  %1369 = vrot.lane.b32.xlu0 %v19, 64
  %v1370 = vpop.permute.xlu0 %1369
  %1371 = vrot.lane.b32.xlu0 %v20, 64
  %v1372 = vpop.permute.xlu0 %1371
  %1373 = vrot.lane.b32.xlu0 %v21, 64
  %v1374 = vpop.permute.xlu0 %1373
  %1375 = vrot.lane.b32.xlu0 %v22, 64
  %v1376 = vpop.permute.xlu0 %1375
  %1377 = vrot.lane.b32.xlu0 %v23, 64
  %v1378 = vpop.permute.xlu0 %1377
  %1379 = vrot.lane.b32.xlu0 %v24, 64
  %v1380 = vpop.permute.xlu0 %1379
  %1381 = vrot.lane.b32.xlu0 %v25, 64
  %v1382 = vpop.permute.xlu0 %1381
  %1383 = vrot.lane.b32.xlu0 %v26, 64
  %v1384 = vpop.permute.xlu0 %1383
  %1385 = vrot.lane.b32.xlu0 %v27, 64
  %v1386 = vpop.permute.xlu0 %1385
  %1387 = vrot.lane.b32.xlu0 %v28, 64
  %v1388 = vpop.permute.xlu0 %1387
  %1389 = vrot.lane.b32.xlu0 %v29, 64
  %v1390 = vpop.permute.xlu0 %1389
  %1391 = vrot.lane.b32.xlu0 %v30, 64
  %v1392 = vpop.permute.xlu0 %1391
  %1393 = vrot.lane.b32.xlu0 %v31, 64
  %v1394 = vpop.permute.xlu0 %1393
  %1395 = vrot.lane.b32.xlu0 %v32, 64
  %v1396 = vpop.permute.xlu0 %1395
  %1397 = vrot.lane.b32.xlu0 %v33, 64
  %v1398 = vpop.permute.xlu0 %1397
  %1399 = vrot.lane.b32.xlu0 %v34, 64
  %v1400 = vpop.permute.xlu0 %1399
  %1417 = vmatpush.msra.mxu0 %v1400
  %1418 = vmatpush.msra.mxu0 %v1398
  %1419 = vmatpush.msra.mxu0 %v1396
  %1420 = vmatpush.msra.mxu0 %v1394
  %1421 = vmatpush.msra.mxu0 %v1392
  %1422 = vmatpush.msra.mxu0 %v1390
  %1423 = vmatpush.msra.mxu0 %v1388
  %1424 = vmatpush.msra.mxu0 %v1386
  %1425 = vmatpush.msra.mxu0 %v1384
  %1426 = vmatpush.msra.mxu0 %v1382
  %1427 = vmatpush.msra.mxu0 %v1380
  %1428 = vmatpush.msra.mxu0 %v1378
  %1429 = vmatpush.msra.mxu0 %v1376
  %1430 = vmatpush.msra.mxu0 %v1374
  %1431 = vmatpush.msra.mxu0 %v1372
  %1432 = vmatpush.msra.mxu0 %v1370
  %1433 = vmatmul.f32.gmra.mxu0 %v1114
  %v1434 = vpop.f32.mrf.mxu0
  %v1435 = vadd.f32 0.0, %v1434
  %1436 = vmatmul.f32.gmra.mxu0 %v1116
  %v1437 = vpop.f32.mrf.mxu0
  %v1438 = vadd.f32 0.0, %v1437
  %1439 = vmatmul.f32.gmra.mxu0 %v1118
  %v1440 = vpop.f32.mrf.mxu0
  %v1441 = vadd.f32 0.0, %v1440
  %1442 = vmatmul.f32.gmra.mxu0 %v1120
  %v1443 = vpop.f32.mrf.mxu0
  %v1444 = vadd.f32 0.0, %v1443
  %1445 = vmatmul.f32.gmra.mxu0 %v1122
  %v1446 = vpop.f32.mrf.mxu0
  %v1447 = vadd.f32 0.0, %v1446
  %1448 = vmatmul.f32.gmra.mxu0 %v1124
  %v1449 = vpop.f32.mrf.mxu0
  %v1450 = vadd.f32 0.0, %v1449
  %1451 = vmatmul.f32.gmra.mxu0 %v1126
  %v1452 = vpop.f32.mrf.mxu0
  %v1453 = vadd.f32 0.0, %v1452
  %1454 = vmatmul.f32.gmra.mxu0 %v1128
  %v1455 = vpop.f32.mrf.mxu0
  %v1456 = vadd.f32 0.0, %v1455
  %1457 = vmatmul.f32.gmra.mxu0 %v1130
  %v1458 = vpop.f32.mrf.mxu0
  %v1459 = vadd.f32 0.0, %v1458
  %1460 = vmatmul.f32.gmra.mxu0 %v1132
  %v1461 = vpop.f32.mrf.mxu0
  %v1462 = vadd.f32 0.0, %v1461
  %1463 = vmatmul.f32.gmra.mxu0 %v1134
  %v1464 = vpop.f32.mrf.mxu0
  %v1465 = vadd.f32 0.0, %v1464
  %1466 = vmatmul.f32.gmra.mxu0 %v1136
  %v1467 = vpop.f32.mrf.mxu0
  %v1468 = vadd.f32 0.0, %v1467
  %1469 = vmatmul.f32.gmra.mxu0 %v1138
  %v1470 = vpop.f32.mrf.mxu0
  %v1471 = vadd.f32 0.0, %v1470
  %1472 = vmatmul.f32.gmra.mxu0 %v1140
  %v1473 = vpop.f32.mrf.mxu0
  %v1474 = vadd.f32 0.0, %v1473
  %1475 = vmatmul.f32.gmra.mxu0 %v1142
  %v1476 = vpop.f32.mrf.mxu0
  %v1477 = vadd.f32 0.0, %v1476
  %1478 = vmatmul.f32.gmra.mxu0 %v1144
  %v1479 = vpop.f32.mrf.mxu0
  %v1480 = vadd.f32 0.0, %v1479
  %1481 = vdwg.mxu0
  %1482 = vrot.lane.b32.xlu0 %v35, 64
  %v1483 = vpop.permute.xlu0 %1482
  %1484 = vrot.lane.b32.xlu0 %v36, 64
  %v1485 = vpop.permute.xlu0 %1484
  %1486 = vrot.lane.b32.xlu0 %v37, 64
  %v1487 = vpop.permute.xlu0 %1486
  %1488 = vrot.lane.b32.xlu0 %v38, 64
  %v1489 = vpop.permute.xlu0 %1488
  %1490 = vrot.lane.b32.xlu0 %v39, 64
  %v1491 = vpop.permute.xlu0 %1490
  %1492 = vrot.lane.b32.xlu0 %v40, 64
  %v1493 = vpop.permute.xlu0 %1492
  %1494 = vrot.lane.b32.xlu0 %v41, 64
  %v1495 = vpop.permute.xlu0 %1494
  %1496 = vrot.lane.b32.xlu0 %v42, 64
  %v1497 = vpop.permute.xlu0 %1496
  %1498 = vrot.lane.b32.xlu0 %v43, 64
  %v1499 = vpop.permute.xlu0 %1498
  %1500 = vrot.lane.b32.xlu0 %v44, 64
  %v1501 = vpop.permute.xlu0 %1500
  %1502 = vrot.lane.b32.xlu0 %v45, 64
  %v1503 = vpop.permute.xlu0 %1502
  %1504 = vrot.lane.b32.xlu0 %v46, 64
  %v1505 = vpop.permute.xlu0 %1504
  %1506 = vrot.lane.b32.xlu0 %v47, 64
  %v1507 = vpop.permute.xlu0 %1506
  %1508 = vrot.lane.b32.xlu0 %v48, 64
  %v1509 = vpop.permute.xlu0 %1508
  %1510 = vrot.lane.b32.xlu0 %v49, 64
  %v1511 = vpop.permute.xlu0 %1510
  %1512 = vrot.lane.b32.xlu0 %v50, 64
  %v1513 = vpop.permute.xlu0 %1512
  %1530 = vmatpush.msra.mxu0 %v1513
  %1531 = vmatpush.msra.mxu0 %v1511
  %1532 = vmatpush.msra.mxu0 %v1509
  %1533 = vmatpush.msra.mxu0 %v1507
  %1534 = vmatpush.msra.mxu0 %v1505
  %1535 = vmatpush.msra.mxu0 %v1503
  %1536 = vmatpush.msra.mxu0 %v1501
  %1537 = vmatpush.msra.mxu0 %v1499
  %1538 = vmatpush.msra.mxu0 %v1497
  %1539 = vmatpush.msra.mxu0 %v1495
  %1540 = vmatpush.msra.mxu0 %v1493
  %1541 = vmatpush.msra.mxu0 %v1491
  %1542 = vmatpush.msra.mxu0 %v1489
  %1543 = vmatpush.msra.mxu0 %v1487
  %1544 = vmatpush.msra.mxu0 %v1485
  %1545 = vmatpush.msra.mxu0 %v1483
  %1546 = vmatmul.f32.gmra.mxu0 %v1146
  %v1547 = vpop.f32.mrf.mxu0
  %v1548 = vadd.f32 0.0, %v1547
  %1549 = vmatmul.f32.gmra.mxu0 %v1148
  %v1550 = vpop.f32.mrf.mxu0
  %v1551 = vadd.f32 0.0, %v1550
  %1552 = vmatmul.f32.gmra.mxu0 %v1150
  %v1553 = vpop.f32.mrf.mxu0
  %v1554 = vadd.f32 0.0, %v1553
  %1555 = vmatmul.f32.gmra.mxu0 %v1152
  %v1556 = vpop.f32.mrf.mxu0
  %v1557 = vadd.f32 0.0, %v1556
  %1558 = vmatmul.f32.gmra.mxu0 %v1154
  %v1559 = vpop.f32.mrf.mxu0
  %v1560 = vadd.f32 0.0, %v1559
  %1561 = vmatmul.f32.gmra.mxu0 %v1156
  %v1562 = vpop.f32.mrf.mxu0
  %v1563 = vadd.f32 0.0, %v1562
  %1564 = vmatmul.f32.gmra.mxu0 %v1158
  %v1565 = vpop.f32.mrf.mxu0
  %v1566 = vadd.f32 0.0, %v1565
  %1567 = vmatmul.f32.gmra.mxu0 %v1160
  %v1568 = vpop.f32.mrf.mxu0
  %v1569 = vadd.f32 0.0, %v1568
  %1570 = vmatmul.f32.gmra.mxu0 %v1162
  %v1571 = vpop.f32.mrf.mxu0
  %v1572 = vadd.f32 0.0, %v1571
  %1573 = vmatmul.f32.gmra.mxu0 %v1164
  %v1574 = vpop.f32.mrf.mxu0
  %v1575 = vadd.f32 0.0, %v1574
  %1576 = vmatmul.f32.gmra.mxu0 %v1166
  %v1577 = vpop.f32.mrf.mxu0
  %v1578 = vadd.f32 0.0, %v1577
  %1579 = vmatmul.f32.gmra.mxu0 %v1168
  %v1580 = vpop.f32.mrf.mxu0
  %v1581 = vadd.f32 0.0, %v1580
  %1582 = vmatmul.f32.gmra.mxu0 %v1170
  %v1583 = vpop.f32.mrf.mxu0
  %v1584 = vadd.f32 0.0, %v1583
  %1585 = vmatmul.f32.gmra.mxu0 %v1172
  %v1586 = vpop.f32.mrf.mxu0
  %v1587 = vadd.f32 0.0, %v1586
  %1588 = vmatmul.f32.gmra.mxu0 %v1174
  %v1589 = vpop.f32.mrf.mxu0
  %v1590 = vadd.f32 0.0, %v1589
  %1591 = vmatmul.f32.gmra.mxu0 %v1176
  %v1592 = vpop.f32.mrf.mxu0
  %v1593 = vadd.f32 0.0, %v1592
  %1594 = vdwg.mxu0
  %1595 = vrot.lane.b32.xlu0 %v51, 64
  %v1596 = vpop.permute.xlu0 %1595
  %1597 = vrot.lane.b32.xlu0 %v52, 64
  %v1598 = vpop.permute.xlu0 %1597
  %1599 = vrot.lane.b32.xlu0 %v53, 64
  %v1600 = vpop.permute.xlu0 %1599
  %1601 = vrot.lane.b32.xlu0 %v54, 64
  %v1602 = vpop.permute.xlu0 %1601
  %1603 = vrot.lane.b32.xlu0 %v55, 64
  %v1604 = vpop.permute.xlu0 %1603
  %1605 = vrot.lane.b32.xlu0 %v56, 64
  %v1606 = vpop.permute.xlu0 %1605
  %1607 = vrot.lane.b32.xlu0 %v57, 64
  %v1608 = vpop.permute.xlu0 %1607
  %1609 = vrot.lane.b32.xlu0 %v58, 64
  %v1610 = vpop.permute.xlu0 %1609
  %1611 = vrot.lane.b32.xlu0 %v59, 64
  %v1612 = vpop.permute.xlu0 %1611
  %1613 = vrot.lane.b32.xlu0 %v60, 64
  %v1614 = vpop.permute.xlu0 %1613
  %1615 = vrot.lane.b32.xlu0 %v61, 64
  %v1616 = vpop.permute.xlu0 %1615
  %1617 = vrot.lane.b32.xlu0 %v62, 64
  %v1618 = vpop.permute.xlu0 %1617
  %1619 = vrot.lane.b32.xlu0 %v63, 64
  %v1620 = vpop.permute.xlu0 %1619
  %1621 = vrot.lane.b32.xlu0 %v64, 64
  %v1622 = vpop.permute.xlu0 %1621
  %1623 = vrot.lane.b32.xlu0 %v65, 64
  %v1624 = vpop.permute.xlu0 %1623
  %1625 = vrot.lane.b32.xlu0 %v66, 64
  %v1626 = vpop.permute.xlu0 %1625
  %1643 = vmatpush.msra.mxu0 %v1626
  %1644 = vmatpush.msra.mxu0 %v1624
  %1645 = vmatpush.msra.mxu0 %v1622
  %1646 = vmatpush.msra.mxu0 %v1620
  %1647 = vmatpush.msra.mxu0 %v1618
  %1648 = vmatpush.msra.mxu0 %v1616
  %1649 = vmatpush.msra.mxu0 %v1614
  %1650 = vmatpush.msra.mxu0 %v1612
  %1651 = vmatpush.msra.mxu0 %v1610
  %1652 = vmatpush.msra.mxu0 %v1608
  %1653 = vmatpush.msra.mxu0 %v1606
  %1654 = vmatpush.msra.mxu0 %v1604
  %1655 = vmatpush.msra.mxu0 %v1602
  %1656 = vmatpush.msra.mxu0 %v1600
  %1657 = vmatpush.msra.mxu0 %v1598
  %1658 = vmatpush.msra.mxu0 %v1596
  %1659 = vmatmul.f32.gmra.mxu0 %v1178
  %v1660 = vpop.f32.mrf.mxu0
  %v1661 = vadd.f32 0.0, %v1660
  %1662 = vmatmul.f32.gmra.mxu0 %v1180
  %v1663 = vpop.f32.mrf.mxu0
  %v1664 = vadd.f32 0.0, %v1663
  %1665 = vmatmul.f32.gmra.mxu0 %v1182
  %v1666 = vpop.f32.mrf.mxu0
  %v1667 = vadd.f32 0.0, %v1666
  %1668 = vmatmul.f32.gmra.mxu0 %v1184
  %v1669 = vpop.f32.mrf.mxu0
  %v1670 = vadd.f32 0.0, %v1669
  %1671 = vmatmul.f32.gmra.mxu0 %v1186
  %v1672 = vpop.f32.mrf.mxu0
  %v1673 = vadd.f32 0.0, %v1672
  %1674 = vmatmul.f32.gmra.mxu0 %v1188
  %v1675 = vpop.f32.mrf.mxu0
  %v1676 = vadd.f32 0.0, %v1675
  %1677 = vmatmul.f32.gmra.mxu0 %v1190
  %v1678 = vpop.f32.mrf.mxu0
  %v1679 = vadd.f32 0.0, %v1678
  %1680 = vmatmul.f32.gmra.mxu0 %v1192
  %v1681 = vpop.f32.mrf.mxu0
  %v1682 = vadd.f32 0.0, %v1681
  %1683 = vmatmul.f32.gmra.mxu0 %v1194
  %v1684 = vpop.f32.mrf.mxu0
  %v1685 = vadd.f32 0.0, %v1684
  %1686 = vmatmul.f32.gmra.mxu0 %v1196
  %v1687 = vpop.f32.mrf.mxu0
  %v1688 = vadd.f32 0.0, %v1687
  %1689 = vmatmul.f32.gmra.mxu0 %v1198
  %v1690 = vpop.f32.mrf.mxu0
  %v1691 = vadd.f32 0.0, %v1690
  %1692 = vmatmul.f32.gmra.mxu0 %v1200
  %v1693 = vpop.f32.mrf.mxu0
  %v1694 = vadd.f32 0.0, %v1693
  %1695 = vmatmul.f32.gmra.mxu0 %v1202
  %v1696 = vpop.f32.mrf.mxu0
  %v1697 = vadd.f32 0.0, %v1696
  %1698 = vmatmul.f32.gmra.mxu0 %v1204
  %v1699 = vpop.f32.mrf.mxu0
  %v1700 = vadd.f32 0.0, %v1699
  %1701 = vmatmul.f32.gmra.mxu0 %v1206
  %v1702 = vpop.f32.mrf.mxu0
  %v1703 = vadd.f32 0.0, %v1702
  %1704 = vmatmul.f32.gmra.mxu0 %v1208
  %v1705 = vpop.f32.mrf.mxu0
  %v1706 = vadd.f32 0.0, %v1705
  %1707 = vdwg.mxu0
  %1708 = vrot.lane.b32.xlu0 %v67, 64
  %v1709 = vpop.permute.xlu0 %1708
  %1710 = vrot.lane.b32.xlu0 %v68, 64
  %v1711 = vpop.permute.xlu0 %1710
  %1712 = vrot.lane.b32.xlu0 %v69, 64
  %v1713 = vpop.permute.xlu0 %1712
  %1714 = vrot.lane.b32.xlu0 %v70, 64
  %v1715 = vpop.permute.xlu0 %1714
  %1716 = vrot.lane.b32.xlu0 %v71, 64
  %v1717 = vpop.permute.xlu0 %1716
  %1718 = vrot.lane.b32.xlu0 %v72, 64
  %v1719 = vpop.permute.xlu0 %1718
  %1720 = vrot.lane.b32.xlu0 %v73, 64
  %v1721 = vpop.permute.xlu0 %1720
  %1722 = vrot.lane.b32.xlu0 %v74, 64
  %v1723 = vpop.permute.xlu0 %1722
  %1724 = vrot.lane.b32.xlu0 %v75, 64
  %v1725 = vpop.permute.xlu0 %1724
  %1726 = vrot.lane.b32.xlu0 %v76, 64
  %v1727 = vpop.permute.xlu0 %1726
  %1728 = vrot.lane.b32.xlu0 %v77, 64
  %v1729 = vpop.permute.xlu0 %1728
  %1730 = vrot.lane.b32.xlu0 %v78, 64
  %v1731 = vpop.permute.xlu0 %1730
  %1732 = vrot.lane.b32.xlu0 %v79, 64
  %v1733 = vpop.permute.xlu0 %1732
  %1734 = vrot.lane.b32.xlu0 %v80, 64
  %v1735 = vpop.permute.xlu0 %1734
  %1736 = vrot.lane.b32.xlu0 %v81, 64
  %v1737 = vpop.permute.xlu0 %1736
  %1738 = vrot.lane.b32.xlu0 %v82, 64
  %v1739 = vpop.permute.xlu0 %1738
  %1756 = vmatpush.msra.mxu0 %v1739
  %1757 = vmatpush.msra.mxu0 %v1737
  %1758 = vmatpush.msra.mxu0 %v1735
  %1759 = vmatpush.msra.mxu0 %v1733
  %1760 = vmatpush.msra.mxu0 %v1731
  %1761 = vmatpush.msra.mxu0 %v1729
  %1762 = vmatpush.msra.mxu0 %v1727
  %1763 = vmatpush.msra.mxu0 %v1725
  %1764 = vmatpush.msra.mxu0 %v1723
  %1765 = vmatpush.msra.mxu0 %v1721
  %1766 = vmatpush.msra.mxu0 %v1719
  %1767 = vmatpush.msra.mxu0 %v1717
  %1768 = vmatpush.msra.mxu0 %v1715
  %1769 = vmatpush.msra.mxu0 %v1713
  %1770 = vmatpush.msra.mxu0 %v1711
  %1771 = vmatpush.msra.mxu0 %v1709
  %1772 = vmatmul.f32.gmra.mxu0 %v1210
  %v1773 = vpop.f32.mrf.mxu0
  %v1774 = vadd.f32 0.0, %v1773
  %1775 = vmatmul.f32.gmra.mxu0 %v1212
  %v1776 = vpop.f32.mrf.mxu0
  %v1777 = vadd.f32 0.0, %v1776
  %1778 = vmatmul.f32.gmra.mxu0 %v1214
  %v1779 = vpop.f32.mrf.mxu0
  %v1780 = vadd.f32 0.0, %v1779
  %1781 = vmatmul.f32.gmra.mxu0 %v1216
  %v1782 = vpop.f32.mrf.mxu0
  %v1783 = vadd.f32 0.0, %v1782
  %1784 = vmatmul.f32.gmra.mxu0 %v1218
  %v1785 = vpop.f32.mrf.mxu0
  %v1786 = vadd.f32 0.0, %v1785
  %1787 = vmatmul.f32.gmra.mxu0 %v1220
  %v1788 = vpop.f32.mrf.mxu0
  %v1789 = vadd.f32 0.0, %v1788
  %1790 = vmatmul.f32.gmra.mxu0 %v1222
  %v1791 = vpop.f32.mrf.mxu0
  %v1792 = vadd.f32 0.0, %v1791
  %1793 = vmatmul.f32.gmra.mxu0 %v1224
  %v1794 = vpop.f32.mrf.mxu0
  %v1795 = vadd.f32 0.0, %v1794
  %1796 = vmatmul.f32.gmra.mxu0 %v1226
  %v1797 = vpop.f32.mrf.mxu0
  %v1798 = vadd.f32 0.0, %v1797
  %1799 = vmatmul.f32.gmra.mxu0 %v1228
  %v1800 = vpop.f32.mrf.mxu0
  %v1801 = vadd.f32 0.0, %v1800
  %1802 = vmatmul.f32.gmra.mxu0 %v1230
  %v1803 = vpop.f32.mrf.mxu0
  %v1804 = vadd.f32 0.0, %v1803
  %1805 = vmatmul.f32.gmra.mxu0 %v1232
  %v1806 = vpop.f32.mrf.mxu0
  %v1807 = vadd.f32 0.0, %v1806
  %1808 = vmatmul.f32.gmra.mxu0 %v1234
  %v1809 = vpop.f32.mrf.mxu0
  %v1810 = vadd.f32 0.0, %v1809
  %1811 = vmatmul.f32.gmra.mxu0 %v1236
  %v1812 = vpop.f32.mrf.mxu0
  %v1813 = vadd.f32 0.0, %v1812
  %1814 = vmatmul.f32.gmra.mxu0 %v1238
  %v1815 = vpop.f32.mrf.mxu0
  %v1816 = vadd.f32 0.0, %v1815
  %1817 = vmatmul.f32.gmra.mxu0 %v1240
  %v1818 = vpop.f32.mrf.mxu0
  %v1819 = vadd.f32 0.0, %v1818
  %1820 = vdwg.mxu0
  %v1821 = vrcp.pop %v1242
  %v1822 = vmul.f32 %v1242, %v1821
  %v1823 = vsub.f32 1.0, %v1822
  %v1824 = vmul.f32 %v1821, %v1823
  %v1825 = vadd.f32 %v1821, %v1824
  %vm1826 = vweird.f32 %v1242
  %vm1827 = vweird.f32 %v1821
  %vm1828 = vmor %vm1826, %vm1827
  %v1829 = vsel %vm1828, %v1821, %v1825
  %v1830 = vand.u32 2147483647, %v1242
  %vm1831 = vcmp.eq.f32.partialorder %v1830, 8.507059e+37
  %v1832 = vand.u32 %v1242, 2147483648
  %v1833 = vor.u32 1.1754944e-38, %v1832
  %v1834 = vsel %vm1831, %v1833, %v1829
  %v1835 = vmul.f32 1.0, %v1834
  %v1836 = vrcp.pop %v1244
  %v1837 = vmul.f32 %v1244, %v1836
  %v1838 = vsub.f32 1.0, %v1837
  %v1839 = vmul.f32 %v1836, %v1838
  %v1840 = vadd.f32 %v1836, %v1839
  %vm1841 = vweird.f32 %v1244
  %vm1842 = vweird.f32 %v1836
  %vm1843 = vmor %vm1841, %vm1842
  %v1844 = vsel %vm1843, %v1836, %v1840
  %v1845 = vand.u32 2147483647, %v1244
  %vm1846 = vcmp.eq.f32.partialorder %v1845, 8.507059e+37
  %v1847 = vand.u32 %v1244, 2147483648
  %v1848 = vor.u32 1.1754944e-38, %v1847
  %v1849 = vsel %vm1846, %v1848, %v1844
  %v1850 = vmul.f32 1.0, %v1849
  %v1851 = vrcp.pop %v1246
  %v1852 = vmul.f32 %v1246, %v1851
  %v1853 = vsub.f32 1.0, %v1852
  %v1854 = vmul.f32 %v1851, %v1853
  %v1855 = vadd.f32 %v1851, %v1854
  %vm1856 = vweird.f32 %v1246
  %vm1857 = vweird.f32 %v1851
  %vm1858 = vmor %vm1856, %vm1857
  %v1859 = vsel %vm1858, %v1851, %v1855
  %v1860 = vand.u32 2147483647, %v1246
  %vm1861 = vcmp.eq.f32.partialorder %v1860, 8.507059e+37
  %v1862 = vand.u32 %v1246, 2147483648
  %v1863 = vor.u32 1.1754944e-38, %v1862
  %v1864 = vsel %vm1861, %v1863, %v1859
  %v1865 = vmul.f32 1.0, %v1864
  %v1866 = vrcp.pop %v1248
  %v1867 = vmul.f32 %v1248, %v1866
  %v1868 = vsub.f32 1.0, %v1867
  %v1869 = vmul.f32 %v1866, %v1868
  %v1870 = vadd.f32 %v1866, %v1869
  %vm1871 = vweird.f32 %v1248
  %vm1872 = vweird.f32 %v1866
  %vm1873 = vmor %vm1871, %vm1872
  %v1874 = vsel %vm1873, %v1866, %v1870
  %v1875 = vand.u32 2147483647, %v1248
  %vm1876 = vcmp.eq.f32.partialorder %v1875, 8.507059e+37
  %v1877 = vand.u32 %v1248, 2147483648
  %v1878 = vor.u32 1.1754944e-38, %v1877
  %v1879 = vsel %vm1876, %v1878, %v1874
  %v1880 = vmul.f32 1.0, %v1879
  %v1881 = vrcp.pop %v1250
  %v1882 = vmul.f32 %v1250, %v1881
  %v1883 = vsub.f32 1.0, %v1882
  %v1884 = vmul.f32 %v1881, %v1883
  %v1885 = vadd.f32 %v1881, %v1884
  %vm1886 = vweird.f32 %v1250
  %vm1887 = vweird.f32 %v1881
  %vm1888 = vmor %vm1886, %vm1887
  %v1889 = vsel %vm1888, %v1881, %v1885
  %v1890 = vand.u32 2147483647, %v1250
  %vm1891 = vcmp.eq.f32.partialorder %v1890, 8.507059e+37
  %v1892 = vand.u32 %v1250, 2147483648
  %v1893 = vor.u32 1.1754944e-38, %v1892
  %v1894 = vsel %vm1891, %v1893, %v1889
  %v1895 = vmul.f32 1.0, %v1894
  %v1896 = vrcp.pop %v1252
  %v1897 = vmul.f32 %v1252, %v1896
  %v1898 = vsub.f32 1.0, %v1897
  %v1899 = vmul.f32 %v1896, %v1898
  %v1900 = vadd.f32 %v1896, %v1899
  %vm1901 = vweird.f32 %v1252
  %vm1902 = vweird.f32 %v1896
  %vm1903 = vmor %vm1901, %vm1902
  %v1904 = vsel %vm1903, %v1896, %v1900
  %v1905 = vand.u32 2147483647, %v1252
  %vm1906 = vcmp.eq.f32.partialorder %v1905, 8.507059e+37
  %v1907 = vand.u32 %v1252, 2147483648
  %v1908 = vor.u32 1.1754944e-38, %v1907
  %v1909 = vsel %vm1906, %v1908, %v1904
  %v1910 = vmul.f32 1.0, %v1909
  %v1911 = vrcp.pop %v1254
  %v1912 = vmul.f32 %v1254, %v1911
  %v1913 = vsub.f32 1.0, %v1912
  %v1914 = vmul.f32 %v1911, %v1913
  %v1915 = vadd.f32 %v1911, %v1914
  %vm1916 = vweird.f32 %v1254
  %vm1917 = vweird.f32 %v1911
  %vm1918 = vmor %vm1916, %vm1917
  %v1919 = vsel %vm1918, %v1911, %v1915
  %v1920 = vand.u32 2147483647, %v1254
  %vm1921 = vcmp.eq.f32.partialorder %v1920, 8.507059e+37
  %v1922 = vand.u32 %v1254, 2147483648
  %v1923 = vor.u32 1.1754944e-38, %v1922
  %v1924 = vsel %vm1921, %v1923, %v1919
  %v1925 = vmul.f32 1.0, %v1924
  %v1926 = vrcp.pop %v1256
  %v1927 = vmul.f32 %v1256, %v1926
  %v1928 = vsub.f32 1.0, %v1927
  %v1929 = vmul.f32 %v1926, %v1928
  %v1930 = vadd.f32 %v1926, %v1929
  %vm1931 = vweird.f32 %v1256
  %vm1932 = vweird.f32 %v1926
  %vm1933 = vmor %vm1931, %vm1932
  %v1934 = vsel %vm1933, %v1926, %v1930
  %v1935 = vand.u32 2147483647, %v1256
  %vm1936 = vcmp.eq.f32.partialorder %v1935, 8.507059e+37
  %v1937 = vand.u32 %v1256, 2147483648
  %v1938 = vor.u32 1.1754944e-38, %v1937
  %v1939 = vsel %vm1936, %v1938, %v1934
  %v1940 = vmul.f32 1.0, %v1939
  %v1941 = vrcp.pop %v1258
  %v1942 = vmul.f32 %v1258, %v1941
  %v1943 = vsub.f32 1.0, %v1942
  %v1944 = vmul.f32 %v1941, %v1943
  %v1945 = vadd.f32 %v1941, %v1944
  %vm1946 = vweird.f32 %v1258
  %vm1947 = vweird.f32 %v1941
  %vm1948 = vmor %vm1946, %vm1947
  %v1949 = vsel %vm1948, %v1941, %v1945
  %v1950 = vand.u32 2147483647, %v1258
  %vm1951 = vcmp.eq.f32.partialorder %v1950, 8.507059e+37
  %v1952 = vand.u32 %v1258, 2147483648
  %v1953 = vor.u32 1.1754944e-38, %v1952
  %v1954 = vsel %vm1951, %v1953, %v1949
  %v1955 = vmul.f32 1.0, %v1954
  %v1956 = vrcp.pop %v1260
  %v1957 = vmul.f32 %v1260, %v1956
  %v1958 = vsub.f32 1.0, %v1957
  %v1959 = vmul.f32 %v1956, %v1958
  %v1960 = vadd.f32 %v1956, %v1959
  %vm1961 = vweird.f32 %v1260
  %vm1962 = vweird.f32 %v1956
  %vm1963 = vmor %vm1961, %vm1962
  %v1964 = vsel %vm1963, %v1956, %v1960
  %v1965 = vand.u32 2147483647, %v1260
  %vm1966 = vcmp.eq.f32.partialorder %v1965, 8.507059e+37
  %v1967 = vand.u32 %v1260, 2147483648
  %v1968 = vor.u32 1.1754944e-38, %v1967
  %v1969 = vsel %vm1966, %v1968, %v1964
  %v1970 = vmul.f32 1.0, %v1969
  %v1971 = vrcp.pop %v1262
  %v1972 = vmul.f32 %v1262, %v1971
  %v1973 = vsub.f32 1.0, %v1972
  %v1974 = vmul.f32 %v1971, %v1973
  %v1975 = vadd.f32 %v1971, %v1974
  %vm1976 = vweird.f32 %v1262
  %vm1977 = vweird.f32 %v1971
  %vm1978 = vmor %vm1976, %vm1977
  %v1979 = vsel %vm1978, %v1971, %v1975
  %v1980 = vand.u32 2147483647, %v1262
  %vm1981 = vcmp.eq.f32.partialorder %v1980, 8.507059e+37
  %v1982 = vand.u32 %v1262, 2147483648
  %v1983 = vor.u32 1.1754944e-38, %v1982
  %v1984 = vsel %vm1981, %v1983, %v1979
  %v1985 = vmul.f32 1.0, %v1984
  %v1986 = vrcp.pop %v1264
  %v1987 = vmul.f32 %v1264, %v1986
  %v1988 = vsub.f32 1.0, %v1987
  %v1989 = vmul.f32 %v1986, %v1988
  %v1990 = vadd.f32 %v1986, %v1989
  %vm1991 = vweird.f32 %v1264
  %vm1992 = vweird.f32 %v1986
  %vm1993 = vmor %vm1991, %vm1992
  %v1994 = vsel %vm1993, %v1986, %v1990
  %v1995 = vand.u32 2147483647, %v1264
  %vm1996 = vcmp.eq.f32.partialorder %v1995, 8.507059e+37
  %v1997 = vand.u32 %v1264, 2147483648
  %v1998 = vor.u32 1.1754944e-38, %v1997
  %v1999 = vsel %vm1996, %v1998, %v1994
  %v2000 = vmul.f32 1.0, %v1999
  %v2001 = vrcp.pop %v1266
  %v2002 = vmul.f32 %v1266, %v2001
  %v2003 = vsub.f32 1.0, %v2002
  %v2004 = vmul.f32 %v2001, %v2003
  %v2005 = vadd.f32 %v2001, %v2004
  %vm2006 = vweird.f32 %v1266
  %vm2007 = vweird.f32 %v2001
  %vm2008 = vmor %vm2006, %vm2007
  %v2009 = vsel %vm2008, %v2001, %v2005
  %v2010 = vand.u32 2147483647, %v1266
  %vm2011 = vcmp.eq.f32.partialorder %v2010, 8.507059e+37
  %v2012 = vand.u32 %v1266, 2147483648
  %v2013 = vor.u32 1.1754944e-38, %v2012
  %v2014 = vsel %vm2011, %v2013, %v2009
  %v2015 = vmul.f32 1.0, %v2014
  %v2016 = vrcp.pop %v1268
  %v2017 = vmul.f32 %v1268, %v2016
  %v2018 = vsub.f32 1.0, %v2017
  %v2019 = vmul.f32 %v2016, %v2018
  %v2020 = vadd.f32 %v2016, %v2019
  %vm2021 = vweird.f32 %v1268
  %vm2022 = vweird.f32 %v2016
  %vm2023 = vmor %vm2021, %vm2022
  %v2024 = vsel %vm2023, %v2016, %v2020
  %v2025 = vand.u32 2147483647, %v1268
  %vm2026 = vcmp.eq.f32.partialorder %v2025, 8.507059e+37
  %v2027 = vand.u32 %v1268, 2147483648
  %v2028 = vor.u32 1.1754944e-38, %v2027
  %v2029 = vsel %vm2026, %v2028, %v2024
  %v2030 = vmul.f32 1.0, %v2029
  %v2031 = vrcp.pop %v1270
  %v2032 = vmul.f32 %v1270, %v2031
  %v2033 = vsub.f32 1.0, %v2032
  %v2034 = vmul.f32 %v2031, %v2033
  %v2035 = vadd.f32 %v2031, %v2034
  %vm2036 = vweird.f32 %v1270
  %vm2037 = vweird.f32 %v2031
  %vm2038 = vmor %vm2036, %vm2037
  %v2039 = vsel %vm2038, %v2031, %v2035
  %v2040 = vand.u32 2147483647, %v1270
  %vm2041 = vcmp.eq.f32.partialorder %v2040, 8.507059e+37
  %v2042 = vand.u32 %v1270, 2147483648
  %v2043 = vor.u32 1.1754944e-38, %v2042
  %v2044 = vsel %vm2041, %v2043, %v2039
  %v2045 = vmul.f32 1.0, %v2044
  %v2046 = vrcp.pop %v1272
  %v2047 = vmul.f32 %v1272, %v2046
  %v2048 = vsub.f32 1.0, %v2047
  %v2049 = vmul.f32 %v2046, %v2048
  %v2050 = vadd.f32 %v2046, %v2049
  %vm2051 = vweird.f32 %v1272
  %vm2052 = vweird.f32 %v2046
  %vm2053 = vmor %vm2051, %vm2052
  %v2054 = vsel %vm2053, %v2046, %v2050
  %v2055 = vand.u32 2147483647, %v1272
  %vm2056 = vcmp.eq.f32.partialorder %v2055, 8.507059e+37
  %v2057 = vand.u32 %v1272, 2147483648
  %v2058 = vor.u32 1.1754944e-38, %v2057
  %v2059 = vsel %vm2056, %v2058, %v2054
  %v2060 = vmul.f32 1.0, %v2059
  %v2061 = vrcp.pop %v1274
  %v2062 = vmul.f32 %v1274, %v2061
  %v2063 = vsub.f32 1.0, %v2062
  %v2064 = vmul.f32 %v2061, %v2063
  %v2065 = vadd.f32 %v2061, %v2064
  %vm2066 = vweird.f32 %v1274
  %vm2067 = vweird.f32 %v2061
  %vm2068 = vmor %vm2066, %vm2067
  %v2069 = vsel %vm2068, %v2061, %v2065
  %v2070 = vand.u32 2147483647, %v1274
  %vm2071 = vcmp.eq.f32.partialorder %v2070, 8.507059e+37
  %v2072 = vand.u32 %v1274, 2147483648
  %v2073 = vor.u32 1.1754944e-38, %v2072
  %v2074 = vsel %vm2071, %v2073, %v2069
  %v2075 = vmul.f32 1.0, %v2074
  %v2076 = vrcp.pop %v1276
  %v2077 = vmul.f32 %v1276, %v2076
  %v2078 = vsub.f32 1.0, %v2077
  %v2079 = vmul.f32 %v2076, %v2078
  %v2080 = vadd.f32 %v2076, %v2079
  %vm2081 = vweird.f32 %v1276
  %vm2082 = vweird.f32 %v2076
  %vm2083 = vmor %vm2081, %vm2082
  %v2084 = vsel %vm2083, %v2076, %v2080
  %v2085 = vand.u32 2147483647, %v1276
  %vm2086 = vcmp.eq.f32.partialorder %v2085, 8.507059e+37
  %v2087 = vand.u32 %v1276, 2147483648
  %v2088 = vor.u32 1.1754944e-38, %v2087
  %v2089 = vsel %vm2086, %v2088, %v2084
  %v2090 = vmul.f32 1.0, %v2089
  %v2091 = vrcp.pop %v1278
  %v2092 = vmul.f32 %v1278, %v2091
  %v2093 = vsub.f32 1.0, %v2092
  %v2094 = vmul.f32 %v2091, %v2093
  %v2095 = vadd.f32 %v2091, %v2094
  %vm2096 = vweird.f32 %v1278
  %vm2097 = vweird.f32 %v2091
  %vm2098 = vmor %vm2096, %vm2097
  %v2099 = vsel %vm2098, %v2091, %v2095
  %v2100 = vand.u32 2147483647, %v1278
  %vm2101 = vcmp.eq.f32.partialorder %v2100, 8.507059e+37
  %v2102 = vand.u32 %v1278, 2147483648
  %v2103 = vor.u32 1.1754944e-38, %v2102
  %v2104 = vsel %vm2101, %v2103, %v2099
  %v2105 = vmul.f32 1.0, %v2104
  %v2106 = vrcp.pop %v1280
  %v2107 = vmul.f32 %v1280, %v2106
  %v2108 = vsub.f32 1.0, %v2107
  %v2109 = vmul.f32 %v2106, %v2108
  %v2110 = vadd.f32 %v2106, %v2109
  %vm2111 = vweird.f32 %v1280
  %vm2112 = vweird.f32 %v2106
  %vm2113 = vmor %vm2111, %vm2112
  %v2114 = vsel %vm2113, %v2106, %v2110
  %v2115 = vand.u32 2147483647, %v1280
  %vm2116 = vcmp.eq.f32.partialorder %v2115, 8.507059e+37
  %v2117 = vand.u32 %v1280, 2147483648
  %v2118 = vor.u32 1.1754944e-38, %v2117
  %v2119 = vsel %vm2116, %v2118, %v2114
  %v2120 = vmul.f32 1.0, %v2119
  %v2121 = vrcp.pop %v1282
  %v2122 = vmul.f32 %v1282, %v2121
  %v2123 = vsub.f32 1.0, %v2122
  %v2124 = vmul.f32 %v2121, %v2123
  %v2125 = vadd.f32 %v2121, %v2124
  %vm2126 = vweird.f32 %v1282
  %vm2127 = vweird.f32 %v2121
  %vm2128 = vmor %vm2126, %vm2127
  %v2129 = vsel %vm2128, %v2121, %v2125
  %v2130 = vand.u32 2147483647, %v1282
  %vm2131 = vcmp.eq.f32.partialorder %v2130, 8.507059e+37
  %v2132 = vand.u32 %v1282, 2147483648
  %v2133 = vor.u32 1.1754944e-38, %v2132
  %v2134 = vsel %vm2131, %v2133, %v2129
  %v2135 = vmul.f32 1.0, %v2134
  %v2136 = vrcp.pop %v1284
  %v2137 = vmul.f32 %v1284, %v2136
  %v2138 = vsub.f32 1.0, %v2137
  %v2139 = vmul.f32 %v2136, %v2138
  %v2140 = vadd.f32 %v2136, %v2139
  %vm2141 = vweird.f32 %v1284
  %vm2142 = vweird.f32 %v2136
  %vm2143 = vmor %vm2141, %vm2142
  %v2144 = vsel %vm2143, %v2136, %v2140
  %v2145 = vand.u32 2147483647, %v1284
  %vm2146 = vcmp.eq.f32.partialorder %v2145, 8.507059e+37
  %v2147 = vand.u32 %v1284, 2147483648
  %v2148 = vor.u32 1.1754944e-38, %v2147
  %v2149 = vsel %vm2146, %v2148, %v2144
  %v2150 = vmul.f32 1.0, %v2149
  %v2151 = vrcp.pop %v1286
  %v2152 = vmul.f32 %v1286, %v2151
  %v2153 = vsub.f32 1.0, %v2152
  %v2154 = vmul.f32 %v2151, %v2153
  %v2155 = vadd.f32 %v2151, %v2154
  %vm2156 = vweird.f32 %v1286
  %vm2157 = vweird.f32 %v2151
  %vm2158 = vmor %vm2156, %vm2157
  %v2159 = vsel %vm2158, %v2151, %v2155
  %v2160 = vand.u32 2147483647, %v1286
  %vm2161 = vcmp.eq.f32.partialorder %v2160, 8.507059e+37
  %v2162 = vand.u32 %v1286, 2147483648
  %v2163 = vor.u32 1.1754944e-38, %v2162
  %v2164 = vsel %vm2161, %v2163, %v2159
  %v2165 = vmul.f32 1.0, %v2164
  %v2166 = vrcp.pop %v1288
  %v2167 = vmul.f32 %v1288, %v2166
  %v2168 = vsub.f32 1.0, %v2167
  %v2169 = vmul.f32 %v2166, %v2168
  %v2170 = vadd.f32 %v2166, %v2169
  %vm2171 = vweird.f32 %v1288
  %vm2172 = vweird.f32 %v2166
  %vm2173 = vmor %vm2171, %vm2172
  %v2174 = vsel %vm2173, %v2166, %v2170
  %v2175 = vand.u32 2147483647, %v1288
  %vm2176 = vcmp.eq.f32.partialorder %v2175, 8.507059e+37
  %v2177 = vand.u32 %v1288, 2147483648
  %v2178 = vor.u32 1.1754944e-38, %v2177
  %v2179 = vsel %vm2176, %v2178, %v2174
  %v2180 = vmul.f32 1.0, %v2179
  %v2181 = vrcp.pop %v1290
  %v2182 = vmul.f32 %v1290, %v2181
  %v2183 = vsub.f32 1.0, %v2182
  %v2184 = vmul.f32 %v2181, %v2183
  %v2185 = vadd.f32 %v2181, %v2184
  %vm2186 = vweird.f32 %v1290
  %vm2187 = vweird.f32 %v2181
  %vm2188 = vmor %vm2186, %vm2187
  %v2189 = vsel %vm2188, %v2181, %v2185
  %v2190 = vand.u32 2147483647, %v1290
  %vm2191 = vcmp.eq.f32.partialorder %v2190, 8.507059e+37
  %v2192 = vand.u32 %v1290, 2147483648
  %v2193 = vor.u32 1.1754944e-38, %v2192
  %v2194 = vsel %vm2191, %v2193, %v2189
  %v2195 = vmul.f32 1.0, %v2194
  %v2196 = vrcp.pop %v1292
  %v2197 = vmul.f32 %v1292, %v2196
  %v2198 = vsub.f32 1.0, %v2197
  %v2199 = vmul.f32 %v2196, %v2198
  %v2200 = vadd.f32 %v2196, %v2199
  %vm2201 = vweird.f32 %v1292
  %vm2202 = vweird.f32 %v2196
  %vm2203 = vmor %vm2201, %vm2202
  %v2204 = vsel %vm2203, %v2196, %v2200
  %v2205 = vand.u32 2147483647, %v1292
  %vm2206 = vcmp.eq.f32.partialorder %v2205, 8.507059e+37
  %v2207 = vand.u32 %v1292, 2147483648
  %v2208 = vor.u32 1.1754944e-38, %v2207
  %v2209 = vsel %vm2206, %v2208, %v2204
  %v2210 = vmul.f32 1.0, %v2209
  %v2211 = vrcp.pop %v1294
  %v2212 = vmul.f32 %v1294, %v2211
  %v2213 = vsub.f32 1.0, %v2212
  %v2214 = vmul.f32 %v2211, %v2213
  %v2215 = vadd.f32 %v2211, %v2214
  %vm2216 = vweird.f32 %v1294
  %vm2217 = vweird.f32 %v2211
  %vm2218 = vmor %vm2216, %vm2217
  %v2219 = vsel %vm2218, %v2211, %v2215
  %v2220 = vand.u32 2147483647, %v1294
  %vm2221 = vcmp.eq.f32.partialorder %v2220, 8.507059e+37
  %v2222 = vand.u32 %v1294, 2147483648
  %v2223 = vor.u32 1.1754944e-38, %v2222
  %v2224 = vsel %vm2221, %v2223, %v2219
  %v2225 = vmul.f32 1.0, %v2224
  %v2226 = vrcp.pop %v1296
  %v2227 = vmul.f32 %v1296, %v2226
  %v2228 = vsub.f32 1.0, %v2227
  %v2229 = vmul.f32 %v2226, %v2228
  %v2230 = vadd.f32 %v2226, %v2229
  %vm2231 = vweird.f32 %v1296
  %vm2232 = vweird.f32 %v2226
  %vm2233 = vmor %vm2231, %vm2232
  %v2234 = vsel %vm2233, %v2226, %v2230
  %v2235 = vand.u32 2147483647, %v1296
  %vm2236 = vcmp.eq.f32.partialorder %v2235, 8.507059e+37
  %v2237 = vand.u32 %v1296, 2147483648
  %v2238 = vor.u32 1.1754944e-38, %v2237
  %v2239 = vsel %vm2236, %v2238, %v2234
  %v2240 = vmul.f32 1.0, %v2239
  %v2241 = vrcp.pop %v1298
  %v2242 = vmul.f32 %v1298, %v2241
  %v2243 = vsub.f32 1.0, %v2242
  %v2244 = vmul.f32 %v2241, %v2243
  %v2245 = vadd.f32 %v2241, %v2244
  %vm2246 = vweird.f32 %v1298
  %vm2247 = vweird.f32 %v2241
  %vm2248 = vmor %vm2246, %vm2247
  %v2249 = vsel %vm2248, %v2241, %v2245
  %v2250 = vand.u32 2147483647, %v1298
  %vm2251 = vcmp.eq.f32.partialorder %v2250, 8.507059e+37
  %v2252 = vand.u32 %v1298, 2147483648
  %v2253 = vor.u32 1.1754944e-38, %v2252
  %v2254 = vsel %vm2251, %v2253, %v2249
  %v2255 = vmul.f32 1.0, %v2254
  %v2256 = vrcp.pop %v1300
  %v2257 = vmul.f32 %v1300, %v2256
  %v2258 = vsub.f32 1.0, %v2257
  %v2259 = vmul.f32 %v2256, %v2258
  %v2260 = vadd.f32 %v2256, %v2259
  %vm2261 = vweird.f32 %v1300
  %vm2262 = vweird.f32 %v2256
  %vm2263 = vmor %vm2261, %vm2262
  %v2264 = vsel %vm2263, %v2256, %v2260
  %v2265 = vand.u32 2147483647, %v1300
  %vm2266 = vcmp.eq.f32.partialorder %v2265, 8.507059e+37
  %v2267 = vand.u32 %v1300, 2147483648
  %v2268 = vor.u32 1.1754944e-38, %v2267
  %v2269 = vsel %vm2266, %v2268, %v2264
  %v2270 = vmul.f32 1.0, %v2269
  %v2271 = vrcp.pop %v1302
  %v2272 = vmul.f32 %v1302, %v2271
  %v2273 = vsub.f32 1.0, %v2272
  %v2274 = vmul.f32 %v2271, %v2273
  %v2275 = vadd.f32 %v2271, %v2274
  %vm2276 = vweird.f32 %v1302
  %vm2277 = vweird.f32 %v2271
  %vm2278 = vmor %vm2276, %vm2277
  %v2279 = vsel %vm2278, %v2271, %v2275
  %v2280 = vand.u32 2147483647, %v1302
  %vm2281 = vcmp.eq.f32.partialorder %v2280, 8.507059e+37
  %v2282 = vand.u32 %v1302, 2147483648
  %v2283 = vor.u32 1.1754944e-38, %v2282
  %v2284 = vsel %vm2281, %v2283, %v2279
  %v2285 = vmul.f32 1.0, %v2284
  %v2286 = vrcp.pop %v1304
  %v2287 = vmul.f32 %v1304, %v2286
  %v2288 = vsub.f32 1.0, %v2287
  %v2289 = vmul.f32 %v2286, %v2288
  %v2290 = vadd.f32 %v2286, %v2289
  %vm2291 = vweird.f32 %v1304
  %vm2292 = vweird.f32 %v2286
  %vm2293 = vmor %vm2291, %vm2292
  %v2294 = vsel %vm2293, %v2286, %v2290
  %v2295 = vand.u32 2147483647, %v1304
  %vm2296 = vcmp.eq.f32.partialorder %v2295, 8.507059e+37
  %v2297 = vand.u32 %v1304, 2147483648
  %v2298 = vor.u32 1.1754944e-38, %v2297
  %v2299 = vsel %vm2296, %v2298, %v2294
  %v2300 = vmul.f32 1.0, %v2299
  %v2301 = vrcp.pop %v1306
  %v2302 = vmul.f32 %v1306, %v2301
  %v2303 = vsub.f32 1.0, %v2302
  %v2304 = vmul.f32 %v2301, %v2303
  %v2305 = vadd.f32 %v2301, %v2304
  %vm2306 = vweird.f32 %v1306
  %vm2307 = vweird.f32 %v2301
  %vm2308 = vmor %vm2306, %vm2307
  %v2309 = vsel %vm2308, %v2301, %v2305
  %v2310 = vand.u32 2147483647, %v1306
  %vm2311 = vcmp.eq.f32.partialorder %v2310, 8.507059e+37
  %v2312 = vand.u32 %v1306, 2147483648
  %v2313 = vor.u32 1.1754944e-38, %v2312
  %v2314 = vsel %vm2311, %v2313, %v2309
  %v2315 = vmul.f32 1.0, %v2314
  %v2316 = vrcp.pop %v1308
  %v2317 = vmul.f32 %v1308, %v2316
  %v2318 = vsub.f32 1.0, %v2317
  %v2319 = vmul.f32 %v2316, %v2318
  %v2320 = vadd.f32 %v2316, %v2319
  %vm2321 = vweird.f32 %v1308
  %vm2322 = vweird.f32 %v2316
  %vm2323 = vmor %vm2321, %vm2322
  %v2324 = vsel %vm2323, %v2316, %v2320
  %v2325 = vand.u32 2147483647, %v1308
  %vm2326 = vcmp.eq.f32.partialorder %v2325, 8.507059e+37
  %v2327 = vand.u32 %v1308, 2147483648
  %v2328 = vor.u32 1.1754944e-38, %v2327
  %v2329 = vsel %vm2326, %v2328, %v2324
  %v2330 = vmul.f32 1.0, %v2329
  %v2331 = vrcp.pop %v1310
  %v2332 = vmul.f32 %v1310, %v2331
  %v2333 = vsub.f32 1.0, %v2332
  %v2334 = vmul.f32 %v2331, %v2333
  %v2335 = vadd.f32 %v2331, %v2334
  %vm2336 = vweird.f32 %v1310
  %vm2337 = vweird.f32 %v2331
  %vm2338 = vmor %vm2336, %vm2337
  %v2339 = vsel %vm2338, %v2331, %v2335
  %v2340 = vand.u32 2147483647, %v1310
  %vm2341 = vcmp.eq.f32.partialorder %v2340, 8.507059e+37
  %v2342 = vand.u32 %v1310, 2147483648
  %v2343 = vor.u32 1.1754944e-38, %v2342
  %v2344 = vsel %vm2341, %v2343, %v2339
  %v2345 = vmul.f32 1.0, %v2344
  %v2346 = vrcp.pop %v1312
  %v2347 = vmul.f32 %v1312, %v2346
  %v2348 = vsub.f32 1.0, %v2347
  %v2349 = vmul.f32 %v2346, %v2348
  %v2350 = vadd.f32 %v2346, %v2349
  %vm2351 = vweird.f32 %v1312
  %vm2352 = vweird.f32 %v2346
  %vm2353 = vmor %vm2351, %vm2352
  %v2354 = vsel %vm2353, %v2346, %v2350
  %v2355 = vand.u32 2147483647, %v1312
  %vm2356 = vcmp.eq.f32.partialorder %v2355, 8.507059e+37
  %v2357 = vand.u32 %v1312, 2147483648
  %v2358 = vor.u32 1.1754944e-38, %v2357
  %v2359 = vsel %vm2356, %v2358, %v2354
  %v2360 = vmul.f32 1.0, %v2359
  %v2361 = vrcp.pop %v1314
  %v2362 = vmul.f32 %v1314, %v2361
  %v2363 = vsub.f32 1.0, %v2362
  %v2364 = vmul.f32 %v2361, %v2363
  %v2365 = vadd.f32 %v2361, %v2364
  %vm2366 = vweird.f32 %v1314
  %vm2367 = vweird.f32 %v2361
  %vm2368 = vmor %vm2366, %vm2367
  %v2369 = vsel %vm2368, %v2361, %v2365
  %v2370 = vand.u32 2147483647, %v1314
  %vm2371 = vcmp.eq.f32.partialorder %v2370, 8.507059e+37
  %v2372 = vand.u32 %v1314, 2147483648
  %v2373 = vor.u32 1.1754944e-38, %v2372
  %v2374 = vsel %vm2371, %v2373, %v2369
  %v2375 = vmul.f32 1.0, %v2374
  %v2376 = vrcp.pop %v1316
  %v2377 = vmul.f32 %v1316, %v2376
  %v2378 = vsub.f32 1.0, %v2377
  %v2379 = vmul.f32 %v2376, %v2378
  %v2380 = vadd.f32 %v2376, %v2379
  %vm2381 = vweird.f32 %v1316
  %vm2382 = vweird.f32 %v2376
  %vm2383 = vmor %vm2381, %vm2382
  %v2384 = vsel %vm2383, %v2376, %v2380
  %v2385 = vand.u32 2147483647, %v1316
  %vm2386 = vcmp.eq.f32.partialorder %v2385, 8.507059e+37
  %v2387 = vand.u32 %v1316, 2147483648
  %v2388 = vor.u32 1.1754944e-38, %v2387
  %v2389 = vsel %vm2386, %v2388, %v2384
  %v2390 = vmul.f32 1.0, %v2389
  %v2391 = vrcp.pop %v1318
  %v2392 = vmul.f32 %v1318, %v2391
  %v2393 = vsub.f32 1.0, %v2392
  %v2394 = vmul.f32 %v2391, %v2393
  %v2395 = vadd.f32 %v2391, %v2394
  %vm2396 = vweird.f32 %v1318
  %vm2397 = vweird.f32 %v2391
  %vm2398 = vmor %vm2396, %vm2397
  %v2399 = vsel %vm2398, %v2391, %v2395
  %v2400 = vand.u32 2147483647, %v1318
  %vm2401 = vcmp.eq.f32.partialorder %v2400, 8.507059e+37
  %v2402 = vand.u32 %v1318, 2147483648
  %v2403 = vor.u32 1.1754944e-38, %v2402
  %v2404 = vsel %vm2401, %v2403, %v2399
  %v2405 = vmul.f32 1.0, %v2404
  %v2406 = vrcp.pop %v1320
  %v2407 = vmul.f32 %v1320, %v2406
  %v2408 = vsub.f32 1.0, %v2407
  %v2409 = vmul.f32 %v2406, %v2408
  %v2410 = vadd.f32 %v2406, %v2409
  %vm2411 = vweird.f32 %v1320
  %vm2412 = vweird.f32 %v2406
  %vm2413 = vmor %vm2411, %vm2412
  %v2414 = vsel %vm2413, %v2406, %v2410
  %v2415 = vand.u32 2147483647, %v1320
  %vm2416 = vcmp.eq.f32.partialorder %v2415, 8.507059e+37
  %v2417 = vand.u32 %v1320, 2147483648
  %v2418 = vor.u32 1.1754944e-38, %v2417
  %v2419 = vsel %vm2416, %v2418, %v2414
  %v2420 = vmul.f32 1.0, %v2419
  %v2421 = vrcp.pop %v1322
  %v2422 = vmul.f32 %v1322, %v2421
  %v2423 = vsub.f32 1.0, %v2422
  %v2424 = vmul.f32 %v2421, %v2423
  %v2425 = vadd.f32 %v2421, %v2424
  %vm2426 = vweird.f32 %v1322
  %vm2427 = vweird.f32 %v2421
  %vm2428 = vmor %vm2426, %vm2427
  %v2429 = vsel %vm2428, %v2421, %v2425
  %v2430 = vand.u32 2147483647, %v1322
  %vm2431 = vcmp.eq.f32.partialorder %v2430, 8.507059e+37
  %v2432 = vand.u32 %v1322, 2147483648
  %v2433 = vor.u32 1.1754944e-38, %v2432
  %v2434 = vsel %vm2431, %v2433, %v2429
  %v2435 = vmul.f32 1.0, %v2434
  %v2436 = vrcp.pop %v1324
  %v2437 = vmul.f32 %v1324, %v2436
  %v2438 = vsub.f32 1.0, %v2437
  %v2439 = vmul.f32 %v2436, %v2438
  %v2440 = vadd.f32 %v2436, %v2439
  %vm2441 = vweird.f32 %v1324
  %vm2442 = vweird.f32 %v2436
  %vm2443 = vmor %vm2441, %vm2442
  %v2444 = vsel %vm2443, %v2436, %v2440
  %v2445 = vand.u32 2147483647, %v1324
  %vm2446 = vcmp.eq.f32.partialorder %v2445, 8.507059e+37
  %v2447 = vand.u32 %v1324, 2147483648
  %v2448 = vor.u32 1.1754944e-38, %v2447
  %v2449 = vsel %vm2446, %v2448, %v2444
  %v2450 = vmul.f32 1.0, %v2449
  %v2451 = vrcp.pop %v1326
  %v2452 = vmul.f32 %v1326, %v2451
  %v2453 = vsub.f32 1.0, %v2452
  %v2454 = vmul.f32 %v2451, %v2453
  %v2455 = vadd.f32 %v2451, %v2454
  %vm2456 = vweird.f32 %v1326
  %vm2457 = vweird.f32 %v2451
  %vm2458 = vmor %vm2456, %vm2457
  %v2459 = vsel %vm2458, %v2451, %v2455
  %v2460 = vand.u32 2147483647, %v1326
  %vm2461 = vcmp.eq.f32.partialorder %v2460, 8.507059e+37
  %v2462 = vand.u32 %v1326, 2147483648
  %v2463 = vor.u32 1.1754944e-38, %v2462
  %v2464 = vsel %vm2461, %v2463, %v2459
  %v2465 = vmul.f32 1.0, %v2464
  %v2466 = vrcp.pop %v1328
  %v2467 = vmul.f32 %v1328, %v2466
  %v2468 = vsub.f32 1.0, %v2467
  %v2469 = vmul.f32 %v2466, %v2468
  %v2470 = vadd.f32 %v2466, %v2469
  %vm2471 = vweird.f32 %v1328
  %vm2472 = vweird.f32 %v2466
  %vm2473 = vmor %vm2471, %vm2472
  %v2474 = vsel %vm2473, %v2466, %v2470
  %v2475 = vand.u32 2147483647, %v1328
  %vm2476 = vcmp.eq.f32.partialorder %v2475, 8.507059e+37
  %v2477 = vand.u32 %v1328, 2147483648
  %v2478 = vor.u32 1.1754944e-38, %v2477
  %v2479 = vsel %vm2476, %v2478, %v2474
  %v2480 = vmul.f32 1.0, %v2479
  %v2481 = vrcp.pop %v1330
  %v2482 = vmul.f32 %v1330, %v2481
  %v2483 = vsub.f32 1.0, %v2482
  %v2484 = vmul.f32 %v2481, %v2483
  %v2485 = vadd.f32 %v2481, %v2484
  %vm2486 = vweird.f32 %v1330
  %vm2487 = vweird.f32 %v2481
  %vm2488 = vmor %vm2486, %vm2487
  %v2489 = vsel %vm2488, %v2481, %v2485
  %v2490 = vand.u32 2147483647, %v1330
  %vm2491 = vcmp.eq.f32.partialorder %v2490, 8.507059e+37
  %v2492 = vand.u32 %v1330, 2147483648
  %v2493 = vor.u32 1.1754944e-38, %v2492
  %v2494 = vsel %vm2491, %v2493, %v2489
  %v2495 = vmul.f32 1.0, %v2494
  %v2496 = vrcp.pop %v1332
  %v2497 = vmul.f32 %v1332, %v2496
  %v2498 = vsub.f32 1.0, %v2497
  %v2499 = vmul.f32 %v2496, %v2498
  %v2500 = vadd.f32 %v2496, %v2499
  %vm2501 = vweird.f32 %v1332
  %vm2502 = vweird.f32 %v2496
  %vm2503 = vmor %vm2501, %vm2502
  %v2504 = vsel %vm2503, %v2496, %v2500
  %v2505 = vand.u32 2147483647, %v1332
  %vm2506 = vcmp.eq.f32.partialorder %v2505, 8.507059e+37
  %v2507 = vand.u32 %v1332, 2147483648
  %v2508 = vor.u32 1.1754944e-38, %v2507
  %v2509 = vsel %vm2506, %v2508, %v2504
  %v2510 = vmul.f32 1.0, %v2509
  %v2511 = vrcp.pop %v1334
  %v2512 = vmul.f32 %v1334, %v2511
  %v2513 = vsub.f32 1.0, %v2512
  %v2514 = vmul.f32 %v2511, %v2513
  %v2515 = vadd.f32 %v2511, %v2514
  %vm2516 = vweird.f32 %v1334
  %vm2517 = vweird.f32 %v2511
  %vm2518 = vmor %vm2516, %vm2517
  %v2519 = vsel %vm2518, %v2511, %v2515
  %v2520 = vand.u32 2147483647, %v1334
  %vm2521 = vcmp.eq.f32.partialorder %v2520, 8.507059e+37
  %v2522 = vand.u32 %v1334, 2147483648
  %v2523 = vor.u32 1.1754944e-38, %v2522
  %v2524 = vsel %vm2521, %v2523, %v2519
  %v2525 = vmul.f32 1.0, %v2524
  %v2526 = vrcp.pop %v1336
  %v2527 = vmul.f32 %v1336, %v2526
  %v2528 = vsub.f32 1.0, %v2527
  %v2529 = vmul.f32 %v2526, %v2528
  %v2530 = vadd.f32 %v2526, %v2529
  %vm2531 = vweird.f32 %v1336
  %vm2532 = vweird.f32 %v2526
  %vm2533 = vmor %vm2531, %vm2532
  %v2534 = vsel %vm2533, %v2526, %v2530
  %v2535 = vand.u32 2147483647, %v1336
  %vm2536 = vcmp.eq.f32.partialorder %v2535, 8.507059e+37
  %v2537 = vand.u32 %v1336, 2147483648
  %v2538 = vor.u32 1.1754944e-38, %v2537
  %v2539 = vsel %vm2536, %v2538, %v2534
  %v2540 = vmul.f32 1.0, %v2539
  %v2541 = vrcp.pop %v1338
  %v2542 = vmul.f32 %v1338, %v2541
  %v2543 = vsub.f32 1.0, %v2542
  %v2544 = vmul.f32 %v2541, %v2543
  %v2545 = vadd.f32 %v2541, %v2544
  %vm2546 = vweird.f32 %v1338
  %vm2547 = vweird.f32 %v2541
  %vm2548 = vmor %vm2546, %vm2547
  %v2549 = vsel %vm2548, %v2541, %v2545
  %v2550 = vand.u32 2147483647, %v1338
  %vm2551 = vcmp.eq.f32.partialorder %v2550, 8.507059e+37
  %v2552 = vand.u32 %v1338, 2147483648
  %v2553 = vor.u32 1.1754944e-38, %v2552
  %v2554 = vsel %vm2551, %v2553, %v2549
  %v2555 = vmul.f32 1.0, %v2554
  %v2556 = vrcp.pop %v1340
  %v2557 = vmul.f32 %v1340, %v2556
  %v2558 = vsub.f32 1.0, %v2557
  %v2559 = vmul.f32 %v2556, %v2558
  %v2560 = vadd.f32 %v2556, %v2559
  %vm2561 = vweird.f32 %v1340
  %vm2562 = vweird.f32 %v2556
  %vm2563 = vmor %vm2561, %vm2562
  %v2564 = vsel %vm2563, %v2556, %v2560
  %v2565 = vand.u32 2147483647, %v1340
  %vm2566 = vcmp.eq.f32.partialorder %v2565, 8.507059e+37
  %v2567 = vand.u32 %v1340, 2147483648
  %v2568 = vor.u32 1.1754944e-38, %v2567
  %v2569 = vsel %vm2566, %v2568, %v2564
  %v2570 = vmul.f32 1.0, %v2569
  %v2571 = vrcp.pop %v1342
  %v2572 = vmul.f32 %v1342, %v2571
  %v2573 = vsub.f32 1.0, %v2572
  %v2574 = vmul.f32 %v2571, %v2573
  %v2575 = vadd.f32 %v2571, %v2574
  %vm2576 = vweird.f32 %v1342
  %vm2577 = vweird.f32 %v2571
  %vm2578 = vmor %vm2576, %vm2577
  %v2579 = vsel %vm2578, %v2571, %v2575
  %v2580 = vand.u32 2147483647, %v1342
  %vm2581 = vcmp.eq.f32.partialorder %v2580, 8.507059e+37
  %v2582 = vand.u32 %v1342, 2147483648
  %v2583 = vor.u32 1.1754944e-38, %v2582
  %v2584 = vsel %vm2581, %v2583, %v2579
  %v2585 = vmul.f32 1.0, %v2584
  %v2586 = vrcp.pop %v1344
  %v2587 = vmul.f32 %v1344, %v2586
  %v2588 = vsub.f32 1.0, %v2587
  %v2589 = vmul.f32 %v2586, %v2588
  %v2590 = vadd.f32 %v2586, %v2589
  %vm2591 = vweird.f32 %v1344
  %vm2592 = vweird.f32 %v2586
  %vm2593 = vmor %vm2591, %vm2592
  %v2594 = vsel %vm2593, %v2586, %v2590
  %v2595 = vand.u32 2147483647, %v1344
  %vm2596 = vcmp.eq.f32.partialorder %v2595, 8.507059e+37
  %v2597 = vand.u32 %v1344, 2147483648
  %v2598 = vor.u32 1.1754944e-38, %v2597
  %v2599 = vsel %vm2596, %v2598, %v2594
  %v2600 = vmul.f32 1.0, %v2599
  %v2601 = vrcp.pop %v1346
  %v2602 = vmul.f32 %v1346, %v2601
  %v2603 = vsub.f32 1.0, %v2602
  %v2604 = vmul.f32 %v2601, %v2603
  %v2605 = vadd.f32 %v2601, %v2604
  %vm2606 = vweird.f32 %v1346
  %vm2607 = vweird.f32 %v2601
  %vm2608 = vmor %vm2606, %vm2607
  %v2609 = vsel %vm2608, %v2601, %v2605
  %v2610 = vand.u32 2147483647, %v1346
  %vm2611 = vcmp.eq.f32.partialorder %v2610, 8.507059e+37
  %v2612 = vand.u32 %v1346, 2147483648
  %v2613 = vor.u32 1.1754944e-38, %v2612
  %v2614 = vsel %vm2611, %v2613, %v2609
  %v2615 = vmul.f32 1.0, %v2614
  %v2616 = vrcp.pop %v1348
  %v2617 = vmul.f32 %v1348, %v2616
  %v2618 = vsub.f32 1.0, %v2617
  %v2619 = vmul.f32 %v2616, %v2618
  %v2620 = vadd.f32 %v2616, %v2619
  %vm2621 = vweird.f32 %v1348
  %vm2622 = vweird.f32 %v2616
  %vm2623 = vmor %vm2621, %vm2622
  %v2624 = vsel %vm2623, %v2616, %v2620
  %v2625 = vand.u32 2147483647, %v1348
  %vm2626 = vcmp.eq.f32.partialorder %v2625, 8.507059e+37
  %v2627 = vand.u32 %v1348, 2147483648
  %v2628 = vor.u32 1.1754944e-38, %v2627
  %v2629 = vsel %vm2626, %v2628, %v2624
  %v2630 = vmul.f32 1.0, %v2629
  %v2631 = vrcp.pop %v1350
  %v2632 = vmul.f32 %v1350, %v2631
  %v2633 = vsub.f32 1.0, %v2632
  %v2634 = vmul.f32 %v2631, %v2633
  %v2635 = vadd.f32 %v2631, %v2634
  %vm2636 = vweird.f32 %v1350
  %vm2637 = vweird.f32 %v2631
  %vm2638 = vmor %vm2636, %vm2637
  %v2639 = vsel %vm2638, %v2631, %v2635
  %v2640 = vand.u32 2147483647, %v1350
  %vm2641 = vcmp.eq.f32.partialorder %v2640, 8.507059e+37
  %v2642 = vand.u32 %v1350, 2147483648
  %v2643 = vor.u32 1.1754944e-38, %v2642
  %v2644 = vsel %vm2641, %v2643, %v2639
  %v2645 = vmul.f32 1.0, %v2644
  %v2646 = vrcp.pop %v1352
  %v2647 = vmul.f32 %v1352, %v2646
  %v2648 = vsub.f32 1.0, %v2647
  %v2649 = vmul.f32 %v2646, %v2648
  %v2650 = vadd.f32 %v2646, %v2649
  %vm2651 = vweird.f32 %v1352
  %vm2652 = vweird.f32 %v2646
  %vm2653 = vmor %vm2651, %vm2652
  %v2654 = vsel %vm2653, %v2646, %v2650
  %v2655 = vand.u32 2147483647, %v1352
  %vm2656 = vcmp.eq.f32.partialorder %v2655, 8.507059e+37
  %v2657 = vand.u32 %v1352, 2147483648
  %v2658 = vor.u32 1.1754944e-38, %v2657
  %v2659 = vsel %vm2656, %v2658, %v2654
  %v2660 = vmul.f32 1.0, %v2659
  %v2661 = vrcp.pop %v1354
  %v2662 = vmul.f32 %v1354, %v2661
  %v2663 = vsub.f32 1.0, %v2662
  %v2664 = vmul.f32 %v2661, %v2663
  %v2665 = vadd.f32 %v2661, %v2664
  %vm2666 = vweird.f32 %v1354
  %vm2667 = vweird.f32 %v2661
  %vm2668 = vmor %vm2666, %vm2667
  %v2669 = vsel %vm2668, %v2661, %v2665
  %v2670 = vand.u32 2147483647, %v1354
  %vm2671 = vcmp.eq.f32.partialorder %v2670, 8.507059e+37
  %v2672 = vand.u32 %v1354, 2147483648
  %v2673 = vor.u32 1.1754944e-38, %v2672
  %v2674 = vsel %vm2671, %v2673, %v2669
  %v2675 = vmul.f32 1.0, %v2674
  %v2676 = vrcp.pop %v1356
  %v2677 = vmul.f32 %v1356, %v2676
  %v2678 = vsub.f32 1.0, %v2677
  %v2679 = vmul.f32 %v2676, %v2678
  %v2680 = vadd.f32 %v2676, %v2679
  %vm2681 = vweird.f32 %v1356
  %vm2682 = vweird.f32 %v2676
  %vm2683 = vmor %vm2681, %vm2682
  %v2684 = vsel %vm2683, %v2676, %v2680
  %v2685 = vand.u32 2147483647, %v1356
  %vm2686 = vcmp.eq.f32.partialorder %v2685, 8.507059e+37
  %v2687 = vand.u32 %v1356, 2147483648
  %v2688 = vor.u32 1.1754944e-38, %v2687
  %v2689 = vsel %vm2686, %v2688, %v2684
  %v2690 = vmul.f32 1.0, %v2689
  %v2691 = vrcp.pop %v1358
  %v2692 = vmul.f32 %v1358, %v2691
  %v2693 = vsub.f32 1.0, %v2692
  %v2694 = vmul.f32 %v2691, %v2693
  %v2695 = vadd.f32 %v2691, %v2694
  %vm2696 = vweird.f32 %v1358
  %vm2697 = vweird.f32 %v2691
  %vm2698 = vmor %vm2696, %vm2697
  %v2699 = vsel %vm2698, %v2691, %v2695
  %v2700 = vand.u32 2147483647, %v1358
  %vm2701 = vcmp.eq.f32.partialorder %v2700, 8.507059e+37
  %v2702 = vand.u32 %v1358, 2147483648
  %v2703 = vor.u32 1.1754944e-38, %v2702
  %v2704 = vsel %vm2701, %v2703, %v2699
  %v2705 = vmul.f32 1.0, %v2704
  %v2706 = vrcp.pop %v1360
  %v2707 = vmul.f32 %v1360, %v2706
  %v2708 = vsub.f32 1.0, %v2707
  %v2709 = vmul.f32 %v2706, %v2708
  %v2710 = vadd.f32 %v2706, %v2709
  %vm2711 = vweird.f32 %v1360
  %vm2712 = vweird.f32 %v2706
  %vm2713 = vmor %vm2711, %vm2712
  %v2714 = vsel %vm2713, %v2706, %v2710
  %v2715 = vand.u32 2147483647, %v1360
  %vm2716 = vcmp.eq.f32.partialorder %v2715, 8.507059e+37
  %v2717 = vand.u32 %v1360, 2147483648
  %v2718 = vor.u32 1.1754944e-38, %v2717
  %v2719 = vsel %vm2716, %v2718, %v2714
  %v2720 = vmul.f32 1.0, %v2719
  %v2721 = vrcp.pop %v1362
  %v2722 = vmul.f32 %v1362, %v2721
  %v2723 = vsub.f32 1.0, %v2722
  %v2724 = vmul.f32 %v2721, %v2723
  %v2725 = vadd.f32 %v2721, %v2724
  %vm2726 = vweird.f32 %v1362
  %vm2727 = vweird.f32 %v2721
  %vm2728 = vmor %vm2726, %vm2727
  %v2729 = vsel %vm2728, %v2721, %v2725
  %v2730 = vand.u32 2147483647, %v1362
  %vm2731 = vcmp.eq.f32.partialorder %v2730, 8.507059e+37
  %v2732 = vand.u32 %v1362, 2147483648
  %v2733 = vor.u32 1.1754944e-38, %v2732
  %v2734 = vsel %vm2731, %v2733, %v2729
  %v2735 = vmul.f32 1.0, %v2734
  %v2736 = vrcp.pop %v1364
  %v2737 = vmul.f32 %v1364, %v2736
  %v2738 = vsub.f32 1.0, %v2737
  %v2739 = vmul.f32 %v2736, %v2738
  %v2740 = vadd.f32 %v2736, %v2739
  %vm2741 = vweird.f32 %v1364
  %vm2742 = vweird.f32 %v2736
  %vm2743 = vmor %vm2741, %vm2742
  %v2744 = vsel %vm2743, %v2736, %v2740
  %v2745 = vand.u32 2147483647, %v1364
  %vm2746 = vcmp.eq.f32.partialorder %v2745, 8.507059e+37
  %v2747 = vand.u32 %v1364, 2147483648
  %v2748 = vor.u32 1.1754944e-38, %v2747
  %v2749 = vsel %vm2746, %v2748, %v2744
  %v2750 = vmul.f32 1.0, %v2749
  %v2751 = vrcp.pop %v1366
  %v2752 = vmul.f32 %v1366, %v2751
  %v2753 = vsub.f32 1.0, %v2752
  %v2754 = vmul.f32 %v2751, %v2753
  %v2755 = vadd.f32 %v2751, %v2754
  %vm2756 = vweird.f32 %v1366
  %vm2757 = vweird.f32 %v2751
  %vm2758 = vmor %vm2756, %vm2757
  %v2759 = vsel %vm2758, %v2751, %v2755
  %v2760 = vand.u32 2147483647, %v1366
  %vm2761 = vcmp.eq.f32.partialorder %v2760, 8.507059e+37
  %v2762 = vand.u32 %v1366, 2147483648
  %v2763 = vor.u32 1.1754944e-38, %v2762
  %v2764 = vsel %vm2761, %v2763, %v2759
  %v2765 = vmul.f32 1.0, %v2764
  %v2766 = vrcp.pop %v1368
  %v2767 = vmul.f32 %v1368, %v2766
  %v2768 = vsub.f32 1.0, %v2767
  %v2769 = vmul.f32 %v2766, %v2768
  %v2770 = vadd.f32 %v2766, %v2769
  %vm2771 = vweird.f32 %v1368
  %vm2772 = vweird.f32 %v2766
  %vm2773 = vmor %vm2771, %vm2772
  %v2774 = vsel %vm2773, %v2766, %v2770
  %v2775 = vand.u32 2147483647, %v1368
  %vm2776 = vcmp.eq.f32.partialorder %v2775, 8.507059e+37
  %v2777 = vand.u32 %v1368, 2147483648
  %v2778 = vor.u32 1.1754944e-38, %v2777
  %v2779 = vsel %vm2776, %v2778, %v2774
  %v2780 = vmul.f32 1.0, %v2779
  %v2781 = vmul.f32 %v1435, %v1835
  %v2782 = vmul.f32 %v1438, %v1850
  %v2783 = vmul.f32 %v1441, %v1865
  %v2784 = vmul.f32 %v1444, %v1880
  %v2785 = vmul.f32 %v1447, %v1895
  %v2786 = vmul.f32 %v1450, %v1910
  %v2787 = vmul.f32 %v1453, %v1925
  %v2788 = vmul.f32 %v1456, %v1940
  %v2789 = vmul.f32 %v1459, %v1955
  %v2790 = vmul.f32 %v1462, %v1970
  %v2791 = vmul.f32 %v1465, %v1985
  %v2792 = vmul.f32 %v1468, %v2000
  %v2793 = vmul.f32 %v1471, %v2015
  %v2794 = vmul.f32 %v1474, %v2030
  %v2795 = vmul.f32 %v1477, %v2045
  %v2796 = vmul.f32 %v1480, %v2060
  %v2797 = vmul.f32 %v1548, %v2075
  %v2798 = vmul.f32 %v1551, %v2090
  %v2799 = vmul.f32 %v1554, %v2105
  %v2800 = vmul.f32 %v1557, %v2120
  %v2801 = vmul.f32 %v1560, %v2135
  %v2802 = vmul.f32 %v1563, %v2150
  %v2803 = vmul.f32 %v1566, %v2165
  %v2804 = vmul.f32 %v1569, %v2180
  %v2805 = vmul.f32 %v1572, %v2195
  %v2806 = vmul.f32 %v1575, %v2210
  %v2807 = vmul.f32 %v1578, %v2225
  %v2808 = vmul.f32 %v1581, %v2240
  %v2809 = vmul.f32 %v1584, %v2255
  %v2810 = vmul.f32 %v1587, %v2270
  %v2811 = vmul.f32 %v1590, %v2285
  %v2812 = vmul.f32 %v1593, %v2300
  %v2813 = vmul.f32 %v1661, %v2315
  %v2814 = vmul.f32 %v1664, %v2330
  %v2815 = vmul.f32 %v1667, %v2345
  %v2816 = vmul.f32 %v1670, %v2360
  %v2817 = vmul.f32 %v1673, %v2375
  %v2818 = vmul.f32 %v1676, %v2390
  %v2819 = vmul.f32 %v1679, %v2405
  %v2820 = vmul.f32 %v1682, %v2420
  %v2821 = vmul.f32 %v1685, %v2435
  %v2822 = vmul.f32 %v1688, %v2450
  %v2823 = vmul.f32 %v1691, %v2465
  %v2824 = vmul.f32 %v1694, %v2480
  %v2825 = vmul.f32 %v1697, %v2495
  %v2826 = vmul.f32 %v1700, %v2510
  %v2827 = vmul.f32 %v1703, %v2525
  %v2828 = vmul.f32 %v1706, %v2540
  %v2829 = vmul.f32 %v1774, %v2555
  %v2830 = vmul.f32 %v1777, %v2570
  %v2831 = vmul.f32 %v1780, %v2585
  %v2832 = vmul.f32 %v1783, %v2600
  %v2833 = vmul.f32 %v1786, %v2615
  %v2834 = vmul.f32 %v1789, %v2630
  %v2835 = vmul.f32 %v1792, %v2645
  %v2836 = vmul.f32 %v1795, %v2660
  %v2837 = vmul.f32 %v1798, %v2675
  %v2838 = vmul.f32 %v1801, %v2690
  %v2839 = vmul.f32 %v1804, %v2705
  %v2840 = vmul.f32 %v1807, %v2720
  %v2841 = vmul.f32 %v1810, %v2735
  %v2842 = vmul.f32 %v1813, %v2750
  %v2843 = vmul.f32 %v1816, %v2765
  %v2844 = vmul.f32 %v1819, %v2780
  %2845 = vrot.lane.b32.xlu0 %v84, 120
  %v2846 = vpop.permute.xlu0 %2845
  %2847 = vrot.lane.b32.xlu0 %v85, 120
  %v2848 = vpop.permute.xlu0 %2847
  %2849 = vrot.lane.b32.xlu0 %v86, 120
  %v2850 = vpop.permute.xlu0 %2849
  %2851 = vrot.lane.b32.xlu0 %v87, 120
  %v2852 = vpop.permute.xlu0 %2851
  %2853 = vrot.lane.b32.xlu0 %v88, 120
  %v2854 = vpop.permute.xlu0 %2853
  %2855 = vrot.lane.b32.xlu0 %v89, 120
  %v2856 = vpop.permute.xlu0 %2855
  %2857 = vrot.lane.b32.xlu0 %v90, 120
  %v2858 = vpop.permute.xlu0 %2857
  %2859 = vrot.lane.b32.xlu0 %v91, 120
  %v2860 = vpop.permute.xlu0 %2859
  %2861 = vrot.lane.b32.xlu0 %v92, 120
  %v2862 = vpop.permute.xlu0 %2861
  %2863 = vrot.lane.b32.xlu0 %v93, 120
  %v2864 = vpop.permute.xlu0 %2863
  %2865 = vrot.lane.b32.xlu0 %v94, 120
  %v2866 = vpop.permute.xlu0 %2865
  %2867 = vrot.lane.b32.xlu0 %v95, 120
  %v2868 = vpop.permute.xlu0 %2867
  %2869 = vrot.lane.b32.xlu0 %v96, 120
  %v2870 = vpop.permute.xlu0 %2869
  %2871 = vrot.lane.b32.xlu0 %v97, 120
  %v2872 = vpop.permute.xlu0 %2871
  %2873 = vrot.lane.b32.xlu0 %v98, 120
  %v2874 = vpop.permute.xlu0 %2873
  %2875 = vrot.lane.b32.xlu0 %v99, 120
  %v2876 = vpop.permute.xlu0 %2875
  %2877 = vrot.lane.b32.xlu0 %v19, 88
  %v2878 = vpop.permute.xlu0 %2877
  %2879 = vrot.lane.b32.xlu0 %v20, 88
  %v2880 = vpop.permute.xlu0 %2879
  %2881 = vrot.lane.b32.xlu0 %v21, 88
  %v2882 = vpop.permute.xlu0 %2881
  %2883 = vrot.lane.b32.xlu0 %v22, 88
  %v2884 = vpop.permute.xlu0 %2883
  %2885 = vrot.lane.b32.xlu0 %v23, 88
  %v2886 = vpop.permute.xlu0 %2885
  %2887 = vrot.lane.b32.xlu0 %v24, 88
  %v2888 = vpop.permute.xlu0 %2887
  %2889 = vrot.lane.b32.xlu0 %v25, 88
  %v2890 = vpop.permute.xlu0 %2889
  %2891 = vrot.lane.b32.xlu0 %v26, 88
  %v2892 = vpop.permute.xlu0 %2891
  %2893 = vrot.lane.b32.xlu0 %v27, 88
  %v2894 = vpop.permute.xlu0 %2893
  %2895 = vrot.lane.b32.xlu0 %v28, 88
  %v2896 = vpop.permute.xlu0 %2895
  %2897 = vrot.lane.b32.xlu0 %v29, 88
  %v2898 = vpop.permute.xlu0 %2897
  %2899 = vrot.lane.b32.xlu0 %v30, 88
  %v2900 = vpop.permute.xlu0 %2899
  %2901 = vrot.lane.b32.xlu0 %v31, 88
  %v2902 = vpop.permute.xlu0 %2901
  %2903 = vrot.lane.b32.xlu0 %v32, 88
  %v2904 = vpop.permute.xlu0 %2903
  %2905 = vrot.lane.b32.xlu0 %v33, 88
  %v2906 = vpop.permute.xlu0 %2905
  %2907 = vrot.lane.b32.xlu0 %v34, 88
  %v2908 = vpop.permute.xlu0 %2907
  %v2909 = vsel %vm196, %v2846, 0
  %v2911 = vsel %vm196, %v2848, 0
  %v2913 = vsel %vm196, %v2850, 0
  %v2915 = vsel %vm196, %v2852, 0
  %v2917 = vsel %vm196, %v2854, 0
  %v2919 = vsel %vm196, %v2856, 0
  %v2921 = vsel %vm196, %v2858, 0
  %v2923 = vsel %vm196, %v2860, 0
  %v2925 = vsel %vm196, %v2862, 0
  %v2927 = vsel %vm196, %v2864, 0
  %v2929 = vsel %vm196, %v2866, 0
  %v2931 = vsel %vm196, %v2868, 0
  %v2933 = vsel %vm196, %v2870, 0
  %v2935 = vsel %vm196, %v2872, 0
  %v2937 = vsel %vm196, %v2874, 0
  %v2939 = vsel %vm196, %v2876, 0
  %v2941 = vsel %vm196, %v2878, 0
  %v2943 = vsel %vm196, %v2880, 0
  %v2945 = vsel %vm196, %v2882, 0
  %v2947 = vsel %vm196, %v2884, 0
  %v2949 = vsel %vm196, %v2886, 0
  %v2951 = vsel %vm196, %v2888, 0
  %v2953 = vsel %vm196, %v2890, 0
  %v2955 = vsel %vm196, %v2892, 0
  %v2957 = vsel %vm196, %v2894, 0
  %v2959 = vsel %vm196, %v2896, 0
  %v2961 = vsel %vm196, %v2898, 0
  %v2963 = vsel %vm196, %v2900, 0
  %v2965 = vsel %vm196, %v2902, 0
  %v2967 = vsel %vm196, %v2904, 0
  %v2969 = vsel %vm196, %v2906, 0
  %v2971 = vsel %vm196, %v2908, 0
  %2973 = vmatpush.xpose.msra.mxu0 %v2971
  %2974 = vmatpush.xpose.msra.mxu0 %v2969
  %2975 = vmatpush.xpose.msra.mxu0 %v2967
  %2976 = vmatpush.xpose.msra.mxu0 %v2965
  %2977 = vmatpush.xpose.msra.mxu0 %v2963
  %2978 = vmatpush.xpose.msra.mxu0 %v2961
  %2979 = vmatpush.xpose.msra.mxu0 %v2959
  %2980 = vmatpush.xpose.msra.mxu0 %v2957
  %2981 = vmatpush.xpose.msra.mxu0 %v2955
  %2982 = vmatpush.xpose.msra.mxu0 %v2953
  %2983 = vmatpush.xpose.msra.mxu0 %v2951
  %2984 = vmatpush.xpose.msra.mxu0 %v2949
  %2985 = vmatpush.xpose.msra.mxu0 %v2947
  %2986 = vmatpush.xpose.msra.mxu0 %v2945
  %2987 = vmatpush.xpose.msra.mxu0 %v2943
  %2988 = vmatpush.xpose.msra.mxu0 %v2941
  %2989 = vmatmul.f32.gmra.mxu0 %v2909
  %v2990 = vpop.f32.mrf.mxu0
  %v2991 = vadd.f32 0.0, %v2990
  %2992 = vmatmul.f32.gmra.mxu0 %v2911
  %v2993 = vpop.f32.mrf.mxu0
  %v2994 = vadd.f32 0.0, %v2993
  %2995 = vmatmul.f32.gmra.mxu0 %v2913
  %v2996 = vpop.f32.mrf.mxu0
  %v2997 = vadd.f32 0.0, %v2996
  %2998 = vmatmul.f32.gmra.mxu0 %v2915
  %v2999 = vpop.f32.mrf.mxu0
  %v3000 = vadd.f32 0.0, %v2999
  %3001 = vmatmul.f32.gmra.mxu0 %v2917
  %v3002 = vpop.f32.mrf.mxu0
  %v3003 = vadd.f32 0.0, %v3002
  %3004 = vmatmul.f32.gmra.mxu0 %v2919
  %v3005 = vpop.f32.mrf.mxu0
  %v3006 = vadd.f32 0.0, %v3005
  %3007 = vmatmul.f32.gmra.mxu0 %v2921
  %v3008 = vpop.f32.mrf.mxu0
  %v3009 = vadd.f32 0.0, %v3008
  %3010 = vmatmul.f32.gmra.mxu0 %v2923
  %v3011 = vpop.f32.mrf.mxu0
  %v3012 = vadd.f32 0.0, %v3011
  %3013 = vmatmul.f32.gmra.mxu0 %v2925
  %v3014 = vpop.f32.mrf.mxu0
  %v3015 = vadd.f32 0.0, %v3014
  %3016 = vmatmul.f32.gmra.mxu0 %v2927
  %v3017 = vpop.f32.mrf.mxu0
  %v3018 = vadd.f32 0.0, %v3017
  %3019 = vmatmul.f32.gmra.mxu0 %v2929
  %v3020 = vpop.f32.mrf.mxu0
  %v3021 = vadd.f32 0.0, %v3020
  %3022 = vmatmul.f32.gmra.mxu0 %v2931
  %v3023 = vpop.f32.mrf.mxu0
  %v3024 = vadd.f32 0.0, %v3023
  %3025 = vmatmul.f32.gmra.mxu0 %v2933
  %v3026 = vpop.f32.mrf.mxu0
  %v3027 = vadd.f32 0.0, %v3026
  %3028 = vmatmul.f32.gmra.mxu0 %v2935
  %v3029 = vpop.f32.mrf.mxu0
  %v3030 = vadd.f32 0.0, %v3029
  %3031 = vmatmul.f32.gmra.mxu0 %v2937
  %v3032 = vpop.f32.mrf.mxu0
  %v3033 = vadd.f32 0.0, %v3032
  %3034 = vmatmul.f32.gmra.mxu0 %v2939
  %v3035 = vpop.f32.mrf.mxu0
  %v3036 = vadd.f32 0.0, %v3035
  %3037 = vdwg.mxu0
  %3038 = vrot.lane.b32.xlu0 %v100, 120
  %v3039 = vpop.permute.xlu0 %3038
  %3040 = vrot.lane.b32.xlu0 %v101, 120
  %v3041 = vpop.permute.xlu0 %3040
  %3042 = vrot.lane.b32.xlu0 %v102, 120
  %v3043 = vpop.permute.xlu0 %3042
  %3044 = vrot.lane.b32.xlu0 %v103, 120
  %v3045 = vpop.permute.xlu0 %3044
  %3046 = vrot.lane.b32.xlu0 %v104, 120
  %v3047 = vpop.permute.xlu0 %3046
  %3048 = vrot.lane.b32.xlu0 %v105, 120
  %v3049 = vpop.permute.xlu0 %3048
  %3050 = vrot.lane.b32.xlu0 %v106, 120
  %v3051 = vpop.permute.xlu0 %3050
  %3052 = vrot.lane.b32.xlu0 %v107, 120
  %v3053 = vpop.permute.xlu0 %3052
  %3054 = vrot.lane.b32.xlu0 %v108, 120
  %v3055 = vpop.permute.xlu0 %3054
  %3056 = vrot.lane.b32.xlu0 %v109, 120
  %v3057 = vpop.permute.xlu0 %3056
  %3058 = vrot.lane.b32.xlu0 %v110, 120
  %v3059 = vpop.permute.xlu0 %3058
  %3060 = vrot.lane.b32.xlu0 %v111, 120
  %v3061 = vpop.permute.xlu0 %3060
  %3062 = vrot.lane.b32.xlu0 %v112, 120
  %v3063 = vpop.permute.xlu0 %3062
  %3064 = vrot.lane.b32.xlu0 %v113, 120
  %v3065 = vpop.permute.xlu0 %3064
  %3066 = vrot.lane.b32.xlu0 %v114, 120
  %v3067 = vpop.permute.xlu0 %3066
  %3068 = vrot.lane.b32.xlu0 %v115, 120
  %v3069 = vpop.permute.xlu0 %3068
  %3070 = vrot.lane.b32.xlu0 %v35, 88
  %v3071 = vpop.permute.xlu0 %3070
  %3072 = vrot.lane.b32.xlu0 %v36, 88
  %v3073 = vpop.permute.xlu0 %3072
  %3074 = vrot.lane.b32.xlu0 %v37, 88
  %v3075 = vpop.permute.xlu0 %3074
  %3076 = vrot.lane.b32.xlu0 %v38, 88
  %v3077 = vpop.permute.xlu0 %3076
  %3078 = vrot.lane.b32.xlu0 %v39, 88
  %v3079 = vpop.permute.xlu0 %3078
  %3080 = vrot.lane.b32.xlu0 %v40, 88
  %v3081 = vpop.permute.xlu0 %3080
  %3082 = vrot.lane.b32.xlu0 %v41, 88
  %v3083 = vpop.permute.xlu0 %3082
  %3084 = vrot.lane.b32.xlu0 %v42, 88
  %v3085 = vpop.permute.xlu0 %3084
  %3086 = vrot.lane.b32.xlu0 %v43, 88
  %v3087 = vpop.permute.xlu0 %3086
  %3088 = vrot.lane.b32.xlu0 %v44, 88
  %v3089 = vpop.permute.xlu0 %3088
  %3090 = vrot.lane.b32.xlu0 %v45, 88
  %v3091 = vpop.permute.xlu0 %3090
  %3092 = vrot.lane.b32.xlu0 %v46, 88
  %v3093 = vpop.permute.xlu0 %3092
  %3094 = vrot.lane.b32.xlu0 %v47, 88
  %v3095 = vpop.permute.xlu0 %3094
  %3096 = vrot.lane.b32.xlu0 %v48, 88
  %v3097 = vpop.permute.xlu0 %3096
  %3098 = vrot.lane.b32.xlu0 %v49, 88
  %v3099 = vpop.permute.xlu0 %3098
  %3100 = vrot.lane.b32.xlu0 %v50, 88
  %v3101 = vpop.permute.xlu0 %3100
  %v3102 = vsel %vm196, %v3039, 0
  %v3104 = vsel %vm196, %v3041, 0
  %v3106 = vsel %vm196, %v3043, 0
  %v3108 = vsel %vm196, %v3045, 0
  %v3110 = vsel %vm196, %v3047, 0
  %v3112 = vsel %vm196, %v3049, 0
  %v3114 = vsel %vm196, %v3051, 0
  %v3116 = vsel %vm196, %v3053, 0
  %v3118 = vsel %vm196, %v3055, 0
  %v3120 = vsel %vm196, %v3057, 0
  %v3122 = vsel %vm196, %v3059, 0
  %v3124 = vsel %vm196, %v3061, 0
  %v3126 = vsel %vm196, %v3063, 0
  %v3128 = vsel %vm196, %v3065, 0
  %v3130 = vsel %vm196, %v3067, 0
  %v3132 = vsel %vm196, %v3069, 0
  %v3134 = vsel %vm196, %v3071, 0
  %v3136 = vsel %vm196, %v3073, 0
  %v3138 = vsel %vm196, %v3075, 0
  %v3140 = vsel %vm196, %v3077, 0
  %v3142 = vsel %vm196, %v3079, 0
  %v3144 = vsel %vm196, %v3081, 0
  %v3146 = vsel %vm196, %v3083, 0
  %v3148 = vsel %vm196, %v3085, 0
  %v3150 = vsel %vm196, %v3087, 0
  %v3152 = vsel %vm196, %v3089, 0
  %v3154 = vsel %vm196, %v3091, 0
  %v3156 = vsel %vm196, %v3093, 0
  %v3158 = vsel %vm196, %v3095, 0
  %v3160 = vsel %vm196, %v3097, 0
  %v3162 = vsel %vm196, %v3099, 0
  %v3164 = vsel %vm196, %v3101, 0
  %3166 = vmatpush.xpose.msra.mxu0 %v3164
  %3167 = vmatpush.xpose.msra.mxu0 %v3162
  %3168 = vmatpush.xpose.msra.mxu0 %v3160
  %3169 = vmatpush.xpose.msra.mxu0 %v3158
  %3170 = vmatpush.xpose.msra.mxu0 %v3156
  %3171 = vmatpush.xpose.msra.mxu0 %v3154
  %3172 = vmatpush.xpose.msra.mxu0 %v3152
  %3173 = vmatpush.xpose.msra.mxu0 %v3150
  %3174 = vmatpush.xpose.msra.mxu0 %v3148
  %3175 = vmatpush.xpose.msra.mxu0 %v3146
  %3176 = vmatpush.xpose.msra.mxu0 %v3144
  %3177 = vmatpush.xpose.msra.mxu0 %v3142
  %3178 = vmatpush.xpose.msra.mxu0 %v3140
  %3179 = vmatpush.xpose.msra.mxu0 %v3138
  %3180 = vmatpush.xpose.msra.mxu0 %v3136
  %3181 = vmatpush.xpose.msra.mxu0 %v3134
  %3182 = vmatmul.f32.gmra.mxu0 %v3102
  %v3183 = vpop.f32.mrf.mxu0
  %v3184 = vadd.f32 0.0, %v3183
  %3185 = vmatmul.f32.gmra.mxu0 %v3104
  %v3186 = vpop.f32.mrf.mxu0
  %v3187 = vadd.f32 0.0, %v3186
  %3188 = vmatmul.f32.gmra.mxu0 %v3106
  %v3189 = vpop.f32.mrf.mxu0
  %v3190 = vadd.f32 0.0, %v3189
  %3191 = vmatmul.f32.gmra.mxu0 %v3108
  %v3192 = vpop.f32.mrf.mxu0
  %v3193 = vadd.f32 0.0, %v3192
  %3194 = vmatmul.f32.gmra.mxu0 %v3110
  %v3195 = vpop.f32.mrf.mxu0
  %v3196 = vadd.f32 0.0, %v3195
  %3197 = vmatmul.f32.gmra.mxu0 %v3112
  %v3198 = vpop.f32.mrf.mxu0
  %v3199 = vadd.f32 0.0, %v3198
  %3200 = vmatmul.f32.gmra.mxu0 %v3114
  %v3201 = vpop.f32.mrf.mxu0
  %v3202 = vadd.f32 0.0, %v3201
  %3203 = vmatmul.f32.gmra.mxu0 %v3116
  %v3204 = vpop.f32.mrf.mxu0
  %v3205 = vadd.f32 0.0, %v3204
  %3206 = vmatmul.f32.gmra.mxu0 %v3118
  %v3207 = vpop.f32.mrf.mxu0
  %v3208 = vadd.f32 0.0, %v3207
  %3209 = vmatmul.f32.gmra.mxu0 %v3120
  %v3210 = vpop.f32.mrf.mxu0
  %v3211 = vadd.f32 0.0, %v3210
  %3212 = vmatmul.f32.gmra.mxu0 %v3122
  %v3213 = vpop.f32.mrf.mxu0
  %v3214 = vadd.f32 0.0, %v3213
  %3215 = vmatmul.f32.gmra.mxu0 %v3124
  %v3216 = vpop.f32.mrf.mxu0
  %v3217 = vadd.f32 0.0, %v3216
  %3218 = vmatmul.f32.gmra.mxu0 %v3126
  %v3219 = vpop.f32.mrf.mxu0
  %v3220 = vadd.f32 0.0, %v3219
  %3221 = vmatmul.f32.gmra.mxu0 %v3128
  %v3222 = vpop.f32.mrf.mxu0
  %v3223 = vadd.f32 0.0, %v3222
  %3224 = vmatmul.f32.gmra.mxu0 %v3130
  %v3225 = vpop.f32.mrf.mxu0
  %v3226 = vadd.f32 0.0, %v3225
  %3227 = vmatmul.f32.gmra.mxu0 %v3132
  %v3228 = vpop.f32.mrf.mxu0
  %v3229 = vadd.f32 0.0, %v3228
  %3230 = vdwg.mxu0
  %3231 = vrot.lane.b32.xlu0 %v116, 120
  %v3232 = vpop.permute.xlu0 %3231
  %3233 = vrot.lane.b32.xlu0 %v117, 120
  %v3234 = vpop.permute.xlu0 %3233
  %3235 = vrot.lane.b32.xlu0 %v118, 120
  %v3236 = vpop.permute.xlu0 %3235
  %3237 = vrot.lane.b32.xlu0 %v119, 120
  %v3238 = vpop.permute.xlu0 %3237
  %3239 = vrot.lane.b32.xlu0 %v120, 120
  %v3240 = vpop.permute.xlu0 %3239
  %3241 = vrot.lane.b32.xlu0 %v121, 120
  %v3242 = vpop.permute.xlu0 %3241
  %3243 = vrot.lane.b32.xlu0 %v122, 120
  %v3244 = vpop.permute.xlu0 %3243
  %3245 = vrot.lane.b32.xlu0 %v123, 120
  %v3246 = vpop.permute.xlu0 %3245
  %3247 = vrot.lane.b32.xlu0 %v124, 120
  %v3248 = vpop.permute.xlu0 %3247
  %3249 = vrot.lane.b32.xlu0 %v125, 120
  %v3250 = vpop.permute.xlu0 %3249
  %3251 = vrot.lane.b32.xlu0 %v126, 120
  %v3252 = vpop.permute.xlu0 %3251
  %3253 = vrot.lane.b32.xlu0 %v127, 120
  %v3254 = vpop.permute.xlu0 %3253
  %3255 = vrot.lane.b32.xlu0 %v128, 120
  %v3256 = vpop.permute.xlu0 %3255
  %3257 = vrot.lane.b32.xlu0 %v129, 120
  %v3258 = vpop.permute.xlu0 %3257
  %3259 = vrot.lane.b32.xlu0 %v130, 120
  %v3260 = vpop.permute.xlu0 %3259
  %3261 = vrot.lane.b32.xlu0 %v131, 120
  %v3262 = vpop.permute.xlu0 %3261
  %3263 = vrot.lane.b32.xlu0 %v51, 88
  %v3264 = vpop.permute.xlu0 %3263
  %3265 = vrot.lane.b32.xlu0 %v52, 88
  %v3266 = vpop.permute.xlu0 %3265
  %3267 = vrot.lane.b32.xlu0 %v53, 88
  %v3268 = vpop.permute.xlu0 %3267
  %3269 = vrot.lane.b32.xlu0 %v54, 88
  %v3270 = vpop.permute.xlu0 %3269
  %3271 = vrot.lane.b32.xlu0 %v55, 88
  %v3272 = vpop.permute.xlu0 %3271
  %3273 = vrot.lane.b32.xlu0 %v56, 88
  %v3274 = vpop.permute.xlu0 %3273
  %3275 = vrot.lane.b32.xlu0 %v57, 88
  %v3276 = vpop.permute.xlu0 %3275
  %3277 = vrot.lane.b32.xlu0 %v58, 88
  %v3278 = vpop.permute.xlu0 %3277
  %3279 = vrot.lane.b32.xlu0 %v59, 88
  %v3280 = vpop.permute.xlu0 %3279
  %3281 = vrot.lane.b32.xlu0 %v60, 88
  %v3282 = vpop.permute.xlu0 %3281
  %3283 = vrot.lane.b32.xlu0 %v61, 88
  %v3284 = vpop.permute.xlu0 %3283
  %3285 = vrot.lane.b32.xlu0 %v62, 88
  %v3286 = vpop.permute.xlu0 %3285
  %3287 = vrot.lane.b32.xlu0 %v63, 88
  %v3288 = vpop.permute.xlu0 %3287
  %3289 = vrot.lane.b32.xlu0 %v64, 88
  %v3290 = vpop.permute.xlu0 %3289
  %3291 = vrot.lane.b32.xlu0 %v65, 88
  %v3292 = vpop.permute.xlu0 %3291
  %3293 = vrot.lane.b32.xlu0 %v66, 88
  %v3294 = vpop.permute.xlu0 %3293
  %v3295 = vsel %vm196, %v3232, 0
  %v3297 = vsel %vm196, %v3234, 0
  %v3299 = vsel %vm196, %v3236, 0
  %v3301 = vsel %vm196, %v3238, 0
  %v3303 = vsel %vm196, %v3240, 0
  %v3305 = vsel %vm196, %v3242, 0
  %v3307 = vsel %vm196, %v3244, 0
  %v3309 = vsel %vm196, %v3246, 0
  %v3311 = vsel %vm196, %v3248, 0
  %v3313 = vsel %vm196, %v3250, 0
  %v3315 = vsel %vm196, %v3252, 0
  %v3317 = vsel %vm196, %v3254, 0
  %v3319 = vsel %vm196, %v3256, 0
  %v3321 = vsel %vm196, %v3258, 0
  %v3323 = vsel %vm196, %v3260, 0
  %v3325 = vsel %vm196, %v3262, 0
  %v3327 = vsel %vm196, %v3264, 0
  %v3329 = vsel %vm196, %v3266, 0
  %v3331 = vsel %vm196, %v3268, 0
  %v3333 = vsel %vm196, %v3270, 0
  %v3335 = vsel %vm196, %v3272, 0
  %v3337 = vsel %vm196, %v3274, 0
  %v3339 = vsel %vm196, %v3276, 0
  %v3341 = vsel %vm196, %v3278, 0
  %v3343 = vsel %vm196, %v3280, 0
  %v3345 = vsel %vm196, %v3282, 0
  %v3347 = vsel %vm196, %v3284, 0
  %v3349 = vsel %vm196, %v3286, 0
  %v3351 = vsel %vm196, %v3288, 0
  %v3353 = vsel %vm196, %v3290, 0
  %v3355 = vsel %vm196, %v3292, 0
  %v3357 = vsel %vm196, %v3294, 0
  %3359 = vmatpush.xpose.msra.mxu0 %v3357
  %3360 = vmatpush.xpose.msra.mxu0 %v3355
  %3361 = vmatpush.xpose.msra.mxu0 %v3353
  %3362 = vmatpush.xpose.msra.mxu0 %v3351
  %3363 = vmatpush.xpose.msra.mxu0 %v3349
  %3364 = vmatpush.xpose.msra.mxu0 %v3347
  %3365 = vmatpush.xpose.msra.mxu0 %v3345
  %3366 = vmatpush.xpose.msra.mxu0 %v3343
  %3367 = vmatpush.xpose.msra.mxu0 %v3341
  %3368 = vmatpush.xpose.msra.mxu0 %v3339
  %3369 = vmatpush.xpose.msra.mxu0 %v3337
  %3370 = vmatpush.xpose.msra.mxu0 %v3335
  %3371 = vmatpush.xpose.msra.mxu0 %v3333
  %3372 = vmatpush.xpose.msra.mxu0 %v3331
  %3373 = vmatpush.xpose.msra.mxu0 %v3329
  %3374 = vmatpush.xpose.msra.mxu0 %v3327
  %3375 = vmatmul.f32.gmra.mxu0 %v3295
  %v3376 = vpop.f32.mrf.mxu0
  %v3377 = vadd.f32 0.0, %v3376
  %3378 = vmatmul.f32.gmra.mxu0 %v3297
  %v3379 = vpop.f32.mrf.mxu0
  %v3380 = vadd.f32 0.0, %v3379
  %3381 = vmatmul.f32.gmra.mxu0 %v3299
  %v3382 = vpop.f32.mrf.mxu0
  %v3383 = vadd.f32 0.0, %v3382
  %3384 = vmatmul.f32.gmra.mxu0 %v3301
  %v3385 = vpop.f32.mrf.mxu0
  %v3386 = vadd.f32 0.0, %v3385
  %3387 = vmatmul.f32.gmra.mxu0 %v3303
  %v3388 = vpop.f32.mrf.mxu0
  %v3389 = vadd.f32 0.0, %v3388
  %3390 = vmatmul.f32.gmra.mxu0 %v3305
  %v3391 = vpop.f32.mrf.mxu0
  %v3392 = vadd.f32 0.0, %v3391
  %3393 = vmatmul.f32.gmra.mxu0 %v3307
  %v3394 = vpop.f32.mrf.mxu0
  %v3395 = vadd.f32 0.0, %v3394
  %3396 = vmatmul.f32.gmra.mxu0 %v3309
  %v3397 = vpop.f32.mrf.mxu0
  %v3398 = vadd.f32 0.0, %v3397
  %3399 = vmatmul.f32.gmra.mxu0 %v3311
  %v3400 = vpop.f32.mrf.mxu0
  %v3401 = vadd.f32 0.0, %v3400
  %3402 = vmatmul.f32.gmra.mxu0 %v3313
  %v3403 = vpop.f32.mrf.mxu0
  %v3404 = vadd.f32 0.0, %v3403
  %3405 = vmatmul.f32.gmra.mxu0 %v3315
  %v3406 = vpop.f32.mrf.mxu0
  %v3407 = vadd.f32 0.0, %v3406
  %3408 = vmatmul.f32.gmra.mxu0 %v3317
  %v3409 = vpop.f32.mrf.mxu0
  %v3410 = vadd.f32 0.0, %v3409
  %3411 = vmatmul.f32.gmra.mxu0 %v3319
  %v3412 = vpop.f32.mrf.mxu0
  %v3413 = vadd.f32 0.0, %v3412
  %3414 = vmatmul.f32.gmra.mxu0 %v3321
  %v3415 = vpop.f32.mrf.mxu0
  %v3416 = vadd.f32 0.0, %v3415
  %3417 = vmatmul.f32.gmra.mxu0 %v3323
  %v3418 = vpop.f32.mrf.mxu0
  %v3419 = vadd.f32 0.0, %v3418
  %3420 = vmatmul.f32.gmra.mxu0 %v3325
  %v3421 = vpop.f32.mrf.mxu0
  %v3422 = vadd.f32 0.0, %v3421
  %3423 = vdwg.mxu0
  %3424 = vrot.lane.b32.xlu0 %v132, 120
  %v3425 = vpop.permute.xlu0 %3424
  %3426 = vrot.lane.b32.xlu0 %v133, 120
  %v3427 = vpop.permute.xlu0 %3426
  %3428 = vrot.lane.b32.xlu0 %v134, 120
  %v3429 = vpop.permute.xlu0 %3428
  %3430 = vrot.lane.b32.xlu0 %v135, 120
  %v3431 = vpop.permute.xlu0 %3430
  %3432 = vrot.lane.b32.xlu0 %v136, 120
  %v3433 = vpop.permute.xlu0 %3432
  %3434 = vrot.lane.b32.xlu0 %v137, 120
  %v3435 = vpop.permute.xlu0 %3434
  %3436 = vrot.lane.b32.xlu0 %v138, 120
  %v3437 = vpop.permute.xlu0 %3436
  %3438 = vrot.lane.b32.xlu0 %v139, 120
  %v3439 = vpop.permute.xlu0 %3438
  %3440 = vrot.lane.b32.xlu0 %v140, 120
  %v3441 = vpop.permute.xlu0 %3440
  %3442 = vrot.lane.b32.xlu0 %v141, 120
  %v3443 = vpop.permute.xlu0 %3442
  %3444 = vrot.lane.b32.xlu0 %v142, 120
  %v3445 = vpop.permute.xlu0 %3444
  %3446 = vrot.lane.b32.xlu0 %v143, 120
  %v3447 = vpop.permute.xlu0 %3446
  %3448 = vrot.lane.b32.xlu0 %v144, 120
  %v3449 = vpop.permute.xlu0 %3448
  %3450 = vrot.lane.b32.xlu0 %v145, 120
  %v3451 = vpop.permute.xlu0 %3450
  %3452 = vrot.lane.b32.xlu0 %v146, 120
  %v3453 = vpop.permute.xlu0 %3452
  %3454 = vrot.lane.b32.xlu0 %v147, 120
  %v3455 = vpop.permute.xlu0 %3454
  %3456 = vrot.lane.b32.xlu0 %v67, 88
  %v3457 = vpop.permute.xlu0 %3456
  %3458 = vrot.lane.b32.xlu0 %v68, 88
  %v3459 = vpop.permute.xlu0 %3458
  %3460 = vrot.lane.b32.xlu0 %v69, 88
  %v3461 = vpop.permute.xlu0 %3460
  %3462 = vrot.lane.b32.xlu0 %v70, 88
  %v3463 = vpop.permute.xlu0 %3462
  %3464 = vrot.lane.b32.xlu0 %v71, 88
  %v3465 = vpop.permute.xlu0 %3464
  %3466 = vrot.lane.b32.xlu0 %v72, 88
  %v3467 = vpop.permute.xlu0 %3466
  %3468 = vrot.lane.b32.xlu0 %v73, 88
  %v3469 = vpop.permute.xlu0 %3468
  %3470 = vrot.lane.b32.xlu0 %v74, 88
  %v3471 = vpop.permute.xlu0 %3470
  %3472 = vrot.lane.b32.xlu0 %v75, 88
  %v3473 = vpop.permute.xlu0 %3472
  %3474 = vrot.lane.b32.xlu0 %v76, 88
  %v3475 = vpop.permute.xlu0 %3474
  %3476 = vrot.lane.b32.xlu0 %v77, 88
  %v3477 = vpop.permute.xlu0 %3476
  %3478 = vrot.lane.b32.xlu0 %v78, 88
  %v3479 = vpop.permute.xlu0 %3478
  %3480 = vrot.lane.b32.xlu0 %v79, 88
  %v3481 = vpop.permute.xlu0 %3480
  %3482 = vrot.lane.b32.xlu0 %v80, 88
  %v3483 = vpop.permute.xlu0 %3482
  %3484 = vrot.lane.b32.xlu0 %v81, 88
  %v3485 = vpop.permute.xlu0 %3484
  %3486 = vrot.lane.b32.xlu0 %v82, 88
  %v3487 = vpop.permute.xlu0 %3486
  %v3488 = vsel %vm196, %v3425, 0
  %v3490 = vsel %vm196, %v3427, 0
  %v3492 = vsel %vm196, %v3429, 0
  %v3494 = vsel %vm196, %v3431, 0
  %v3496 = vsel %vm196, %v3433, 0
  %v3498 = vsel %vm196, %v3435, 0
  %v3500 = vsel %vm196, %v3437, 0
  %v3502 = vsel %vm196, %v3439, 0
  %v3504 = vsel %vm196, %v3441, 0
  %v3506 = vsel %vm196, %v3443, 0
  %v3508 = vsel %vm196, %v3445, 0
  %v3510 = vsel %vm196, %v3447, 0
  %v3512 = vsel %vm196, %v3449, 0
  %v3514 = vsel %vm196, %v3451, 0
  %v3516 = vsel %vm196, %v3453, 0
  %v3518 = vsel %vm196, %v3455, 0
  %v3520 = vsel %vm196, %v3457, 0
  %v3522 = vsel %vm196, %v3459, 0
  %v3524 = vsel %vm196, %v3461, 0
  %v3526 = vsel %vm196, %v3463, 0
  %v3528 = vsel %vm196, %v3465, 0
  %v3530 = vsel %vm196, %v3467, 0
  %v3532 = vsel %vm196, %v3469, 0
  %v3534 = vsel %vm196, %v3471, 0
  %v3536 = vsel %vm196, %v3473, 0
  %v3538 = vsel %vm196, %v3475, 0
  %v3540 = vsel %vm196, %v3477, 0
  %v3542 = vsel %vm196, %v3479, 0
  %v3544 = vsel %vm196, %v3481, 0
  %v3546 = vsel %vm196, %v3483, 0
  %v3548 = vsel %vm196, %v3485, 0
  %v3550 = vsel %vm196, %v3487, 0
  %3552 = vmatpush.xpose.msra.mxu0 %v3550
  %3553 = vmatpush.xpose.msra.mxu0 %v3548
  %3554 = vmatpush.xpose.msra.mxu0 %v3546
  %3555 = vmatpush.xpose.msra.mxu0 %v3544
  %3556 = vmatpush.xpose.msra.mxu0 %v3542
  %3557 = vmatpush.xpose.msra.mxu0 %v3540
  %3558 = vmatpush.xpose.msra.mxu0 %v3538
  %3559 = vmatpush.xpose.msra.mxu0 %v3536
  %3560 = vmatpush.xpose.msra.mxu0 %v3534
  %3561 = vmatpush.xpose.msra.mxu0 %v3532
  %3562 = vmatpush.xpose.msra.mxu0 %v3530
  %3563 = vmatpush.xpose.msra.mxu0 %v3528
  %3564 = vmatpush.xpose.msra.mxu0 %v3526
  %3565 = vmatpush.xpose.msra.mxu0 %v3524
  %3566 = vmatpush.xpose.msra.mxu0 %v3522
  %3567 = vmatpush.xpose.msra.mxu0 %v3520
  %3568 = vmatmul.f32.gmra.mxu0 %v3488
  %v3569 = vpop.f32.mrf.mxu0
  %v3570 = vadd.f32 0.0, %v3569
  %3571 = vmatmul.f32.gmra.mxu0 %v3490
  %v3572 = vpop.f32.mrf.mxu0
  %v3573 = vadd.f32 0.0, %v3572
  %3574 = vmatmul.f32.gmra.mxu0 %v3492
  %v3575 = vpop.f32.mrf.mxu0
  %v3576 = vadd.f32 0.0, %v3575
  %3577 = vmatmul.f32.gmra.mxu0 %v3494
  %v3578 = vpop.f32.mrf.mxu0
  %v3579 = vadd.f32 0.0, %v3578
  %3580 = vmatmul.f32.gmra.mxu0 %v3496
  %v3581 = vpop.f32.mrf.mxu0
  %v3582 = vadd.f32 0.0, %v3581
  %3583 = vmatmul.f32.gmra.mxu0 %v3498
  %v3584 = vpop.f32.mrf.mxu0
  %v3585 = vadd.f32 0.0, %v3584
  %3586 = vmatmul.f32.gmra.mxu0 %v3500
  %v3587 = vpop.f32.mrf.mxu0
  %v3588 = vadd.f32 0.0, %v3587
  %3589 = vmatmul.f32.gmra.mxu0 %v3502
  %v3590 = vpop.f32.mrf.mxu0
  %v3591 = vadd.f32 0.0, %v3590
  %3592 = vmatmul.f32.gmra.mxu0 %v3504
  %v3593 = vpop.f32.mrf.mxu0
  %v3594 = vadd.f32 0.0, %v3593
  %3595 = vmatmul.f32.gmra.mxu0 %v3506
  %v3596 = vpop.f32.mrf.mxu0
  %v3597 = vadd.f32 0.0, %v3596
  %3598 = vmatmul.f32.gmra.mxu0 %v3508
  %v3599 = vpop.f32.mrf.mxu0
  %v3600 = vadd.f32 0.0, %v3599
  %3601 = vmatmul.f32.gmra.mxu0 %v3510
  %v3602 = vpop.f32.mrf.mxu0
  %v3603 = vadd.f32 0.0, %v3602
  %3604 = vmatmul.f32.gmra.mxu0 %v3512
  %v3605 = vpop.f32.mrf.mxu0
  %v3606 = vadd.f32 0.0, %v3605
  %3607 = vmatmul.f32.gmra.mxu0 %v3514
  %v3608 = vpop.f32.mrf.mxu0
  %v3609 = vadd.f32 0.0, %v3608
  %3610 = vmatmul.f32.gmra.mxu0 %v3516
  %v3611 = vpop.f32.mrf.mxu0
  %v3612 = vadd.f32 0.0, %v3611
  %3613 = vmatmul.f32.gmra.mxu0 %v3518
  %v3614 = vpop.f32.mrf.mxu0
  %v3615 = vadd.f32 0.0, %v3614
  %3616 = vdwg.mxu0
  %3617 = vmax.xlane.f32.xlu0 %v2991
  %v3618 = vpop.xlane.xlu0 %3617
  %3619 = vmax.xlane.f32.xlu0 %v2994
  %v3620 = vpop.xlane.xlu0 %3619
  %3621 = vmax.xlane.f32.xlu0 %v2997
  %v3622 = vpop.xlane.xlu0 %3621
  %3623 = vmax.xlane.f32.xlu0 %v3000
  %v3624 = vpop.xlane.xlu0 %3623
  %3625 = vmax.xlane.f32.xlu0 %v3003
  %v3626 = vpop.xlane.xlu0 %3625
  %3627 = vmax.xlane.f32.xlu0 %v3006
  %v3628 = vpop.xlane.xlu0 %3627
  %3629 = vmax.xlane.f32.xlu0 %v3009
  %v3630 = vpop.xlane.xlu0 %3629
  %3631 = vmax.xlane.f32.xlu0 %v3012
  %v3632 = vpop.xlane.xlu0 %3631
  %3633 = vmax.xlane.f32.xlu0 %v3015
  %v3634 = vpop.xlane.xlu0 %3633
  %3635 = vmax.xlane.f32.xlu0 %v3018
  %v3636 = vpop.xlane.xlu0 %3635
  %3637 = vmax.xlane.f32.xlu0 %v3021
  %v3638 = vpop.xlane.xlu0 %3637
  %3639 = vmax.xlane.f32.xlu0 %v3024
  %v3640 = vpop.xlane.xlu0 %3639
  %3641 = vmax.xlane.f32.xlu0 %v3027
  %v3642 = vpop.xlane.xlu0 %3641
  %3643 = vmax.xlane.f32.xlu0 %v3030
  %v3644 = vpop.xlane.xlu0 %3643
  %3645 = vmax.xlane.f32.xlu0 %v3033
  %v3646 = vpop.xlane.xlu0 %3645
  %3647 = vmax.xlane.f32.xlu0 %v3036
  %v3648 = vpop.xlane.xlu0 %3647
  %3649 = vmax.xlane.f32.xlu0 %v3184
  %v3650 = vpop.xlane.xlu0 %3649
  %3651 = vmax.xlane.f32.xlu0 %v3187
  %v3652 = vpop.xlane.xlu0 %3651
  %3653 = vmax.xlane.f32.xlu0 %v3190
  %v3654 = vpop.xlane.xlu0 %3653
  %3655 = vmax.xlane.f32.xlu0 %v3193
  %v3656 = vpop.xlane.xlu0 %3655
  %3657 = vmax.xlane.f32.xlu0 %v3196
  %v3658 = vpop.xlane.xlu0 %3657
  %3659 = vmax.xlane.f32.xlu0 %v3199
  %v3660 = vpop.xlane.xlu0 %3659
  %3661 = vmax.xlane.f32.xlu0 %v3202
  %v3662 = vpop.xlane.xlu0 %3661
  %3663 = vmax.xlane.f32.xlu0 %v3205
  %v3664 = vpop.xlane.xlu0 %3663
  %3665 = vmax.xlane.f32.xlu0 %v3208
  %v3666 = vpop.xlane.xlu0 %3665
  %3667 = vmax.xlane.f32.xlu0 %v3211
  %v3668 = vpop.xlane.xlu0 %3667
  %3669 = vmax.xlane.f32.xlu0 %v3214
  %v3670 = vpop.xlane.xlu0 %3669
  %3671 = vmax.xlane.f32.xlu0 %v3217
  %v3672 = vpop.xlane.xlu0 %3671
  %3673 = vmax.xlane.f32.xlu0 %v3220
  %v3674 = vpop.xlane.xlu0 %3673
  %3675 = vmax.xlane.f32.xlu0 %v3223
  %v3676 = vpop.xlane.xlu0 %3675
  %3677 = vmax.xlane.f32.xlu0 %v3226
  %v3678 = vpop.xlane.xlu0 %3677
  %3679 = vmax.xlane.f32.xlu0 %v3229
  %v3680 = vpop.xlane.xlu0 %3679
  %3681 = vmax.xlane.f32.xlu0 %v3377
  %v3682 = vpop.xlane.xlu0 %3681
  %3683 = vmax.xlane.f32.xlu0 %v3380
  %v3684 = vpop.xlane.xlu0 %3683
  %3685 = vmax.xlane.f32.xlu0 %v3383
  %v3686 = vpop.xlane.xlu0 %3685
  %3687 = vmax.xlane.f32.xlu0 %v3386
  %v3688 = vpop.xlane.xlu0 %3687
  %3689 = vmax.xlane.f32.xlu0 %v3389
  %v3690 = vpop.xlane.xlu0 %3689
  %3691 = vmax.xlane.f32.xlu0 %v3392
  %v3692 = vpop.xlane.xlu0 %3691
  %3693 = vmax.xlane.f32.xlu0 %v3395
  %v3694 = vpop.xlane.xlu0 %3693
  %3695 = vmax.xlane.f32.xlu0 %v3398
  %v3696 = vpop.xlane.xlu0 %3695
  %3697 = vmax.xlane.f32.xlu0 %v3401
  %v3698 = vpop.xlane.xlu0 %3697
  %3699 = vmax.xlane.f32.xlu0 %v3404
  %v3700 = vpop.xlane.xlu0 %3699
  %3701 = vmax.xlane.f32.xlu0 %v3407
  %v3702 = vpop.xlane.xlu0 %3701
  %3703 = vmax.xlane.f32.xlu0 %v3410
  %v3704 = vpop.xlane.xlu0 %3703
  %3705 = vmax.xlane.f32.xlu0 %v3413
  %v3706 = vpop.xlane.xlu0 %3705
  %3707 = vmax.xlane.f32.xlu0 %v3416
  %v3708 = vpop.xlane.xlu0 %3707
  %3709 = vmax.xlane.f32.xlu0 %v3419
  %v3710 = vpop.xlane.xlu0 %3709
  %3711 = vmax.xlane.f32.xlu0 %v3422
  %v3712 = vpop.xlane.xlu0 %3711
  %3713 = vmax.xlane.f32.xlu0 %v3570
  %v3714 = vpop.xlane.xlu0 %3713
  %3715 = vmax.xlane.f32.xlu0 %v3573
  %v3716 = vpop.xlane.xlu0 %3715
  %3717 = vmax.xlane.f32.xlu0 %v3576
  %v3718 = vpop.xlane.xlu0 %3717
  %3719 = vmax.xlane.f32.xlu0 %v3579
  %v3720 = vpop.xlane.xlu0 %3719
  %3721 = vmax.xlane.f32.xlu0 %v3582
  %v3722 = vpop.xlane.xlu0 %3721
  %3723 = vmax.xlane.f32.xlu0 %v3585
  %v3724 = vpop.xlane.xlu0 %3723
  %3725 = vmax.xlane.f32.xlu0 %v3588
  %v3726 = vpop.xlane.xlu0 %3725
  %3727 = vmax.xlane.f32.xlu0 %v3591
  %v3728 = vpop.xlane.xlu0 %3727
  %3729 = vmax.xlane.f32.xlu0 %v3594
  %v3730 = vpop.xlane.xlu0 %3729
  %3731 = vmax.xlane.f32.xlu0 %v3597
  %v3732 = vpop.xlane.xlu0 %3731
  %3733 = vmax.xlane.f32.xlu0 %v3600
  %v3734 = vpop.xlane.xlu0 %3733
  %3735 = vmax.xlane.f32.xlu0 %v3603
  %v3736 = vpop.xlane.xlu0 %3735
  %3737 = vmax.xlane.f32.xlu0 %v3606
  %v3738 = vpop.xlane.xlu0 %3737
  %3739 = vmax.xlane.f32.xlu0 %v3609
  %v3740 = vpop.xlane.xlu0 %3739
  %3741 = vmax.xlane.f32.xlu0 %v3612
  %v3742 = vpop.xlane.xlu0 %3741
  %3743 = vmax.xlane.f32.xlu0 %v3615
  %v3744 = vpop.xlane.xlu0 %3743
  %v3745 = vsub.f32 %v2991, %v3618
  %v3746 = vsub.f32 %v2994, %v3620
  %v3747 = vsub.f32 %v2997, %v3622
  %v3748 = vsub.f32 %v3000, %v3624
  %v3749 = vsub.f32 %v3003, %v3626
  %v3750 = vsub.f32 %v3006, %v3628
  %v3751 = vsub.f32 %v3009, %v3630
  %v3752 = vsub.f32 %v3012, %v3632
  %v3753 = vsub.f32 %v3015, %v3634
  %v3754 = vsub.f32 %v3018, %v3636
  %v3755 = vsub.f32 %v3021, %v3638
  %v3756 = vsub.f32 %v3024, %v3640
  %v3757 = vsub.f32 %v3027, %v3642
  %v3758 = vsub.f32 %v3030, %v3644
  %v3759 = vsub.f32 %v3033, %v3646
  %v3760 = vsub.f32 %v3036, %v3648
  %v3761 = vsub.f32 %v3184, %v3650
  %v3762 = vsub.f32 %v3187, %v3652
  %v3763 = vsub.f32 %v3190, %v3654
  %v3764 = vsub.f32 %v3193, %v3656
  %v3765 = vsub.f32 %v3196, %v3658
  %v3766 = vsub.f32 %v3199, %v3660
  %v3767 = vsub.f32 %v3202, %v3662
  %v3768 = vsub.f32 %v3205, %v3664
  %v3769 = vsub.f32 %v3208, %v3666
  %v3770 = vsub.f32 %v3211, %v3668
  %v3771 = vsub.f32 %v3214, %v3670
  %v3772 = vsub.f32 %v3217, %v3672
  %v3773 = vsub.f32 %v3220, %v3674
  %v3774 = vsub.f32 %v3223, %v3676
  %v3775 = vsub.f32 %v3226, %v3678
  %v3776 = vsub.f32 %v3229, %v3680
  %v3777 = vsub.f32 %v3377, %v3682
  %v3778 = vsub.f32 %v3380, %v3684
  %v3779 = vsub.f32 %v3383, %v3686
  %v3780 = vsub.f32 %v3386, %v3688
  %v3781 = vsub.f32 %v3389, %v3690
  %v3782 = vsub.f32 %v3392, %v3692
  %v3783 = vsub.f32 %v3395, %v3694
  %v3784 = vsub.f32 %v3398, %v3696
  %v3785 = vsub.f32 %v3401, %v3698
  %v3786 = vsub.f32 %v3404, %v3700
  %v3787 = vsub.f32 %v3407, %v3702
  %v3788 = vsub.f32 %v3410, %v3704
  %v3789 = vsub.f32 %v3413, %v3706
  %v3790 = vsub.f32 %v3416, %v3708
  %v3791 = vsub.f32 %v3419, %v3710
  %v3792 = vsub.f32 %v3422, %v3712
  %v3793 = vsub.f32 %v3570, %v3714
  %v3794 = vsub.f32 %v3573, %v3716
  %v3795 = vsub.f32 %v3576, %v3718
  %v3796 = vsub.f32 %v3579, %v3720
  %v3797 = vsub.f32 %v3582, %v3722
  %v3798 = vsub.f32 %v3585, %v3724
  %v3799 = vsub.f32 %v3588, %v3726
  %v3800 = vsub.f32 %v3591, %v3728
  %v3801 = vsub.f32 %v3594, %v3730
  %v3802 = vsub.f32 %v3597, %v3732
  %v3803 = vsub.f32 %v3600, %v3734
  %v3804 = vsub.f32 %v3603, %v3736
  %v3805 = vsub.f32 %v3606, %v3738
  %v3806 = vsub.f32 %v3609, %v3740
  %v3807 = vsub.f32 %v3612, %v3742
  %v3808 = vsub.f32 %v3615, %v3744
  %v3809 = vmul.f32 %v3745, 1.442695
  %v3810 = vpow.pop %v3809
  %v3811 = vmul.f32 %v3746, 1.442695
  %v3812 = vpow.pop %v3811
  %v3813 = vmul.f32 %v3747, 1.442695
  %v3814 = vpow.pop %v3813
  %v3815 = vmul.f32 %v3748, 1.442695
  %v3816 = vpow.pop %v3815
  %v3817 = vmul.f32 %v3749, 1.442695
  %v3818 = vpow.pop %v3817
  %v3819 = vmul.f32 %v3750, 1.442695
  %v3820 = vpow.pop %v3819
  %v3821 = vmul.f32 %v3751, 1.442695
  %v3822 = vpow.pop %v3821
  %v3823 = vmul.f32 %v3752, 1.442695
  %v3824 = vpow.pop %v3823
  %v3825 = vmul.f32 %v3753, 1.442695
  %v3826 = vpow.pop %v3825
  %v3827 = vmul.f32 %v3754, 1.442695
  %v3828 = vpow.pop %v3827
  %v3829 = vmul.f32 %v3755, 1.442695
  %v3830 = vpow.pop %v3829
  %v3831 = vmul.f32 %v3756, 1.442695
  %v3832 = vpow.pop %v3831
  %v3833 = vmul.f32 %v3757, 1.442695
  %v3834 = vpow.pop %v3833
  %v3835 = vmul.f32 %v3758, 1.442695
  %v3836 = vpow.pop %v3835
  %v3837 = vmul.f32 %v3759, 1.442695
  %v3838 = vpow.pop %v3837
  %v3839 = vmul.f32 %v3760, 1.442695
  %v3840 = vpow.pop %v3839
  %v3841 = vmul.f32 %v3761, 1.442695
  %v3842 = vpow.pop %v3841
  %v3843 = vmul.f32 %v3762, 1.442695
  %v3844 = vpow.pop %v3843
  %v3845 = vmul.f32 %v3763, 1.442695
  %v3846 = vpow.pop %v3845
  %v3847 = vmul.f32 %v3764, 1.442695
  %v3848 = vpow.pop %v3847
  %v3849 = vmul.f32 %v3765, 1.442695
  %v3850 = vpow.pop %v3849
  %v3851 = vmul.f32 %v3766, 1.442695
  %v3852 = vpow.pop %v3851
  %v3853 = vmul.f32 %v3767, 1.442695
  %v3854 = vpow.pop %v3853
  %v3855 = vmul.f32 %v3768, 1.442695
  %v3856 = vpow.pop %v3855
  %v3857 = vmul.f32 %v3769, 1.442695
  %v3858 = vpow.pop %v3857
  %v3859 = vmul.f32 %v3770, 1.442695
  %v3860 = vpow.pop %v3859
  %v3861 = vmul.f32 %v3771, 1.442695
  %v3862 = vpow.pop %v3861
  %v3863 = vmul.f32 %v3772, 1.442695
  %v3864 = vpow.pop %v3863
  %v3865 = vmul.f32 %v3773, 1.442695
  %v3866 = vpow.pop %v3865
  %v3867 = vmul.f32 %v3774, 1.442695
  %v3868 = vpow.pop %v3867
  %v3869 = vmul.f32 %v3775, 1.442695
  %v3870 = vpow.pop %v3869
  %v3871 = vmul.f32 %v3776, 1.442695
  %v3872 = vpow.pop %v3871
  %v3873 = vmul.f32 %v3777, 1.442695
  %v3874 = vpow.pop %v3873
  %v3875 = vmul.f32 %v3778, 1.442695
  %v3876 = vpow.pop %v3875
  %v3877 = vmul.f32 %v3779, 1.442695
  %v3878 = vpow.pop %v3877
  %v3879 = vmul.f32 %v3780, 1.442695
  %v3880 = vpow.pop %v3879
  %v3881 = vmul.f32 %v3781, 1.442695
  %v3882 = vpow.pop %v3881
  %v3883 = vmul.f32 %v3782, 1.442695
  %v3884 = vpow.pop %v3883
  %v3885 = vmul.f32 %v3783, 1.442695
  %v3886 = vpow.pop %v3885
  %v3887 = vmul.f32 %v3784, 1.442695
  %v3888 = vpow.pop %v3887
  %v3889 = vmul.f32 %v3785, 1.442695
  %v3890 = vpow.pop %v3889
  %v3891 = vmul.f32 %v3786, 1.442695
  %v3892 = vpow.pop %v3891
  %v3893 = vmul.f32 %v3787, 1.442695
  %v3894 = vpow.pop %v3893
  %v3895 = vmul.f32 %v3788, 1.442695
  %v3896 = vpow.pop %v3895
  %v3897 = vmul.f32 %v3789, 1.442695
  %v3898 = vpow.pop %v3897
  %v3899 = vmul.f32 %v3790, 1.442695
  %v3900 = vpow.pop %v3899
  %v3901 = vmul.f32 %v3791, 1.442695
  %v3902 = vpow.pop %v3901
  %v3903 = vmul.f32 %v3792, 1.442695
  %v3904 = vpow.pop %v3903
  %v3905 = vmul.f32 %v3793, 1.442695
  %v3906 = vpow.pop %v3905
  %v3907 = vmul.f32 %v3794, 1.442695
  %v3908 = vpow.pop %v3907
  %v3909 = vmul.f32 %v3795, 1.442695
  %v3910 = vpow.pop %v3909
  %v3911 = vmul.f32 %v3796, 1.442695
  %v3912 = vpow.pop %v3911
  %v3913 = vmul.f32 %v3797, 1.442695
  %v3914 = vpow.pop %v3913
  %v3915 = vmul.f32 %v3798, 1.442695
  %v3916 = vpow.pop %v3915
  %v3917 = vmul.f32 %v3799, 1.442695
  %v3918 = vpow.pop %v3917
  %v3919 = vmul.f32 %v3800, 1.442695
  %v3920 = vpow.pop %v3919
  %v3921 = vmul.f32 %v3801, 1.442695
  %v3922 = vpow.pop %v3921
  %v3923 = vmul.f32 %v3802, 1.442695
  %v3924 = vpow.pop %v3923
  %v3925 = vmul.f32 %v3803, 1.442695
  %v3926 = vpow.pop %v3925
  %v3927 = vmul.f32 %v3804, 1.442695
  %v3928 = vpow.pop %v3927
  %v3929 = vmul.f32 %v3805, 1.442695
  %v3930 = vpow.pop %v3929
  %v3931 = vmul.f32 %v3806, 1.442695
  %v3932 = vpow.pop %v3931
  %v3933 = vmul.f32 %v3807, 1.442695
  %v3934 = vpow.pop %v3933
  %v3935 = vmul.f32 %v3808, 1.442695
  %v3936 = vpow.pop %v3935
  %3937 = vadd.xlane.f32.xlu0 %v3810
  %v3938 = vpop.xlane.xlu0 %3937
  %3939 = vadd.xlane.f32.xlu0 %v3812
  %v3940 = vpop.xlane.xlu0 %3939
  %3941 = vadd.xlane.f32.xlu0 %v3814
  %v3942 = vpop.xlane.xlu0 %3941
  %3943 = vadd.xlane.f32.xlu0 %v3816
  %v3944 = vpop.xlane.xlu0 %3943
  %3945 = vadd.xlane.f32.xlu0 %v3818
  %v3946 = vpop.xlane.xlu0 %3945
  %3947 = vadd.xlane.f32.xlu0 %v3820
  %v3948 = vpop.xlane.xlu0 %3947
  %3949 = vadd.xlane.f32.xlu0 %v3822
  %v3950 = vpop.xlane.xlu0 %3949
  %3951 = vadd.xlane.f32.xlu0 %v3824
  %v3952 = vpop.xlane.xlu0 %3951
  %3953 = vadd.xlane.f32.xlu0 %v3826
  %v3954 = vpop.xlane.xlu0 %3953
  %3955 = vadd.xlane.f32.xlu0 %v3828
  %v3956 = vpop.xlane.xlu0 %3955
  %3957 = vadd.xlane.f32.xlu0 %v3830
  %v3958 = vpop.xlane.xlu0 %3957
  %3959 = vadd.xlane.f32.xlu0 %v3832
  %v3960 = vpop.xlane.xlu0 %3959
  %3961 = vadd.xlane.f32.xlu0 %v3834
  %v3962 = vpop.xlane.xlu0 %3961
  %3963 = vadd.xlane.f32.xlu0 %v3836
  %v3964 = vpop.xlane.xlu0 %3963
  %3965 = vadd.xlane.f32.xlu0 %v3838
  %v3966 = vpop.xlane.xlu0 %3965
  %3967 = vadd.xlane.f32.xlu0 %v3840
  %v3968 = vpop.xlane.xlu0 %3967
  %3969 = vadd.xlane.f32.xlu0 %v3842
  %v3970 = vpop.xlane.xlu0 %3969
  %3971 = vadd.xlane.f32.xlu0 %v3844
  %v3972 = vpop.xlane.xlu0 %3971
  %3973 = vadd.xlane.f32.xlu0 %v3846
  %v3974 = vpop.xlane.xlu0 %3973
  %3975 = vadd.xlane.f32.xlu0 %v3848
  %v3976 = vpop.xlane.xlu0 %3975
  %3977 = vadd.xlane.f32.xlu0 %v3850
  %v3978 = vpop.xlane.xlu0 %3977
  %3979 = vadd.xlane.f32.xlu0 %v3852
  %v3980 = vpop.xlane.xlu0 %3979
  %3981 = vadd.xlane.f32.xlu0 %v3854
  %v3982 = vpop.xlane.xlu0 %3981
  %3983 = vadd.xlane.f32.xlu0 %v3856
  %v3984 = vpop.xlane.xlu0 %3983
  %3985 = vadd.xlane.f32.xlu0 %v3858
  %v3986 = vpop.xlane.xlu0 %3985
  %3987 = vadd.xlane.f32.xlu0 %v3860
  %v3988 = vpop.xlane.xlu0 %3987
  %3989 = vadd.xlane.f32.xlu0 %v3862
  %v3990 = vpop.xlane.xlu0 %3989
  %3991 = vadd.xlane.f32.xlu0 %v3864
  %v3992 = vpop.xlane.xlu0 %3991
  %3993 = vadd.xlane.f32.xlu0 %v3866
  %v3994 = vpop.xlane.xlu0 %3993
  %3995 = vadd.xlane.f32.xlu0 %v3868
  %v3996 = vpop.xlane.xlu0 %3995
  %3997 = vadd.xlane.f32.xlu0 %v3870
  %v3998 = vpop.xlane.xlu0 %3997
  %3999 = vadd.xlane.f32.xlu0 %v3872
  %v4000 = vpop.xlane.xlu0 %3999
  %4001 = vadd.xlane.f32.xlu0 %v3874
  %v4002 = vpop.xlane.xlu0 %4001
  %4003 = vadd.xlane.f32.xlu0 %v3876
  %v4004 = vpop.xlane.xlu0 %4003
  %4005 = vadd.xlane.f32.xlu0 %v3878
  %v4006 = vpop.xlane.xlu0 %4005
  %4007 = vadd.xlane.f32.xlu0 %v3880
  %v4008 = vpop.xlane.xlu0 %4007
  %4009 = vadd.xlane.f32.xlu0 %v3882
  %v4010 = vpop.xlane.xlu0 %4009
  %4011 = vadd.xlane.f32.xlu0 %v3884
  %v4012 = vpop.xlane.xlu0 %4011
  %4013 = vadd.xlane.f32.xlu0 %v3886
  %v4014 = vpop.xlane.xlu0 %4013
  %4015 = vadd.xlane.f32.xlu0 %v3888
  %v4016 = vpop.xlane.xlu0 %4015
  %4017 = vadd.xlane.f32.xlu0 %v3890
  %v4018 = vpop.xlane.xlu0 %4017
  %4019 = vadd.xlane.f32.xlu0 %v3892
  %v4020 = vpop.xlane.xlu0 %4019
  %4021 = vadd.xlane.f32.xlu0 %v3894
  %v4022 = vpop.xlane.xlu0 %4021
  %4023 = vadd.xlane.f32.xlu0 %v3896
  %v4024 = vpop.xlane.xlu0 %4023
  %4025 = vadd.xlane.f32.xlu0 %v3898
  %v4026 = vpop.xlane.xlu0 %4025
  %4027 = vadd.xlane.f32.xlu0 %v3900
  %v4028 = vpop.xlane.xlu0 %4027
  %4029 = vadd.xlane.f32.xlu0 %v3902
  %v4030 = vpop.xlane.xlu0 %4029
  %4031 = vadd.xlane.f32.xlu0 %v3904
  %v4032 = vpop.xlane.xlu0 %4031
  %4033 = vadd.xlane.f32.xlu0 %v3906
  %v4034 = vpop.xlane.xlu0 %4033
  %4035 = vadd.xlane.f32.xlu0 %v3908
  %v4036 = vpop.xlane.xlu0 %4035
  %4037 = vadd.xlane.f32.xlu0 %v3910
  %v4038 = vpop.xlane.xlu0 %4037
  %4039 = vadd.xlane.f32.xlu0 %v3912
  %v4040 = vpop.xlane.xlu0 %4039
  %4041 = vadd.xlane.f32.xlu0 %v3914
  %v4042 = vpop.xlane.xlu0 %4041
  %4043 = vadd.xlane.f32.xlu0 %v3916
  %v4044 = vpop.xlane.xlu0 %4043
  %4045 = vadd.xlane.f32.xlu0 %v3918
  %v4046 = vpop.xlane.xlu0 %4045
  %4047 = vadd.xlane.f32.xlu0 %v3920
  %v4048 = vpop.xlane.xlu0 %4047
  %4049 = vadd.xlane.f32.xlu0 %v3922
  %v4050 = vpop.xlane.xlu0 %4049
  %4051 = vadd.xlane.f32.xlu0 %v3924
  %v4052 = vpop.xlane.xlu0 %4051
  %4053 = vadd.xlane.f32.xlu0 %v3926
  %v4054 = vpop.xlane.xlu0 %4053
  %4055 = vadd.xlane.f32.xlu0 %v3928
  %v4056 = vpop.xlane.xlu0 %4055
  %4057 = vadd.xlane.f32.xlu0 %v3930
  %v4058 = vpop.xlane.xlu0 %4057
  %4059 = vadd.xlane.f32.xlu0 %v3932
  %v4060 = vpop.xlane.xlu0 %4059
  %4061 = vadd.xlane.f32.xlu0 %v3934
  %v4062 = vpop.xlane.xlu0 %4061
  %4063 = vadd.xlane.f32.xlu0 %v3936
  %v4064 = vpop.xlane.xlu0 %4063
  %4065 = vrot.lane.b32.xlu0 %v19, 56
  %v4066 = vpop.permute.xlu0 %4065
  %4067 = vrot.lane.b32.xlu0 %v20, 56
  %v4068 = vpop.permute.xlu0 %4067
  %4069 = vrot.lane.b32.xlu0 %v21, 56
  %v4070 = vpop.permute.xlu0 %4069
  %4071 = vrot.lane.b32.xlu0 %v22, 56
  %v4072 = vpop.permute.xlu0 %4071
  %4073 = vrot.lane.b32.xlu0 %v23, 56
  %v4074 = vpop.permute.xlu0 %4073
  %4075 = vrot.lane.b32.xlu0 %v24, 56
  %v4076 = vpop.permute.xlu0 %4075
  %4077 = vrot.lane.b32.xlu0 %v25, 56
  %v4078 = vpop.permute.xlu0 %4077
  %4079 = vrot.lane.b32.xlu0 %v26, 56
  %v4080 = vpop.permute.xlu0 %4079
  %4081 = vrot.lane.b32.xlu0 %v27, 56
  %v4082 = vpop.permute.xlu0 %4081
  %4083 = vrot.lane.b32.xlu0 %v28, 56
  %v4084 = vpop.permute.xlu0 %4083
  %4085 = vrot.lane.b32.xlu0 %v29, 56
  %v4086 = vpop.permute.xlu0 %4085
  %4087 = vrot.lane.b32.xlu0 %v30, 56
  %v4088 = vpop.permute.xlu0 %4087
  %4089 = vrot.lane.b32.xlu0 %v31, 56
  %v4090 = vpop.permute.xlu0 %4089
  %4091 = vrot.lane.b32.xlu0 %v32, 56
  %v4092 = vpop.permute.xlu0 %4091
  %4093 = vrot.lane.b32.xlu0 %v33, 56
  %v4094 = vpop.permute.xlu0 %4093
  %4095 = vrot.lane.b32.xlu0 %v34, 56
  %v4096 = vpop.permute.xlu0 %4095
  %4113 = vmatpush.msra.mxu0 %v4096
  %4114 = vmatpush.msra.mxu0 %v4094
  %4115 = vmatpush.msra.mxu0 %v4092
  %4116 = vmatpush.msra.mxu0 %v4090
  %4117 = vmatpush.msra.mxu0 %v4088
  %4118 = vmatpush.msra.mxu0 %v4086
  %4119 = vmatpush.msra.mxu0 %v4084
  %4120 = vmatpush.msra.mxu0 %v4082
  %4121 = vmatpush.msra.mxu0 %v4080
  %4122 = vmatpush.msra.mxu0 %v4078
  %4123 = vmatpush.msra.mxu0 %v4076
  %4124 = vmatpush.msra.mxu0 %v4074
  %4125 = vmatpush.msra.mxu0 %v4072
  %4126 = vmatpush.msra.mxu0 %v4070
  %4127 = vmatpush.msra.mxu0 %v4068
  %4128 = vmatpush.msra.mxu0 %v4066
  %4129 = vmatmul.f32.gmra.mxu0 %v3810
  %v4130 = vpop.f32.mrf.mxu0
  %v4131 = vadd.f32 0.0, %v4130
  %4132 = vmatmul.f32.gmra.mxu0 %v3812
  %v4133 = vpop.f32.mrf.mxu0
  %v4134 = vadd.f32 0.0, %v4133
  %4135 = vmatmul.f32.gmra.mxu0 %v3814
  %v4136 = vpop.f32.mrf.mxu0
  %v4137 = vadd.f32 0.0, %v4136
  %4138 = vmatmul.f32.gmra.mxu0 %v3816
  %v4139 = vpop.f32.mrf.mxu0
  %v4140 = vadd.f32 0.0, %v4139
  %4141 = vmatmul.f32.gmra.mxu0 %v3818
  %v4142 = vpop.f32.mrf.mxu0
  %v4143 = vadd.f32 0.0, %v4142
  %4144 = vmatmul.f32.gmra.mxu0 %v3820
  %v4145 = vpop.f32.mrf.mxu0
  %v4146 = vadd.f32 0.0, %v4145
  %4147 = vmatmul.f32.gmra.mxu0 %v3822
  %v4148 = vpop.f32.mrf.mxu0
  %v4149 = vadd.f32 0.0, %v4148
  %4150 = vmatmul.f32.gmra.mxu0 %v3824
  %v4151 = vpop.f32.mrf.mxu0
  %v4152 = vadd.f32 0.0, %v4151
  %4153 = vmatmul.f32.gmra.mxu0 %v3826
  %v4154 = vpop.f32.mrf.mxu0
  %v4155 = vadd.f32 0.0, %v4154
  %4156 = vmatmul.f32.gmra.mxu0 %v3828
  %v4157 = vpop.f32.mrf.mxu0
  %v4158 = vadd.f32 0.0, %v4157
  %4159 = vmatmul.f32.gmra.mxu0 %v3830
  %v4160 = vpop.f32.mrf.mxu0
  %v4161 = vadd.f32 0.0, %v4160
  %4162 = vmatmul.f32.gmra.mxu0 %v3832
  %v4163 = vpop.f32.mrf.mxu0
  %v4164 = vadd.f32 0.0, %v4163
  %4165 = vmatmul.f32.gmra.mxu0 %v3834
  %v4166 = vpop.f32.mrf.mxu0
  %v4167 = vadd.f32 0.0, %v4166
  %4168 = vmatmul.f32.gmra.mxu0 %v3836
  %v4169 = vpop.f32.mrf.mxu0
  %v4170 = vadd.f32 0.0, %v4169
  %4171 = vmatmul.f32.gmra.mxu0 %v3838
  %v4172 = vpop.f32.mrf.mxu0
  %v4173 = vadd.f32 0.0, %v4172
  %4174 = vmatmul.f32.gmra.mxu0 %v3840
  %v4175 = vpop.f32.mrf.mxu0
  %v4176 = vadd.f32 0.0, %v4175
  %4177 = vdwg.mxu0
  %4178 = vrot.lane.b32.xlu0 %v35, 56
  %v4179 = vpop.permute.xlu0 %4178
  %4180 = vrot.lane.b32.xlu0 %v36, 56
  %v4181 = vpop.permute.xlu0 %4180
  %4182 = vrot.lane.b32.xlu0 %v37, 56
  %v4183 = vpop.permute.xlu0 %4182
  %4184 = vrot.lane.b32.xlu0 %v38, 56
  %v4185 = vpop.permute.xlu0 %4184
  %4186 = vrot.lane.b32.xlu0 %v39, 56
  %v4187 = vpop.permute.xlu0 %4186
  %4188 = vrot.lane.b32.xlu0 %v40, 56
  %v4189 = vpop.permute.xlu0 %4188
  %4190 = vrot.lane.b32.xlu0 %v41, 56
  %v4191 = vpop.permute.xlu0 %4190
  %4192 = vrot.lane.b32.xlu0 %v42, 56
  %v4193 = vpop.permute.xlu0 %4192
  %4194 = vrot.lane.b32.xlu0 %v43, 56
  %v4195 = vpop.permute.xlu0 %4194
  %4196 = vrot.lane.b32.xlu0 %v44, 56
  %v4197 = vpop.permute.xlu0 %4196
  %4198 = vrot.lane.b32.xlu0 %v45, 56
  %v4199 = vpop.permute.xlu0 %4198
  %4200 = vrot.lane.b32.xlu0 %v46, 56
  %v4201 = vpop.permute.xlu0 %4200
  %4202 = vrot.lane.b32.xlu0 %v47, 56
  %v4203 = vpop.permute.xlu0 %4202
  %4204 = vrot.lane.b32.xlu0 %v48, 56
  %v4205 = vpop.permute.xlu0 %4204
  %4206 = vrot.lane.b32.xlu0 %v49, 56
  %v4207 = vpop.permute.xlu0 %4206
  %4208 = vrot.lane.b32.xlu0 %v50, 56
  %v4209 = vpop.permute.xlu0 %4208
  %4226 = vmatpush.msra.mxu0 %v4209
  %4227 = vmatpush.msra.mxu0 %v4207
  %4228 = vmatpush.msra.mxu0 %v4205
  %4229 = vmatpush.msra.mxu0 %v4203
  %4230 = vmatpush.msra.mxu0 %v4201
  %4231 = vmatpush.msra.mxu0 %v4199
  %4232 = vmatpush.msra.mxu0 %v4197
  %4233 = vmatpush.msra.mxu0 %v4195
  %4234 = vmatpush.msra.mxu0 %v4193
  %4235 = vmatpush.msra.mxu0 %v4191
  %4236 = vmatpush.msra.mxu0 %v4189
  %4237 = vmatpush.msra.mxu0 %v4187
  %4238 = vmatpush.msra.mxu0 %v4185
  %4239 = vmatpush.msra.mxu0 %v4183
  %4240 = vmatpush.msra.mxu0 %v4181
  %4241 = vmatpush.msra.mxu0 %v4179
  %4242 = vmatmul.f32.gmra.mxu0 %v3842
  %v4243 = vpop.f32.mrf.mxu0
  %v4244 = vadd.f32 0.0, %v4243
  %4245 = vmatmul.f32.gmra.mxu0 %v3844
  %v4246 = vpop.f32.mrf.mxu0
  %v4247 = vadd.f32 0.0, %v4246
  %4248 = vmatmul.f32.gmra.mxu0 %v3846
  %v4249 = vpop.f32.mrf.mxu0
  %v4250 = vadd.f32 0.0, %v4249
  %4251 = vmatmul.f32.gmra.mxu0 %v3848
  %v4252 = vpop.f32.mrf.mxu0
  %v4253 = vadd.f32 0.0, %v4252
  %4254 = vmatmul.f32.gmra.mxu0 %v3850
  %v4255 = vpop.f32.mrf.mxu0
  %v4256 = vadd.f32 0.0, %v4255
  %4257 = vmatmul.f32.gmra.mxu0 %v3852
  %v4258 = vpop.f32.mrf.mxu0
  %v4259 = vadd.f32 0.0, %v4258
  %4260 = vmatmul.f32.gmra.mxu0 %v3854
  %v4261 = vpop.f32.mrf.mxu0
  %v4262 = vadd.f32 0.0, %v4261
  %4263 = vmatmul.f32.gmra.mxu0 %v3856
  %v4264 = vpop.f32.mrf.mxu0
  %v4265 = vadd.f32 0.0, %v4264
  %4266 = vmatmul.f32.gmra.mxu0 %v3858
  %v4267 = vpop.f32.mrf.mxu0
  %v4268 = vadd.f32 0.0, %v4267
  %4269 = vmatmul.f32.gmra.mxu0 %v3860
  %v4270 = vpop.f32.mrf.mxu0
  %v4271 = vadd.f32 0.0, %v4270
  %4272 = vmatmul.f32.gmra.mxu0 %v3862
  %v4273 = vpop.f32.mrf.mxu0
  %v4274 = vadd.f32 0.0, %v4273
  %4275 = vmatmul.f32.gmra.mxu0 %v3864
  %v4276 = vpop.f32.mrf.mxu0
  %v4277 = vadd.f32 0.0, %v4276
  %4278 = vmatmul.f32.gmra.mxu0 %v3866
  %v4279 = vpop.f32.mrf.mxu0
  %v4280 = vadd.f32 0.0, %v4279
  %4281 = vmatmul.f32.gmra.mxu0 %v3868
  %v4282 = vpop.f32.mrf.mxu0
  %v4283 = vadd.f32 0.0, %v4282
  %4284 = vmatmul.f32.gmra.mxu0 %v3870
  %v4285 = vpop.f32.mrf.mxu0
  %v4286 = vadd.f32 0.0, %v4285
  %4287 = vmatmul.f32.gmra.mxu0 %v3872
  %v4288 = vpop.f32.mrf.mxu0
  %v4289 = vadd.f32 0.0, %v4288
  %4290 = vdwg.mxu0
  %4291 = vrot.lane.b32.xlu0 %v51, 56
  %v4292 = vpop.permute.xlu0 %4291
  %4293 = vrot.lane.b32.xlu0 %v52, 56
  %v4294 = vpop.permute.xlu0 %4293
  %4295 = vrot.lane.b32.xlu0 %v53, 56
  %v4296 = vpop.permute.xlu0 %4295
  %4297 = vrot.lane.b32.xlu0 %v54, 56
  %v4298 = vpop.permute.xlu0 %4297
  %4299 = vrot.lane.b32.xlu0 %v55, 56
  %v4300 = vpop.permute.xlu0 %4299
  %4301 = vrot.lane.b32.xlu0 %v56, 56
  %v4302 = vpop.permute.xlu0 %4301
  %4303 = vrot.lane.b32.xlu0 %v57, 56
  %v4304 = vpop.permute.xlu0 %4303
  %4305 = vrot.lane.b32.xlu0 %v58, 56
  %v4306 = vpop.permute.xlu0 %4305
  %4307 = vrot.lane.b32.xlu0 %v59, 56
  %v4308 = vpop.permute.xlu0 %4307
  %4309 = vrot.lane.b32.xlu0 %v60, 56
  %v4310 = vpop.permute.xlu0 %4309
  %4311 = vrot.lane.b32.xlu0 %v61, 56
  %v4312 = vpop.permute.xlu0 %4311
  %4313 = vrot.lane.b32.xlu0 %v62, 56
  %v4314 = vpop.permute.xlu0 %4313
  %4315 = vrot.lane.b32.xlu0 %v63, 56
  %v4316 = vpop.permute.xlu0 %4315
  %4317 = vrot.lane.b32.xlu0 %v64, 56
  %v4318 = vpop.permute.xlu0 %4317
  %4319 = vrot.lane.b32.xlu0 %v65, 56
  %v4320 = vpop.permute.xlu0 %4319
  %4321 = vrot.lane.b32.xlu0 %v66, 56
  %v4322 = vpop.permute.xlu0 %4321
  %4339 = vmatpush.msra.mxu0 %v4322
  %4340 = vmatpush.msra.mxu0 %v4320
  %4341 = vmatpush.msra.mxu0 %v4318
  %4342 = vmatpush.msra.mxu0 %v4316
  %4343 = vmatpush.msra.mxu0 %v4314
  %4344 = vmatpush.msra.mxu0 %v4312
  %4345 = vmatpush.msra.mxu0 %v4310
  %4346 = vmatpush.msra.mxu0 %v4308
  %4347 = vmatpush.msra.mxu0 %v4306
  %4348 = vmatpush.msra.mxu0 %v4304
  %4349 = vmatpush.msra.mxu0 %v4302
  %4350 = vmatpush.msra.mxu0 %v4300
  %4351 = vmatpush.msra.mxu0 %v4298
  %4352 = vmatpush.msra.mxu0 %v4296
  %4353 = vmatpush.msra.mxu0 %v4294
  %4354 = vmatpush.msra.mxu0 %v4292
  %4355 = vmatmul.f32.gmra.mxu0 %v3874
  %v4356 = vpop.f32.mrf.mxu0
  %v4357 = vadd.f32 0.0, %v4356
  %4358 = vmatmul.f32.gmra.mxu0 %v3876
  %v4359 = vpop.f32.mrf.mxu0
  %v4360 = vadd.f32 0.0, %v4359
  %4361 = vmatmul.f32.gmra.mxu0 %v3878
  %v4362 = vpop.f32.mrf.mxu0
  %v4363 = vadd.f32 0.0, %v4362
  %4364 = vmatmul.f32.gmra.mxu0 %v3880
  %v4365 = vpop.f32.mrf.mxu0
  %v4366 = vadd.f32 0.0, %v4365
  %4367 = vmatmul.f32.gmra.mxu0 %v3882
  %v4368 = vpop.f32.mrf.mxu0
  %v4369 = vadd.f32 0.0, %v4368
  %4370 = vmatmul.f32.gmra.mxu0 %v3884
  %v4371 = vpop.f32.mrf.mxu0
  %v4372 = vadd.f32 0.0, %v4371
  %4373 = vmatmul.f32.gmra.mxu0 %v3886
  %v4374 = vpop.f32.mrf.mxu0
  %v4375 = vadd.f32 0.0, %v4374
  %4376 = vmatmul.f32.gmra.mxu0 %v3888
  %v4377 = vpop.f32.mrf.mxu0
  %v4378 = vadd.f32 0.0, %v4377
  %4379 = vmatmul.f32.gmra.mxu0 %v3890
  %v4380 = vpop.f32.mrf.mxu0
  %v4381 = vadd.f32 0.0, %v4380
  %4382 = vmatmul.f32.gmra.mxu0 %v3892
  %v4383 = vpop.f32.mrf.mxu0
  %v4384 = vadd.f32 0.0, %v4383
  %4385 = vmatmul.f32.gmra.mxu0 %v3894
  %v4386 = vpop.f32.mrf.mxu0
  %v4387 = vadd.f32 0.0, %v4386
  %4388 = vmatmul.f32.gmra.mxu0 %v3896
  %v4389 = vpop.f32.mrf.mxu0
  %v4390 = vadd.f32 0.0, %v4389
  %4391 = vmatmul.f32.gmra.mxu0 %v3898
  %v4392 = vpop.f32.mrf.mxu0
  %v4393 = vadd.f32 0.0, %v4392
  %4394 = vmatmul.f32.gmra.mxu0 %v3900
  %v4395 = vpop.f32.mrf.mxu0
  %v4396 = vadd.f32 0.0, %v4395
  %4397 = vmatmul.f32.gmra.mxu0 %v3902
  %v4398 = vpop.f32.mrf.mxu0
  %v4399 = vadd.f32 0.0, %v4398
  %4400 = vmatmul.f32.gmra.mxu0 %v3904
  %v4401 = vpop.f32.mrf.mxu0
  %v4402 = vadd.f32 0.0, %v4401
  %4403 = vdwg.mxu0
  %4404 = vrot.lane.b32.xlu0 %v67, 56
  %v4405 = vpop.permute.xlu0 %4404
  %4406 = vrot.lane.b32.xlu0 %v68, 56
  %v4407 = vpop.permute.xlu0 %4406
  %4408 = vrot.lane.b32.xlu0 %v69, 56
  %v4409 = vpop.permute.xlu0 %4408
  %4410 = vrot.lane.b32.xlu0 %v70, 56
  %v4411 = vpop.permute.xlu0 %4410
  %4412 = vrot.lane.b32.xlu0 %v71, 56
  %v4413 = vpop.permute.xlu0 %4412
  %4414 = vrot.lane.b32.xlu0 %v72, 56
  %v4415 = vpop.permute.xlu0 %4414
  %4416 = vrot.lane.b32.xlu0 %v73, 56
  %v4417 = vpop.permute.xlu0 %4416
  %4418 = vrot.lane.b32.xlu0 %v74, 56
  %v4419 = vpop.permute.xlu0 %4418
  %4420 = vrot.lane.b32.xlu0 %v75, 56
  %v4421 = vpop.permute.xlu0 %4420
  %4422 = vrot.lane.b32.xlu0 %v76, 56
  %v4423 = vpop.permute.xlu0 %4422
  %4424 = vrot.lane.b32.xlu0 %v77, 56
  %v4425 = vpop.permute.xlu0 %4424
  %4426 = vrot.lane.b32.xlu0 %v78, 56
  %v4427 = vpop.permute.xlu0 %4426
  %4428 = vrot.lane.b32.xlu0 %v79, 56
  %v4429 = vpop.permute.xlu0 %4428
  %4430 = vrot.lane.b32.xlu0 %v80, 56
  %v4431 = vpop.permute.xlu0 %4430
  %4432 = vrot.lane.b32.xlu0 %v81, 56
  %v4433 = vpop.permute.xlu0 %4432
  %4434 = vrot.lane.b32.xlu0 %v82, 56
  %v4435 = vpop.permute.xlu0 %4434
  %4452 = vmatpush.msra.mxu0 %v4435
  %4453 = vmatpush.msra.mxu0 %v4433
  %4454 = vmatpush.msra.mxu0 %v4431
  %4455 = vmatpush.msra.mxu0 %v4429
  %4456 = vmatpush.msra.mxu0 %v4427
  %4457 = vmatpush.msra.mxu0 %v4425
  %4458 = vmatpush.msra.mxu0 %v4423
  %4459 = vmatpush.msra.mxu0 %v4421
  %4460 = vmatpush.msra.mxu0 %v4419
  %4461 = vmatpush.msra.mxu0 %v4417
  %4462 = vmatpush.msra.mxu0 %v4415
  %4463 = vmatpush.msra.mxu0 %v4413
  %4464 = vmatpush.msra.mxu0 %v4411
  %4465 = vmatpush.msra.mxu0 %v4409
  %4466 = vmatpush.msra.mxu0 %v4407
  %4467 = vmatpush.msra.mxu0 %v4405
  %4468 = vmatmul.f32.gmra.mxu0 %v3906
  %v4469 = vpop.f32.mrf.mxu0
  %v4470 = vadd.f32 0.0, %v4469
  %4471 = vmatmul.f32.gmra.mxu0 %v3908
  %v4472 = vpop.f32.mrf.mxu0
  %v4473 = vadd.f32 0.0, %v4472
  %4474 = vmatmul.f32.gmra.mxu0 %v3910
  %v4475 = vpop.f32.mrf.mxu0
  %v4476 = vadd.f32 0.0, %v4475
  %4477 = vmatmul.f32.gmra.mxu0 %v3912
  %v4478 = vpop.f32.mrf.mxu0
  %v4479 = vadd.f32 0.0, %v4478
  %4480 = vmatmul.f32.gmra.mxu0 %v3914
  %v4481 = vpop.f32.mrf.mxu0
  %v4482 = vadd.f32 0.0, %v4481
  %4483 = vmatmul.f32.gmra.mxu0 %v3916
  %v4484 = vpop.f32.mrf.mxu0
  %v4485 = vadd.f32 0.0, %v4484
  %4486 = vmatmul.f32.gmra.mxu0 %v3918
  %v4487 = vpop.f32.mrf.mxu0
  %v4488 = vadd.f32 0.0, %v4487
  %4489 = vmatmul.f32.gmra.mxu0 %v3920
  %v4490 = vpop.f32.mrf.mxu0
  %v4491 = vadd.f32 0.0, %v4490
  %4492 = vmatmul.f32.gmra.mxu0 %v3922
  %v4493 = vpop.f32.mrf.mxu0
  %v4494 = vadd.f32 0.0, %v4493
  %4495 = vmatmul.f32.gmra.mxu0 %v3924
  %v4496 = vpop.f32.mrf.mxu0
  %v4497 = vadd.f32 0.0, %v4496
  %4498 = vmatmul.f32.gmra.mxu0 %v3926
  %v4499 = vpop.f32.mrf.mxu0
  %v4500 = vadd.f32 0.0, %v4499
  %4501 = vmatmul.f32.gmra.mxu0 %v3928
  %v4502 = vpop.f32.mrf.mxu0
  %v4503 = vadd.f32 0.0, %v4502
  %4504 = vmatmul.f32.gmra.mxu0 %v3930
  %v4505 = vpop.f32.mrf.mxu0
  %v4506 = vadd.f32 0.0, %v4505
  %4507 = vmatmul.f32.gmra.mxu0 %v3932
  %v4508 = vpop.f32.mrf.mxu0
  %v4509 = vadd.f32 0.0, %v4508
  %4510 = vmatmul.f32.gmra.mxu0 %v3934
  %v4511 = vpop.f32.mrf.mxu0
  %v4512 = vadd.f32 0.0, %v4511
  %4513 = vmatmul.f32.gmra.mxu0 %v3936
  %v4514 = vpop.f32.mrf.mxu0
  %v4515 = vadd.f32 0.0, %v4514
  %4516 = vdwg.mxu0
  %v4517 = vrcp.pop %v3938
  %v4518 = vmul.f32 %v3938, %v4517
  %v4519 = vsub.f32 1.0, %v4518
  %v4520 = vmul.f32 %v4517, %v4519
  %v4521 = vadd.f32 %v4517, %v4520
  %vm4522 = vweird.f32 %v3938
  %vm4523 = vweird.f32 %v4517
  %vm4524 = vmor %vm4522, %vm4523
  %v4525 = vsel %vm4524, %v4517, %v4521
  %v4526 = vand.u32 2147483647, %v3938
  %vm4527 = vcmp.eq.f32.partialorder %v4526, 8.507059e+37
  %v4528 = vand.u32 %v3938, 2147483648
  %v4529 = vor.u32 1.1754944e-38, %v4528
  %v4530 = vsel %vm4527, %v4529, %v4525
  %v4531 = vmul.f32 1.0, %v4530
  %v4532 = vrcp.pop %v3940
  %v4533 = vmul.f32 %v3940, %v4532
  %v4534 = vsub.f32 1.0, %v4533
  %v4535 = vmul.f32 %v4532, %v4534
  %v4536 = vadd.f32 %v4532, %v4535
  %vm4537 = vweird.f32 %v3940
  %vm4538 = vweird.f32 %v4532
  %vm4539 = vmor %vm4537, %vm4538
  %v4540 = vsel %vm4539, %v4532, %v4536
  %v4541 = vand.u32 2147483647, %v3940
  %vm4542 = vcmp.eq.f32.partialorder %v4541, 8.507059e+37
  %v4543 = vand.u32 %v3940, 2147483648
  %v4544 = vor.u32 1.1754944e-38, %v4543
  %v4545 = vsel %vm4542, %v4544, %v4540
  %v4546 = vmul.f32 1.0, %v4545
  %v4547 = vrcp.pop %v3942
  %v4548 = vmul.f32 %v3942, %v4547
  %v4549 = vsub.f32 1.0, %v4548
  %v4550 = vmul.f32 %v4547, %v4549
  %v4551 = vadd.f32 %v4547, %v4550
  %vm4552 = vweird.f32 %v3942
  %vm4553 = vweird.f32 %v4547
  %vm4554 = vmor %vm4552, %vm4553
  %v4555 = vsel %vm4554, %v4547, %v4551
  %v4556 = vand.u32 2147483647, %v3942
  %vm4557 = vcmp.eq.f32.partialorder %v4556, 8.507059e+37
  %v4558 = vand.u32 %v3942, 2147483648
  %v4559 = vor.u32 1.1754944e-38, %v4558
  %v4560 = vsel %vm4557, %v4559, %v4555
  %v4561 = vmul.f32 1.0, %v4560
  %v4562 = vrcp.pop %v3944
  %v4563 = vmul.f32 %v3944, %v4562
  %v4564 = vsub.f32 1.0, %v4563
  %v4565 = vmul.f32 %v4562, %v4564
  %v4566 = vadd.f32 %v4562, %v4565
  %vm4567 = vweird.f32 %v3944
  %vm4568 = vweird.f32 %v4562
  %vm4569 = vmor %vm4567, %vm4568
  %v4570 = vsel %vm4569, %v4562, %v4566
  %v4571 = vand.u32 2147483647, %v3944
  %vm4572 = vcmp.eq.f32.partialorder %v4571, 8.507059e+37
  %v4573 = vand.u32 %v3944, 2147483648
  %v4574 = vor.u32 1.1754944e-38, %v4573
  %v4575 = vsel %vm4572, %v4574, %v4570
  %v4576 = vmul.f32 1.0, %v4575
  %v4577 = vrcp.pop %v3946
  %v4578 = vmul.f32 %v3946, %v4577
  %v4579 = vsub.f32 1.0, %v4578
  %v4580 = vmul.f32 %v4577, %v4579
  %v4581 = vadd.f32 %v4577, %v4580
  %vm4582 = vweird.f32 %v3946
  %vm4583 = vweird.f32 %v4577
  %vm4584 = vmor %vm4582, %vm4583
  %v4585 = vsel %vm4584, %v4577, %v4581
  %v4586 = vand.u32 2147483647, %v3946
  %vm4587 = vcmp.eq.f32.partialorder %v4586, 8.507059e+37
  %v4588 = vand.u32 %v3946, 2147483648
  %v4589 = vor.u32 1.1754944e-38, %v4588
  %v4590 = vsel %vm4587, %v4589, %v4585
  %v4591 = vmul.f32 1.0, %v4590
  %v4592 = vrcp.pop %v3948
  %v4593 = vmul.f32 %v3948, %v4592
  %v4594 = vsub.f32 1.0, %v4593
  %v4595 = vmul.f32 %v4592, %v4594
  %v4596 = vadd.f32 %v4592, %v4595
  %vm4597 = vweird.f32 %v3948
  %vm4598 = vweird.f32 %v4592
  %vm4599 = vmor %vm4597, %vm4598
  %v4600 = vsel %vm4599, %v4592, %v4596
  %v4601 = vand.u32 2147483647, %v3948
  %vm4602 = vcmp.eq.f32.partialorder %v4601, 8.507059e+37
  %v4603 = vand.u32 %v3948, 2147483648
  %v4604 = vor.u32 1.1754944e-38, %v4603
  %v4605 = vsel %vm4602, %v4604, %v4600
  %v4606 = vmul.f32 1.0, %v4605
  %v4607 = vrcp.pop %v3950
  %v4608 = vmul.f32 %v3950, %v4607
  %v4609 = vsub.f32 1.0, %v4608
  %v4610 = vmul.f32 %v4607, %v4609
  %v4611 = vadd.f32 %v4607, %v4610
  %vm4612 = vweird.f32 %v3950
  %vm4613 = vweird.f32 %v4607
  %vm4614 = vmor %vm4612, %vm4613
  %v4615 = vsel %vm4614, %v4607, %v4611
  %v4616 = vand.u32 2147483647, %v3950
  %vm4617 = vcmp.eq.f32.partialorder %v4616, 8.507059e+37
  %v4618 = vand.u32 %v3950, 2147483648
  %v4619 = vor.u32 1.1754944e-38, %v4618
  %v4620 = vsel %vm4617, %v4619, %v4615
  %v4621 = vmul.f32 1.0, %v4620
  %v4622 = vrcp.pop %v3952
  %v4623 = vmul.f32 %v3952, %v4622
  %v4624 = vsub.f32 1.0, %v4623
  %v4625 = vmul.f32 %v4622, %v4624
  %v4626 = vadd.f32 %v4622, %v4625
  %vm4627 = vweird.f32 %v3952
  %vm4628 = vweird.f32 %v4622
  %vm4629 = vmor %vm4627, %vm4628
  %v4630 = vsel %vm4629, %v4622, %v4626
  %v4631 = vand.u32 2147483647, %v3952
  %vm4632 = vcmp.eq.f32.partialorder %v4631, 8.507059e+37
  %v4633 = vand.u32 %v3952, 2147483648
  %v4634 = vor.u32 1.1754944e-38, %v4633
  %v4635 = vsel %vm4632, %v4634, %v4630
  %v4636 = vmul.f32 1.0, %v4635
  %v4637 = vrcp.pop %v3954
  %v4638 = vmul.f32 %v3954, %v4637
  %v4639 = vsub.f32 1.0, %v4638
  %v4640 = vmul.f32 %v4637, %v4639
  %v4641 = vadd.f32 %v4637, %v4640
  %vm4642 = vweird.f32 %v3954
  %vm4643 = vweird.f32 %v4637
  %vm4644 = vmor %vm4642, %vm4643
  %v4645 = vsel %vm4644, %v4637, %v4641
  %v4646 = vand.u32 2147483647, %v3954
  %vm4647 = vcmp.eq.f32.partialorder %v4646, 8.507059e+37
  %v4648 = vand.u32 %v3954, 2147483648
  %v4649 = vor.u32 1.1754944e-38, %v4648
  %v4650 = vsel %vm4647, %v4649, %v4645
  %v4651 = vmul.f32 1.0, %v4650
  %v4652 = vrcp.pop %v3956
  %v4653 = vmul.f32 %v3956, %v4652
  %v4654 = vsub.f32 1.0, %v4653
  %v4655 = vmul.f32 %v4652, %v4654
  %v4656 = vadd.f32 %v4652, %v4655
  %vm4657 = vweird.f32 %v3956
  %vm4658 = vweird.f32 %v4652
  %vm4659 = vmor %vm4657, %vm4658
  %v4660 = vsel %vm4659, %v4652, %v4656
  %v4661 = vand.u32 2147483647, %v3956
  %vm4662 = vcmp.eq.f32.partialorder %v4661, 8.507059e+37
  %v4663 = vand.u32 %v3956, 2147483648
  %v4664 = vor.u32 1.1754944e-38, %v4663
  %v4665 = vsel %vm4662, %v4664, %v4660
  %v4666 = vmul.f32 1.0, %v4665
  %v4667 = vrcp.pop %v3958
  %v4668 = vmul.f32 %v3958, %v4667
  %v4669 = vsub.f32 1.0, %v4668
  %v4670 = vmul.f32 %v4667, %v4669
  %v4671 = vadd.f32 %v4667, %v4670
  %vm4672 = vweird.f32 %v3958
  %vm4673 = vweird.f32 %v4667
  %vm4674 = vmor %vm4672, %vm4673
  %v4675 = vsel %vm4674, %v4667, %v4671
  %v4676 = vand.u32 2147483647, %v3958
  %vm4677 = vcmp.eq.f32.partialorder %v4676, 8.507059e+37
  %v4678 = vand.u32 %v3958, 2147483648
  %v4679 = vor.u32 1.1754944e-38, %v4678
  %v4680 = vsel %vm4677, %v4679, %v4675
  %v4681 = vmul.f32 1.0, %v4680
  %v4682 = vrcp.pop %v3960
  %v4683 = vmul.f32 %v3960, %v4682
  %v4684 = vsub.f32 1.0, %v4683
  %v4685 = vmul.f32 %v4682, %v4684
  %v4686 = vadd.f32 %v4682, %v4685
  %vm4687 = vweird.f32 %v3960
  %vm4688 = vweird.f32 %v4682
  %vm4689 = vmor %vm4687, %vm4688
  %v4690 = vsel %vm4689, %v4682, %v4686
  %v4691 = vand.u32 2147483647, %v3960
  %vm4692 = vcmp.eq.f32.partialorder %v4691, 8.507059e+37
  %v4693 = vand.u32 %v3960, 2147483648
  %v4694 = vor.u32 1.1754944e-38, %v4693
  %v4695 = vsel %vm4692, %v4694, %v4690
  %v4696 = vmul.f32 1.0, %v4695
  %v4697 = vrcp.pop %v3962
  %v4698 = vmul.f32 %v3962, %v4697
  %v4699 = vsub.f32 1.0, %v4698
  %v4700 = vmul.f32 %v4697, %v4699
  %v4701 = vadd.f32 %v4697, %v4700
  %vm4702 = vweird.f32 %v3962
  %vm4703 = vweird.f32 %v4697
  %vm4704 = vmor %vm4702, %vm4703
  %v4705 = vsel %vm4704, %v4697, %v4701
  %v4706 = vand.u32 2147483647, %v3962
  %vm4707 = vcmp.eq.f32.partialorder %v4706, 8.507059e+37
  %v4708 = vand.u32 %v3962, 2147483648
  %v4709 = vor.u32 1.1754944e-38, %v4708
  %v4710 = vsel %vm4707, %v4709, %v4705
  %v4711 = vmul.f32 1.0, %v4710
  %v4712 = vrcp.pop %v3964
  %v4713 = vmul.f32 %v3964, %v4712
  %v4714 = vsub.f32 1.0, %v4713
  %v4715 = vmul.f32 %v4712, %v4714
  %v4716 = vadd.f32 %v4712, %v4715
  %vm4717 = vweird.f32 %v3964
  %vm4718 = vweird.f32 %v4712
  %vm4719 = vmor %vm4717, %vm4718
  %v4720 = vsel %vm4719, %v4712, %v4716
  %v4721 = vand.u32 2147483647, %v3964
  %vm4722 = vcmp.eq.f32.partialorder %v4721, 8.507059e+37
  %v4723 = vand.u32 %v3964, 2147483648
  %v4724 = vor.u32 1.1754944e-38, %v4723
  %v4725 = vsel %vm4722, %v4724, %v4720
  %v4726 = vmul.f32 1.0, %v4725
  %v4727 = vrcp.pop %v3966
  %v4728 = vmul.f32 %v3966, %v4727
  %v4729 = vsub.f32 1.0, %v4728
  %v4730 = vmul.f32 %v4727, %v4729
  %v4731 = vadd.f32 %v4727, %v4730
  %vm4732 = vweird.f32 %v3966
  %vm4733 = vweird.f32 %v4727
  %vm4734 = vmor %vm4732, %vm4733
  %v4735 = vsel %vm4734, %v4727, %v4731
  %v4736 = vand.u32 2147483647, %v3966
  %vm4737 = vcmp.eq.f32.partialorder %v4736, 8.507059e+37
  %v4738 = vand.u32 %v3966, 2147483648
  %v4739 = vor.u32 1.1754944e-38, %v4738
  %v4740 = vsel %vm4737, %v4739, %v4735
  %v4741 = vmul.f32 1.0, %v4740
  %v4742 = vrcp.pop %v3968
  %v4743 = vmul.f32 %v3968, %v4742
  %v4744 = vsub.f32 1.0, %v4743
  %v4745 = vmul.f32 %v4742, %v4744
  %v4746 = vadd.f32 %v4742, %v4745
  %vm4747 = vweird.f32 %v3968
  %vm4748 = vweird.f32 %v4742
  %vm4749 = vmor %vm4747, %vm4748
  %v4750 = vsel %vm4749, %v4742, %v4746
  %v4751 = vand.u32 2147483647, %v3968
  %vm4752 = vcmp.eq.f32.partialorder %v4751, 8.507059e+37
  %v4753 = vand.u32 %v3968, 2147483648
  %v4754 = vor.u32 1.1754944e-38, %v4753
  %v4755 = vsel %vm4752, %v4754, %v4750
  %v4756 = vmul.f32 1.0, %v4755
  %v4757 = vrcp.pop %v3970
  %v4758 = vmul.f32 %v3970, %v4757
  %v4759 = vsub.f32 1.0, %v4758
  %v4760 = vmul.f32 %v4757, %v4759
  %v4761 = vadd.f32 %v4757, %v4760
  %vm4762 = vweird.f32 %v3970
  %vm4763 = vweird.f32 %v4757
  %vm4764 = vmor %vm4762, %vm4763
  %v4765 = vsel %vm4764, %v4757, %v4761
  %v4766 = vand.u32 2147483647, %v3970
  %vm4767 = vcmp.eq.f32.partialorder %v4766, 8.507059e+37
  %v4768 = vand.u32 %v3970, 2147483648
  %v4769 = vor.u32 1.1754944e-38, %v4768
  %v4770 = vsel %vm4767, %v4769, %v4765
  %v4771 = vmul.f32 1.0, %v4770
  %v4772 = vrcp.pop %v3972
  %v4773 = vmul.f32 %v3972, %v4772
  %v4774 = vsub.f32 1.0, %v4773
  %v4775 = vmul.f32 %v4772, %v4774
  %v4776 = vadd.f32 %v4772, %v4775
  %vm4777 = vweird.f32 %v3972
  %vm4778 = vweird.f32 %v4772
  %vm4779 = vmor %vm4777, %vm4778
  %v4780 = vsel %vm4779, %v4772, %v4776
  %v4781 = vand.u32 2147483647, %v3972
  %vm4782 = vcmp.eq.f32.partialorder %v4781, 8.507059e+37
  %v4783 = vand.u32 %v3972, 2147483648
  %v4784 = vor.u32 1.1754944e-38, %v4783
  %v4785 = vsel %vm4782, %v4784, %v4780
  %v4786 = vmul.f32 1.0, %v4785
  %v4787 = vrcp.pop %v3974
  %v4788 = vmul.f32 %v3974, %v4787
  %v4789 = vsub.f32 1.0, %v4788
  %v4790 = vmul.f32 %v4787, %v4789
  %v4791 = vadd.f32 %v4787, %v4790
  %vm4792 = vweird.f32 %v3974
  %vm4793 = vweird.f32 %v4787
  %vm4794 = vmor %vm4792, %vm4793
  %v4795 = vsel %vm4794, %v4787, %v4791
  %v4796 = vand.u32 2147483647, %v3974
  %vm4797 = vcmp.eq.f32.partialorder %v4796, 8.507059e+37
  %v4798 = vand.u32 %v3974, 2147483648
  %v4799 = vor.u32 1.1754944e-38, %v4798
  %v4800 = vsel %vm4797, %v4799, %v4795
  %v4801 = vmul.f32 1.0, %v4800
  %v4802 = vrcp.pop %v3976
  %v4803 = vmul.f32 %v3976, %v4802
  %v4804 = vsub.f32 1.0, %v4803
  %v4805 = vmul.f32 %v4802, %v4804
  %v4806 = vadd.f32 %v4802, %v4805
  %vm4807 = vweird.f32 %v3976
  %vm4808 = vweird.f32 %v4802
  %vm4809 = vmor %vm4807, %vm4808
  %v4810 = vsel %vm4809, %v4802, %v4806
  %v4811 = vand.u32 2147483647, %v3976
  %vm4812 = vcmp.eq.f32.partialorder %v4811, 8.507059e+37
  %v4813 = vand.u32 %v3976, 2147483648
  %v4814 = vor.u32 1.1754944e-38, %v4813
  %v4815 = vsel %vm4812, %v4814, %v4810
  %v4816 = vmul.f32 1.0, %v4815
  %v4817 = vrcp.pop %v3978
  %v4818 = vmul.f32 %v3978, %v4817
  %v4819 = vsub.f32 1.0, %v4818
  %v4820 = vmul.f32 %v4817, %v4819
  %v4821 = vadd.f32 %v4817, %v4820
  %vm4822 = vweird.f32 %v3978
  %vm4823 = vweird.f32 %v4817
  %vm4824 = vmor %vm4822, %vm4823
  %v4825 = vsel %vm4824, %v4817, %v4821
  %v4826 = vand.u32 2147483647, %v3978
  %vm4827 = vcmp.eq.f32.partialorder %v4826, 8.507059e+37
  %v4828 = vand.u32 %v3978, 2147483648
  %v4829 = vor.u32 1.1754944e-38, %v4828
  %v4830 = vsel %vm4827, %v4829, %v4825
  %v4831 = vmul.f32 1.0, %v4830
  %v4832 = vrcp.pop %v3980
  %v4833 = vmul.f32 %v3980, %v4832
  %v4834 = vsub.f32 1.0, %v4833
  %v4835 = vmul.f32 %v4832, %v4834
  %v4836 = vadd.f32 %v4832, %v4835
  %vm4837 = vweird.f32 %v3980
  %vm4838 = vweird.f32 %v4832
  %vm4839 = vmor %vm4837, %vm4838
  %v4840 = vsel %vm4839, %v4832, %v4836
  %v4841 = vand.u32 2147483647, %v3980
  %vm4842 = vcmp.eq.f32.partialorder %v4841, 8.507059e+37
  %v4843 = vand.u32 %v3980, 2147483648
  %v4844 = vor.u32 1.1754944e-38, %v4843
  %v4845 = vsel %vm4842, %v4844, %v4840
  %v4846 = vmul.f32 1.0, %v4845
  %v4847 = vrcp.pop %v3982
  %v4848 = vmul.f32 %v3982, %v4847
  %v4849 = vsub.f32 1.0, %v4848
  %v4850 = vmul.f32 %v4847, %v4849
  %v4851 = vadd.f32 %v4847, %v4850
  %vm4852 = vweird.f32 %v3982
  %vm4853 = vweird.f32 %v4847
  %vm4854 = vmor %vm4852, %vm4853
  %v4855 = vsel %vm4854, %v4847, %v4851
  %v4856 = vand.u32 2147483647, %v3982
  %vm4857 = vcmp.eq.f32.partialorder %v4856, 8.507059e+37
  %v4858 = vand.u32 %v3982, 2147483648
  %v4859 = vor.u32 1.1754944e-38, %v4858
  %v4860 = vsel %vm4857, %v4859, %v4855
  %v4861 = vmul.f32 1.0, %v4860
  %v4862 = vrcp.pop %v3984
  %v4863 = vmul.f32 %v3984, %v4862
  %v4864 = vsub.f32 1.0, %v4863
  %v4865 = vmul.f32 %v4862, %v4864
  %v4866 = vadd.f32 %v4862, %v4865
  %vm4867 = vweird.f32 %v3984
  %vm4868 = vweird.f32 %v4862
  %vm4869 = vmor %vm4867, %vm4868
  %v4870 = vsel %vm4869, %v4862, %v4866
  %v4871 = vand.u32 2147483647, %v3984
  %vm4872 = vcmp.eq.f32.partialorder %v4871, 8.507059e+37
  %v4873 = vand.u32 %v3984, 2147483648
  %v4874 = vor.u32 1.1754944e-38, %v4873
  %v4875 = vsel %vm4872, %v4874, %v4870
  %v4876 = vmul.f32 1.0, %v4875
  %v4877 = vrcp.pop %v3986
  %v4878 = vmul.f32 %v3986, %v4877
  %v4879 = vsub.f32 1.0, %v4878
  %v4880 = vmul.f32 %v4877, %v4879
  %v4881 = vadd.f32 %v4877, %v4880
  %vm4882 = vweird.f32 %v3986
  %vm4883 = vweird.f32 %v4877
  %vm4884 = vmor %vm4882, %vm4883
  %v4885 = vsel %vm4884, %v4877, %v4881
  %v4886 = vand.u32 2147483647, %v3986
  %vm4887 = vcmp.eq.f32.partialorder %v4886, 8.507059e+37
  %v4888 = vand.u32 %v3986, 2147483648
  %v4889 = vor.u32 1.1754944e-38, %v4888
  %v4890 = vsel %vm4887, %v4889, %v4885
  %v4891 = vmul.f32 1.0, %v4890
  %v4892 = vrcp.pop %v3988
  %v4893 = vmul.f32 %v3988, %v4892
  %v4894 = vsub.f32 1.0, %v4893
  %v4895 = vmul.f32 %v4892, %v4894
  %v4896 = vadd.f32 %v4892, %v4895
  %vm4897 = vweird.f32 %v3988
  %vm4898 = vweird.f32 %v4892
  %vm4899 = vmor %vm4897, %vm4898
  %v4900 = vsel %vm4899, %v4892, %v4896
  %v4901 = vand.u32 2147483647, %v3988
  %vm4902 = vcmp.eq.f32.partialorder %v4901, 8.507059e+37
  %v4903 = vand.u32 %v3988, 2147483648
  %v4904 = vor.u32 1.1754944e-38, %v4903
  %v4905 = vsel %vm4902, %v4904, %v4900
  %v4906 = vmul.f32 1.0, %v4905
  %v4907 = vrcp.pop %v3990
  %v4908 = vmul.f32 %v3990, %v4907
  %v4909 = vsub.f32 1.0, %v4908
  %v4910 = vmul.f32 %v4907, %v4909
  %v4911 = vadd.f32 %v4907, %v4910
  %vm4912 = vweird.f32 %v3990
  %vm4913 = vweird.f32 %v4907
  %vm4914 = vmor %vm4912, %vm4913
  %v4915 = vsel %vm4914, %v4907, %v4911
  %v4916 = vand.u32 2147483647, %v3990
  %vm4917 = vcmp.eq.f32.partialorder %v4916, 8.507059e+37
  %v4918 = vand.u32 %v3990, 2147483648
  %v4919 = vor.u32 1.1754944e-38, %v4918
  %v4920 = vsel %vm4917, %v4919, %v4915
  %v4921 = vmul.f32 1.0, %v4920
  %v4922 = vrcp.pop %v3992
  %v4923 = vmul.f32 %v3992, %v4922
  %v4924 = vsub.f32 1.0, %v4923
  %v4925 = vmul.f32 %v4922, %v4924
  %v4926 = vadd.f32 %v4922, %v4925
  %vm4927 = vweird.f32 %v3992
  %vm4928 = vweird.f32 %v4922
  %vm4929 = vmor %vm4927, %vm4928
  %v4930 = vsel %vm4929, %v4922, %v4926
  %v4931 = vand.u32 2147483647, %v3992
  %vm4932 = vcmp.eq.f32.partialorder %v4931, 8.507059e+37
  %v4933 = vand.u32 %v3992, 2147483648
  %v4934 = vor.u32 1.1754944e-38, %v4933
  %v4935 = vsel %vm4932, %v4934, %v4930
  %v4936 = vmul.f32 1.0, %v4935
  %v4937 = vrcp.pop %v3994
  %v4938 = vmul.f32 %v3994, %v4937
  %v4939 = vsub.f32 1.0, %v4938
  %v4940 = vmul.f32 %v4937, %v4939
  %v4941 = vadd.f32 %v4937, %v4940
  %vm4942 = vweird.f32 %v3994
  %vm4943 = vweird.f32 %v4937
  %vm4944 = vmor %vm4942, %vm4943
  %v4945 = vsel %vm4944, %v4937, %v4941
  %v4946 = vand.u32 2147483647, %v3994
  %vm4947 = vcmp.eq.f32.partialorder %v4946, 8.507059e+37
  %v4948 = vand.u32 %v3994, 2147483648
  %v4949 = vor.u32 1.1754944e-38, %v4948
  %v4950 = vsel %vm4947, %v4949, %v4945
  %v4951 = vmul.f32 1.0, %v4950
  %v4952 = vrcp.pop %v3996
  %v4953 = vmul.f32 %v3996, %v4952
  %v4954 = vsub.f32 1.0, %v4953
  %v4955 = vmul.f32 %v4952, %v4954
  %v4956 = vadd.f32 %v4952, %v4955
  %vm4957 = vweird.f32 %v3996
  %vm4958 = vweird.f32 %v4952
  %vm4959 = vmor %vm4957, %vm4958
  %v4960 = vsel %vm4959, %v4952, %v4956
  %v4961 = vand.u32 2147483647, %v3996
  %vm4962 = vcmp.eq.f32.partialorder %v4961, 8.507059e+37
  %v4963 = vand.u32 %v3996, 2147483648
  %v4964 = vor.u32 1.1754944e-38, %v4963
  %v4965 = vsel %vm4962, %v4964, %v4960
  %v4966 = vmul.f32 1.0, %v4965
  %v4967 = vrcp.pop %v3998
  %v4968 = vmul.f32 %v3998, %v4967
  %v4969 = vsub.f32 1.0, %v4968
  %v4970 = vmul.f32 %v4967, %v4969
  %v4971 = vadd.f32 %v4967, %v4970
  %vm4972 = vweird.f32 %v3998
  %vm4973 = vweird.f32 %v4967
  %vm4974 = vmor %vm4972, %vm4973
  %v4975 = vsel %vm4974, %v4967, %v4971
  %v4976 = vand.u32 2147483647, %v3998
  %vm4977 = vcmp.eq.f32.partialorder %v4976, 8.507059e+37
  %v4978 = vand.u32 %v3998, 2147483648
  %v4979 = vor.u32 1.1754944e-38, %v4978
  %v4980 = vsel %vm4977, %v4979, %v4975
  %v4981 = vmul.f32 1.0, %v4980
  %v4982 = vrcp.pop %v4000
  %v4983 = vmul.f32 %v4000, %v4982
  %v4984 = vsub.f32 1.0, %v4983
  %v4985 = vmul.f32 %v4982, %v4984
  %v4986 = vadd.f32 %v4982, %v4985
  %vm4987 = vweird.f32 %v4000
  %vm4988 = vweird.f32 %v4982
  %vm4989 = vmor %vm4987, %vm4988
  %v4990 = vsel %vm4989, %v4982, %v4986
  %v4991 = vand.u32 2147483647, %v4000
  %vm4992 = vcmp.eq.f32.partialorder %v4991, 8.507059e+37
  %v4993 = vand.u32 %v4000, 2147483648
  %v4994 = vor.u32 1.1754944e-38, %v4993
  %v4995 = vsel %vm4992, %v4994, %v4990
  %v4996 = vmul.f32 1.0, %v4995
  %v4997 = vrcp.pop %v4002
  %v4998 = vmul.f32 %v4002, %v4997
  %v4999 = vsub.f32 1.0, %v4998
  %v5000 = vmul.f32 %v4997, %v4999
  %v5001 = vadd.f32 %v4997, %v5000
  %vm5002 = vweird.f32 %v4002
  %vm5003 = vweird.f32 %v4997
  %vm5004 = vmor %vm5002, %vm5003
  %v5005 = vsel %vm5004, %v4997, %v5001
  %v5006 = vand.u32 2147483647, %v4002
  %vm5007 = vcmp.eq.f32.partialorder %v5006, 8.507059e+37
  %v5008 = vand.u32 %v4002, 2147483648
  %v5009 = vor.u32 1.1754944e-38, %v5008
  %v5010 = vsel %vm5007, %v5009, %v5005
  %v5011 = vmul.f32 1.0, %v5010
  %v5012 = vrcp.pop %v4004
  %v5013 = vmul.f32 %v4004, %v5012
  %v5014 = vsub.f32 1.0, %v5013
  %v5015 = vmul.f32 %v5012, %v5014
  %v5016 = vadd.f32 %v5012, %v5015
  %vm5017 = vweird.f32 %v4004
  %vm5018 = vweird.f32 %v5012
  %vm5019 = vmor %vm5017, %vm5018
  %v5020 = vsel %vm5019, %v5012, %v5016
  %v5021 = vand.u32 2147483647, %v4004
  %vm5022 = vcmp.eq.f32.partialorder %v5021, 8.507059e+37
  %v5023 = vand.u32 %v4004, 2147483648
  %v5024 = vor.u32 1.1754944e-38, %v5023
  %v5025 = vsel %vm5022, %v5024, %v5020
  %v5026 = vmul.f32 1.0, %v5025
  %v5027 = vrcp.pop %v4006
  %v5028 = vmul.f32 %v4006, %v5027
  %v5029 = vsub.f32 1.0, %v5028
  %v5030 = vmul.f32 %v5027, %v5029
  %v5031 = vadd.f32 %v5027, %v5030
  %vm5032 = vweird.f32 %v4006
  %vm5033 = vweird.f32 %v5027
  %vm5034 = vmor %vm5032, %vm5033
  %v5035 = vsel %vm5034, %v5027, %v5031
  %v5036 = vand.u32 2147483647, %v4006
  %vm5037 = vcmp.eq.f32.partialorder %v5036, 8.507059e+37
  %v5038 = vand.u32 %v4006, 2147483648
  %v5039 = vor.u32 1.1754944e-38, %v5038
  %v5040 = vsel %vm5037, %v5039, %v5035
  %v5041 = vmul.f32 1.0, %v5040
  %v5042 = vrcp.pop %v4008
  %v5043 = vmul.f32 %v4008, %v5042
  %v5044 = vsub.f32 1.0, %v5043
  %v5045 = vmul.f32 %v5042, %v5044
  %v5046 = vadd.f32 %v5042, %v5045
  %vm5047 = vweird.f32 %v4008
  %vm5048 = vweird.f32 %v5042
  %vm5049 = vmor %vm5047, %vm5048
  %v5050 = vsel %vm5049, %v5042, %v5046
  %v5051 = vand.u32 2147483647, %v4008
  %vm5052 = vcmp.eq.f32.partialorder %v5051, 8.507059e+37
  %v5053 = vand.u32 %v4008, 2147483648
  %v5054 = vor.u32 1.1754944e-38, %v5053
  %v5055 = vsel %vm5052, %v5054, %v5050
  %v5056 = vmul.f32 1.0, %v5055
  %v5057 = vrcp.pop %v4010
  %v5058 = vmul.f32 %v4010, %v5057
  %v5059 = vsub.f32 1.0, %v5058
  %v5060 = vmul.f32 %v5057, %v5059
  %v5061 = vadd.f32 %v5057, %v5060
  %vm5062 = vweird.f32 %v4010
  %vm5063 = vweird.f32 %v5057
  %vm5064 = vmor %vm5062, %vm5063
  %v5065 = vsel %vm5064, %v5057, %v5061
  %v5066 = vand.u32 2147483647, %v4010
  %vm5067 = vcmp.eq.f32.partialorder %v5066, 8.507059e+37
  %v5068 = vand.u32 %v4010, 2147483648
  %v5069 = vor.u32 1.1754944e-38, %v5068
  %v5070 = vsel %vm5067, %v5069, %v5065
  %v5071 = vmul.f32 1.0, %v5070
  %v5072 = vrcp.pop %v4012
  %v5073 = vmul.f32 %v4012, %v5072
  %v5074 = vsub.f32 1.0, %v5073
  %v5075 = vmul.f32 %v5072, %v5074
  %v5076 = vadd.f32 %v5072, %v5075
  %vm5077 = vweird.f32 %v4012
  %vm5078 = vweird.f32 %v5072
  %vm5079 = vmor %vm5077, %vm5078
  %v5080 = vsel %vm5079, %v5072, %v5076
  %v5081 = vand.u32 2147483647, %v4012
  %vm5082 = vcmp.eq.f32.partialorder %v5081, 8.507059e+37
  %v5083 = vand.u32 %v4012, 2147483648
  %v5084 = vor.u32 1.1754944e-38, %v5083
  %v5085 = vsel %vm5082, %v5084, %v5080
  %v5086 = vmul.f32 1.0, %v5085
  %v5087 = vrcp.pop %v4014
  %v5088 = vmul.f32 %v4014, %v5087
  %v5089 = vsub.f32 1.0, %v5088
  %v5090 = vmul.f32 %v5087, %v5089
  %v5091 = vadd.f32 %v5087, %v5090
  %vm5092 = vweird.f32 %v4014
  %vm5093 = vweird.f32 %v5087
  %vm5094 = vmor %vm5092, %vm5093
  %v5095 = vsel %vm5094, %v5087, %v5091
  %v5096 = vand.u32 2147483647, %v4014
  %vm5097 = vcmp.eq.f32.partialorder %v5096, 8.507059e+37
  %v5098 = vand.u32 %v4014, 2147483648
  %v5099 = vor.u32 1.1754944e-38, %v5098
  %v5100 = vsel %vm5097, %v5099, %v5095
  %v5101 = vmul.f32 1.0, %v5100
  %v5102 = vrcp.pop %v4016
  %v5103 = vmul.f32 %v4016, %v5102
  %v5104 = vsub.f32 1.0, %v5103
  %v5105 = vmul.f32 %v5102, %v5104
  %v5106 = vadd.f32 %v5102, %v5105
  %vm5107 = vweird.f32 %v4016
  %vm5108 = vweird.f32 %v5102
  %vm5109 = vmor %vm5107, %vm5108
  %v5110 = vsel %vm5109, %v5102, %v5106
  %v5111 = vand.u32 2147483647, %v4016
  %vm5112 = vcmp.eq.f32.partialorder %v5111, 8.507059e+37
  %v5113 = vand.u32 %v4016, 2147483648
  %v5114 = vor.u32 1.1754944e-38, %v5113
  %v5115 = vsel %vm5112, %v5114, %v5110
  %v5116 = vmul.f32 1.0, %v5115
  %v5117 = vrcp.pop %v4018
  %v5118 = vmul.f32 %v4018, %v5117
  %v5119 = vsub.f32 1.0, %v5118
  %v5120 = vmul.f32 %v5117, %v5119
  %v5121 = vadd.f32 %v5117, %v5120
  %vm5122 = vweird.f32 %v4018
  %vm5123 = vweird.f32 %v5117
  %vm5124 = vmor %vm5122, %vm5123
  %v5125 = vsel %vm5124, %v5117, %v5121
  %v5126 = vand.u32 2147483647, %v4018
  %vm5127 = vcmp.eq.f32.partialorder %v5126, 8.507059e+37
  %v5128 = vand.u32 %v4018, 2147483648
  %v5129 = vor.u32 1.1754944e-38, %v5128
  %v5130 = vsel %vm5127, %v5129, %v5125
  %v5131 = vmul.f32 1.0, %v5130
  %v5132 = vrcp.pop %v4020
  %v5133 = vmul.f32 %v4020, %v5132
  %v5134 = vsub.f32 1.0, %v5133
  %v5135 = vmul.f32 %v5132, %v5134
  %v5136 = vadd.f32 %v5132, %v5135
  %vm5137 = vweird.f32 %v4020
  %vm5138 = vweird.f32 %v5132
  %vm5139 = vmor %vm5137, %vm5138
  %v5140 = vsel %vm5139, %v5132, %v5136
  %v5141 = vand.u32 2147483647, %v4020
  %vm5142 = vcmp.eq.f32.partialorder %v5141, 8.507059e+37
  %v5143 = vand.u32 %v4020, 2147483648
  %v5144 = vor.u32 1.1754944e-38, %v5143
  %v5145 = vsel %vm5142, %v5144, %v5140
  %v5146 = vmul.f32 1.0, %v5145
  %v5147 = vrcp.pop %v4022
  %v5148 = vmul.f32 %v4022, %v5147
  %v5149 = vsub.f32 1.0, %v5148
  %v5150 = vmul.f32 %v5147, %v5149
  %v5151 = vadd.f32 %v5147, %v5150
  %vm5152 = vweird.f32 %v4022
  %vm5153 = vweird.f32 %v5147
  %vm5154 = vmor %vm5152, %vm5153
  %v5155 = vsel %vm5154, %v5147, %v5151
  %v5156 = vand.u32 2147483647, %v4022
  %vm5157 = vcmp.eq.f32.partialorder %v5156, 8.507059e+37
  %v5158 = vand.u32 %v4022, 2147483648
  %v5159 = vor.u32 1.1754944e-38, %v5158
  %v5160 = vsel %vm5157, %v5159, %v5155
  %v5161 = vmul.f32 1.0, %v5160
  %v5162 = vrcp.pop %v4024
  %v5163 = vmul.f32 %v4024, %v5162
  %v5164 = vsub.f32 1.0, %v5163
  %v5165 = vmul.f32 %v5162, %v5164
  %v5166 = vadd.f32 %v5162, %v5165
  %vm5167 = vweird.f32 %v4024
  %vm5168 = vweird.f32 %v5162
  %vm5169 = vmor %vm5167, %vm5168
  %v5170 = vsel %vm5169, %v5162, %v5166
  %v5171 = vand.u32 2147483647, %v4024
  %vm5172 = vcmp.eq.f32.partialorder %v5171, 8.507059e+37
  %v5173 = vand.u32 %v4024, 2147483648
  %v5174 = vor.u32 1.1754944e-38, %v5173
  %v5175 = vsel %vm5172, %v5174, %v5170
  %v5176 = vmul.f32 1.0, %v5175
  %v5177 = vrcp.pop %v4026
  %v5178 = vmul.f32 %v4026, %v5177
  %v5179 = vsub.f32 1.0, %v5178
  %v5180 = vmul.f32 %v5177, %v5179
  %v5181 = vadd.f32 %v5177, %v5180
  %vm5182 = vweird.f32 %v4026
  %vm5183 = vweird.f32 %v5177
  %vm5184 = vmor %vm5182, %vm5183
  %v5185 = vsel %vm5184, %v5177, %v5181
  %v5186 = vand.u32 2147483647, %v4026
  %vm5187 = vcmp.eq.f32.partialorder %v5186, 8.507059e+37
  %v5188 = vand.u32 %v4026, 2147483648
  %v5189 = vor.u32 1.1754944e-38, %v5188
  %v5190 = vsel %vm5187, %v5189, %v5185
  %v5191 = vmul.f32 1.0, %v5190
  %v5192 = vrcp.pop %v4028
  %v5193 = vmul.f32 %v4028, %v5192
  %v5194 = vsub.f32 1.0, %v5193
  %v5195 = vmul.f32 %v5192, %v5194
  %v5196 = vadd.f32 %v5192, %v5195
  %vm5197 = vweird.f32 %v4028
  %vm5198 = vweird.f32 %v5192
  %vm5199 = vmor %vm5197, %vm5198
  %v5200 = vsel %vm5199, %v5192, %v5196
  %v5201 = vand.u32 2147483647, %v4028
  %vm5202 = vcmp.eq.f32.partialorder %v5201, 8.507059e+37
  %v5203 = vand.u32 %v4028, 2147483648
  %v5204 = vor.u32 1.1754944e-38, %v5203
  %v5205 = vsel %vm5202, %v5204, %v5200
  %v5206 = vmul.f32 1.0, %v5205
  %v5207 = vrcp.pop %v4030
  %v5208 = vmul.f32 %v4030, %v5207
  %v5209 = vsub.f32 1.0, %v5208
  %v5210 = vmul.f32 %v5207, %v5209
  %v5211 = vadd.f32 %v5207, %v5210
  %vm5212 = vweird.f32 %v4030
  %vm5213 = vweird.f32 %v5207
  %vm5214 = vmor %vm5212, %vm5213
  %v5215 = vsel %vm5214, %v5207, %v5211
  %v5216 = vand.u32 2147483647, %v4030
  %vm5217 = vcmp.eq.f32.partialorder %v5216, 8.507059e+37
  %v5218 = vand.u32 %v4030, 2147483648
  %v5219 = vor.u32 1.1754944e-38, %v5218
  %v5220 = vsel %vm5217, %v5219, %v5215
  %v5221 = vmul.f32 1.0, %v5220
  %v5222 = vrcp.pop %v4032
  %v5223 = vmul.f32 %v4032, %v5222
  %v5224 = vsub.f32 1.0, %v5223
  %v5225 = vmul.f32 %v5222, %v5224
  %v5226 = vadd.f32 %v5222, %v5225
  %vm5227 = vweird.f32 %v4032
  %vm5228 = vweird.f32 %v5222
  %vm5229 = vmor %vm5227, %vm5228
  %v5230 = vsel %vm5229, %v5222, %v5226
  %v5231 = vand.u32 2147483647, %v4032
  %vm5232 = vcmp.eq.f32.partialorder %v5231, 8.507059e+37
  %v5233 = vand.u32 %v4032, 2147483648
  %v5234 = vor.u32 1.1754944e-38, %v5233
  %v5235 = vsel %vm5232, %v5234, %v5230
  %v5236 = vmul.f32 1.0, %v5235
  %v5237 = vrcp.pop %v4034
  %v5238 = vmul.f32 %v4034, %v5237
  %v5239 = vsub.f32 1.0, %v5238
  %v5240 = vmul.f32 %v5237, %v5239
  %v5241 = vadd.f32 %v5237, %v5240
  %vm5242 = vweird.f32 %v4034
  %vm5243 = vweird.f32 %v5237
  %vm5244 = vmor %vm5242, %vm5243
  %v5245 = vsel %vm5244, %v5237, %v5241
  %v5246 = vand.u32 2147483647, %v4034
  %vm5247 = vcmp.eq.f32.partialorder %v5246, 8.507059e+37
  %v5248 = vand.u32 %v4034, 2147483648
  %v5249 = vor.u32 1.1754944e-38, %v5248
  %v5250 = vsel %vm5247, %v5249, %v5245
  %v5251 = vmul.f32 1.0, %v5250
  %v5252 = vrcp.pop %v4036
  %v5253 = vmul.f32 %v4036, %v5252
  %v5254 = vsub.f32 1.0, %v5253
  %v5255 = vmul.f32 %v5252, %v5254
  %v5256 = vadd.f32 %v5252, %v5255
  %vm5257 = vweird.f32 %v4036
  %vm5258 = vweird.f32 %v5252
  %vm5259 = vmor %vm5257, %vm5258
  %v5260 = vsel %vm5259, %v5252, %v5256
  %v5261 = vand.u32 2147483647, %v4036
  %vm5262 = vcmp.eq.f32.partialorder %v5261, 8.507059e+37
  %v5263 = vand.u32 %v4036, 2147483648
  %v5264 = vor.u32 1.1754944e-38, %v5263
  %v5265 = vsel %vm5262, %v5264, %v5260
  %v5266 = vmul.f32 1.0, %v5265
  %v5267 = vrcp.pop %v4038
  %v5268 = vmul.f32 %v4038, %v5267
  %v5269 = vsub.f32 1.0, %v5268
  %v5270 = vmul.f32 %v5267, %v5269
  %v5271 = vadd.f32 %v5267, %v5270
  %vm5272 = vweird.f32 %v4038
  %vm5273 = vweird.f32 %v5267
  %vm5274 = vmor %vm5272, %vm5273
  %v5275 = vsel %vm5274, %v5267, %v5271
  %v5276 = vand.u32 2147483647, %v4038
  %vm5277 = vcmp.eq.f32.partialorder %v5276, 8.507059e+37
  %v5278 = vand.u32 %v4038, 2147483648
  %v5279 = vor.u32 1.1754944e-38, %v5278
  %v5280 = vsel %vm5277, %v5279, %v5275
  %v5281 = vmul.f32 1.0, %v5280
  %v5282 = vrcp.pop %v4040
  %v5283 = vmul.f32 %v4040, %v5282
  %v5284 = vsub.f32 1.0, %v5283
  %v5285 = vmul.f32 %v5282, %v5284
  %v5286 = vadd.f32 %v5282, %v5285
  %vm5287 = vweird.f32 %v4040
  %vm5288 = vweird.f32 %v5282
  %vm5289 = vmor %vm5287, %vm5288
  %v5290 = vsel %vm5289, %v5282, %v5286
  %v5291 = vand.u32 2147483647, %v4040
  %vm5292 = vcmp.eq.f32.partialorder %v5291, 8.507059e+37
  %v5293 = vand.u32 %v4040, 2147483648
  %v5294 = vor.u32 1.1754944e-38, %v5293
  %v5295 = vsel %vm5292, %v5294, %v5290
  %v5296 = vmul.f32 1.0, %v5295
  %v5297 = vrcp.pop %v4042
  %v5298 = vmul.f32 %v4042, %v5297
  %v5299 = vsub.f32 1.0, %v5298
  %v5300 = vmul.f32 %v5297, %v5299
  %v5301 = vadd.f32 %v5297, %v5300
  %vm5302 = vweird.f32 %v4042
  %vm5303 = vweird.f32 %v5297
  %vm5304 = vmor %vm5302, %vm5303
  %v5305 = vsel %vm5304, %v5297, %v5301
  %v5306 = vand.u32 2147483647, %v4042
  %vm5307 = vcmp.eq.f32.partialorder %v5306, 8.507059e+37
  %v5308 = vand.u32 %v4042, 2147483648
  %v5309 = vor.u32 1.1754944e-38, %v5308
  %v5310 = vsel %vm5307, %v5309, %v5305
  %v5311 = vmul.f32 1.0, %v5310
  %v5312 = vrcp.pop %v4044
  %v5313 = vmul.f32 %v4044, %v5312
  %v5314 = vsub.f32 1.0, %v5313
  %v5315 = vmul.f32 %v5312, %v5314
  %v5316 = vadd.f32 %v5312, %v5315
  %vm5317 = vweird.f32 %v4044
  %vm5318 = vweird.f32 %v5312
  %vm5319 = vmor %vm5317, %vm5318
  %v5320 = vsel %vm5319, %v5312, %v5316
  %v5321 = vand.u32 2147483647, %v4044
  %vm5322 = vcmp.eq.f32.partialorder %v5321, 8.507059e+37
  %v5323 = vand.u32 %v4044, 2147483648
  %v5324 = vor.u32 1.1754944e-38, %v5323
  %v5325 = vsel %vm5322, %v5324, %v5320
  %v5326 = vmul.f32 1.0, %v5325
  %v5327 = vrcp.pop %v4046
  %v5328 = vmul.f32 %v4046, %v5327
  %v5329 = vsub.f32 1.0, %v5328
  %v5330 = vmul.f32 %v5327, %v5329
  %v5331 = vadd.f32 %v5327, %v5330
  %vm5332 = vweird.f32 %v4046
  %vm5333 = vweird.f32 %v5327
  %vm5334 = vmor %vm5332, %vm5333
  %v5335 = vsel %vm5334, %v5327, %v5331
  %v5336 = vand.u32 2147483647, %v4046
  %vm5337 = vcmp.eq.f32.partialorder %v5336, 8.507059e+37
  %v5338 = vand.u32 %v4046, 2147483648
  %v5339 = vor.u32 1.1754944e-38, %v5338
  %v5340 = vsel %vm5337, %v5339, %v5335
  %v5341 = vmul.f32 1.0, %v5340
  %v5342 = vrcp.pop %v4048
  %v5343 = vmul.f32 %v4048, %v5342
  %v5344 = vsub.f32 1.0, %v5343
  %v5345 = vmul.f32 %v5342, %v5344
  %v5346 = vadd.f32 %v5342, %v5345
  %vm5347 = vweird.f32 %v4048
  %vm5348 = vweird.f32 %v5342
  %vm5349 = vmor %vm5347, %vm5348
  %v5350 = vsel %vm5349, %v5342, %v5346
  %v5351 = vand.u32 2147483647, %v4048
  %vm5352 = vcmp.eq.f32.partialorder %v5351, 8.507059e+37
  %v5353 = vand.u32 %v4048, 2147483648
  %v5354 = vor.u32 1.1754944e-38, %v5353
  %v5355 = vsel %vm5352, %v5354, %v5350
  %v5356 = vmul.f32 1.0, %v5355
  %v5357 = vrcp.pop %v4050
  %v5358 = vmul.f32 %v4050, %v5357
  %v5359 = vsub.f32 1.0, %v5358
  %v5360 = vmul.f32 %v5357, %v5359
  %v5361 = vadd.f32 %v5357, %v5360
  %vm5362 = vweird.f32 %v4050
  %vm5363 = vweird.f32 %v5357
  %vm5364 = vmor %vm5362, %vm5363
  %v5365 = vsel %vm5364, %v5357, %v5361
  %v5366 = vand.u32 2147483647, %v4050
  %vm5367 = vcmp.eq.f32.partialorder %v5366, 8.507059e+37
  %v5368 = vand.u32 %v4050, 2147483648
  %v5369 = vor.u32 1.1754944e-38, %v5368
  %v5370 = vsel %vm5367, %v5369, %v5365
  %v5371 = vmul.f32 1.0, %v5370
  %v5372 = vrcp.pop %v4052
  %v5373 = vmul.f32 %v4052, %v5372
  %v5374 = vsub.f32 1.0, %v5373
  %v5375 = vmul.f32 %v5372, %v5374
  %v5376 = vadd.f32 %v5372, %v5375
  %vm5377 = vweird.f32 %v4052
  %vm5378 = vweird.f32 %v5372
  %vm5379 = vmor %vm5377, %vm5378
  %v5380 = vsel %vm5379, %v5372, %v5376
  %v5381 = vand.u32 2147483647, %v4052
  %vm5382 = vcmp.eq.f32.partialorder %v5381, 8.507059e+37
  %v5383 = vand.u32 %v4052, 2147483648
  %v5384 = vor.u32 1.1754944e-38, %v5383
  %v5385 = vsel %vm5382, %v5384, %v5380
  %v5386 = vmul.f32 1.0, %v5385
  %v5387 = vrcp.pop %v4054
  %v5388 = vmul.f32 %v4054, %v5387
  %v5389 = vsub.f32 1.0, %v5388
  %v5390 = vmul.f32 %v5387, %v5389
  %v5391 = vadd.f32 %v5387, %v5390
  %vm5392 = vweird.f32 %v4054
  %vm5393 = vweird.f32 %v5387
  %vm5394 = vmor %vm5392, %vm5393
  %v5395 = vsel %vm5394, %v5387, %v5391
  %v5396 = vand.u32 2147483647, %v4054
  %vm5397 = vcmp.eq.f32.partialorder %v5396, 8.507059e+37
  %v5398 = vand.u32 %v4054, 2147483648
  %v5399 = vor.u32 1.1754944e-38, %v5398
  %v5400 = vsel %vm5397, %v5399, %v5395
  %v5401 = vmul.f32 1.0, %v5400
  %v5402 = vrcp.pop %v4056
  %v5403 = vmul.f32 %v4056, %v5402
  %v5404 = vsub.f32 1.0, %v5403
  %v5405 = vmul.f32 %v5402, %v5404
  %v5406 = vadd.f32 %v5402, %v5405
  %vm5407 = vweird.f32 %v4056
  %vm5408 = vweird.f32 %v5402
  %vm5409 = vmor %vm5407, %vm5408
  %v5410 = vsel %vm5409, %v5402, %v5406
  %v5411 = vand.u32 2147483647, %v4056
  %vm5412 = vcmp.eq.f32.partialorder %v5411, 8.507059e+37
  %v5413 = vand.u32 %v4056, 2147483648
  %v5414 = vor.u32 1.1754944e-38, %v5413
  %v5415 = vsel %vm5412, %v5414, %v5410
  %v5416 = vmul.f32 1.0, %v5415
  %v5417 = vrcp.pop %v4058
  %v5418 = vmul.f32 %v4058, %v5417
  %v5419 = vsub.f32 1.0, %v5418
  %v5420 = vmul.f32 %v5417, %v5419
  %v5421 = vadd.f32 %v5417, %v5420
  %vm5422 = vweird.f32 %v4058
  %vm5423 = vweird.f32 %v5417
  %vm5424 = vmor %vm5422, %vm5423
  %v5425 = vsel %vm5424, %v5417, %v5421
  %v5426 = vand.u32 2147483647, %v4058
  %vm5427 = vcmp.eq.f32.partialorder %v5426, 8.507059e+37
  %v5428 = vand.u32 %v4058, 2147483648
  %v5429 = vor.u32 1.1754944e-38, %v5428
  %v5430 = vsel %vm5427, %v5429, %v5425
  %v5431 = vmul.f32 1.0, %v5430
  %v5432 = vrcp.pop %v4060
  %v5433 = vmul.f32 %v4060, %v5432
  %v5434 = vsub.f32 1.0, %v5433
  %v5435 = vmul.f32 %v5432, %v5434
  %v5436 = vadd.f32 %v5432, %v5435
  %vm5437 = vweird.f32 %v4060
  %vm5438 = vweird.f32 %v5432
  %vm5439 = vmor %vm5437, %vm5438
  %v5440 = vsel %vm5439, %v5432, %v5436
  %v5441 = vand.u32 2147483647, %v4060
  %vm5442 = vcmp.eq.f32.partialorder %v5441, 8.507059e+37
  %v5443 = vand.u32 %v4060, 2147483648
  %v5444 = vor.u32 1.1754944e-38, %v5443
  %v5445 = vsel %vm5442, %v5444, %v5440
  %v5446 = vmul.f32 1.0, %v5445
  %v5447 = vrcp.pop %v4062
  %v5448 = vmul.f32 %v4062, %v5447
  %v5449 = vsub.f32 1.0, %v5448
  %v5450 = vmul.f32 %v5447, %v5449
  %v5451 = vadd.f32 %v5447, %v5450
  %vm5452 = vweird.f32 %v4062
  %vm5453 = vweird.f32 %v5447
  %vm5454 = vmor %vm5452, %vm5453
  %v5455 = vsel %vm5454, %v5447, %v5451
  %v5456 = vand.u32 2147483647, %v4062
  %vm5457 = vcmp.eq.f32.partialorder %v5456, 8.507059e+37
  %v5458 = vand.u32 %v4062, 2147483648
  %v5459 = vor.u32 1.1754944e-38, %v5458
  %v5460 = vsel %vm5457, %v5459, %v5455
  %v5461 = vmul.f32 1.0, %v5460
  %v5462 = vrcp.pop %v4064
  %v5463 = vmul.f32 %v4064, %v5462
  %v5464 = vsub.f32 1.0, %v5463
  %v5465 = vmul.f32 %v5462, %v5464
  %v5466 = vadd.f32 %v5462, %v5465
  %vm5467 = vweird.f32 %v4064
  %vm5468 = vweird.f32 %v5462
  %vm5469 = vmor %vm5467, %vm5468
  %v5470 = vsel %vm5469, %v5462, %v5466
  %v5471 = vand.u32 2147483647, %v4064
  %vm5472 = vcmp.eq.f32.partialorder %v5471, 8.507059e+37
  %v5473 = vand.u32 %v4064, 2147483648
  %v5474 = vor.u32 1.1754944e-38, %v5473
  %v5475 = vsel %vm5472, %v5474, %v5470
  %v5476 = vmul.f32 1.0, %v5475
  %v5477 = vmul.f32 %v4131, %v4531
  %v5478 = vmul.f32 %v4134, %v4546
  %v5479 = vmul.f32 %v4137, %v4561
  %v5480 = vmul.f32 %v4140, %v4576
  %v5481 = vmul.f32 %v4143, %v4591
  %v5482 = vmul.f32 %v4146, %v4606
  %v5483 = vmul.f32 %v4149, %v4621
  %v5484 = vmul.f32 %v4152, %v4636
  %v5485 = vmul.f32 %v4155, %v4651
  %v5486 = vmul.f32 %v4158, %v4666
  %v5487 = vmul.f32 %v4161, %v4681
  %v5488 = vmul.f32 %v4164, %v4696
  %v5489 = vmul.f32 %v4167, %v4711
  %v5490 = vmul.f32 %v4170, %v4726
  %v5491 = vmul.f32 %v4173, %v4741
  %v5492 = vmul.f32 %v4176, %v4756
  %v5493 = vmul.f32 %v4244, %v4771
  %v5494 = vmul.f32 %v4247, %v4786
  %v5495 = vmul.f32 %v4250, %v4801
  %v5496 = vmul.f32 %v4253, %v4816
  %v5497 = vmul.f32 %v4256, %v4831
  %v5498 = vmul.f32 %v4259, %v4846
  %v5499 = vmul.f32 %v4262, %v4861
  %v5500 = vmul.f32 %v4265, %v4876
  %v5501 = vmul.f32 %v4268, %v4891
  %v5502 = vmul.f32 %v4271, %v4906
  %v5503 = vmul.f32 %v4274, %v4921
  %v5504 = vmul.f32 %v4277, %v4936
  %v5505 = vmul.f32 %v4280, %v4951
  %v5506 = vmul.f32 %v4283, %v4966
  %v5507 = vmul.f32 %v4286, %v4981
  %v5508 = vmul.f32 %v4289, %v4996
  %v5509 = vmul.f32 %v4357, %v5011
  %v5510 = vmul.f32 %v4360, %v5026
  %v5511 = vmul.f32 %v4363, %v5041
  %v5512 = vmul.f32 %v4366, %v5056
  %v5513 = vmul.f32 %v4369, %v5071
  %v5514 = vmul.f32 %v4372, %v5086
  %v5515 = vmul.f32 %v4375, %v5101
  %v5516 = vmul.f32 %v4378, %v5116
  %v5517 = vmul.f32 %v4381, %v5131
  %v5518 = vmul.f32 %v4384, %v5146
  %v5519 = vmul.f32 %v4387, %v5161
  %v5520 = vmul.f32 %v4390, %v5176
  %v5521 = vmul.f32 %v4393, %v5191
  %v5522 = vmul.f32 %v4396, %v5206
  %v5523 = vmul.f32 %v4399, %v5221
  %v5524 = vmul.f32 %v4402, %v5236
  %v5525 = vmul.f32 %v4470, %v5251
  %v5526 = vmul.f32 %v4473, %v5266
  %v5527 = vmul.f32 %v4476, %v5281
  %v5528 = vmul.f32 %v4479, %v5296
  %v5529 = vmul.f32 %v4482, %v5311
  %v5530 = vmul.f32 %v4485, %v5326
  %v5531 = vmul.f32 %v4488, %v5341
  %v5532 = vmul.f32 %v4491, %v5356
  %v5533 = vmul.f32 %v4494, %v5371
  %v5534 = vmul.f32 %v4497, %v5386
  %v5535 = vmul.f32 %v4500, %v5401
  %v5536 = vmul.f32 %v4503, %v5416
  %v5537 = vmul.f32 %v4506, %v5431
  %v5538 = vmul.f32 %v4509, %v5446
  %v5539 = vmul.f32 %v4512, %v5461
  %v5540 = vmul.f32 %v4515, %v5476
  %5541 = vrot.lane.b32.xlu0 %v84, 112
  %v5542 = vpop.permute.xlu0 %5541
  %5543 = vrot.lane.b32.xlu0 %v85, 112
  %v5544 = vpop.permute.xlu0 %5543
  %5545 = vrot.lane.b32.xlu0 %v86, 112
  %v5546 = vpop.permute.xlu0 %5545
  %5547 = vrot.lane.b32.xlu0 %v87, 112
  %v5548 = vpop.permute.xlu0 %5547
  %5549 = vrot.lane.b32.xlu0 %v88, 112
  %v5550 = vpop.permute.xlu0 %5549
  %5551 = vrot.lane.b32.xlu0 %v89, 112
  %v5552 = vpop.permute.xlu0 %5551
  %5553 = vrot.lane.b32.xlu0 %v90, 112
  %v5554 = vpop.permute.xlu0 %5553
  %5555 = vrot.lane.b32.xlu0 %v91, 112
  %v5556 = vpop.permute.xlu0 %5555
  %5557 = vrot.lane.b32.xlu0 %v92, 112
  %v5558 = vpop.permute.xlu0 %5557
  %5559 = vrot.lane.b32.xlu0 %v93, 112
  %v5560 = vpop.permute.xlu0 %5559
  %5561 = vrot.lane.b32.xlu0 %v94, 112
  %v5562 = vpop.permute.xlu0 %5561
  %5563 = vrot.lane.b32.xlu0 %v95, 112
  %v5564 = vpop.permute.xlu0 %5563
  %5565 = vrot.lane.b32.xlu0 %v96, 112
  %v5566 = vpop.permute.xlu0 %5565
  %5567 = vrot.lane.b32.xlu0 %v97, 112
  %v5568 = vpop.permute.xlu0 %5567
  %5569 = vrot.lane.b32.xlu0 %v98, 112
  %v5570 = vpop.permute.xlu0 %5569
  %5571 = vrot.lane.b32.xlu0 %v99, 112
  %v5572 = vpop.permute.xlu0 %5571
  %5573 = vrot.lane.b32.xlu0 %v19, 80
  %v5574 = vpop.permute.xlu0 %5573
  %5575 = vrot.lane.b32.xlu0 %v20, 80
  %v5576 = vpop.permute.xlu0 %5575
  %5577 = vrot.lane.b32.xlu0 %v21, 80
  %v5578 = vpop.permute.xlu0 %5577
  %5579 = vrot.lane.b32.xlu0 %v22, 80
  %v5580 = vpop.permute.xlu0 %5579
  %5581 = vrot.lane.b32.xlu0 %v23, 80
  %v5582 = vpop.permute.xlu0 %5581
  %5583 = vrot.lane.b32.xlu0 %v24, 80
  %v5584 = vpop.permute.xlu0 %5583
  %5585 = vrot.lane.b32.xlu0 %v25, 80
  %v5586 = vpop.permute.xlu0 %5585
  %5587 = vrot.lane.b32.xlu0 %v26, 80
  %v5588 = vpop.permute.xlu0 %5587
  %5589 = vrot.lane.b32.xlu0 %v27, 80
  %v5590 = vpop.permute.xlu0 %5589
  %5591 = vrot.lane.b32.xlu0 %v28, 80
  %v5592 = vpop.permute.xlu0 %5591
  %5593 = vrot.lane.b32.xlu0 %v29, 80
  %v5594 = vpop.permute.xlu0 %5593
  %5595 = vrot.lane.b32.xlu0 %v30, 80
  %v5596 = vpop.permute.xlu0 %5595
  %5597 = vrot.lane.b32.xlu0 %v31, 80
  %v5598 = vpop.permute.xlu0 %5597
  %5599 = vrot.lane.b32.xlu0 %v32, 80
  %v5600 = vpop.permute.xlu0 %5599
  %5601 = vrot.lane.b32.xlu0 %v33, 80
  %v5602 = vpop.permute.xlu0 %5601
  %5603 = vrot.lane.b32.xlu0 %v34, 80
  %v5604 = vpop.permute.xlu0 %5603
  %v5605 = vsel %vm196, %v5542, 0
  %v5607 = vsel %vm196, %v5544, 0
  %v5609 = vsel %vm196, %v5546, 0
  %v5611 = vsel %vm196, %v5548, 0
  %v5613 = vsel %vm196, %v5550, 0
  %v5615 = vsel %vm196, %v5552, 0
  %v5617 = vsel %vm196, %v5554, 0
  %v5619 = vsel %vm196, %v5556, 0
  %v5621 = vsel %vm196, %v5558, 0
  %v5623 = vsel %vm196, %v5560, 0
  %v5625 = vsel %vm196, %v5562, 0
  %v5627 = vsel %vm196, %v5564, 0
  %v5629 = vsel %vm196, %v5566, 0
  %v5631 = vsel %vm196, %v5568, 0
  %v5633 = vsel %vm196, %v5570, 0
  %v5635 = vsel %vm196, %v5572, 0
  %v5637 = vsel %vm196, %v5574, 0
  %v5639 = vsel %vm196, %v5576, 0
  %v5641 = vsel %vm196, %v5578, 0
  %v5643 = vsel %vm196, %v5580, 0
  %v5645 = vsel %vm196, %v5582, 0
  %v5647 = vsel %vm196, %v5584, 0
  %v5649 = vsel %vm196, %v5586, 0
  %v5651 = vsel %vm196, %v5588, 0
  %v5653 = vsel %vm196, %v5590, 0
  %v5655 = vsel %vm196, %v5592, 0
  %v5657 = vsel %vm196, %v5594, 0
  %v5659 = vsel %vm196, %v5596, 0
  %v5661 = vsel %vm196, %v5598, 0
  %v5663 = vsel %vm196, %v5600, 0
  %v5665 = vsel %vm196, %v5602, 0
  %v5667 = vsel %vm196, %v5604, 0
  %5669 = vmatpush.xpose.msra.mxu0 %v5667
  %5670 = vmatpush.xpose.msra.mxu0 %v5665
  %5671 = vmatpush.xpose.msra.mxu0 %v5663
  %5672 = vmatpush.xpose.msra.mxu0 %v5661
  %5673 = vmatpush.xpose.msra.mxu0 %v5659
  %5674 = vmatpush.xpose.msra.mxu0 %v5657
  %5675 = vmatpush.xpose.msra.mxu0 %v5655
  %5676 = vmatpush.xpose.msra.mxu0 %v5653
  %5677 = vmatpush.xpose.msra.mxu0 %v5651
  %5678 = vmatpush.xpose.msra.mxu0 %v5649
  %5679 = vmatpush.xpose.msra.mxu0 %v5647
  %5680 = vmatpush.xpose.msra.mxu0 %v5645
  %5681 = vmatpush.xpose.msra.mxu0 %v5643
  %5682 = vmatpush.xpose.msra.mxu0 %v5641
  %5683 = vmatpush.xpose.msra.mxu0 %v5639
  %5684 = vmatpush.xpose.msra.mxu0 %v5637
  %5685 = vmatmul.f32.gmra.mxu0 %v5605
  %v5686 = vpop.f32.mrf.mxu0
  %v5687 = vadd.f32 0.0, %v5686
  %5688 = vmatmul.f32.gmra.mxu0 %v5607
  %v5689 = vpop.f32.mrf.mxu0
  %v5690 = vadd.f32 0.0, %v5689
  %5691 = vmatmul.f32.gmra.mxu0 %v5609
  %v5692 = vpop.f32.mrf.mxu0
  %v5693 = vadd.f32 0.0, %v5692
  %5694 = vmatmul.f32.gmra.mxu0 %v5611
  %v5695 = vpop.f32.mrf.mxu0
  %v5696 = vadd.f32 0.0, %v5695
  %5697 = vmatmul.f32.gmra.mxu0 %v5613
  %v5698 = vpop.f32.mrf.mxu0
  %v5699 = vadd.f32 0.0, %v5698
  %5700 = vmatmul.f32.gmra.mxu0 %v5615
  %v5701 = vpop.f32.mrf.mxu0
  %v5702 = vadd.f32 0.0, %v5701
  %5703 = vmatmul.f32.gmra.mxu0 %v5617
  %v5704 = vpop.f32.mrf.mxu0
  %v5705 = vadd.f32 0.0, %v5704
  %5706 = vmatmul.f32.gmra.mxu0 %v5619
  %v5707 = vpop.f32.mrf.mxu0
  %v5708 = vadd.f32 0.0, %v5707
  %5709 = vmatmul.f32.gmra.mxu0 %v5621
  %v5710 = vpop.f32.mrf.mxu0
  %v5711 = vadd.f32 0.0, %v5710
  %5712 = vmatmul.f32.gmra.mxu0 %v5623
  %v5713 = vpop.f32.mrf.mxu0
  %v5714 = vadd.f32 0.0, %v5713
  %5715 = vmatmul.f32.gmra.mxu0 %v5625
  %v5716 = vpop.f32.mrf.mxu0
  %v5717 = vadd.f32 0.0, %v5716
  %5718 = vmatmul.f32.gmra.mxu0 %v5627
  %v5719 = vpop.f32.mrf.mxu0
  %v5720 = vadd.f32 0.0, %v5719
  %5721 = vmatmul.f32.gmra.mxu0 %v5629
  %v5722 = vpop.f32.mrf.mxu0
  %v5723 = vadd.f32 0.0, %v5722
  %5724 = vmatmul.f32.gmra.mxu0 %v5631
  %v5725 = vpop.f32.mrf.mxu0
  %v5726 = vadd.f32 0.0, %v5725
  %5727 = vmatmul.f32.gmra.mxu0 %v5633
  %v5728 = vpop.f32.mrf.mxu0
  %v5729 = vadd.f32 0.0, %v5728
  %5730 = vmatmul.f32.gmra.mxu0 %v5635
  %v5731 = vpop.f32.mrf.mxu0
  %v5732 = vadd.f32 0.0, %v5731
  %5733 = vdwg.mxu0
  %5734 = vrot.lane.b32.xlu0 %v100, 112
  %v5735 = vpop.permute.xlu0 %5734
  %5736 = vrot.lane.b32.xlu0 %v101, 112
  %v5737 = vpop.permute.xlu0 %5736
  %5738 = vrot.lane.b32.xlu0 %v102, 112
  %v5739 = vpop.permute.xlu0 %5738
  %5740 = vrot.lane.b32.xlu0 %v103, 112
  %v5741 = vpop.permute.xlu0 %5740
  %5742 = vrot.lane.b32.xlu0 %v104, 112
  %v5743 = vpop.permute.xlu0 %5742
  %5744 = vrot.lane.b32.xlu0 %v105, 112
  %v5745 = vpop.permute.xlu0 %5744
  %5746 = vrot.lane.b32.xlu0 %v106, 112
  %v5747 = vpop.permute.xlu0 %5746
  %5748 = vrot.lane.b32.xlu0 %v107, 112
  %v5749 = vpop.permute.xlu0 %5748
  %5750 = vrot.lane.b32.xlu0 %v108, 112
  %v5751 = vpop.permute.xlu0 %5750
  %5752 = vrot.lane.b32.xlu0 %v109, 112
  %v5753 = vpop.permute.xlu0 %5752
  %5754 = vrot.lane.b32.xlu0 %v110, 112
  %v5755 = vpop.permute.xlu0 %5754
  %5756 = vrot.lane.b32.xlu0 %v111, 112
  %v5757 = vpop.permute.xlu0 %5756
  %5758 = vrot.lane.b32.xlu0 %v112, 112
  %v5759 = vpop.permute.xlu0 %5758
  %5760 = vrot.lane.b32.xlu0 %v113, 112
  %v5761 = vpop.permute.xlu0 %5760
  %5762 = vrot.lane.b32.xlu0 %v114, 112
  %v5763 = vpop.permute.xlu0 %5762
  %5764 = vrot.lane.b32.xlu0 %v115, 112
  %v5765 = vpop.permute.xlu0 %5764
  %5766 = vrot.lane.b32.xlu0 %v35, 80
  %v5767 = vpop.permute.xlu0 %5766
  %5768 = vrot.lane.b32.xlu0 %v36, 80
  %v5769 = vpop.permute.xlu0 %5768
  %5770 = vrot.lane.b32.xlu0 %v37, 80
  %v5771 = vpop.permute.xlu0 %5770
  %5772 = vrot.lane.b32.xlu0 %v38, 80
  %v5773 = vpop.permute.xlu0 %5772
  %5774 = vrot.lane.b32.xlu0 %v39, 80
  %v5775 = vpop.permute.xlu0 %5774
  %5776 = vrot.lane.b32.xlu0 %v40, 80
  %v5777 = vpop.permute.xlu0 %5776
  %5778 = vrot.lane.b32.xlu0 %v41, 80
  %v5779 = vpop.permute.xlu0 %5778
  %5780 = vrot.lane.b32.xlu0 %v42, 80
  %v5781 = vpop.permute.xlu0 %5780
  %5782 = vrot.lane.b32.xlu0 %v43, 80
  %v5783 = vpop.permute.xlu0 %5782
  %5784 = vrot.lane.b32.xlu0 %v44, 80
  %v5785 = vpop.permute.xlu0 %5784
  %5786 = vrot.lane.b32.xlu0 %v45, 80
  %v5787 = vpop.permute.xlu0 %5786
  %5788 = vrot.lane.b32.xlu0 %v46, 80
  %v5789 = vpop.permute.xlu0 %5788
  %5790 = vrot.lane.b32.xlu0 %v47, 80
  %v5791 = vpop.permute.xlu0 %5790
  %5792 = vrot.lane.b32.xlu0 %v48, 80
  %v5793 = vpop.permute.xlu0 %5792
  %5794 = vrot.lane.b32.xlu0 %v49, 80
  %v5795 = vpop.permute.xlu0 %5794
  %5796 = vrot.lane.b32.xlu0 %v50, 80
  %v5797 = vpop.permute.xlu0 %5796
  %v5798 = vsel %vm196, %v5735, 0
  %v5800 = vsel %vm196, %v5737, 0
  %v5802 = vsel %vm196, %v5739, 0
  %v5804 = vsel %vm196, %v5741, 0
  %v5806 = vsel %vm196, %v5743, 0
  %v5808 = vsel %vm196, %v5745, 0
  %v5810 = vsel %vm196, %v5747, 0
  %v5812 = vsel %vm196, %v5749, 0
  %v5814 = vsel %vm196, %v5751, 0
  %v5816 = vsel %vm196, %v5753, 0
  %v5818 = vsel %vm196, %v5755, 0
  %v5820 = vsel %vm196, %v5757, 0
  %v5822 = vsel %vm196, %v5759, 0
  %v5824 = vsel %vm196, %v5761, 0
  %v5826 = vsel %vm196, %v5763, 0
  %v5828 = vsel %vm196, %v5765, 0
  %v5830 = vsel %vm196, %v5767, 0
  %v5832 = vsel %vm196, %v5769, 0
  %v5834 = vsel %vm196, %v5771, 0
  %v5836 = vsel %vm196, %v5773, 0
  %v5838 = vsel %vm196, %v5775, 0
  %v5840 = vsel %vm196, %v5777, 0
  %v5842 = vsel %vm196, %v5779, 0
  %v5844 = vsel %vm196, %v5781, 0
  %v5846 = vsel %vm196, %v5783, 0
  %v5848 = vsel %vm196, %v5785, 0
  %v5850 = vsel %vm196, %v5787, 0
  %v5852 = vsel %vm196, %v5789, 0
  %v5854 = vsel %vm196, %v5791, 0
  %v5856 = vsel %vm196, %v5793, 0
  %v5858 = vsel %vm196, %v5795, 0
  %v5860 = vsel %vm196, %v5797, 0
  %5862 = vmatpush.xpose.msra.mxu0 %v5860
  %5863 = vmatpush.xpose.msra.mxu0 %v5858
  %5864 = vmatpush.xpose.msra.mxu0 %v5856
  %5865 = vmatpush.xpose.msra.mxu0 %v5854
  %5866 = vmatpush.xpose.msra.mxu0 %v5852
  %5867 = vmatpush.xpose.msra.mxu0 %v5850
  %5868 = vmatpush.xpose.msra.mxu0 %v5848
  %5869 = vmatpush.xpose.msra.mxu0 %v5846
  %5870 = vmatpush.xpose.msra.mxu0 %v5844
  %5871 = vmatpush.xpose.msra.mxu0 %v5842
  %5872 = vmatpush.xpose.msra.mxu0 %v5840
  %5873 = vmatpush.xpose.msra.mxu0 %v5838
  %5874 = vmatpush.xpose.msra.mxu0 %v5836
  %5875 = vmatpush.xpose.msra.mxu0 %v5834
  %5876 = vmatpush.xpose.msra.mxu0 %v5832
  %5877 = vmatpush.xpose.msra.mxu0 %v5830
  %5878 = vmatmul.f32.gmra.mxu0 %v5798
  %v5879 = vpop.f32.mrf.mxu0
  %v5880 = vadd.f32 0.0, %v5879
  %5881 = vmatmul.f32.gmra.mxu0 %v5800
  %v5882 = vpop.f32.mrf.mxu0
  %v5883 = vadd.f32 0.0, %v5882
  %5884 = vmatmul.f32.gmra.mxu0 %v5802
  %v5885 = vpop.f32.mrf.mxu0
  %v5886 = vadd.f32 0.0, %v5885
  %5887 = vmatmul.f32.gmra.mxu0 %v5804
  %v5888 = vpop.f32.mrf.mxu0
  %v5889 = vadd.f32 0.0, %v5888
  %5890 = vmatmul.f32.gmra.mxu0 %v5806
  %v5891 = vpop.f32.mrf.mxu0
  %v5892 = vadd.f32 0.0, %v5891
  %5893 = vmatmul.f32.gmra.mxu0 %v5808
  %v5894 = vpop.f32.mrf.mxu0
  %v5895 = vadd.f32 0.0, %v5894
  %5896 = vmatmul.f32.gmra.mxu0 %v5810
  %v5897 = vpop.f32.mrf.mxu0
  %v5898 = vadd.f32 0.0, %v5897
  %5899 = vmatmul.f32.gmra.mxu0 %v5812
  %v5900 = vpop.f32.mrf.mxu0
  %v5901 = vadd.f32 0.0, %v5900
  %5902 = vmatmul.f32.gmra.mxu0 %v5814
  %v5903 = vpop.f32.mrf.mxu0
  %v5904 = vadd.f32 0.0, %v5903
  %5905 = vmatmul.f32.gmra.mxu0 %v5816
  %v5906 = vpop.f32.mrf.mxu0
  %v5907 = vadd.f32 0.0, %v5906
  %5908 = vmatmul.f32.gmra.mxu0 %v5818
  %v5909 = vpop.f32.mrf.mxu0
  %v5910 = vadd.f32 0.0, %v5909
  %5911 = vmatmul.f32.gmra.mxu0 %v5820
  %v5912 = vpop.f32.mrf.mxu0
  %v5913 = vadd.f32 0.0, %v5912
  %5914 = vmatmul.f32.gmra.mxu0 %v5822
  %v5915 = vpop.f32.mrf.mxu0
  %v5916 = vadd.f32 0.0, %v5915
  %5917 = vmatmul.f32.gmra.mxu0 %v5824
  %v5918 = vpop.f32.mrf.mxu0
  %v5919 = vadd.f32 0.0, %v5918
  %5920 = vmatmul.f32.gmra.mxu0 %v5826
  %v5921 = vpop.f32.mrf.mxu0
  %v5922 = vadd.f32 0.0, %v5921
  %5923 = vmatmul.f32.gmra.mxu0 %v5828
  %v5924 = vpop.f32.mrf.mxu0
  %v5925 = vadd.f32 0.0, %v5924
  %5926 = vdwg.mxu0
  %5927 = vrot.lane.b32.xlu0 %v116, 112
  %v5928 = vpop.permute.xlu0 %5927
  %5929 = vrot.lane.b32.xlu0 %v117, 112
  %v5930 = vpop.permute.xlu0 %5929
  %5931 = vrot.lane.b32.xlu0 %v118, 112
  %v5932 = vpop.permute.xlu0 %5931
  %5933 = vrot.lane.b32.xlu0 %v119, 112
  %v5934 = vpop.permute.xlu0 %5933
  %5935 = vrot.lane.b32.xlu0 %v120, 112
  %v5936 = vpop.permute.xlu0 %5935
  %5937 = vrot.lane.b32.xlu0 %v121, 112
  %v5938 = vpop.permute.xlu0 %5937
  %5939 = vrot.lane.b32.xlu0 %v122, 112
  %v5940 = vpop.permute.xlu0 %5939
  %5941 = vrot.lane.b32.xlu0 %v123, 112
  %v5942 = vpop.permute.xlu0 %5941
  %5943 = vrot.lane.b32.xlu0 %v124, 112
  %v5944 = vpop.permute.xlu0 %5943
  %5945 = vrot.lane.b32.xlu0 %v125, 112
  %v5946 = vpop.permute.xlu0 %5945
  %5947 = vrot.lane.b32.xlu0 %v126, 112
  %v5948 = vpop.permute.xlu0 %5947
  %5949 = vrot.lane.b32.xlu0 %v127, 112
  %v5950 = vpop.permute.xlu0 %5949
  %5951 = vrot.lane.b32.xlu0 %v128, 112
  %v5952 = vpop.permute.xlu0 %5951
  %5953 = vrot.lane.b32.xlu0 %v129, 112
  %v5954 = vpop.permute.xlu0 %5953
  %5955 = vrot.lane.b32.xlu0 %v130, 112
  %v5956 = vpop.permute.xlu0 %5955
  %5957 = vrot.lane.b32.xlu0 %v131, 112
  %v5958 = vpop.permute.xlu0 %5957
  %5959 = vrot.lane.b32.xlu0 %v51, 80
  %v5960 = vpop.permute.xlu0 %5959
  %5961 = vrot.lane.b32.xlu0 %v52, 80
  %v5962 = vpop.permute.xlu0 %5961
  %5963 = vrot.lane.b32.xlu0 %v53, 80
  %v5964 = vpop.permute.xlu0 %5963
  %5965 = vrot.lane.b32.xlu0 %v54, 80
  %v5966 = vpop.permute.xlu0 %5965
  %5967 = vrot.lane.b32.xlu0 %v55, 80
  %v5968 = vpop.permute.xlu0 %5967
  %5969 = vrot.lane.b32.xlu0 %v56, 80
  %v5970 = vpop.permute.xlu0 %5969
  %5971 = vrot.lane.b32.xlu0 %v57, 80
  %v5972 = vpop.permute.xlu0 %5971
  %5973 = vrot.lane.b32.xlu0 %v58, 80
  %v5974 = vpop.permute.xlu0 %5973
  %5975 = vrot.lane.b32.xlu0 %v59, 80
  %v5976 = vpop.permute.xlu0 %5975
  %5977 = vrot.lane.b32.xlu0 %v60, 80
  %v5978 = vpop.permute.xlu0 %5977
  %5979 = vrot.lane.b32.xlu0 %v61, 80
  %v5980 = vpop.permute.xlu0 %5979
  %5981 = vrot.lane.b32.xlu0 %v62, 80
  %v5982 = vpop.permute.xlu0 %5981
  %5983 = vrot.lane.b32.xlu0 %v63, 80
  %v5984 = vpop.permute.xlu0 %5983
  %5985 = vrot.lane.b32.xlu0 %v64, 80
  %v5986 = vpop.permute.xlu0 %5985
  %5987 = vrot.lane.b32.xlu0 %v65, 80
  %v5988 = vpop.permute.xlu0 %5987
  %5989 = vrot.lane.b32.xlu0 %v66, 80
  %v5990 = vpop.permute.xlu0 %5989
  %v5991 = vsel %vm196, %v5928, 0
  %v5993 = vsel %vm196, %v5930, 0
  %v5995 = vsel %vm196, %v5932, 0
  %v5997 = vsel %vm196, %v5934, 0
  %v5999 = vsel %vm196, %v5936, 0
  %v6001 = vsel %vm196, %v5938, 0
  %v6003 = vsel %vm196, %v5940, 0
  %v6005 = vsel %vm196, %v5942, 0
  %v6007 = vsel %vm196, %v5944, 0
  %v6009 = vsel %vm196, %v5946, 0
  %v6011 = vsel %vm196, %v5948, 0
  %v6013 = vsel %vm196, %v5950, 0
  %v6015 = vsel %vm196, %v5952, 0
  %v6017 = vsel %vm196, %v5954, 0
  %v6019 = vsel %vm196, %v5956, 0
  %v6021 = vsel %vm196, %v5958, 0
  %v6023 = vsel %vm196, %v5960, 0
  %v6025 = vsel %vm196, %v5962, 0
  %v6027 = vsel %vm196, %v5964, 0
  %v6029 = vsel %vm196, %v5966, 0
  %v6031 = vsel %vm196, %v5968, 0
  %v6033 = vsel %vm196, %v5970, 0
  %v6035 = vsel %vm196, %v5972, 0
  %v6037 = vsel %vm196, %v5974, 0
  %v6039 = vsel %vm196, %v5976, 0
  %v6041 = vsel %vm196, %v5978, 0
  %v6043 = vsel %vm196, %v5980, 0
  %v6045 = vsel %vm196, %v5982, 0
  %v6047 = vsel %vm196, %v5984, 0
  %v6049 = vsel %vm196, %v5986, 0
  %v6051 = vsel %vm196, %v5988, 0
  %v6053 = vsel %vm196, %v5990, 0
  %6055 = vmatpush.xpose.msra.mxu0 %v6053
  %6056 = vmatpush.xpose.msra.mxu0 %v6051
  %6057 = vmatpush.xpose.msra.mxu0 %v6049
  %6058 = vmatpush.xpose.msra.mxu0 %v6047
  %6059 = vmatpush.xpose.msra.mxu0 %v6045
  %6060 = vmatpush.xpose.msra.mxu0 %v6043
  %6061 = vmatpush.xpose.msra.mxu0 %v6041
  %6062 = vmatpush.xpose.msra.mxu0 %v6039
  %6063 = vmatpush.xpose.msra.mxu0 %v6037
  %6064 = vmatpush.xpose.msra.mxu0 %v6035
  %6065 = vmatpush.xpose.msra.mxu0 %v6033
  %6066 = vmatpush.xpose.msra.mxu0 %v6031
  %6067 = vmatpush.xpose.msra.mxu0 %v6029
  %6068 = vmatpush.xpose.msra.mxu0 %v6027
  %6069 = vmatpush.xpose.msra.mxu0 %v6025
  %6070 = vmatpush.xpose.msra.mxu0 %v6023
  %6071 = vmatmul.f32.gmra.mxu0 %v5991
  %v6072 = vpop.f32.mrf.mxu0
  %v6073 = vadd.f32 0.0, %v6072
  %6074 = vmatmul.f32.gmra.mxu0 %v5993
  %v6075 = vpop.f32.mrf.mxu0
  %v6076 = vadd.f32 0.0, %v6075
  %6077 = vmatmul.f32.gmra.mxu0 %v5995
  %v6078 = vpop.f32.mrf.mxu0
  %v6079 = vadd.f32 0.0, %v6078
  %6080 = vmatmul.f32.gmra.mxu0 %v5997
  %v6081 = vpop.f32.mrf.mxu0
  %v6082 = vadd.f32 0.0, %v6081
  %6083 = vmatmul.f32.gmra.mxu0 %v5999
  %v6084 = vpop.f32.mrf.mxu0
  %v6085 = vadd.f32 0.0, %v6084
  %6086 = vmatmul.f32.gmra.mxu0 %v6001
  %v6087 = vpop.f32.mrf.mxu0
  %v6088 = vadd.f32 0.0, %v6087
  %6089 = vmatmul.f32.gmra.mxu0 %v6003
  %v6090 = vpop.f32.mrf.mxu0
  %v6091 = vadd.f32 0.0, %v6090
  %6092 = vmatmul.f32.gmra.mxu0 %v6005
  %v6093 = vpop.f32.mrf.mxu0
  %v6094 = vadd.f32 0.0, %v6093
  %6095 = vmatmul.f32.gmra.mxu0 %v6007
  %v6096 = vpop.f32.mrf.mxu0
  %v6097 = vadd.f32 0.0, %v6096
  %6098 = vmatmul.f32.gmra.mxu0 %v6009
  %v6099 = vpop.f32.mrf.mxu0
  %v6100 = vadd.f32 0.0, %v6099
  %6101 = vmatmul.f32.gmra.mxu0 %v6011
  %v6102 = vpop.f32.mrf.mxu0
  %v6103 = vadd.f32 0.0, %v6102
  %6104 = vmatmul.f32.gmra.mxu0 %v6013
  %v6105 = vpop.f32.mrf.mxu0
  %v6106 = vadd.f32 0.0, %v6105
  %6107 = vmatmul.f32.gmra.mxu0 %v6015
  %v6108 = vpop.f32.mrf.mxu0
  %v6109 = vadd.f32 0.0, %v6108
  %6110 = vmatmul.f32.gmra.mxu0 %v6017
  %v6111 = vpop.f32.mrf.mxu0
  %v6112 = vadd.f32 0.0, %v6111
  %6113 = vmatmul.f32.gmra.mxu0 %v6019
  %v6114 = vpop.f32.mrf.mxu0
  %v6115 = vadd.f32 0.0, %v6114
  %6116 = vmatmul.f32.gmra.mxu0 %v6021
  %v6117 = vpop.f32.mrf.mxu0
  %v6118 = vadd.f32 0.0, %v6117
  %6119 = vdwg.mxu0
  %6120 = vrot.lane.b32.xlu0 %v132, 112
  %v6121 = vpop.permute.xlu0 %6120
  %6122 = vrot.lane.b32.xlu0 %v133, 112
  %v6123 = vpop.permute.xlu0 %6122
  %6124 = vrot.lane.b32.xlu0 %v134, 112
  %v6125 = vpop.permute.xlu0 %6124
  %6126 = vrot.lane.b32.xlu0 %v135, 112
  %v6127 = vpop.permute.xlu0 %6126
  %6128 = vrot.lane.b32.xlu0 %v136, 112
  %v6129 = vpop.permute.xlu0 %6128
  %6130 = vrot.lane.b32.xlu0 %v137, 112
  %v6131 = vpop.permute.xlu0 %6130
  %6132 = vrot.lane.b32.xlu0 %v138, 112
  %v6133 = vpop.permute.xlu0 %6132
  %6134 = vrot.lane.b32.xlu0 %v139, 112
  %v6135 = vpop.permute.xlu0 %6134
  %6136 = vrot.lane.b32.xlu0 %v140, 112
  %v6137 = vpop.permute.xlu0 %6136
  %6138 = vrot.lane.b32.xlu0 %v141, 112
  %v6139 = vpop.permute.xlu0 %6138
  %6140 = vrot.lane.b32.xlu0 %v142, 112
  %v6141 = vpop.permute.xlu0 %6140
  %6142 = vrot.lane.b32.xlu0 %v143, 112
  %v6143 = vpop.permute.xlu0 %6142
  %6144 = vrot.lane.b32.xlu0 %v144, 112
  %v6145 = vpop.permute.xlu0 %6144
  %6146 = vrot.lane.b32.xlu0 %v145, 112
  %v6147 = vpop.permute.xlu0 %6146
  %6148 = vrot.lane.b32.xlu0 %v146, 112
  %v6149 = vpop.permute.xlu0 %6148
  %6150 = vrot.lane.b32.xlu0 %v147, 112
  %v6151 = vpop.permute.xlu0 %6150
  %6152 = vrot.lane.b32.xlu0 %v67, 80
  %v6153 = vpop.permute.xlu0 %6152
  %6154 = vrot.lane.b32.xlu0 %v68, 80
  %v6155 = vpop.permute.xlu0 %6154
  %6156 = vrot.lane.b32.xlu0 %v69, 80
  %v6157 = vpop.permute.xlu0 %6156
  %6158 = vrot.lane.b32.xlu0 %v70, 80
  %v6159 = vpop.permute.xlu0 %6158
  %6160 = vrot.lane.b32.xlu0 %v71, 80
  %v6161 = vpop.permute.xlu0 %6160
  %6162 = vrot.lane.b32.xlu0 %v72, 80
  %v6163 = vpop.permute.xlu0 %6162
  %6164 = vrot.lane.b32.xlu0 %v73, 80
  %v6165 = vpop.permute.xlu0 %6164
  %6166 = vrot.lane.b32.xlu0 %v74, 80
  %v6167 = vpop.permute.xlu0 %6166
  %6168 = vrot.lane.b32.xlu0 %v75, 80
  %v6169 = vpop.permute.xlu0 %6168
  %6170 = vrot.lane.b32.xlu0 %v76, 80
  %v6171 = vpop.permute.xlu0 %6170
  %6172 = vrot.lane.b32.xlu0 %v77, 80
  %v6173 = vpop.permute.xlu0 %6172
  %6174 = vrot.lane.b32.xlu0 %v78, 80
  %v6175 = vpop.permute.xlu0 %6174
  %6176 = vrot.lane.b32.xlu0 %v79, 80
  %v6177 = vpop.permute.xlu0 %6176
  %6178 = vrot.lane.b32.xlu0 %v80, 80
  %v6179 = vpop.permute.xlu0 %6178
  %6180 = vrot.lane.b32.xlu0 %v81, 80
  %v6181 = vpop.permute.xlu0 %6180
  %6182 = vrot.lane.b32.xlu0 %v82, 80
  %v6183 = vpop.permute.xlu0 %6182
  %v6184 = vsel %vm196, %v6121, 0
  %v6186 = vsel %vm196, %v6123, 0
  %v6188 = vsel %vm196, %v6125, 0
  %v6190 = vsel %vm196, %v6127, 0
  %v6192 = vsel %vm196, %v6129, 0
  %v6194 = vsel %vm196, %v6131, 0
  %v6196 = vsel %vm196, %v6133, 0
  %v6198 = vsel %vm196, %v6135, 0
  %v6200 = vsel %vm196, %v6137, 0
  %v6202 = vsel %vm196, %v6139, 0
  %v6204 = vsel %vm196, %v6141, 0
  %v6206 = vsel %vm196, %v6143, 0
  %v6208 = vsel %vm196, %v6145, 0
  %v6210 = vsel %vm196, %v6147, 0
  %v6212 = vsel %vm196, %v6149, 0
  %v6214 = vsel %vm196, %v6151, 0
  %v6216 = vsel %vm196, %v6153, 0
  %v6218 = vsel %vm196, %v6155, 0
  %v6220 = vsel %vm196, %v6157, 0
  %v6222 = vsel %vm196, %v6159, 0
  %v6224 = vsel %vm196, %v6161, 0
  %v6226 = vsel %vm196, %v6163, 0
  %v6228 = vsel %vm196, %v6165, 0
  %v6230 = vsel %vm196, %v6167, 0
  %v6232 = vsel %vm196, %v6169, 0
  %v6234 = vsel %vm196, %v6171, 0
  %v6236 = vsel %vm196, %v6173, 0
  %v6238 = vsel %vm196, %v6175, 0
  %v6240 = vsel %vm196, %v6177, 0
  %v6242 = vsel %vm196, %v6179, 0
  %v6244 = vsel %vm196, %v6181, 0
  %v6246 = vsel %vm196, %v6183, 0
  %6248 = vmatpush.xpose.msra.mxu0 %v6246
  %6249 = vmatpush.xpose.msra.mxu0 %v6244
  %6250 = vmatpush.xpose.msra.mxu0 %v6242
  %6251 = vmatpush.xpose.msra.mxu0 %v6240
  %6252 = vmatpush.xpose.msra.mxu0 %v6238
  %6253 = vmatpush.xpose.msra.mxu0 %v6236
  %6254 = vmatpush.xpose.msra.mxu0 %v6234
  %6255 = vmatpush.xpose.msra.mxu0 %v6232
  %6256 = vmatpush.xpose.msra.mxu0 %v6230
  %6257 = vmatpush.xpose.msra.mxu0 %v6228
  %6258 = vmatpush.xpose.msra.mxu0 %v6226
  %6259 = vmatpush.xpose.msra.mxu0 %v6224
  %6260 = vmatpush.xpose.msra.mxu0 %v6222
  %6261 = vmatpush.xpose.msra.mxu0 %v6220
  %6262 = vmatpush.xpose.msra.mxu0 %v6218
  %6263 = vmatpush.xpose.msra.mxu0 %v6216
  %6264 = vmatmul.f32.gmra.mxu0 %v6184
  %v6265 = vpop.f32.mrf.mxu0
  %v6266 = vadd.f32 0.0, %v6265
  %6267 = vmatmul.f32.gmra.mxu0 %v6186
  %v6268 = vpop.f32.mrf.mxu0
  %v6269 = vadd.f32 0.0, %v6268
  %6270 = vmatmul.f32.gmra.mxu0 %v6188
  %v6271 = vpop.f32.mrf.mxu0
  %v6272 = vadd.f32 0.0, %v6271
  %6273 = vmatmul.f32.gmra.mxu0 %v6190
  %v6274 = vpop.f32.mrf.mxu0
  %v6275 = vadd.f32 0.0, %v6274
  %6276 = vmatmul.f32.gmra.mxu0 %v6192
  %v6277 = vpop.f32.mrf.mxu0
  %v6278 = vadd.f32 0.0, %v6277
  %6279 = vmatmul.f32.gmra.mxu0 %v6194
  %v6280 = vpop.f32.mrf.mxu0
  %v6281 = vadd.f32 0.0, %v6280
  %6282 = vmatmul.f32.gmra.mxu0 %v6196
  %v6283 = vpop.f32.mrf.mxu0
  %v6284 = vadd.f32 0.0, %v6283
  %6285 = vmatmul.f32.gmra.mxu0 %v6198
  %v6286 = vpop.f32.mrf.mxu0
  %v6287 = vadd.f32 0.0, %v6286
  %6288 = vmatmul.f32.gmra.mxu0 %v6200
  %v6289 = vpop.f32.mrf.mxu0
  %v6290 = vadd.f32 0.0, %v6289
  %6291 = vmatmul.f32.gmra.mxu0 %v6202
  %v6292 = vpop.f32.mrf.mxu0
  %v6293 = vadd.f32 0.0, %v6292
  %6294 = vmatmul.f32.gmra.mxu0 %v6204
  %v6295 = vpop.f32.mrf.mxu0
  %v6296 = vadd.f32 0.0, %v6295
  %6297 = vmatmul.f32.gmra.mxu0 %v6206
  %v6298 = vpop.f32.mrf.mxu0
  %v6299 = vadd.f32 0.0, %v6298
  %6300 = vmatmul.f32.gmra.mxu0 %v6208
  %v6301 = vpop.f32.mrf.mxu0
  %v6302 = vadd.f32 0.0, %v6301
  %6303 = vmatmul.f32.gmra.mxu0 %v6210
  %v6304 = vpop.f32.mrf.mxu0
  %v6305 = vadd.f32 0.0, %v6304
  %6306 = vmatmul.f32.gmra.mxu0 %v6212
  %v6307 = vpop.f32.mrf.mxu0
  %v6308 = vadd.f32 0.0, %v6307
  %6309 = vmatmul.f32.gmra.mxu0 %v6214
  %v6310 = vpop.f32.mrf.mxu0
  %v6311 = vadd.f32 0.0, %v6310
  %6312 = vdwg.mxu0
  %6313 = vmax.xlane.f32.xlu0 %v5687
  %v6314 = vpop.xlane.xlu0 %6313
  %6315 = vmax.xlane.f32.xlu0 %v5690
  %v6316 = vpop.xlane.xlu0 %6315
  %6317 = vmax.xlane.f32.xlu0 %v5693
  %v6318 = vpop.xlane.xlu0 %6317
  %6319 = vmax.xlane.f32.xlu0 %v5696
  %v6320 = vpop.xlane.xlu0 %6319
  %6321 = vmax.xlane.f32.xlu0 %v5699
  %v6322 = vpop.xlane.xlu0 %6321
  %6323 = vmax.xlane.f32.xlu0 %v5702
  %v6324 = vpop.xlane.xlu0 %6323
  %6325 = vmax.xlane.f32.xlu0 %v5705
  %v6326 = vpop.xlane.xlu0 %6325
  %6327 = vmax.xlane.f32.xlu0 %v5708
  %v6328 = vpop.xlane.xlu0 %6327
  %6329 = vmax.xlane.f32.xlu0 %v5711
  %v6330 = vpop.xlane.xlu0 %6329
  %6331 = vmax.xlane.f32.xlu0 %v5714
  %v6332 = vpop.xlane.xlu0 %6331
  %6333 = vmax.xlane.f32.xlu0 %v5717
  %v6334 = vpop.xlane.xlu0 %6333
  %6335 = vmax.xlane.f32.xlu0 %v5720
  %v6336 = vpop.xlane.xlu0 %6335
  %6337 = vmax.xlane.f32.xlu0 %v5723
  %v6338 = vpop.xlane.xlu0 %6337
  %6339 = vmax.xlane.f32.xlu0 %v5726
  %v6340 = vpop.xlane.xlu0 %6339
  %6341 = vmax.xlane.f32.xlu0 %v5729
  %v6342 = vpop.xlane.xlu0 %6341
  %6343 = vmax.xlane.f32.xlu0 %v5732
  %v6344 = vpop.xlane.xlu0 %6343
  %6345 = vmax.xlane.f32.xlu0 %v5880
  %v6346 = vpop.xlane.xlu0 %6345
  %6347 = vmax.xlane.f32.xlu0 %v5883
  %v6348 = vpop.xlane.xlu0 %6347
  %6349 = vmax.xlane.f32.xlu0 %v5886
  %v6350 = vpop.xlane.xlu0 %6349
  %6351 = vmax.xlane.f32.xlu0 %v5889
  %v6352 = vpop.xlane.xlu0 %6351
  %6353 = vmax.xlane.f32.xlu0 %v5892
  %v6354 = vpop.xlane.xlu0 %6353
  %6355 = vmax.xlane.f32.xlu0 %v5895
  %v6356 = vpop.xlane.xlu0 %6355
  %6357 = vmax.xlane.f32.xlu0 %v5898
  %v6358 = vpop.xlane.xlu0 %6357
  %6359 = vmax.xlane.f32.xlu0 %v5901
  %v6360 = vpop.xlane.xlu0 %6359
  %6361 = vmax.xlane.f32.xlu0 %v5904
  %v6362 = vpop.xlane.xlu0 %6361
  %6363 = vmax.xlane.f32.xlu0 %v5907
  %v6364 = vpop.xlane.xlu0 %6363
  %6365 = vmax.xlane.f32.xlu0 %v5910
  %v6366 = vpop.xlane.xlu0 %6365
  %6367 = vmax.xlane.f32.xlu0 %v5913
  %v6368 = vpop.xlane.xlu0 %6367
  %6369 = vmax.xlane.f32.xlu0 %v5916
  %v6370 = vpop.xlane.xlu0 %6369
  %6371 = vmax.xlane.f32.xlu0 %v5919
  %v6372 = vpop.xlane.xlu0 %6371
  %6373 = vmax.xlane.f32.xlu0 %v5922
  %v6374 = vpop.xlane.xlu0 %6373
  %6375 = vmax.xlane.f32.xlu0 %v5925
  %v6376 = vpop.xlane.xlu0 %6375
  %6377 = vmax.xlane.f32.xlu0 %v6073
  %v6378 = vpop.xlane.xlu0 %6377
  %6379 = vmax.xlane.f32.xlu0 %v6076
  %v6380 = vpop.xlane.xlu0 %6379
  %6381 = vmax.xlane.f32.xlu0 %v6079
  %v6382 = vpop.xlane.xlu0 %6381
  %6383 = vmax.xlane.f32.xlu0 %v6082
  %v6384 = vpop.xlane.xlu0 %6383
  %6385 = vmax.xlane.f32.xlu0 %v6085
  %v6386 = vpop.xlane.xlu0 %6385
  %6387 = vmax.xlane.f32.xlu0 %v6088
  %v6388 = vpop.xlane.xlu0 %6387
  %6389 = vmax.xlane.f32.xlu0 %v6091
  %v6390 = vpop.xlane.xlu0 %6389
  %6391 = vmax.xlane.f32.xlu0 %v6094
  %v6392 = vpop.xlane.xlu0 %6391
  %6393 = vmax.xlane.f32.xlu0 %v6097
  %v6394 = vpop.xlane.xlu0 %6393
  %6395 = vmax.xlane.f32.xlu0 %v6100
  %v6396 = vpop.xlane.xlu0 %6395
  %6397 = vmax.xlane.f32.xlu0 %v6103
  %v6398 = vpop.xlane.xlu0 %6397
  %6399 = vmax.xlane.f32.xlu0 %v6106
  %v6400 = vpop.xlane.xlu0 %6399
  %6401 = vmax.xlane.f32.xlu0 %v6109
  %v6402 = vpop.xlane.xlu0 %6401
  %6403 = vmax.xlane.f32.xlu0 %v6112
  %v6404 = vpop.xlane.xlu0 %6403
  %6405 = vmax.xlane.f32.xlu0 %v6115
  %v6406 = vpop.xlane.xlu0 %6405
  %6407 = vmax.xlane.f32.xlu0 %v6118
  %v6408 = vpop.xlane.xlu0 %6407
  %6409 = vmax.xlane.f32.xlu0 %v6266
  %v6410 = vpop.xlane.xlu0 %6409
  %6411 = vmax.xlane.f32.xlu0 %v6269
  %v6412 = vpop.xlane.xlu0 %6411
  %6413 = vmax.xlane.f32.xlu0 %v6272
  %v6414 = vpop.xlane.xlu0 %6413
  %6415 = vmax.xlane.f32.xlu0 %v6275
  %v6416 = vpop.xlane.xlu0 %6415
  %6417 = vmax.xlane.f32.xlu0 %v6278
  %v6418 = vpop.xlane.xlu0 %6417
  %6419 = vmax.xlane.f32.xlu0 %v6281
  %v6420 = vpop.xlane.xlu0 %6419
  %6421 = vmax.xlane.f32.xlu0 %v6284
  %v6422 = vpop.xlane.xlu0 %6421
  %6423 = vmax.xlane.f32.xlu0 %v6287
  %v6424 = vpop.xlane.xlu0 %6423
  %6425 = vmax.xlane.f32.xlu0 %v6290
  %v6426 = vpop.xlane.xlu0 %6425
  %6427 = vmax.xlane.f32.xlu0 %v6293
  %v6428 = vpop.xlane.xlu0 %6427
  %6429 = vmax.xlane.f32.xlu0 %v6296
  %v6430 = vpop.xlane.xlu0 %6429
  %6431 = vmax.xlane.f32.xlu0 %v6299
  %v6432 = vpop.xlane.xlu0 %6431
  %6433 = vmax.xlane.f32.xlu0 %v6302
  %v6434 = vpop.xlane.xlu0 %6433
  %6435 = vmax.xlane.f32.xlu0 %v6305
  %v6436 = vpop.xlane.xlu0 %6435
  %6437 = vmax.xlane.f32.xlu0 %v6308
  %v6438 = vpop.xlane.xlu0 %6437
  %6439 = vmax.xlane.f32.xlu0 %v6311
  %v6440 = vpop.xlane.xlu0 %6439
  %v6441 = vsub.f32 %v5687, %v6314
  %v6442 = vsub.f32 %v5690, %v6316
  %v6443 = vsub.f32 %v5693, %v6318
  %v6444 = vsub.f32 %v5696, %v6320
  %v6445 = vsub.f32 %v5699, %v6322
  %v6446 = vsub.f32 %v5702, %v6324
  %v6447 = vsub.f32 %v5705, %v6326
  %v6448 = vsub.f32 %v5708, %v6328
  %v6449 = vsub.f32 %v5711, %v6330
  %v6450 = vsub.f32 %v5714, %v6332
  %v6451 = vsub.f32 %v5717, %v6334
  %v6452 = vsub.f32 %v5720, %v6336
  %v6453 = vsub.f32 %v5723, %v6338
  %v6454 = vsub.f32 %v5726, %v6340
  %v6455 = vsub.f32 %v5729, %v6342
  %v6456 = vsub.f32 %v5732, %v6344
  %v6457 = vsub.f32 %v5880, %v6346
  %v6458 = vsub.f32 %v5883, %v6348
  %v6459 = vsub.f32 %v5886, %v6350
  %v6460 = vsub.f32 %v5889, %v6352
  %v6461 = vsub.f32 %v5892, %v6354
  %v6462 = vsub.f32 %v5895, %v6356
  %v6463 = vsub.f32 %v5898, %v6358
  %v6464 = vsub.f32 %v5901, %v6360
  %v6465 = vsub.f32 %v5904, %v6362
  %v6466 = vsub.f32 %v5907, %v6364
  %v6467 = vsub.f32 %v5910, %v6366
  %v6468 = vsub.f32 %v5913, %v6368
  %v6469 = vsub.f32 %v5916, %v6370
  %v6470 = vsub.f32 %v5919, %v6372
  %v6471 = vsub.f32 %v5922, %v6374
  %v6472 = vsub.f32 %v5925, %v6376
  %v6473 = vsub.f32 %v6073, %v6378
  %v6474 = vsub.f32 %v6076, %v6380
  %v6475 = vsub.f32 %v6079, %v6382
  %v6476 = vsub.f32 %v6082, %v6384
  %v6477 = vsub.f32 %v6085, %v6386
  %v6478 = vsub.f32 %v6088, %v6388
  %v6479 = vsub.f32 %v6091, %v6390
  %v6480 = vsub.f32 %v6094, %v6392
  %v6481 = vsub.f32 %v6097, %v6394
  %v6482 = vsub.f32 %v6100, %v6396
  %v6483 = vsub.f32 %v6103, %v6398
  %v6484 = vsub.f32 %v6106, %v6400
  %v6485 = vsub.f32 %v6109, %v6402
  %v6486 = vsub.f32 %v6112, %v6404
  %v6487 = vsub.f32 %v6115, %v6406
  %v6488 = vsub.f32 %v6118, %v6408
  %v6489 = vsub.f32 %v6266, %v6410
  %v6490 = vsub.f32 %v6269, %v6412
  %v6491 = vsub.f32 %v6272, %v6414
  %v6492 = vsub.f32 %v6275, %v6416
  %v6493 = vsub.f32 %v6278, %v6418
  %v6494 = vsub.f32 %v6281, %v6420
  %v6495 = vsub.f32 %v6284, %v6422
  %v6496 = vsub.f32 %v6287, %v6424
  %v6497 = vsub.f32 %v6290, %v6426
  %v6498 = vsub.f32 %v6293, %v6428
  %v6499 = vsub.f32 %v6296, %v6430
  %v6500 = vsub.f32 %v6299, %v6432
  %v6501 = vsub.f32 %v6302, %v6434
  %v6502 = vsub.f32 %v6305, %v6436
  %v6503 = vsub.f32 %v6308, %v6438
  %v6504 = vsub.f32 %v6311, %v6440
  %v6505 = vmul.f32 %v6441, 1.442695
  %v6506 = vpow.pop %v6505
  %v6507 = vmul.f32 %v6442, 1.442695
  %v6508 = vpow.pop %v6507
  %v6509 = vmul.f32 %v6443, 1.442695
  %v6510 = vpow.pop %v6509
  %v6511 = vmul.f32 %v6444, 1.442695
  %v6512 = vpow.pop %v6511
  %v6513 = vmul.f32 %v6445, 1.442695
  %v6514 = vpow.pop %v6513
  %v6515 = vmul.f32 %v6446, 1.442695
  %v6516 = vpow.pop %v6515
  %v6517 = vmul.f32 %v6447, 1.442695
  %v6518 = vpow.pop %v6517
  %v6519 = vmul.f32 %v6448, 1.442695
  %v6520 = vpow.pop %v6519
  %v6521 = vmul.f32 %v6449, 1.442695
  %v6522 = vpow.pop %v6521
  %v6523 = vmul.f32 %v6450, 1.442695
  %v6524 = vpow.pop %v6523
  %v6525 = vmul.f32 %v6451, 1.442695
  %v6526 = vpow.pop %v6525
  %v6527 = vmul.f32 %v6452, 1.442695
  %v6528 = vpow.pop %v6527
  %v6529 = vmul.f32 %v6453, 1.442695
  %v6530 = vpow.pop %v6529
  %v6531 = vmul.f32 %v6454, 1.442695
  %v6532 = vpow.pop %v6531
  %v6533 = vmul.f32 %v6455, 1.442695
  %v6534 = vpow.pop %v6533
  %v6535 = vmul.f32 %v6456, 1.442695
  %v6536 = vpow.pop %v6535
  %v6537 = vmul.f32 %v6457, 1.442695
  %v6538 = vpow.pop %v6537
  %v6539 = vmul.f32 %v6458, 1.442695
  %v6540 = vpow.pop %v6539
  %v6541 = vmul.f32 %v6459, 1.442695
  %v6542 = vpow.pop %v6541
  %v6543 = vmul.f32 %v6460, 1.442695
  %v6544 = vpow.pop %v6543
  %v6545 = vmul.f32 %v6461, 1.442695
  %v6546 = vpow.pop %v6545
  %v6547 = vmul.f32 %v6462, 1.442695
  %v6548 = vpow.pop %v6547
  %v6549 = vmul.f32 %v6463, 1.442695
  %v6550 = vpow.pop %v6549
  %v6551 = vmul.f32 %v6464, 1.442695
  %v6552 = vpow.pop %v6551
  %v6553 = vmul.f32 %v6465, 1.442695
  %v6554 = vpow.pop %v6553
  %v6555 = vmul.f32 %v6466, 1.442695
  %v6556 = vpow.pop %v6555
  %v6557 = vmul.f32 %v6467, 1.442695
  %v6558 = vpow.pop %v6557
  %v6559 = vmul.f32 %v6468, 1.442695
  %v6560 = vpow.pop %v6559
  %v6561 = vmul.f32 %v6469, 1.442695
  %v6562 = vpow.pop %v6561
  %v6563 = vmul.f32 %v6470, 1.442695
  %v6564 = vpow.pop %v6563
  %v6565 = vmul.f32 %v6471, 1.442695
  %v6566 = vpow.pop %v6565
  %v6567 = vmul.f32 %v6472, 1.442695
  %v6568 = vpow.pop %v6567
  %v6569 = vmul.f32 %v6473, 1.442695
  %v6570 = vpow.pop %v6569
  %v6571 = vmul.f32 %v6474, 1.442695
  %v6572 = vpow.pop %v6571
  %v6573 = vmul.f32 %v6475, 1.442695
  %v6574 = vpow.pop %v6573
  %v6575 = vmul.f32 %v6476, 1.442695
  %v6576 = vpow.pop %v6575
  %v6577 = vmul.f32 %v6477, 1.442695
  %v6578 = vpow.pop %v6577
  %v6579 = vmul.f32 %v6478, 1.442695
  %v6580 = vpow.pop %v6579
  %v6581 = vmul.f32 %v6479, 1.442695
  %v6582 = vpow.pop %v6581
  %v6583 = vmul.f32 %v6480, 1.442695
  %v6584 = vpow.pop %v6583
  %v6585 = vmul.f32 %v6481, 1.442695
  %v6586 = vpow.pop %v6585
  %v6587 = vmul.f32 %v6482, 1.442695
  %v6588 = vpow.pop %v6587
  %v6589 = vmul.f32 %v6483, 1.442695
  %v6590 = vpow.pop %v6589
  %v6591 = vmul.f32 %v6484, 1.442695
  %v6592 = vpow.pop %v6591
  %v6593 = vmul.f32 %v6485, 1.442695
  %v6594 = vpow.pop %v6593
  %v6595 = vmul.f32 %v6486, 1.442695
  %v6596 = vpow.pop %v6595
  %v6597 = vmul.f32 %v6487, 1.442695
  %v6598 = vpow.pop %v6597
  %v6599 = vmul.f32 %v6488, 1.442695
  %v6600 = vpow.pop %v6599
  %v6601 = vmul.f32 %v6489, 1.442695
  %v6602 = vpow.pop %v6601
  %v6603 = vmul.f32 %v6490, 1.442695
  %v6604 = vpow.pop %v6603
  %v6605 = vmul.f32 %v6491, 1.442695
  %v6606 = vpow.pop %v6605
  %v6607 = vmul.f32 %v6492, 1.442695
  %v6608 = vpow.pop %v6607
  %v6609 = vmul.f32 %v6493, 1.442695
  %v6610 = vpow.pop %v6609
  %v6611 = vmul.f32 %v6494, 1.442695
  %v6612 = vpow.pop %v6611
  %v6613 = vmul.f32 %v6495, 1.442695
  %v6614 = vpow.pop %v6613
  %v6615 = vmul.f32 %v6496, 1.442695
  %v6616 = vpow.pop %v6615
  %v6617 = vmul.f32 %v6497, 1.442695
  %v6618 = vpow.pop %v6617
  %v6619 = vmul.f32 %v6498, 1.442695
  %v6620 = vpow.pop %v6619
  %v6621 = vmul.f32 %v6499, 1.442695
  %v6622 = vpow.pop %v6621
  %v6623 = vmul.f32 %v6500, 1.442695
  %v6624 = vpow.pop %v6623
  %v6625 = vmul.f32 %v6501, 1.442695
  %v6626 = vpow.pop %v6625
  %v6627 = vmul.f32 %v6502, 1.442695
  %v6628 = vpow.pop %v6627
  %v6629 = vmul.f32 %v6503, 1.442695
  %v6630 = vpow.pop %v6629
  %v6631 = vmul.f32 %v6504, 1.442695
  %v6632 = vpow.pop %v6631
  %6633 = vadd.xlane.f32.xlu0 %v6506
  %v6634 = vpop.xlane.xlu0 %6633
  %6635 = vadd.xlane.f32.xlu0 %v6508
  %v6636 = vpop.xlane.xlu0 %6635
  %6637 = vadd.xlane.f32.xlu0 %v6510
  %v6638 = vpop.xlane.xlu0 %6637
  %6639 = vadd.xlane.f32.xlu0 %v6512
  %v6640 = vpop.xlane.xlu0 %6639
  %6641 = vadd.xlane.f32.xlu0 %v6514
  %v6642 = vpop.xlane.xlu0 %6641
  %6643 = vadd.xlane.f32.xlu0 %v6516
  %v6644 = vpop.xlane.xlu0 %6643
  %6645 = vadd.xlane.f32.xlu0 %v6518
  %v6646 = vpop.xlane.xlu0 %6645
  %6647 = vadd.xlane.f32.xlu0 %v6520
  %v6648 = vpop.xlane.xlu0 %6647
  %6649 = vadd.xlane.f32.xlu0 %v6522
  %v6650 = vpop.xlane.xlu0 %6649
  %6651 = vadd.xlane.f32.xlu0 %v6524
  %v6652 = vpop.xlane.xlu0 %6651
  %6653 = vadd.xlane.f32.xlu0 %v6526
  %v6654 = vpop.xlane.xlu0 %6653
  %6655 = vadd.xlane.f32.xlu0 %v6528
  %v6656 = vpop.xlane.xlu0 %6655
  %6657 = vadd.xlane.f32.xlu0 %v6530
  %v6658 = vpop.xlane.xlu0 %6657
  %6659 = vadd.xlane.f32.xlu0 %v6532
  %v6660 = vpop.xlane.xlu0 %6659
  %6661 = vadd.xlane.f32.xlu0 %v6534
  %v6662 = vpop.xlane.xlu0 %6661
  %6663 = vadd.xlane.f32.xlu0 %v6536
  %v6664 = vpop.xlane.xlu0 %6663
  %6665 = vadd.xlane.f32.xlu0 %v6538
  %v6666 = vpop.xlane.xlu0 %6665
  %6667 = vadd.xlane.f32.xlu0 %v6540
  %v6668 = vpop.xlane.xlu0 %6667
  %6669 = vadd.xlane.f32.xlu0 %v6542
  %v6670 = vpop.xlane.xlu0 %6669
  %6671 = vadd.xlane.f32.xlu0 %v6544
  %v6672 = vpop.xlane.xlu0 %6671
  %6673 = vadd.xlane.f32.xlu0 %v6546
  %v6674 = vpop.xlane.xlu0 %6673
  %6675 = vadd.xlane.f32.xlu0 %v6548
  %v6676 = vpop.xlane.xlu0 %6675
  %6677 = vadd.xlane.f32.xlu0 %v6550
  %v6678 = vpop.xlane.xlu0 %6677
  %6679 = vadd.xlane.f32.xlu0 %v6552
  %v6680 = vpop.xlane.xlu0 %6679
  %6681 = vadd.xlane.f32.xlu0 %v6554
  %v6682 = vpop.xlane.xlu0 %6681
  %6683 = vadd.xlane.f32.xlu0 %v6556
  %v6684 = vpop.xlane.xlu0 %6683
  %6685 = vadd.xlane.f32.xlu0 %v6558
  %v6686 = vpop.xlane.xlu0 %6685
  %6687 = vadd.xlane.f32.xlu0 %v6560
  %v6688 = vpop.xlane.xlu0 %6687
  %6689 = vadd.xlane.f32.xlu0 %v6562
  %v6690 = vpop.xlane.xlu0 %6689
  %6691 = vadd.xlane.f32.xlu0 %v6564
  %v6692 = vpop.xlane.xlu0 %6691
  %6693 = vadd.xlane.f32.xlu0 %v6566
  %v6694 = vpop.xlane.xlu0 %6693
  %6695 = vadd.xlane.f32.xlu0 %v6568
  %v6696 = vpop.xlane.xlu0 %6695
  %6697 = vadd.xlane.f32.xlu0 %v6570
  %v6698 = vpop.xlane.xlu0 %6697
  %6699 = vadd.xlane.f32.xlu0 %v6572
  %v6700 = vpop.xlane.xlu0 %6699
  %6701 = vadd.xlane.f32.xlu0 %v6574
  %v6702 = vpop.xlane.xlu0 %6701
  %6703 = vadd.xlane.f32.xlu0 %v6576
  %v6704 = vpop.xlane.xlu0 %6703
  %6705 = vadd.xlane.f32.xlu0 %v6578
  %v6706 = vpop.xlane.xlu0 %6705
  %6707 = vadd.xlane.f32.xlu0 %v6580
  %v6708 = vpop.xlane.xlu0 %6707
  %6709 = vadd.xlane.f32.xlu0 %v6582
  %v6710 = vpop.xlane.xlu0 %6709
  %6711 = vadd.xlane.f32.xlu0 %v6584
  %v6712 = vpop.xlane.xlu0 %6711
  %6713 = vadd.xlane.f32.xlu0 %v6586
  %v6714 = vpop.xlane.xlu0 %6713
  %6715 = vadd.xlane.f32.xlu0 %v6588
  %v6716 = vpop.xlane.xlu0 %6715
  %6717 = vadd.xlane.f32.xlu0 %v6590
  %v6718 = vpop.xlane.xlu0 %6717
  %6719 = vadd.xlane.f32.xlu0 %v6592
  %v6720 = vpop.xlane.xlu0 %6719
  %6721 = vadd.xlane.f32.xlu0 %v6594
  %v6722 = vpop.xlane.xlu0 %6721
  %6723 = vadd.xlane.f32.xlu0 %v6596
  %v6724 = vpop.xlane.xlu0 %6723
  %6725 = vadd.xlane.f32.xlu0 %v6598
  %v6726 = vpop.xlane.xlu0 %6725
  %6727 = vadd.xlane.f32.xlu0 %v6600
  %v6728 = vpop.xlane.xlu0 %6727
  %6729 = vadd.xlane.f32.xlu0 %v6602
  %v6730 = vpop.xlane.xlu0 %6729
  %6731 = vadd.xlane.f32.xlu0 %v6604
  %v6732 = vpop.xlane.xlu0 %6731
  %6733 = vadd.xlane.f32.xlu0 %v6606
  %v6734 = vpop.xlane.xlu0 %6733
  %6735 = vadd.xlane.f32.xlu0 %v6608
  %v6736 = vpop.xlane.xlu0 %6735
  %6737 = vadd.xlane.f32.xlu0 %v6610
  %v6738 = vpop.xlane.xlu0 %6737
  %6739 = vadd.xlane.f32.xlu0 %v6612
  %v6740 = vpop.xlane.xlu0 %6739
  %6741 = vadd.xlane.f32.xlu0 %v6614
  %v6742 = vpop.xlane.xlu0 %6741
  %6743 = vadd.xlane.f32.xlu0 %v6616
  %v6744 = vpop.xlane.xlu0 %6743
  %6745 = vadd.xlane.f32.xlu0 %v6618
  %v6746 = vpop.xlane.xlu0 %6745
  %6747 = vadd.xlane.f32.xlu0 %v6620
  %v6748 = vpop.xlane.xlu0 %6747
  %6749 = vadd.xlane.f32.xlu0 %v6622
  %v6750 = vpop.xlane.xlu0 %6749
  %6751 = vadd.xlane.f32.xlu0 %v6624
  %v6752 = vpop.xlane.xlu0 %6751
  %6753 = vadd.xlane.f32.xlu0 %v6626
  %v6754 = vpop.xlane.xlu0 %6753
  %6755 = vadd.xlane.f32.xlu0 %v6628
  %v6756 = vpop.xlane.xlu0 %6755
  %6757 = vadd.xlane.f32.xlu0 %v6630
  %v6758 = vpop.xlane.xlu0 %6757
  %6759 = vadd.xlane.f32.xlu0 %v6632
  %v6760 = vpop.xlane.xlu0 %6759
  %6761 = vrot.lane.b32.xlu0 %v19, 48
  %v6762 = vpop.permute.xlu0 %6761
  %6763 = vrot.lane.b32.xlu0 %v20, 48
  %v6764 = vpop.permute.xlu0 %6763
  %6765 = vrot.lane.b32.xlu0 %v21, 48
  %v6766 = vpop.permute.xlu0 %6765
  %6767 = vrot.lane.b32.xlu0 %v22, 48
  %v6768 = vpop.permute.xlu0 %6767
  %6769 = vrot.lane.b32.xlu0 %v23, 48
  %v6770 = vpop.permute.xlu0 %6769
  %6771 = vrot.lane.b32.xlu0 %v24, 48
  %v6772 = vpop.permute.xlu0 %6771
  %6773 = vrot.lane.b32.xlu0 %v25, 48
  %v6774 = vpop.permute.xlu0 %6773
  %6775 = vrot.lane.b32.xlu0 %v26, 48
  %v6776 = vpop.permute.xlu0 %6775
  %6777 = vrot.lane.b32.xlu0 %v27, 48
  %v6778 = vpop.permute.xlu0 %6777
  %6779 = vrot.lane.b32.xlu0 %v28, 48
  %v6780 = vpop.permute.xlu0 %6779
  %6781 = vrot.lane.b32.xlu0 %v29, 48
  %v6782 = vpop.permute.xlu0 %6781
  %6783 = vrot.lane.b32.xlu0 %v30, 48
  %v6784 = vpop.permute.xlu0 %6783
  %6785 = vrot.lane.b32.xlu0 %v31, 48
  %v6786 = vpop.permute.xlu0 %6785
  %6787 = vrot.lane.b32.xlu0 %v32, 48
  %v6788 = vpop.permute.xlu0 %6787
  %6789 = vrot.lane.b32.xlu0 %v33, 48
  %v6790 = vpop.permute.xlu0 %6789
  %6791 = vrot.lane.b32.xlu0 %v34, 48
  %v6792 = vpop.permute.xlu0 %6791
  %6809 = vmatpush.msra.mxu0 %v6792
  %6810 = vmatpush.msra.mxu0 %v6790
  %6811 = vmatpush.msra.mxu0 %v6788
  %6812 = vmatpush.msra.mxu0 %v6786
  %6813 = vmatpush.msra.mxu0 %v6784
  %6814 = vmatpush.msra.mxu0 %v6782
  %6815 = vmatpush.msra.mxu0 %v6780
  %6816 = vmatpush.msra.mxu0 %v6778
  %6817 = vmatpush.msra.mxu0 %v6776
  %6818 = vmatpush.msra.mxu0 %v6774
  %6819 = vmatpush.msra.mxu0 %v6772
  %6820 = vmatpush.msra.mxu0 %v6770
  %6821 = vmatpush.msra.mxu0 %v6768
  %6822 = vmatpush.msra.mxu0 %v6766
  %6823 = vmatpush.msra.mxu0 %v6764
  %6824 = vmatpush.msra.mxu0 %v6762
  %6825 = vmatmul.f32.gmra.mxu0 %v6506
  %v6826 = vpop.f32.mrf.mxu0
  %v6827 = vadd.f32 0.0, %v6826
  %6828 = vmatmul.f32.gmra.mxu0 %v6508
  %v6829 = vpop.f32.mrf.mxu0
  %v6830 = vadd.f32 0.0, %v6829
  %6831 = vmatmul.f32.gmra.mxu0 %v6510
  %v6832 = vpop.f32.mrf.mxu0
  %v6833 = vadd.f32 0.0, %v6832
  %6834 = vmatmul.f32.gmra.mxu0 %v6512
  %v6835 = vpop.f32.mrf.mxu0
  %v6836 = vadd.f32 0.0, %v6835
  %6837 = vmatmul.f32.gmra.mxu0 %v6514
  %v6838 = vpop.f32.mrf.mxu0
  %v6839 = vadd.f32 0.0, %v6838
  %6840 = vmatmul.f32.gmra.mxu0 %v6516
  %v6841 = vpop.f32.mrf.mxu0
  %v6842 = vadd.f32 0.0, %v6841
  %6843 = vmatmul.f32.gmra.mxu0 %v6518
  %v6844 = vpop.f32.mrf.mxu0
  %v6845 = vadd.f32 0.0, %v6844
  %6846 = vmatmul.f32.gmra.mxu0 %v6520
  %v6847 = vpop.f32.mrf.mxu0
  %v6848 = vadd.f32 0.0, %v6847
  %6849 = vmatmul.f32.gmra.mxu0 %v6522
  %v6850 = vpop.f32.mrf.mxu0
  %v6851 = vadd.f32 0.0, %v6850
  %6852 = vmatmul.f32.gmra.mxu0 %v6524
  %v6853 = vpop.f32.mrf.mxu0
  %v6854 = vadd.f32 0.0, %v6853
  %6855 = vmatmul.f32.gmra.mxu0 %v6526
  %v6856 = vpop.f32.mrf.mxu0
  %v6857 = vadd.f32 0.0, %v6856
  %6858 = vmatmul.f32.gmra.mxu0 %v6528
  %v6859 = vpop.f32.mrf.mxu0
  %v6860 = vadd.f32 0.0, %v6859
  %6861 = vmatmul.f32.gmra.mxu0 %v6530
  %v6862 = vpop.f32.mrf.mxu0
  %v6863 = vadd.f32 0.0, %v6862
  %6864 = vmatmul.f32.gmra.mxu0 %v6532
  %v6865 = vpop.f32.mrf.mxu0
  %v6866 = vadd.f32 0.0, %v6865
  %6867 = vmatmul.f32.gmra.mxu0 %v6534
  %v6868 = vpop.f32.mrf.mxu0
  %v6869 = vadd.f32 0.0, %v6868
  %6870 = vmatmul.f32.gmra.mxu0 %v6536
  %v6871 = vpop.f32.mrf.mxu0
  %v6872 = vadd.f32 0.0, %v6871
  %6873 = vdwg.mxu0
  %6874 = vrot.lane.b32.xlu0 %v35, 48
  %v6875 = vpop.permute.xlu0 %6874
  %6876 = vrot.lane.b32.xlu0 %v36, 48
  %v6877 = vpop.permute.xlu0 %6876
  %6878 = vrot.lane.b32.xlu0 %v37, 48
  %v6879 = vpop.permute.xlu0 %6878
  %6880 = vrot.lane.b32.xlu0 %v38, 48
  %v6881 = vpop.permute.xlu0 %6880
  %6882 = vrot.lane.b32.xlu0 %v39, 48
  %v6883 = vpop.permute.xlu0 %6882
  %6884 = vrot.lane.b32.xlu0 %v40, 48
  %v6885 = vpop.permute.xlu0 %6884
  %6886 = vrot.lane.b32.xlu0 %v41, 48
  %v6887 = vpop.permute.xlu0 %6886
  %6888 = vrot.lane.b32.xlu0 %v42, 48
  %v6889 = vpop.permute.xlu0 %6888
  %6890 = vrot.lane.b32.xlu0 %v43, 48
  %v6891 = vpop.permute.xlu0 %6890
  %6892 = vrot.lane.b32.xlu0 %v44, 48
  %v6893 = vpop.permute.xlu0 %6892
  %6894 = vrot.lane.b32.xlu0 %v45, 48
  %v6895 = vpop.permute.xlu0 %6894
  %6896 = vrot.lane.b32.xlu0 %v46, 48
  %v6897 = vpop.permute.xlu0 %6896
  %6898 = vrot.lane.b32.xlu0 %v47, 48
  %v6899 = vpop.permute.xlu0 %6898
  %6900 = vrot.lane.b32.xlu0 %v48, 48
  %v6901 = vpop.permute.xlu0 %6900
  %6902 = vrot.lane.b32.xlu0 %v49, 48
  %v6903 = vpop.permute.xlu0 %6902
  %6904 = vrot.lane.b32.xlu0 %v50, 48
  %v6905 = vpop.permute.xlu0 %6904
  %6922 = vmatpush.msra.mxu0 %v6905
  %6923 = vmatpush.msra.mxu0 %v6903
  %6924 = vmatpush.msra.mxu0 %v6901
  %6925 = vmatpush.msra.mxu0 %v6899
  %6926 = vmatpush.msra.mxu0 %v6897
  %6927 = vmatpush.msra.mxu0 %v6895
  %6928 = vmatpush.msra.mxu0 %v6893
  %6929 = vmatpush.msra.mxu0 %v6891
  %6930 = vmatpush.msra.mxu0 %v6889
  %6931 = vmatpush.msra.mxu0 %v6887
  %6932 = vmatpush.msra.mxu0 %v6885
  %6933 = vmatpush.msra.mxu0 %v6883
  %6934 = vmatpush.msra.mxu0 %v6881
  %6935 = vmatpush.msra.mxu0 %v6879
  %6936 = vmatpush.msra.mxu0 %v6877
  %6937 = vmatpush.msra.mxu0 %v6875
  %6938 = vmatmul.f32.gmra.mxu0 %v6538
  %v6939 = vpop.f32.mrf.mxu0
  %v6940 = vadd.f32 0.0, %v6939
  %6941 = vmatmul.f32.gmra.mxu0 %v6540
  %v6942 = vpop.f32.mrf.mxu0
  %v6943 = vadd.f32 0.0, %v6942
  %6944 = vmatmul.f32.gmra.mxu0 %v6542
  %v6945 = vpop.f32.mrf.mxu0
  %v6946 = vadd.f32 0.0, %v6945
  %6947 = vmatmul.f32.gmra.mxu0 %v6544
  %v6948 = vpop.f32.mrf.mxu0
  %v6949 = vadd.f32 0.0, %v6948
  %6950 = vmatmul.f32.gmra.mxu0 %v6546
  %v6951 = vpop.f32.mrf.mxu0
  %v6952 = vadd.f32 0.0, %v6951
  %6953 = vmatmul.f32.gmra.mxu0 %v6548
  %v6954 = vpop.f32.mrf.mxu0
  %v6955 = vadd.f32 0.0, %v6954
  %6956 = vmatmul.f32.gmra.mxu0 %v6550
  %v6957 = vpop.f32.mrf.mxu0
  %v6958 = vadd.f32 0.0, %v6957
  %6959 = vmatmul.f32.gmra.mxu0 %v6552
  %v6960 = vpop.f32.mrf.mxu0
  %v6961 = vadd.f32 0.0, %v6960
  %6962 = vmatmul.f32.gmra.mxu0 %v6554
  %v6963 = vpop.f32.mrf.mxu0
  %v6964 = vadd.f32 0.0, %v6963
  %6965 = vmatmul.f32.gmra.mxu0 %v6556
  %v6966 = vpop.f32.mrf.mxu0
  %v6967 = vadd.f32 0.0, %v6966
  %6968 = vmatmul.f32.gmra.mxu0 %v6558
  %v6969 = vpop.f32.mrf.mxu0
  %v6970 = vadd.f32 0.0, %v6969
  %6971 = vmatmul.f32.gmra.mxu0 %v6560
  %v6972 = vpop.f32.mrf.mxu0
  %v6973 = vadd.f32 0.0, %v6972
  %6974 = vmatmul.f32.gmra.mxu0 %v6562
  %v6975 = vpop.f32.mrf.mxu0
  %v6976 = vadd.f32 0.0, %v6975
  %6977 = vmatmul.f32.gmra.mxu0 %v6564
  %v6978 = vpop.f32.mrf.mxu0
  %v6979 = vadd.f32 0.0, %v6978
  %6980 = vmatmul.f32.gmra.mxu0 %v6566
  %v6981 = vpop.f32.mrf.mxu0
  %v6982 = vadd.f32 0.0, %v6981
  %6983 = vmatmul.f32.gmra.mxu0 %v6568
  %v6984 = vpop.f32.mrf.mxu0
  %v6985 = vadd.f32 0.0, %v6984
  %6986 = vdwg.mxu0
  %6987 = vrot.lane.b32.xlu0 %v51, 48
  %v6988 = vpop.permute.xlu0 %6987
  %6989 = vrot.lane.b32.xlu0 %v52, 48
  %v6990 = vpop.permute.xlu0 %6989
  %6991 = vrot.lane.b32.xlu0 %v53, 48
  %v6992 = vpop.permute.xlu0 %6991
  %6993 = vrot.lane.b32.xlu0 %v54, 48
  %v6994 = vpop.permute.xlu0 %6993
  %6995 = vrot.lane.b32.xlu0 %v55, 48
  %v6996 = vpop.permute.xlu0 %6995
  %6997 = vrot.lane.b32.xlu0 %v56, 48
  %v6998 = vpop.permute.xlu0 %6997
  %6999 = vrot.lane.b32.xlu0 %v57, 48
  %v7000 = vpop.permute.xlu0 %6999
  %7001 = vrot.lane.b32.xlu0 %v58, 48
  %v7002 = vpop.permute.xlu0 %7001
  %7003 = vrot.lane.b32.xlu0 %v59, 48
  %v7004 = vpop.permute.xlu0 %7003
  %7005 = vrot.lane.b32.xlu0 %v60, 48
  %v7006 = vpop.permute.xlu0 %7005
  %7007 = vrot.lane.b32.xlu0 %v61, 48
  %v7008 = vpop.permute.xlu0 %7007
  %7009 = vrot.lane.b32.xlu0 %v62, 48
  %v7010 = vpop.permute.xlu0 %7009
  %7011 = vrot.lane.b32.xlu0 %v63, 48
  %v7012 = vpop.permute.xlu0 %7011
  %7013 = vrot.lane.b32.xlu0 %v64, 48
  %v7014 = vpop.permute.xlu0 %7013
  %7015 = vrot.lane.b32.xlu0 %v65, 48
  %v7016 = vpop.permute.xlu0 %7015
  %7017 = vrot.lane.b32.xlu0 %v66, 48
  %v7018 = vpop.permute.xlu0 %7017
  %7035 = vmatpush.msra.mxu0 %v7018
  %7036 = vmatpush.msra.mxu0 %v7016
  %7037 = vmatpush.msra.mxu0 %v7014
  %7038 = vmatpush.msra.mxu0 %v7012
  %7039 = vmatpush.msra.mxu0 %v7010
  %7040 = vmatpush.msra.mxu0 %v7008
  %7041 = vmatpush.msra.mxu0 %v7006
  %7042 = vmatpush.msra.mxu0 %v7004
  %7043 = vmatpush.msra.mxu0 %v7002
  %7044 = vmatpush.msra.mxu0 %v7000
  %7045 = vmatpush.msra.mxu0 %v6998
  %7046 = vmatpush.msra.mxu0 %v6996
  %7047 = vmatpush.msra.mxu0 %v6994
  %7048 = vmatpush.msra.mxu0 %v6992
  %7049 = vmatpush.msra.mxu0 %v6990
  %7050 = vmatpush.msra.mxu0 %v6988
  %7051 = vmatmul.f32.gmra.mxu0 %v6570
  %v7052 = vpop.f32.mrf.mxu0
  %v7053 = vadd.f32 0.0, %v7052
  %7054 = vmatmul.f32.gmra.mxu0 %v6572
  %v7055 = vpop.f32.mrf.mxu0
  %v7056 = vadd.f32 0.0, %v7055
  %7057 = vmatmul.f32.gmra.mxu0 %v6574
  %v7058 = vpop.f32.mrf.mxu0
  %v7059 = vadd.f32 0.0, %v7058
  %7060 = vmatmul.f32.gmra.mxu0 %v6576
  %v7061 = vpop.f32.mrf.mxu0
  %v7062 = vadd.f32 0.0, %v7061
  %7063 = vmatmul.f32.gmra.mxu0 %v6578
  %v7064 = vpop.f32.mrf.mxu0
  %v7065 = vadd.f32 0.0, %v7064
  %7066 = vmatmul.f32.gmra.mxu0 %v6580
  %v7067 = vpop.f32.mrf.mxu0
  %v7068 = vadd.f32 0.0, %v7067
  %7069 = vmatmul.f32.gmra.mxu0 %v6582
  %v7070 = vpop.f32.mrf.mxu0
  %v7071 = vadd.f32 0.0, %v7070
  %7072 = vmatmul.f32.gmra.mxu0 %v6584
  %v7073 = vpop.f32.mrf.mxu0
  %v7074 = vadd.f32 0.0, %v7073
  %7075 = vmatmul.f32.gmra.mxu0 %v6586
  %v7076 = vpop.f32.mrf.mxu0
  %v7077 = vadd.f32 0.0, %v7076
  %7078 = vmatmul.f32.gmra.mxu0 %v6588
  %v7079 = vpop.f32.mrf.mxu0
  %v7080 = vadd.f32 0.0, %v7079
  %7081 = vmatmul.f32.gmra.mxu0 %v6590
  %v7082 = vpop.f32.mrf.mxu0
  %v7083 = vadd.f32 0.0, %v7082
  %7084 = vmatmul.f32.gmra.mxu0 %v6592
  %v7085 = vpop.f32.mrf.mxu0
  %v7086 = vadd.f32 0.0, %v7085
  %7087 = vmatmul.f32.gmra.mxu0 %v6594
  %v7088 = vpop.f32.mrf.mxu0
  %v7089 = vadd.f32 0.0, %v7088
  %7090 = vmatmul.f32.gmra.mxu0 %v6596
  %v7091 = vpop.f32.mrf.mxu0
  %v7092 = vadd.f32 0.0, %v7091
  %7093 = vmatmul.f32.gmra.mxu0 %v6598
  %v7094 = vpop.f32.mrf.mxu0
  %v7095 = vadd.f32 0.0, %v7094
  %7096 = vmatmul.f32.gmra.mxu0 %v6600
  %v7097 = vpop.f32.mrf.mxu0
  %v7098 = vadd.f32 0.0, %v7097
  %7099 = vdwg.mxu0
  %7100 = vrot.lane.b32.xlu0 %v67, 48
  %v7101 = vpop.permute.xlu0 %7100
  %7102 = vrot.lane.b32.xlu0 %v68, 48
  %v7103 = vpop.permute.xlu0 %7102
  %7104 = vrot.lane.b32.xlu0 %v69, 48
  %v7105 = vpop.permute.xlu0 %7104
  %7106 = vrot.lane.b32.xlu0 %v70, 48
  %v7107 = vpop.permute.xlu0 %7106
  %7108 = vrot.lane.b32.xlu0 %v71, 48
  %v7109 = vpop.permute.xlu0 %7108
  %7110 = vrot.lane.b32.xlu0 %v72, 48
  %v7111 = vpop.permute.xlu0 %7110
  %7112 = vrot.lane.b32.xlu0 %v73, 48
  %v7113 = vpop.permute.xlu0 %7112
  %7114 = vrot.lane.b32.xlu0 %v74, 48
  %v7115 = vpop.permute.xlu0 %7114
  %7116 = vrot.lane.b32.xlu0 %v75, 48
  %v7117 = vpop.permute.xlu0 %7116
  %7118 = vrot.lane.b32.xlu0 %v76, 48
  %v7119 = vpop.permute.xlu0 %7118
  %7120 = vrot.lane.b32.xlu0 %v77, 48
  %v7121 = vpop.permute.xlu0 %7120
  %7122 = vrot.lane.b32.xlu0 %v78, 48
  %v7123 = vpop.permute.xlu0 %7122
  %7124 = vrot.lane.b32.xlu0 %v79, 48
  %v7125 = vpop.permute.xlu0 %7124
  %7126 = vrot.lane.b32.xlu0 %v80, 48
  %v7127 = vpop.permute.xlu0 %7126
  %7128 = vrot.lane.b32.xlu0 %v81, 48
  %v7129 = vpop.permute.xlu0 %7128
  %7130 = vrot.lane.b32.xlu0 %v82, 48
  %v7131 = vpop.permute.xlu0 %7130
  %7148 = vmatpush.msra.mxu0 %v7131
  %7149 = vmatpush.msra.mxu0 %v7129
  %7150 = vmatpush.msra.mxu0 %v7127
  %7151 = vmatpush.msra.mxu0 %v7125
  %7152 = vmatpush.msra.mxu0 %v7123
  %7153 = vmatpush.msra.mxu0 %v7121
  %7154 = vmatpush.msra.mxu0 %v7119
  %7155 = vmatpush.msra.mxu0 %v7117
  %7156 = vmatpush.msra.mxu0 %v7115
  %7157 = vmatpush.msra.mxu0 %v7113
  %7158 = vmatpush.msra.mxu0 %v7111
  %7159 = vmatpush.msra.mxu0 %v7109
  %7160 = vmatpush.msra.mxu0 %v7107
  %7161 = vmatpush.msra.mxu0 %v7105
  %7162 = vmatpush.msra.mxu0 %v7103
  %7163 = vmatpush.msra.mxu0 %v7101
  %7164 = vmatmul.f32.gmra.mxu0 %v6602
  %v7165 = vpop.f32.mrf.mxu0
  %v7166 = vadd.f32 0.0, %v7165
  %7167 = vmatmul.f32.gmra.mxu0 %v6604
  %v7168 = vpop.f32.mrf.mxu0
  %v7169 = vadd.f32 0.0, %v7168
  %7170 = vmatmul.f32.gmra.mxu0 %v6606
  %v7171 = vpop.f32.mrf.mxu0
  %v7172 = vadd.f32 0.0, %v7171
  %7173 = vmatmul.f32.gmra.mxu0 %v6608
  %v7174 = vpop.f32.mrf.mxu0
  %v7175 = vadd.f32 0.0, %v7174
  %7176 = vmatmul.f32.gmra.mxu0 %v6610
  %v7177 = vpop.f32.mrf.mxu0
  %v7178 = vadd.f32 0.0, %v7177
  %7179 = vmatmul.f32.gmra.mxu0 %v6612
  %v7180 = vpop.f32.mrf.mxu0
  %v7181 = vadd.f32 0.0, %v7180
  %7182 = vmatmul.f32.gmra.mxu0 %v6614
  %v7183 = vpop.f32.mrf.mxu0
  %v7184 = vadd.f32 0.0, %v7183
  %7185 = vmatmul.f32.gmra.mxu0 %v6616
  %v7186 = vpop.f32.mrf.mxu0
  %v7187 = vadd.f32 0.0, %v7186
  %7188 = vmatmul.f32.gmra.mxu0 %v6618
  %v7189 = vpop.f32.mrf.mxu0
  %v7190 = vadd.f32 0.0, %v7189
  %7191 = vmatmul.f32.gmra.mxu0 %v6620
  %v7192 = vpop.f32.mrf.mxu0
  %v7193 = vadd.f32 0.0, %v7192
  %7194 = vmatmul.f32.gmra.mxu0 %v6622
  %v7195 = vpop.f32.mrf.mxu0
  %v7196 = vadd.f32 0.0, %v7195
  %7197 = vmatmul.f32.gmra.mxu0 %v6624
  %v7198 = vpop.f32.mrf.mxu0
  %v7199 = vadd.f32 0.0, %v7198
  %7200 = vmatmul.f32.gmra.mxu0 %v6626
  %v7201 = vpop.f32.mrf.mxu0
  %v7202 = vadd.f32 0.0, %v7201
  %7203 = vmatmul.f32.gmra.mxu0 %v6628
  %v7204 = vpop.f32.mrf.mxu0
  %v7205 = vadd.f32 0.0, %v7204
  %7206 = vmatmul.f32.gmra.mxu0 %v6630
  %v7207 = vpop.f32.mrf.mxu0
  %v7208 = vadd.f32 0.0, %v7207
  %7209 = vmatmul.f32.gmra.mxu0 %v6632
  %v7210 = vpop.f32.mrf.mxu0
  %v7211 = vadd.f32 0.0, %v7210
  %7212 = vdwg.mxu0
  %v7213 = vrcp.pop %v6634
  %v7214 = vmul.f32 %v6634, %v7213
  %v7215 = vsub.f32 1.0, %v7214
  %v7216 = vmul.f32 %v7213, %v7215
  %v7217 = vadd.f32 %v7213, %v7216
  %vm7218 = vweird.f32 %v6634
  %vm7219 = vweird.f32 %v7213
  %vm7220 = vmor %vm7218, %vm7219
  %v7221 = vsel %vm7220, %v7213, %v7217
  %v7222 = vand.u32 2147483647, %v6634
  %vm7223 = vcmp.eq.f32.partialorder %v7222, 8.507059e+37
  %v7224 = vand.u32 %v6634, 2147483648
  %v7225 = vor.u32 1.1754944e-38, %v7224
  %v7226 = vsel %vm7223, %v7225, %v7221
  %v7227 = vmul.f32 1.0, %v7226
  %v7228 = vrcp.pop %v6636
  %v7229 = vmul.f32 %v6636, %v7228
  %v7230 = vsub.f32 1.0, %v7229
  %v7231 = vmul.f32 %v7228, %v7230
  %v7232 = vadd.f32 %v7228, %v7231
  %vm7233 = vweird.f32 %v6636
  %vm7234 = vweird.f32 %v7228
  %vm7235 = vmor %vm7233, %vm7234
  %v7236 = vsel %vm7235, %v7228, %v7232
  %v7237 = vand.u32 2147483647, %v6636
  %vm7238 = vcmp.eq.f32.partialorder %v7237, 8.507059e+37
  %v7239 = vand.u32 %v6636, 2147483648
  %v7240 = vor.u32 1.1754944e-38, %v7239
  %v7241 = vsel %vm7238, %v7240, %v7236
  %v7242 = vmul.f32 1.0, %v7241
  %v7243 = vrcp.pop %v6638
  %v7244 = vmul.f32 %v6638, %v7243
  %v7245 = vsub.f32 1.0, %v7244
  %v7246 = vmul.f32 %v7243, %v7245
  %v7247 = vadd.f32 %v7243, %v7246
  %vm7248 = vweird.f32 %v6638
  %vm7249 = vweird.f32 %v7243
  %vm7250 = vmor %vm7248, %vm7249
  %v7251 = vsel %vm7250, %v7243, %v7247
  %v7252 = vand.u32 2147483647, %v6638
  %vm7253 = vcmp.eq.f32.partialorder %v7252, 8.507059e+37
  %v7254 = vand.u32 %v6638, 2147483648
  %v7255 = vor.u32 1.1754944e-38, %v7254
  %v7256 = vsel %vm7253, %v7255, %v7251
  %v7257 = vmul.f32 1.0, %v7256
  %v7258 = vrcp.pop %v6640
  %v7259 = vmul.f32 %v6640, %v7258
  %v7260 = vsub.f32 1.0, %v7259
  %v7261 = vmul.f32 %v7258, %v7260
  %v7262 = vadd.f32 %v7258, %v7261
  %vm7263 = vweird.f32 %v6640
  %vm7264 = vweird.f32 %v7258
  %vm7265 = vmor %vm7263, %vm7264
  %v7266 = vsel %vm7265, %v7258, %v7262
  %v7267 = vand.u32 2147483647, %v6640
  %vm7268 = vcmp.eq.f32.partialorder %v7267, 8.507059e+37
  %v7269 = vand.u32 %v6640, 2147483648
  %v7270 = vor.u32 1.1754944e-38, %v7269
  %v7271 = vsel %vm7268, %v7270, %v7266
  %v7272 = vmul.f32 1.0, %v7271
  %v7273 = vrcp.pop %v6642
  %v7274 = vmul.f32 %v6642, %v7273
  %v7275 = vsub.f32 1.0, %v7274
  %v7276 = vmul.f32 %v7273, %v7275
  %v7277 = vadd.f32 %v7273, %v7276
  %vm7278 = vweird.f32 %v6642
  %vm7279 = vweird.f32 %v7273
  %vm7280 = vmor %vm7278, %vm7279
  %v7281 = vsel %vm7280, %v7273, %v7277
  %v7282 = vand.u32 2147483647, %v6642
  %vm7283 = vcmp.eq.f32.partialorder %v7282, 8.507059e+37
  %v7284 = vand.u32 %v6642, 2147483648
  %v7285 = vor.u32 1.1754944e-38, %v7284
  %v7286 = vsel %vm7283, %v7285, %v7281
  %v7287 = vmul.f32 1.0, %v7286
  %v7288 = vrcp.pop %v6644
  %v7289 = vmul.f32 %v6644, %v7288
  %v7290 = vsub.f32 1.0, %v7289
  %v7291 = vmul.f32 %v7288, %v7290
  %v7292 = vadd.f32 %v7288, %v7291
  %vm7293 = vweird.f32 %v6644
  %vm7294 = vweird.f32 %v7288
  %vm7295 = vmor %vm7293, %vm7294
  %v7296 = vsel %vm7295, %v7288, %v7292
  %v7297 = vand.u32 2147483647, %v6644
  %vm7298 = vcmp.eq.f32.partialorder %v7297, 8.507059e+37
  %v7299 = vand.u32 %v6644, 2147483648
  %v7300 = vor.u32 1.1754944e-38, %v7299
  %v7301 = vsel %vm7298, %v7300, %v7296
  %v7302 = vmul.f32 1.0, %v7301
  %v7303 = vrcp.pop %v6646
  %v7304 = vmul.f32 %v6646, %v7303
  %v7305 = vsub.f32 1.0, %v7304
  %v7306 = vmul.f32 %v7303, %v7305
  %v7307 = vadd.f32 %v7303, %v7306
  %vm7308 = vweird.f32 %v6646
  %vm7309 = vweird.f32 %v7303
  %vm7310 = vmor %vm7308, %vm7309
  %v7311 = vsel %vm7310, %v7303, %v7307
  %v7312 = vand.u32 2147483647, %v6646
  %vm7313 = vcmp.eq.f32.partialorder %v7312, 8.507059e+37
  %v7314 = vand.u32 %v6646, 2147483648
  %v7315 = vor.u32 1.1754944e-38, %v7314
  %v7316 = vsel %vm7313, %v7315, %v7311
  %v7317 = vmul.f32 1.0, %v7316
  %v7318 = vrcp.pop %v6648
  %v7319 = vmul.f32 %v6648, %v7318
  %v7320 = vsub.f32 1.0, %v7319
  %v7321 = vmul.f32 %v7318, %v7320
  %v7322 = vadd.f32 %v7318, %v7321
  %vm7323 = vweird.f32 %v6648
  %vm7324 = vweird.f32 %v7318
  %vm7325 = vmor %vm7323, %vm7324
  %v7326 = vsel %vm7325, %v7318, %v7322
  %v7327 = vand.u32 2147483647, %v6648
  %vm7328 = vcmp.eq.f32.partialorder %v7327, 8.507059e+37
  %v7329 = vand.u32 %v6648, 2147483648
  %v7330 = vor.u32 1.1754944e-38, %v7329
  %v7331 = vsel %vm7328, %v7330, %v7326
  %v7332 = vmul.f32 1.0, %v7331
  %v7333 = vrcp.pop %v6650
  %v7334 = vmul.f32 %v6650, %v7333
  %v7335 = vsub.f32 1.0, %v7334
  %v7336 = vmul.f32 %v7333, %v7335
  %v7337 = vadd.f32 %v7333, %v7336
  %vm7338 = vweird.f32 %v6650
  %vm7339 = vweird.f32 %v7333
  %vm7340 = vmor %vm7338, %vm7339
  %v7341 = vsel %vm7340, %v7333, %v7337
  %v7342 = vand.u32 2147483647, %v6650
  %vm7343 = vcmp.eq.f32.partialorder %v7342, 8.507059e+37
  %v7344 = vand.u32 %v6650, 2147483648
  %v7345 = vor.u32 1.1754944e-38, %v7344
  %v7346 = vsel %vm7343, %v7345, %v7341
  %v7347 = vmul.f32 1.0, %v7346
  %v7348 = vrcp.pop %v6652
  %v7349 = vmul.f32 %v6652, %v7348
  %v7350 = vsub.f32 1.0, %v7349
  %v7351 = vmul.f32 %v7348, %v7350
  %v7352 = vadd.f32 %v7348, %v7351
  %vm7353 = vweird.f32 %v6652
  %vm7354 = vweird.f32 %v7348
  %vm7355 = vmor %vm7353, %vm7354
  %v7356 = vsel %vm7355, %v7348, %v7352
  %v7357 = vand.u32 2147483647, %v6652
  %vm7358 = vcmp.eq.f32.partialorder %v7357, 8.507059e+37
  %v7359 = vand.u32 %v6652, 2147483648
  %v7360 = vor.u32 1.1754944e-38, %v7359
  %v7361 = vsel %vm7358, %v7360, %v7356
  %v7362 = vmul.f32 1.0, %v7361
  %v7363 = vrcp.pop %v6654
  %v7364 = vmul.f32 %v6654, %v7363
  %v7365 = vsub.f32 1.0, %v7364
  %v7366 = vmul.f32 %v7363, %v7365
  %v7367 = vadd.f32 %v7363, %v7366
  %vm7368 = vweird.f32 %v6654
  %vm7369 = vweird.f32 %v7363
  %vm7370 = vmor %vm7368, %vm7369
  %v7371 = vsel %vm7370, %v7363, %v7367
  %v7372 = vand.u32 2147483647, %v6654
  %vm7373 = vcmp.eq.f32.partialorder %v7372, 8.507059e+37
  %v7374 = vand.u32 %v6654, 2147483648
  %v7375 = vor.u32 1.1754944e-38, %v7374
  %v7376 = vsel %vm7373, %v7375, %v7371
  %v7377 = vmul.f32 1.0, %v7376
  %v7378 = vrcp.pop %v6656
  %v7379 = vmul.f32 %v6656, %v7378
  %v7380 = vsub.f32 1.0, %v7379
  %v7381 = vmul.f32 %v7378, %v7380
  %v7382 = vadd.f32 %v7378, %v7381
  %vm7383 = vweird.f32 %v6656
  %vm7384 = vweird.f32 %v7378
  %vm7385 = vmor %vm7383, %vm7384
  %v7386 = vsel %vm7385, %v7378, %v7382
  %v7387 = vand.u32 2147483647, %v6656
  %vm7388 = vcmp.eq.f32.partialorder %v7387, 8.507059e+37
  %v7389 = vand.u32 %v6656, 2147483648
  %v7390 = vor.u32 1.1754944e-38, %v7389
  %v7391 = vsel %vm7388, %v7390, %v7386
  %v7392 = vmul.f32 1.0, %v7391
  %v7393 = vrcp.pop %v6658
  %v7394 = vmul.f32 %v6658, %v7393
  %v7395 = vsub.f32 1.0, %v7394
  %v7396 = vmul.f32 %v7393, %v7395
  %v7397 = vadd.f32 %v7393, %v7396
  %vm7398 = vweird.f32 %v6658
  %vm7399 = vweird.f32 %v7393
  %vm7400 = vmor %vm7398, %vm7399
  %v7401 = vsel %vm7400, %v7393, %v7397
  %v7402 = vand.u32 2147483647, %v6658
  %vm7403 = vcmp.eq.f32.partialorder %v7402, 8.507059e+37
  %v7404 = vand.u32 %v6658, 2147483648
  %v7405 = vor.u32 1.1754944e-38, %v7404
  %v7406 = vsel %vm7403, %v7405, %v7401
  %v7407 = vmul.f32 1.0, %v7406
  %v7408 = vrcp.pop %v6660
  %v7409 = vmul.f32 %v6660, %v7408
  %v7410 = vsub.f32 1.0, %v7409
  %v7411 = vmul.f32 %v7408, %v7410
  %v7412 = vadd.f32 %v7408, %v7411
  %vm7413 = vweird.f32 %v6660
  %vm7414 = vweird.f32 %v7408
  %vm7415 = vmor %vm7413, %vm7414
  %v7416 = vsel %vm7415, %v7408, %v7412
  %v7417 = vand.u32 2147483647, %v6660
  %vm7418 = vcmp.eq.f32.partialorder %v7417, 8.507059e+37
  %v7419 = vand.u32 %v6660, 2147483648
  %v7420 = vor.u32 1.1754944e-38, %v7419
  %v7421 = vsel %vm7418, %v7420, %v7416
  %v7422 = vmul.f32 1.0, %v7421
  %v7423 = vrcp.pop %v6662
  %v7424 = vmul.f32 %v6662, %v7423
  %v7425 = vsub.f32 1.0, %v7424
  %v7426 = vmul.f32 %v7423, %v7425
  %v7427 = vadd.f32 %v7423, %v7426
  %vm7428 = vweird.f32 %v6662
  %vm7429 = vweird.f32 %v7423
  %vm7430 = vmor %vm7428, %vm7429
  %v7431 = vsel %vm7430, %v7423, %v7427
  %v7432 = vand.u32 2147483647, %v6662
  %vm7433 = vcmp.eq.f32.partialorder %v7432, 8.507059e+37
  %v7434 = vand.u32 %v6662, 2147483648
  %v7435 = vor.u32 1.1754944e-38, %v7434
  %v7436 = vsel %vm7433, %v7435, %v7431
  %v7437 = vmul.f32 1.0, %v7436
  %v7438 = vrcp.pop %v6664
  %v7439 = vmul.f32 %v6664, %v7438
  %v7440 = vsub.f32 1.0, %v7439
  %v7441 = vmul.f32 %v7438, %v7440
  %v7442 = vadd.f32 %v7438, %v7441
  %vm7443 = vweird.f32 %v6664
  %vm7444 = vweird.f32 %v7438
  %vm7445 = vmor %vm7443, %vm7444
  %v7446 = vsel %vm7445, %v7438, %v7442
  %v7447 = vand.u32 2147483647, %v6664
  %vm7448 = vcmp.eq.f32.partialorder %v7447, 8.507059e+37
  %v7449 = vand.u32 %v6664, 2147483648
  %v7450 = vor.u32 1.1754944e-38, %v7449
  %v7451 = vsel %vm7448, %v7450, %v7446
  %v7452 = vmul.f32 1.0, %v7451
  %v7453 = vrcp.pop %v6666
  %v7454 = vmul.f32 %v6666, %v7453
  %v7455 = vsub.f32 1.0, %v7454
  %v7456 = vmul.f32 %v7453, %v7455
  %v7457 = vadd.f32 %v7453, %v7456
  %vm7458 = vweird.f32 %v6666
  %vm7459 = vweird.f32 %v7453
  %vm7460 = vmor %vm7458, %vm7459
  %v7461 = vsel %vm7460, %v7453, %v7457
  %v7462 = vand.u32 2147483647, %v6666
  %vm7463 = vcmp.eq.f32.partialorder %v7462, 8.507059e+37
  %v7464 = vand.u32 %v6666, 2147483648
  %v7465 = vor.u32 1.1754944e-38, %v7464
  %v7466 = vsel %vm7463, %v7465, %v7461
  %v7467 = vmul.f32 1.0, %v7466
  %v7468 = vrcp.pop %v6668
  %v7469 = vmul.f32 %v6668, %v7468
  %v7470 = vsub.f32 1.0, %v7469
  %v7471 = vmul.f32 %v7468, %v7470
  %v7472 = vadd.f32 %v7468, %v7471
  %vm7473 = vweird.f32 %v6668
  %vm7474 = vweird.f32 %v7468
  %vm7475 = vmor %vm7473, %vm7474
  %v7476 = vsel %vm7475, %v7468, %v7472
  %v7477 = vand.u32 2147483647, %v6668
  %vm7478 = vcmp.eq.f32.partialorder %v7477, 8.507059e+37
  %v7479 = vand.u32 %v6668, 2147483648
  %v7480 = vor.u32 1.1754944e-38, %v7479
  %v7481 = vsel %vm7478, %v7480, %v7476
  %v7482 = vmul.f32 1.0, %v7481
  %v7483 = vrcp.pop %v6670
  %v7484 = vmul.f32 %v6670, %v7483
  %v7485 = vsub.f32 1.0, %v7484
  %v7486 = vmul.f32 %v7483, %v7485
  %v7487 = vadd.f32 %v7483, %v7486
  %vm7488 = vweird.f32 %v6670
  %vm7489 = vweird.f32 %v7483
  %vm7490 = vmor %vm7488, %vm7489
  %v7491 = vsel %vm7490, %v7483, %v7487
  %v7492 = vand.u32 2147483647, %v6670
  %vm7493 = vcmp.eq.f32.partialorder %v7492, 8.507059e+37
  %v7494 = vand.u32 %v6670, 2147483648
  %v7495 = vor.u32 1.1754944e-38, %v7494
  %v7496 = vsel %vm7493, %v7495, %v7491
  %v7497 = vmul.f32 1.0, %v7496
  %v7498 = vrcp.pop %v6672
  %v7499 = vmul.f32 %v6672, %v7498
  %v7500 = vsub.f32 1.0, %v7499
  %v7501 = vmul.f32 %v7498, %v7500
  %v7502 = vadd.f32 %v7498, %v7501
  %vm7503 = vweird.f32 %v6672
  %vm7504 = vweird.f32 %v7498
  %vm7505 = vmor %vm7503, %vm7504
  %v7506 = vsel %vm7505, %v7498, %v7502
  %v7507 = vand.u32 2147483647, %v6672
  %vm7508 = vcmp.eq.f32.partialorder %v7507, 8.507059e+37
  %v7509 = vand.u32 %v6672, 2147483648
  %v7510 = vor.u32 1.1754944e-38, %v7509
  %v7511 = vsel %vm7508, %v7510, %v7506
  %v7512 = vmul.f32 1.0, %v7511
  %v7513 = vrcp.pop %v6674
  %v7514 = vmul.f32 %v6674, %v7513
  %v7515 = vsub.f32 1.0, %v7514
  %v7516 = vmul.f32 %v7513, %v7515
  %v7517 = vadd.f32 %v7513, %v7516
  %vm7518 = vweird.f32 %v6674
  %vm7519 = vweird.f32 %v7513
  %vm7520 = vmor %vm7518, %vm7519
  %v7521 = vsel %vm7520, %v7513, %v7517
  %v7522 = vand.u32 2147483647, %v6674
  %vm7523 = vcmp.eq.f32.partialorder %v7522, 8.507059e+37
  %v7524 = vand.u32 %v6674, 2147483648
  %v7525 = vor.u32 1.1754944e-38, %v7524
  %v7526 = vsel %vm7523, %v7525, %v7521
  %v7527 = vmul.f32 1.0, %v7526
  %v7528 = vrcp.pop %v6676
  %v7529 = vmul.f32 %v6676, %v7528
  %v7530 = vsub.f32 1.0, %v7529
  %v7531 = vmul.f32 %v7528, %v7530
  %v7532 = vadd.f32 %v7528, %v7531
  %vm7533 = vweird.f32 %v6676
  %vm7534 = vweird.f32 %v7528
  %vm7535 = vmor %vm7533, %vm7534
  %v7536 = vsel %vm7535, %v7528, %v7532
  %v7537 = vand.u32 2147483647, %v6676
  %vm7538 = vcmp.eq.f32.partialorder %v7537, 8.507059e+37
  %v7539 = vand.u32 %v6676, 2147483648
  %v7540 = vor.u32 1.1754944e-38, %v7539
  %v7541 = vsel %vm7538, %v7540, %v7536
  %v7542 = vmul.f32 1.0, %v7541
  %v7543 = vrcp.pop %v6678
  %v7544 = vmul.f32 %v6678, %v7543
  %v7545 = vsub.f32 1.0, %v7544
  %v7546 = vmul.f32 %v7543, %v7545
  %v7547 = vadd.f32 %v7543, %v7546
  %vm7548 = vweird.f32 %v6678
  %vm7549 = vweird.f32 %v7543
  %vm7550 = vmor %vm7548, %vm7549
  %v7551 = vsel %vm7550, %v7543, %v7547
  %v7552 = vand.u32 2147483647, %v6678
  %vm7553 = vcmp.eq.f32.partialorder %v7552, 8.507059e+37
  %v7554 = vand.u32 %v6678, 2147483648
  %v7555 = vor.u32 1.1754944e-38, %v7554
  %v7556 = vsel %vm7553, %v7555, %v7551
  %v7557 = vmul.f32 1.0, %v7556
  %v7558 = vrcp.pop %v6680
  %v7559 = vmul.f32 %v6680, %v7558
  %v7560 = vsub.f32 1.0, %v7559
  %v7561 = vmul.f32 %v7558, %v7560
  %v7562 = vadd.f32 %v7558, %v7561
  %vm7563 = vweird.f32 %v6680
  %vm7564 = vweird.f32 %v7558
  %vm7565 = vmor %vm7563, %vm7564
  %v7566 = vsel %vm7565, %v7558, %v7562
  %v7567 = vand.u32 2147483647, %v6680
  %vm7568 = vcmp.eq.f32.partialorder %v7567, 8.507059e+37
  %v7569 = vand.u32 %v6680, 2147483648
  %v7570 = vor.u32 1.1754944e-38, %v7569
  %v7571 = vsel %vm7568, %v7570, %v7566
  %v7572 = vmul.f32 1.0, %v7571
  %v7573 = vrcp.pop %v6682
  %v7574 = vmul.f32 %v6682, %v7573
  %v7575 = vsub.f32 1.0, %v7574
  %v7576 = vmul.f32 %v7573, %v7575
  %v7577 = vadd.f32 %v7573, %v7576
  %vm7578 = vweird.f32 %v6682
  %vm7579 = vweird.f32 %v7573
  %vm7580 = vmor %vm7578, %vm7579
  %v7581 = vsel %vm7580, %v7573, %v7577
  %v7582 = vand.u32 2147483647, %v6682
  %vm7583 = vcmp.eq.f32.partialorder %v7582, 8.507059e+37
  %v7584 = vand.u32 %v6682, 2147483648
  %v7585 = vor.u32 1.1754944e-38, %v7584
  %v7586 = vsel %vm7583, %v7585, %v7581
  %v7587 = vmul.f32 1.0, %v7586
  %v7588 = vrcp.pop %v6684
  %v7589 = vmul.f32 %v6684, %v7588
  %v7590 = vsub.f32 1.0, %v7589
  %v7591 = vmul.f32 %v7588, %v7590
  %v7592 = vadd.f32 %v7588, %v7591
  %vm7593 = vweird.f32 %v6684
  %vm7594 = vweird.f32 %v7588
  %vm7595 = vmor %vm7593, %vm7594
  %v7596 = vsel %vm7595, %v7588, %v7592
  %v7597 = vand.u32 2147483647, %v6684
  %vm7598 = vcmp.eq.f32.partialorder %v7597, 8.507059e+37
  %v7599 = vand.u32 %v6684, 2147483648
  %v7600 = vor.u32 1.1754944e-38, %v7599
  %v7601 = vsel %vm7598, %v7600, %v7596
  %v7602 = vmul.f32 1.0, %v7601
  %v7603 = vrcp.pop %v6686
  %v7604 = vmul.f32 %v6686, %v7603
  %v7605 = vsub.f32 1.0, %v7604
  %v7606 = vmul.f32 %v7603, %v7605
  %v7607 = vadd.f32 %v7603, %v7606
  %vm7608 = vweird.f32 %v6686
  %vm7609 = vweird.f32 %v7603
  %vm7610 = vmor %vm7608, %vm7609
  %v7611 = vsel %vm7610, %v7603, %v7607
  %v7612 = vand.u32 2147483647, %v6686
  %vm7613 = vcmp.eq.f32.partialorder %v7612, 8.507059e+37
  %v7614 = vand.u32 %v6686, 2147483648
  %v7615 = vor.u32 1.1754944e-38, %v7614
  %v7616 = vsel %vm7613, %v7615, %v7611
  %v7617 = vmul.f32 1.0, %v7616
  %v7618 = vrcp.pop %v6688
  %v7619 = vmul.f32 %v6688, %v7618
  %v7620 = vsub.f32 1.0, %v7619
  %v7621 = vmul.f32 %v7618, %v7620
  %v7622 = vadd.f32 %v7618, %v7621
  %vm7623 = vweird.f32 %v6688
  %vm7624 = vweird.f32 %v7618
  %vm7625 = vmor %vm7623, %vm7624
  %v7626 = vsel %vm7625, %v7618, %v7622
  %v7627 = vand.u32 2147483647, %v6688
  %vm7628 = vcmp.eq.f32.partialorder %v7627, 8.507059e+37
  %v7629 = vand.u32 %v6688, 2147483648
  %v7630 = vor.u32 1.1754944e-38, %v7629
  %v7631 = vsel %vm7628, %v7630, %v7626
  %v7632 = vmul.f32 1.0, %v7631
  %v7633 = vrcp.pop %v6690
  %v7634 = vmul.f32 %v6690, %v7633
  %v7635 = vsub.f32 1.0, %v7634
  %v7636 = vmul.f32 %v7633, %v7635
  %v7637 = vadd.f32 %v7633, %v7636
  %vm7638 = vweird.f32 %v6690
  %vm7639 = vweird.f32 %v7633
  %vm7640 = vmor %vm7638, %vm7639
  %v7641 = vsel %vm7640, %v7633, %v7637
  %v7642 = vand.u32 2147483647, %v6690
  %vm7643 = vcmp.eq.f32.partialorder %v7642, 8.507059e+37
  %v7644 = vand.u32 %v6690, 2147483648
  %v7645 = vor.u32 1.1754944e-38, %v7644
  %v7646 = vsel %vm7643, %v7645, %v7641
  %v7647 = vmul.f32 1.0, %v7646
  %v7648 = vrcp.pop %v6692
  %v7649 = vmul.f32 %v6692, %v7648
  %v7650 = vsub.f32 1.0, %v7649
  %v7651 = vmul.f32 %v7648, %v7650
  %v7652 = vadd.f32 %v7648, %v7651
  %vm7653 = vweird.f32 %v6692
  %vm7654 = vweird.f32 %v7648
  %vm7655 = vmor %vm7653, %vm7654
  %v7656 = vsel %vm7655, %v7648, %v7652
  %v7657 = vand.u32 2147483647, %v6692
  %vm7658 = vcmp.eq.f32.partialorder %v7657, 8.507059e+37
  %v7659 = vand.u32 %v6692, 2147483648
  %v7660 = vor.u32 1.1754944e-38, %v7659
  %v7661 = vsel %vm7658, %v7660, %v7656
  %v7662 = vmul.f32 1.0, %v7661
  %v7663 = vrcp.pop %v6694
  %v7664 = vmul.f32 %v6694, %v7663
  %v7665 = vsub.f32 1.0, %v7664
  %v7666 = vmul.f32 %v7663, %v7665
  %v7667 = vadd.f32 %v7663, %v7666
  %vm7668 = vweird.f32 %v6694
  %vm7669 = vweird.f32 %v7663
  %vm7670 = vmor %vm7668, %vm7669
  %v7671 = vsel %vm7670, %v7663, %v7667
  %v7672 = vand.u32 2147483647, %v6694
  %vm7673 = vcmp.eq.f32.partialorder %v7672, 8.507059e+37
  %v7674 = vand.u32 %v6694, 2147483648
  %v7675 = vor.u32 1.1754944e-38, %v7674
  %v7676 = vsel %vm7673, %v7675, %v7671
  %v7677 = vmul.f32 1.0, %v7676
  %v7678 = vrcp.pop %v6696
  %v7679 = vmul.f32 %v6696, %v7678
  %v7680 = vsub.f32 1.0, %v7679
  %v7681 = vmul.f32 %v7678, %v7680
  %v7682 = vadd.f32 %v7678, %v7681
  %vm7683 = vweird.f32 %v6696
  %vm7684 = vweird.f32 %v7678
  %vm7685 = vmor %vm7683, %vm7684
  %v7686 = vsel %vm7685, %v7678, %v7682
  %v7687 = vand.u32 2147483647, %v6696
  %vm7688 = vcmp.eq.f32.partialorder %v7687, 8.507059e+37
  %v7689 = vand.u32 %v6696, 2147483648
  %v7690 = vor.u32 1.1754944e-38, %v7689
  %v7691 = vsel %vm7688, %v7690, %v7686
  %v7692 = vmul.f32 1.0, %v7691
  %v7693 = vrcp.pop %v6698
  %v7694 = vmul.f32 %v6698, %v7693
  %v7695 = vsub.f32 1.0, %v7694
  %v7696 = vmul.f32 %v7693, %v7695
  %v7697 = vadd.f32 %v7693, %v7696
  %vm7698 = vweird.f32 %v6698
  %vm7699 = vweird.f32 %v7693
  %vm7700 = vmor %vm7698, %vm7699
  %v7701 = vsel %vm7700, %v7693, %v7697
  %v7702 = vand.u32 2147483647, %v6698
  %vm7703 = vcmp.eq.f32.partialorder %v7702, 8.507059e+37
  %v7704 = vand.u32 %v6698, 2147483648
  %v7705 = vor.u32 1.1754944e-38, %v7704
  %v7706 = vsel %vm7703, %v7705, %v7701
  %v7707 = vmul.f32 1.0, %v7706
  %v7708 = vrcp.pop %v6700
  %v7709 = vmul.f32 %v6700, %v7708
  %v7710 = vsub.f32 1.0, %v7709
  %v7711 = vmul.f32 %v7708, %v7710
  %v7712 = vadd.f32 %v7708, %v7711
  %vm7713 = vweird.f32 %v6700
  %vm7714 = vweird.f32 %v7708
  %vm7715 = vmor %vm7713, %vm7714
  %v7716 = vsel %vm7715, %v7708, %v7712
  %v7717 = vand.u32 2147483647, %v6700
  %vm7718 = vcmp.eq.f32.partialorder %v7717, 8.507059e+37
  %v7719 = vand.u32 %v6700, 2147483648
  %v7720 = vor.u32 1.1754944e-38, %v7719
  %v7721 = vsel %vm7718, %v7720, %v7716
  %v7722 = vmul.f32 1.0, %v7721
  %v7723 = vrcp.pop %v6702
  %v7724 = vmul.f32 %v6702, %v7723
  %v7725 = vsub.f32 1.0, %v7724
  %v7726 = vmul.f32 %v7723, %v7725
  %v7727 = vadd.f32 %v7723, %v7726
  %vm7728 = vweird.f32 %v6702
  %vm7729 = vweird.f32 %v7723
  %vm7730 = vmor %vm7728, %vm7729
  %v7731 = vsel %vm7730, %v7723, %v7727
  %v7732 = vand.u32 2147483647, %v6702
  %vm7733 = vcmp.eq.f32.partialorder %v7732, 8.507059e+37
  %v7734 = vand.u32 %v6702, 2147483648
  %v7735 = vor.u32 1.1754944e-38, %v7734
  %v7736 = vsel %vm7733, %v7735, %v7731
  %v7737 = vmul.f32 1.0, %v7736
  %v7738 = vrcp.pop %v6704
  %v7739 = vmul.f32 %v6704, %v7738
  %v7740 = vsub.f32 1.0, %v7739
  %v7741 = vmul.f32 %v7738, %v7740
  %v7742 = vadd.f32 %v7738, %v7741
  %vm7743 = vweird.f32 %v6704
  %vm7744 = vweird.f32 %v7738
  %vm7745 = vmor %vm7743, %vm7744
  %v7746 = vsel %vm7745, %v7738, %v7742
  %v7747 = vand.u32 2147483647, %v6704
  %vm7748 = vcmp.eq.f32.partialorder %v7747, 8.507059e+37
  %v7749 = vand.u32 %v6704, 2147483648
  %v7750 = vor.u32 1.1754944e-38, %v7749
  %v7751 = vsel %vm7748, %v7750, %v7746
  %v7752 = vmul.f32 1.0, %v7751
  %v7753 = vrcp.pop %v6706
  %v7754 = vmul.f32 %v6706, %v7753
  %v7755 = vsub.f32 1.0, %v7754
  %v7756 = vmul.f32 %v7753, %v7755
  %v7757 = vadd.f32 %v7753, %v7756
  %vm7758 = vweird.f32 %v6706
  %vm7759 = vweird.f32 %v7753
  %vm7760 = vmor %vm7758, %vm7759
  %v7761 = vsel %vm7760, %v7753, %v7757
  %v7762 = vand.u32 2147483647, %v6706
  %vm7763 = vcmp.eq.f32.partialorder %v7762, 8.507059e+37
  %v7764 = vand.u32 %v6706, 2147483648
  %v7765 = vor.u32 1.1754944e-38, %v7764
  %v7766 = vsel %vm7763, %v7765, %v7761
  %v7767 = vmul.f32 1.0, %v7766
  %v7768 = vrcp.pop %v6708
  %v7769 = vmul.f32 %v6708, %v7768
  %v7770 = vsub.f32 1.0, %v7769
  %v7771 = vmul.f32 %v7768, %v7770
  %v7772 = vadd.f32 %v7768, %v7771
  %vm7773 = vweird.f32 %v6708
  %vm7774 = vweird.f32 %v7768
  %vm7775 = vmor %vm7773, %vm7774
  %v7776 = vsel %vm7775, %v7768, %v7772
  %v7777 = vand.u32 2147483647, %v6708
  %vm7778 = vcmp.eq.f32.partialorder %v7777, 8.507059e+37
  %v7779 = vand.u32 %v6708, 2147483648
  %v7780 = vor.u32 1.1754944e-38, %v7779
  %v7781 = vsel %vm7778, %v7780, %v7776
  %v7782 = vmul.f32 1.0, %v7781
  %v7783 = vrcp.pop %v6710
  %v7784 = vmul.f32 %v6710, %v7783
  %v7785 = vsub.f32 1.0, %v7784
  %v7786 = vmul.f32 %v7783, %v7785
  %v7787 = vadd.f32 %v7783, %v7786
  %vm7788 = vweird.f32 %v6710
  %vm7789 = vweird.f32 %v7783
  %vm7790 = vmor %vm7788, %vm7789
  %v7791 = vsel %vm7790, %v7783, %v7787
  %v7792 = vand.u32 2147483647, %v6710
  %vm7793 = vcmp.eq.f32.partialorder %v7792, 8.507059e+37
  %v7794 = vand.u32 %v6710, 2147483648
  %v7795 = vor.u32 1.1754944e-38, %v7794
  %v7796 = vsel %vm7793, %v7795, %v7791
  %v7797 = vmul.f32 1.0, %v7796
  %v7798 = vrcp.pop %v6712
  %v7799 = vmul.f32 %v6712, %v7798
  %v7800 = vsub.f32 1.0, %v7799
  %v7801 = vmul.f32 %v7798, %v7800
  %v7802 = vadd.f32 %v7798, %v7801
  %vm7803 = vweird.f32 %v6712
  %vm7804 = vweird.f32 %v7798
  %vm7805 = vmor %vm7803, %vm7804
  %v7806 = vsel %vm7805, %v7798, %v7802
  %v7807 = vand.u32 2147483647, %v6712
  %vm7808 = vcmp.eq.f32.partialorder %v7807, 8.507059e+37
  %v7809 = vand.u32 %v6712, 2147483648
  %v7810 = vor.u32 1.1754944e-38, %v7809
  %v7811 = vsel %vm7808, %v7810, %v7806
  %v7812 = vmul.f32 1.0, %v7811
  %v7813 = vrcp.pop %v6714
  %v7814 = vmul.f32 %v6714, %v7813
  %v7815 = vsub.f32 1.0, %v7814
  %v7816 = vmul.f32 %v7813, %v7815
  %v7817 = vadd.f32 %v7813, %v7816
  %vm7818 = vweird.f32 %v6714
  %vm7819 = vweird.f32 %v7813
  %vm7820 = vmor %vm7818, %vm7819
  %v7821 = vsel %vm7820, %v7813, %v7817
  %v7822 = vand.u32 2147483647, %v6714
  %vm7823 = vcmp.eq.f32.partialorder %v7822, 8.507059e+37
  %v7824 = vand.u32 %v6714, 2147483648
  %v7825 = vor.u32 1.1754944e-38, %v7824
  %v7826 = vsel %vm7823, %v7825, %v7821
  %v7827 = vmul.f32 1.0, %v7826
  %v7828 = vrcp.pop %v6716
  %v7829 = vmul.f32 %v6716, %v7828
  %v7830 = vsub.f32 1.0, %v7829
  %v7831 = vmul.f32 %v7828, %v7830
  %v7832 = vadd.f32 %v7828, %v7831
  %vm7833 = vweird.f32 %v6716
  %vm7834 = vweird.f32 %v7828
  %vm7835 = vmor %vm7833, %vm7834
  %v7836 = vsel %vm7835, %v7828, %v7832
  %v7837 = vand.u32 2147483647, %v6716
  %vm7838 = vcmp.eq.f32.partialorder %v7837, 8.507059e+37
  %v7839 = vand.u32 %v6716, 2147483648
  %v7840 = vor.u32 1.1754944e-38, %v7839
  %v7841 = vsel %vm7838, %v7840, %v7836
  %v7842 = vmul.f32 1.0, %v7841
  %v7843 = vrcp.pop %v6718
  %v7844 = vmul.f32 %v6718, %v7843
  %v7845 = vsub.f32 1.0, %v7844
  %v7846 = vmul.f32 %v7843, %v7845
  %v7847 = vadd.f32 %v7843, %v7846
  %vm7848 = vweird.f32 %v6718
  %vm7849 = vweird.f32 %v7843
  %vm7850 = vmor %vm7848, %vm7849
  %v7851 = vsel %vm7850, %v7843, %v7847
  %v7852 = vand.u32 2147483647, %v6718
  %vm7853 = vcmp.eq.f32.partialorder %v7852, 8.507059e+37
  %v7854 = vand.u32 %v6718, 2147483648
  %v7855 = vor.u32 1.1754944e-38, %v7854
  %v7856 = vsel %vm7853, %v7855, %v7851
  %v7857 = vmul.f32 1.0, %v7856
  %v7858 = vrcp.pop %v6720
  %v7859 = vmul.f32 %v6720, %v7858
  %v7860 = vsub.f32 1.0, %v7859
  %v7861 = vmul.f32 %v7858, %v7860
  %v7862 = vadd.f32 %v7858, %v7861
  %vm7863 = vweird.f32 %v6720
  %vm7864 = vweird.f32 %v7858
  %vm7865 = vmor %vm7863, %vm7864
  %v7866 = vsel %vm7865, %v7858, %v7862
  %v7867 = vand.u32 2147483647, %v6720
  %vm7868 = vcmp.eq.f32.partialorder %v7867, 8.507059e+37
  %v7869 = vand.u32 %v6720, 2147483648
  %v7870 = vor.u32 1.1754944e-38, %v7869
  %v7871 = vsel %vm7868, %v7870, %v7866
  %v7872 = vmul.f32 1.0, %v7871
  %v7873 = vrcp.pop %v6722
  %v7874 = vmul.f32 %v6722, %v7873
  %v7875 = vsub.f32 1.0, %v7874
  %v7876 = vmul.f32 %v7873, %v7875
  %v7877 = vadd.f32 %v7873, %v7876
  %vm7878 = vweird.f32 %v6722
  %vm7879 = vweird.f32 %v7873
  %vm7880 = vmor %vm7878, %vm7879
  %v7881 = vsel %vm7880, %v7873, %v7877
  %v7882 = vand.u32 2147483647, %v6722
  %vm7883 = vcmp.eq.f32.partialorder %v7882, 8.507059e+37
  %v7884 = vand.u32 %v6722, 2147483648
  %v7885 = vor.u32 1.1754944e-38, %v7884
  %v7886 = vsel %vm7883, %v7885, %v7881
  %v7887 = vmul.f32 1.0, %v7886
  %v7888 = vrcp.pop %v6724
  %v7889 = vmul.f32 %v6724, %v7888
  %v7890 = vsub.f32 1.0, %v7889
  %v7891 = vmul.f32 %v7888, %v7890
  %v7892 = vadd.f32 %v7888, %v7891
  %vm7893 = vweird.f32 %v6724
  %vm7894 = vweird.f32 %v7888
  %vm7895 = vmor %vm7893, %vm7894
  %v7896 = vsel %vm7895, %v7888, %v7892
  %v7897 = vand.u32 2147483647, %v6724
  %vm7898 = vcmp.eq.f32.partialorder %v7897, 8.507059e+37
  %v7899 = vand.u32 %v6724, 2147483648
  %v7900 = vor.u32 1.1754944e-38, %v7899
  %v7901 = vsel %vm7898, %v7900, %v7896
  %v7902 = vmul.f32 1.0, %v7901
  %v7903 = vrcp.pop %v6726
  %v7904 = vmul.f32 %v6726, %v7903
  %v7905 = vsub.f32 1.0, %v7904
  %v7906 = vmul.f32 %v7903, %v7905
  %v7907 = vadd.f32 %v7903, %v7906
  %vm7908 = vweird.f32 %v6726
  %vm7909 = vweird.f32 %v7903
  %vm7910 = vmor %vm7908, %vm7909
  %v7911 = vsel %vm7910, %v7903, %v7907
  %v7912 = vand.u32 2147483647, %v6726
  %vm7913 = vcmp.eq.f32.partialorder %v7912, 8.507059e+37
  %v7914 = vand.u32 %v6726, 2147483648
  %v7915 = vor.u32 1.1754944e-38, %v7914
  %v7916 = vsel %vm7913, %v7915, %v7911
  %v7917 = vmul.f32 1.0, %v7916
  %v7918 = vrcp.pop %v6728
  %v7919 = vmul.f32 %v6728, %v7918
  %v7920 = vsub.f32 1.0, %v7919
  %v7921 = vmul.f32 %v7918, %v7920
  %v7922 = vadd.f32 %v7918, %v7921
  %vm7923 = vweird.f32 %v6728
  %vm7924 = vweird.f32 %v7918
  %vm7925 = vmor %vm7923, %vm7924
  %v7926 = vsel %vm7925, %v7918, %v7922
  %v7927 = vand.u32 2147483647, %v6728
  %vm7928 = vcmp.eq.f32.partialorder %v7927, 8.507059e+37
  %v7929 = vand.u32 %v6728, 2147483648
  %v7930 = vor.u32 1.1754944e-38, %v7929
  %v7931 = vsel %vm7928, %v7930, %v7926
  %v7932 = vmul.f32 1.0, %v7931
  %v7933 = vrcp.pop %v6730
  %v7934 = vmul.f32 %v6730, %v7933
  %v7935 = vsub.f32 1.0, %v7934
  %v7936 = vmul.f32 %v7933, %v7935
  %v7937 = vadd.f32 %v7933, %v7936
  %vm7938 = vweird.f32 %v6730
  %vm7939 = vweird.f32 %v7933
  %vm7940 = vmor %vm7938, %vm7939
  %v7941 = vsel %vm7940, %v7933, %v7937
  %v7942 = vand.u32 2147483647, %v6730
  %vm7943 = vcmp.eq.f32.partialorder %v7942, 8.507059e+37
  %v7944 = vand.u32 %v6730, 2147483648
  %v7945 = vor.u32 1.1754944e-38, %v7944
  %v7946 = vsel %vm7943, %v7945, %v7941
  %v7947 = vmul.f32 1.0, %v7946
  %v7948 = vrcp.pop %v6732
  %v7949 = vmul.f32 %v6732, %v7948
  %v7950 = vsub.f32 1.0, %v7949
  %v7951 = vmul.f32 %v7948, %v7950
  %v7952 = vadd.f32 %v7948, %v7951
  %vm7953 = vweird.f32 %v6732
  %vm7954 = vweird.f32 %v7948
  %vm7955 = vmor %vm7953, %vm7954
  %v7956 = vsel %vm7955, %v7948, %v7952
  %v7957 = vand.u32 2147483647, %v6732
  %vm7958 = vcmp.eq.f32.partialorder %v7957, 8.507059e+37
  %v7959 = vand.u32 %v6732, 2147483648
  %v7960 = vor.u32 1.1754944e-38, %v7959
  %v7961 = vsel %vm7958, %v7960, %v7956
  %v7962 = vmul.f32 1.0, %v7961
  %v7963 = vrcp.pop %v6734
  %v7964 = vmul.f32 %v6734, %v7963
  %v7965 = vsub.f32 1.0, %v7964
  %v7966 = vmul.f32 %v7963, %v7965
  %v7967 = vadd.f32 %v7963, %v7966
  %vm7968 = vweird.f32 %v6734
  %vm7969 = vweird.f32 %v7963
  %vm7970 = vmor %vm7968, %vm7969
  %v7971 = vsel %vm7970, %v7963, %v7967
  %v7972 = vand.u32 2147483647, %v6734
  %vm7973 = vcmp.eq.f32.partialorder %v7972, 8.507059e+37
  %v7974 = vand.u32 %v6734, 2147483648
  %v7975 = vor.u32 1.1754944e-38, %v7974
  %v7976 = vsel %vm7973, %v7975, %v7971
  %v7977 = vmul.f32 1.0, %v7976
  %v7978 = vrcp.pop %v6736
  %v7979 = vmul.f32 %v6736, %v7978
  %v7980 = vsub.f32 1.0, %v7979
  %v7981 = vmul.f32 %v7978, %v7980
  %v7982 = vadd.f32 %v7978, %v7981
  %vm7983 = vweird.f32 %v6736
  %vm7984 = vweird.f32 %v7978
  %vm7985 = vmor %vm7983, %vm7984
  %v7986 = vsel %vm7985, %v7978, %v7982
  %v7987 = vand.u32 2147483647, %v6736
  %vm7988 = vcmp.eq.f32.partialorder %v7987, 8.507059e+37
  %v7989 = vand.u32 %v6736, 2147483648
  %v7990 = vor.u32 1.1754944e-38, %v7989
  %v7991 = vsel %vm7988, %v7990, %v7986
  %v7992 = vmul.f32 1.0, %v7991
  %v7993 = vrcp.pop %v6738
  %v7994 = vmul.f32 %v6738, %v7993
  %v7995 = vsub.f32 1.0, %v7994
  %v7996 = vmul.f32 %v7993, %v7995
  %v7997 = vadd.f32 %v7993, %v7996
  %vm7998 = vweird.f32 %v6738
  %vm7999 = vweird.f32 %v7993
  %vm8000 = vmor %vm7998, %vm7999
  %v8001 = vsel %vm8000, %v7993, %v7997
  %v8002 = vand.u32 2147483647, %v6738
  %vm8003 = vcmp.eq.f32.partialorder %v8002, 8.507059e+37
  %v8004 = vand.u32 %v6738, 2147483648
  %v8005 = vor.u32 1.1754944e-38, %v8004
  %v8006 = vsel %vm8003, %v8005, %v8001
  %v8007 = vmul.f32 1.0, %v8006
  %v8008 = vrcp.pop %v6740
  %v8009 = vmul.f32 %v6740, %v8008
  %v8010 = vsub.f32 1.0, %v8009
  %v8011 = vmul.f32 %v8008, %v8010
  %v8012 = vadd.f32 %v8008, %v8011
  %vm8013 = vweird.f32 %v6740
  %vm8014 = vweird.f32 %v8008
  %vm8015 = vmor %vm8013, %vm8014
  %v8016 = vsel %vm8015, %v8008, %v8012
  %v8017 = vand.u32 2147483647, %v6740
  %vm8018 = vcmp.eq.f32.partialorder %v8017, 8.507059e+37
  %v8019 = vand.u32 %v6740, 2147483648
  %v8020 = vor.u32 1.1754944e-38, %v8019
  %v8021 = vsel %vm8018, %v8020, %v8016
  %v8022 = vmul.f32 1.0, %v8021
  %v8023 = vrcp.pop %v6742
  %v8024 = vmul.f32 %v6742, %v8023
  %v8025 = vsub.f32 1.0, %v8024
  %v8026 = vmul.f32 %v8023, %v8025
  %v8027 = vadd.f32 %v8023, %v8026
  %vm8028 = vweird.f32 %v6742
  %vm8029 = vweird.f32 %v8023
  %vm8030 = vmor %vm8028, %vm8029
  %v8031 = vsel %vm8030, %v8023, %v8027
  %v8032 = vand.u32 2147483647, %v6742
  %vm8033 = vcmp.eq.f32.partialorder %v8032, 8.507059e+37
  %v8034 = vand.u32 %v6742, 2147483648
  %v8035 = vor.u32 1.1754944e-38, %v8034
  %v8036 = vsel %vm8033, %v8035, %v8031
  %v8037 = vmul.f32 1.0, %v8036
  %v8038 = vrcp.pop %v6744
  %v8039 = vmul.f32 %v6744, %v8038
  %v8040 = vsub.f32 1.0, %v8039
  %v8041 = vmul.f32 %v8038, %v8040
  %v8042 = vadd.f32 %v8038, %v8041
  %vm8043 = vweird.f32 %v6744
  %vm8044 = vweird.f32 %v8038
  %vm8045 = vmor %vm8043, %vm8044
  %v8046 = vsel %vm8045, %v8038, %v8042
  %v8047 = vand.u32 2147483647, %v6744
  %vm8048 = vcmp.eq.f32.partialorder %v8047, 8.507059e+37
  %v8049 = vand.u32 %v6744, 2147483648
  %v8050 = vor.u32 1.1754944e-38, %v8049
  %v8051 = vsel %vm8048, %v8050, %v8046
  %v8052 = vmul.f32 1.0, %v8051
  %v8053 = vrcp.pop %v6746
  %v8054 = vmul.f32 %v6746, %v8053
  %v8055 = vsub.f32 1.0, %v8054
  %v8056 = vmul.f32 %v8053, %v8055
  %v8057 = vadd.f32 %v8053, %v8056
  %vm8058 = vweird.f32 %v6746
  %vm8059 = vweird.f32 %v8053
  %vm8060 = vmor %vm8058, %vm8059
  %v8061 = vsel %vm8060, %v8053, %v8057
  %v8062 = vand.u32 2147483647, %v6746
  %vm8063 = vcmp.eq.f32.partialorder %v8062, 8.507059e+37
  %v8064 = vand.u32 %v6746, 2147483648
  %v8065 = vor.u32 1.1754944e-38, %v8064
  %v8066 = vsel %vm8063, %v8065, %v8061
  %v8067 = vmul.f32 1.0, %v8066
  %v8068 = vrcp.pop %v6748
  %v8069 = vmul.f32 %v6748, %v8068
  %v8070 = vsub.f32 1.0, %v8069
  %v8071 = vmul.f32 %v8068, %v8070
  %v8072 = vadd.f32 %v8068, %v8071
  %vm8073 = vweird.f32 %v6748
  %vm8074 = vweird.f32 %v8068
  %vm8075 = vmor %vm8073, %vm8074
  %v8076 = vsel %vm8075, %v8068, %v8072
  %v8077 = vand.u32 2147483647, %v6748
  %vm8078 = vcmp.eq.f32.partialorder %v8077, 8.507059e+37
  %v8079 = vand.u32 %v6748, 2147483648
  %v8080 = vor.u32 1.1754944e-38, %v8079
  %v8081 = vsel %vm8078, %v8080, %v8076
  %v8082 = vmul.f32 1.0, %v8081
  %v8083 = vrcp.pop %v6750
  %v8084 = vmul.f32 %v6750, %v8083
  %v8085 = vsub.f32 1.0, %v8084
  %v8086 = vmul.f32 %v8083, %v8085
  %v8087 = vadd.f32 %v8083, %v8086
  %vm8088 = vweird.f32 %v6750
  %vm8089 = vweird.f32 %v8083
  %vm8090 = vmor %vm8088, %vm8089
  %v8091 = vsel %vm8090, %v8083, %v8087
  %v8092 = vand.u32 2147483647, %v6750
  %vm8093 = vcmp.eq.f32.partialorder %v8092, 8.507059e+37
  %v8094 = vand.u32 %v6750, 2147483648
  %v8095 = vor.u32 1.1754944e-38, %v8094
  %v8096 = vsel %vm8093, %v8095, %v8091
  %v8097 = vmul.f32 1.0, %v8096
  %v8098 = vrcp.pop %v6752
  %v8099 = vmul.f32 %v6752, %v8098
  %v8100 = vsub.f32 1.0, %v8099
  %v8101 = vmul.f32 %v8098, %v8100
  %v8102 = vadd.f32 %v8098, %v8101
  %vm8103 = vweird.f32 %v6752
  %vm8104 = vweird.f32 %v8098
  %vm8105 = vmor %vm8103, %vm8104
  %v8106 = vsel %vm8105, %v8098, %v8102
  %v8107 = vand.u32 2147483647, %v6752
  %vm8108 = vcmp.eq.f32.partialorder %v8107, 8.507059e+37
  %v8109 = vand.u32 %v6752, 2147483648
  %v8110 = vor.u32 1.1754944e-38, %v8109
  %v8111 = vsel %vm8108, %v8110, %v8106
  %v8112 = vmul.f32 1.0, %v8111
  %v8113 = vrcp.pop %v6754
  %v8114 = vmul.f32 %v6754, %v8113
  %v8115 = vsub.f32 1.0, %v8114
  %v8116 = vmul.f32 %v8113, %v8115
  %v8117 = vadd.f32 %v8113, %v8116
  %vm8118 = vweird.f32 %v6754
  %vm8119 = vweird.f32 %v8113
  %vm8120 = vmor %vm8118, %vm8119
  %v8121 = vsel %vm8120, %v8113, %v8117
  %v8122 = vand.u32 2147483647, %v6754
  %vm8123 = vcmp.eq.f32.partialorder %v8122, 8.507059e+37
  %v8124 = vand.u32 %v6754, 2147483648
  %v8125 = vor.u32 1.1754944e-38, %v8124
  %v8126 = vsel %vm8123, %v8125, %v8121
  %v8127 = vmul.f32 1.0, %v8126
  %v8128 = vrcp.pop %v6756
  %v8129 = vmul.f32 %v6756, %v8128
  %v8130 = vsub.f32 1.0, %v8129
  %v8131 = vmul.f32 %v8128, %v8130
  %v8132 = vadd.f32 %v8128, %v8131
  %vm8133 = vweird.f32 %v6756
  %vm8134 = vweird.f32 %v8128
  %vm8135 = vmor %vm8133, %vm8134
  %v8136 = vsel %vm8135, %v8128, %v8132
  %v8137 = vand.u32 2147483647, %v6756
  %vm8138 = vcmp.eq.f32.partialorder %v8137, 8.507059e+37
  %v8139 = vand.u32 %v6756, 2147483648
  %v8140 = vor.u32 1.1754944e-38, %v8139
  %v8141 = vsel %vm8138, %v8140, %v8136
  %v8142 = vmul.f32 1.0, %v8141
  %v8143 = vrcp.pop %v6758
  %v8144 = vmul.f32 %v6758, %v8143
  %v8145 = vsub.f32 1.0, %v8144
  %v8146 = vmul.f32 %v8143, %v8145
  %v8147 = vadd.f32 %v8143, %v8146
  %vm8148 = vweird.f32 %v6758
  %vm8149 = vweird.f32 %v8143
  %vm8150 = vmor %vm8148, %vm8149
  %v8151 = vsel %vm8150, %v8143, %v8147
  %v8152 = vand.u32 2147483647, %v6758
  %vm8153 = vcmp.eq.f32.partialorder %v8152, 8.507059e+37
  %v8154 = vand.u32 %v6758, 2147483648
  %v8155 = vor.u32 1.1754944e-38, %v8154
  %v8156 = vsel %vm8153, %v8155, %v8151
  %v8157 = vmul.f32 1.0, %v8156
  %v8158 = vrcp.pop %v6760
  %v8159 = vmul.f32 %v6760, %v8158
  %v8160 = vsub.f32 1.0, %v8159
  %v8161 = vmul.f32 %v8158, %v8160
  %v8162 = vadd.f32 %v8158, %v8161
  %vm8163 = vweird.f32 %v6760
  %vm8164 = vweird.f32 %v8158
  %vm8165 = vmor %vm8163, %vm8164
  %v8166 = vsel %vm8165, %v8158, %v8162
  %v8167 = vand.u32 2147483647, %v6760
  %vm8168 = vcmp.eq.f32.partialorder %v8167, 8.507059e+37
  %v8169 = vand.u32 %v6760, 2147483648
  %v8170 = vor.u32 1.1754944e-38, %v8169
  %v8171 = vsel %vm8168, %v8170, %v8166
  %v8172 = vmul.f32 1.0, %v8171
  %v8173 = vmul.f32 %v6827, %v7227
  %v8174 = vmul.f32 %v6830, %v7242
  %v8175 = vmul.f32 %v6833, %v7257
  %v8176 = vmul.f32 %v6836, %v7272
  %v8177 = vmul.f32 %v6839, %v7287
  %v8178 = vmul.f32 %v6842, %v7302
  %v8179 = vmul.f32 %v6845, %v7317
  %v8180 = vmul.f32 %v6848, %v7332
  %v8181 = vmul.f32 %v6851, %v7347
  %v8182 = vmul.f32 %v6854, %v7362
  %v8183 = vmul.f32 %v6857, %v7377
  %v8184 = vmul.f32 %v6860, %v7392
  %v8185 = vmul.f32 %v6863, %v7407
  %v8186 = vmul.f32 %v6866, %v7422
  %v8187 = vmul.f32 %v6869, %v7437
  %v8188 = vmul.f32 %v6872, %v7452
  %v8189 = vmul.f32 %v6940, %v7467
  %v8190 = vmul.f32 %v6943, %v7482
  %v8191 = vmul.f32 %v6946, %v7497
  %v8192 = vmul.f32 %v6949, %v7512
  %v8193 = vmul.f32 %v6952, %v7527
  %v8194 = vmul.f32 %v6955, %v7542
  %v8195 = vmul.f32 %v6958, %v7557
  %v8196 = vmul.f32 %v6961, %v7572
  %v8197 = vmul.f32 %v6964, %v7587
  %v8198 = vmul.f32 %v6967, %v7602
  %v8199 = vmul.f32 %v6970, %v7617
  %v8200 = vmul.f32 %v6973, %v7632
  %v8201 = vmul.f32 %v6976, %v7647
  %v8202 = vmul.f32 %v6979, %v7662
  %v8203 = vmul.f32 %v6982, %v7677
  %v8204 = vmul.f32 %v6985, %v7692
  %v8205 = vmul.f32 %v7053, %v7707
  %v8206 = vmul.f32 %v7056, %v7722
  %v8207 = vmul.f32 %v7059, %v7737
  %v8208 = vmul.f32 %v7062, %v7752
  %v8209 = vmul.f32 %v7065, %v7767
  %v8210 = vmul.f32 %v7068, %v7782
  %v8211 = vmul.f32 %v7071, %v7797
  %v8212 = vmul.f32 %v7074, %v7812
  %v8213 = vmul.f32 %v7077, %v7827
  %v8214 = vmul.f32 %v7080, %v7842
  %v8215 = vmul.f32 %v7083, %v7857
  %v8216 = vmul.f32 %v7086, %v7872
  %v8217 = vmul.f32 %v7089, %v7887
  %v8218 = vmul.f32 %v7092, %v7902
  %v8219 = vmul.f32 %v7095, %v7917
  %v8220 = vmul.f32 %v7098, %v7932
  %v8221 = vmul.f32 %v7166, %v7947
  %v8222 = vmul.f32 %v7169, %v7962
  %v8223 = vmul.f32 %v7172, %v7977
  %v8224 = vmul.f32 %v7175, %v7992
  %v8225 = vmul.f32 %v7178, %v8007
  %v8226 = vmul.f32 %v7181, %v8022
  %v8227 = vmul.f32 %v7184, %v8037
  %v8228 = vmul.f32 %v7187, %v8052
  %v8229 = vmul.f32 %v7190, %v8067
  %v8230 = vmul.f32 %v7193, %v8082
  %v8231 = vmul.f32 %v7196, %v8097
  %v8232 = vmul.f32 %v7199, %v8112
  %v8233 = vmul.f32 %v7202, %v8127
  %v8234 = vmul.f32 %v7205, %v8142
  %v8235 = vmul.f32 %v7208, %v8157
  %v8236 = vmul.f32 %v7211, %v8172
  %8237 = vrot.lane.b32.xlu0 %v84, 104
  %v8238 = vpop.permute.xlu0 %8237
  %8239 = vrot.lane.b32.xlu0 %v85, 104
  %v8240 = vpop.permute.xlu0 %8239
  %8241 = vrot.lane.b32.xlu0 %v86, 104
  %v8242 = vpop.permute.xlu0 %8241
  %8243 = vrot.lane.b32.xlu0 %v87, 104
  %v8244 = vpop.permute.xlu0 %8243
  %8245 = vrot.lane.b32.xlu0 %v88, 104
  %v8246 = vpop.permute.xlu0 %8245
  %8247 = vrot.lane.b32.xlu0 %v89, 104
  %v8248 = vpop.permute.xlu0 %8247
  %8249 = vrot.lane.b32.xlu0 %v90, 104
  %v8250 = vpop.permute.xlu0 %8249
  %8251 = vrot.lane.b32.xlu0 %v91, 104
  %v8252 = vpop.permute.xlu0 %8251
  %8253 = vrot.lane.b32.xlu0 %v92, 104
  %v8254 = vpop.permute.xlu0 %8253
  %8255 = vrot.lane.b32.xlu0 %v93, 104
  %v8256 = vpop.permute.xlu0 %8255
  %8257 = vrot.lane.b32.xlu0 %v94, 104
  %v8258 = vpop.permute.xlu0 %8257
  %8259 = vrot.lane.b32.xlu0 %v95, 104
  %v8260 = vpop.permute.xlu0 %8259
  %8261 = vrot.lane.b32.xlu0 %v96, 104
  %v8262 = vpop.permute.xlu0 %8261
  %8263 = vrot.lane.b32.xlu0 %v97, 104
  %v8264 = vpop.permute.xlu0 %8263
  %8265 = vrot.lane.b32.xlu0 %v98, 104
  %v8266 = vpop.permute.xlu0 %8265
  %8267 = vrot.lane.b32.xlu0 %v99, 104
  %v8268 = vpop.permute.xlu0 %8267
  %8269 = vrot.lane.b32.xlu0 %v19, 72
  %v8270 = vpop.permute.xlu0 %8269
  %8271 = vrot.lane.b32.xlu0 %v20, 72
  %v8272 = vpop.permute.xlu0 %8271
  %8273 = vrot.lane.b32.xlu0 %v21, 72
  %v8274 = vpop.permute.xlu0 %8273
  %8275 = vrot.lane.b32.xlu0 %v22, 72
  %v8276 = vpop.permute.xlu0 %8275
  %8277 = vrot.lane.b32.xlu0 %v23, 72
  %v8278 = vpop.permute.xlu0 %8277
  %8279 = vrot.lane.b32.xlu0 %v24, 72
  %v8280 = vpop.permute.xlu0 %8279
  %8281 = vrot.lane.b32.xlu0 %v25, 72
  %v8282 = vpop.permute.xlu0 %8281
  %8283 = vrot.lane.b32.xlu0 %v26, 72
  %v8284 = vpop.permute.xlu0 %8283
  %8285 = vrot.lane.b32.xlu0 %v27, 72
  %v8286 = vpop.permute.xlu0 %8285
  %8287 = vrot.lane.b32.xlu0 %v28, 72
  %v8288 = vpop.permute.xlu0 %8287
  %8289 = vrot.lane.b32.xlu0 %v29, 72
  %v8290 = vpop.permute.xlu0 %8289
  %8291 = vrot.lane.b32.xlu0 %v30, 72
  %v8292 = vpop.permute.xlu0 %8291
  %8293 = vrot.lane.b32.xlu0 %v31, 72
  %v8294 = vpop.permute.xlu0 %8293
  %8295 = vrot.lane.b32.xlu0 %v32, 72
  %v8296 = vpop.permute.xlu0 %8295
  %8297 = vrot.lane.b32.xlu0 %v33, 72
  %v8298 = vpop.permute.xlu0 %8297
  %8299 = vrot.lane.b32.xlu0 %v34, 72
  %v8300 = vpop.permute.xlu0 %8299
  %v8301 = vsel %vm196, %v8238, 0
  %v8303 = vsel %vm196, %v8240, 0
  %v8305 = vsel %vm196, %v8242, 0
  %v8307 = vsel %vm196, %v8244, 0
  %v8309 = vsel %vm196, %v8246, 0
  %v8311 = vsel %vm196, %v8248, 0
  %v8313 = vsel %vm196, %v8250, 0
  %v8315 = vsel %vm196, %v8252, 0
  %v8317 = vsel %vm196, %v8254, 0
  %v8319 = vsel %vm196, %v8256, 0
  %v8321 = vsel %vm196, %v8258, 0
  %v8323 = vsel %vm196, %v8260, 0
  %v8325 = vsel %vm196, %v8262, 0
  %v8327 = vsel %vm196, %v8264, 0
  %v8329 = vsel %vm196, %v8266, 0
  %v8331 = vsel %vm196, %v8268, 0
  %v8333 = vsel %vm196, %v8270, 0
  %v8335 = vsel %vm196, %v8272, 0
  %v8337 = vsel %vm196, %v8274, 0
  %v8339 = vsel %vm196, %v8276, 0
  %v8341 = vsel %vm196, %v8278, 0
  %v8343 = vsel %vm196, %v8280, 0
  %v8345 = vsel %vm196, %v8282, 0
  %v8347 = vsel %vm196, %v8284, 0
  %v8349 = vsel %vm196, %v8286, 0
  %v8351 = vsel %vm196, %v8288, 0
  %v8353 = vsel %vm196, %v8290, 0
  %v8355 = vsel %vm196, %v8292, 0
  %v8357 = vsel %vm196, %v8294, 0
  %v8359 = vsel %vm196, %v8296, 0
  %v8361 = vsel %vm196, %v8298, 0
  %v8363 = vsel %vm196, %v8300, 0
  %8365 = vmatpush.xpose.msra.mxu0 %v8363
  %8366 = vmatpush.xpose.msra.mxu0 %v8361
  %8367 = vmatpush.xpose.msra.mxu0 %v8359
  %8368 = vmatpush.xpose.msra.mxu0 %v8357
  %8369 = vmatpush.xpose.msra.mxu0 %v8355
  %8370 = vmatpush.xpose.msra.mxu0 %v8353
  %8371 = vmatpush.xpose.msra.mxu0 %v8351
  %8372 = vmatpush.xpose.msra.mxu0 %v8349
  %8373 = vmatpush.xpose.msra.mxu0 %v8347
  %8374 = vmatpush.xpose.msra.mxu0 %v8345
  %8375 = vmatpush.xpose.msra.mxu0 %v8343
  %8376 = vmatpush.xpose.msra.mxu0 %v8341
  %8377 = vmatpush.xpose.msra.mxu0 %v8339
  %8378 = vmatpush.xpose.msra.mxu0 %v8337
  %8379 = vmatpush.xpose.msra.mxu0 %v8335
  %8380 = vmatpush.xpose.msra.mxu0 %v8333
  %8381 = vmatmul.f32.gmra.mxu0 %v8301
  %v8382 = vpop.f32.mrf.mxu0
  %v8383 = vadd.f32 0.0, %v8382
  %8384 = vmatmul.f32.gmra.mxu0 %v8303
  %v8385 = vpop.f32.mrf.mxu0
  %v8386 = vadd.f32 0.0, %v8385
  %8387 = vmatmul.f32.gmra.mxu0 %v8305
  %v8388 = vpop.f32.mrf.mxu0
  %v8389 = vadd.f32 0.0, %v8388
  %8390 = vmatmul.f32.gmra.mxu0 %v8307
  %v8391 = vpop.f32.mrf.mxu0
  %v8392 = vadd.f32 0.0, %v8391
  %8393 = vmatmul.f32.gmra.mxu0 %v8309
  %v8394 = vpop.f32.mrf.mxu0
  %v8395 = vadd.f32 0.0, %v8394
  %8396 = vmatmul.f32.gmra.mxu0 %v8311
  %v8397 = vpop.f32.mrf.mxu0
  %v8398 = vadd.f32 0.0, %v8397
  %8399 = vmatmul.f32.gmra.mxu0 %v8313
  %v8400 = vpop.f32.mrf.mxu0
  %v8401 = vadd.f32 0.0, %v8400
  %8402 = vmatmul.f32.gmra.mxu0 %v8315
  %v8403 = vpop.f32.mrf.mxu0
  %v8404 = vadd.f32 0.0, %v8403
  %8405 = vmatmul.f32.gmra.mxu0 %v8317
  %v8406 = vpop.f32.mrf.mxu0
  %v8407 = vadd.f32 0.0, %v8406
  %8408 = vmatmul.f32.gmra.mxu0 %v8319
  %v8409 = vpop.f32.mrf.mxu0
  %v8410 = vadd.f32 0.0, %v8409
  %8411 = vmatmul.f32.gmra.mxu0 %v8321
  %v8412 = vpop.f32.mrf.mxu0
  %v8413 = vadd.f32 0.0, %v8412
  %8414 = vmatmul.f32.gmra.mxu0 %v8323
  %v8415 = vpop.f32.mrf.mxu0
  %v8416 = vadd.f32 0.0, %v8415
  %8417 = vmatmul.f32.gmra.mxu0 %v8325
  %v8418 = vpop.f32.mrf.mxu0
  %v8419 = vadd.f32 0.0, %v8418
  %8420 = vmatmul.f32.gmra.mxu0 %v8327
  %v8421 = vpop.f32.mrf.mxu0
  %v8422 = vadd.f32 0.0, %v8421
  %8423 = vmatmul.f32.gmra.mxu0 %v8329
  %v8424 = vpop.f32.mrf.mxu0
  %v8425 = vadd.f32 0.0, %v8424
  %8426 = vmatmul.f32.gmra.mxu0 %v8331
  %v8427 = vpop.f32.mrf.mxu0
  %v8428 = vadd.f32 0.0, %v8427
  %8429 = vdwg.mxu0
  %8430 = vrot.lane.b32.xlu0 %v100, 104
  %v8431 = vpop.permute.xlu0 %8430
  %8432 = vrot.lane.b32.xlu0 %v101, 104
  %v8433 = vpop.permute.xlu0 %8432
  %8434 = vrot.lane.b32.xlu0 %v102, 104
  %v8435 = vpop.permute.xlu0 %8434
  %8436 = vrot.lane.b32.xlu0 %v103, 104
  %v8437 = vpop.permute.xlu0 %8436
  %8438 = vrot.lane.b32.xlu0 %v104, 104
  %v8439 = vpop.permute.xlu0 %8438
  %8440 = vrot.lane.b32.xlu0 %v105, 104
  %v8441 = vpop.permute.xlu0 %8440
  %8442 = vrot.lane.b32.xlu0 %v106, 104
  %v8443 = vpop.permute.xlu0 %8442
  %8444 = vrot.lane.b32.xlu0 %v107, 104
  %v8445 = vpop.permute.xlu0 %8444
  %8446 = vrot.lane.b32.xlu0 %v108, 104
  %v8447 = vpop.permute.xlu0 %8446
  %8448 = vrot.lane.b32.xlu0 %v109, 104
  %v8449 = vpop.permute.xlu0 %8448
  %8450 = vrot.lane.b32.xlu0 %v110, 104
  %v8451 = vpop.permute.xlu0 %8450
  %8452 = vrot.lane.b32.xlu0 %v111, 104
  %v8453 = vpop.permute.xlu0 %8452
  %8454 = vrot.lane.b32.xlu0 %v112, 104
  %v8455 = vpop.permute.xlu0 %8454
  %8456 = vrot.lane.b32.xlu0 %v113, 104
  %v8457 = vpop.permute.xlu0 %8456
  %8458 = vrot.lane.b32.xlu0 %v114, 104
  %v8459 = vpop.permute.xlu0 %8458
  %8460 = vrot.lane.b32.xlu0 %v115, 104
  %v8461 = vpop.permute.xlu0 %8460
  %8462 = vrot.lane.b32.xlu0 %v35, 72
  %v8463 = vpop.permute.xlu0 %8462
  %8464 = vrot.lane.b32.xlu0 %v36, 72
  %v8465 = vpop.permute.xlu0 %8464
  %8466 = vrot.lane.b32.xlu0 %v37, 72
  %v8467 = vpop.permute.xlu0 %8466
  %8468 = vrot.lane.b32.xlu0 %v38, 72
  %v8469 = vpop.permute.xlu0 %8468
  %8470 = vrot.lane.b32.xlu0 %v39, 72
  %v8471 = vpop.permute.xlu0 %8470
  %8472 = vrot.lane.b32.xlu0 %v40, 72
  %v8473 = vpop.permute.xlu0 %8472
  %8474 = vrot.lane.b32.xlu0 %v41, 72
  %v8475 = vpop.permute.xlu0 %8474
  %8476 = vrot.lane.b32.xlu0 %v42, 72
  %v8477 = vpop.permute.xlu0 %8476
  %8478 = vrot.lane.b32.xlu0 %v43, 72
  %v8479 = vpop.permute.xlu0 %8478
  %8480 = vrot.lane.b32.xlu0 %v44, 72
  %v8481 = vpop.permute.xlu0 %8480
  %8482 = vrot.lane.b32.xlu0 %v45, 72
  %v8483 = vpop.permute.xlu0 %8482
  %8484 = vrot.lane.b32.xlu0 %v46, 72
  %v8485 = vpop.permute.xlu0 %8484
  %8486 = vrot.lane.b32.xlu0 %v47, 72
  %v8487 = vpop.permute.xlu0 %8486
  %8488 = vrot.lane.b32.xlu0 %v48, 72
  %v8489 = vpop.permute.xlu0 %8488
  %8490 = vrot.lane.b32.xlu0 %v49, 72
  %v8491 = vpop.permute.xlu0 %8490
  %8492 = vrot.lane.b32.xlu0 %v50, 72
  %v8493 = vpop.permute.xlu0 %8492
  %v8494 = vsel %vm196, %v8431, 0
  %v8496 = vsel %vm196, %v8433, 0
  %v8498 = vsel %vm196, %v8435, 0
  %v8500 = vsel %vm196, %v8437, 0
  %v8502 = vsel %vm196, %v8439, 0
  %v8504 = vsel %vm196, %v8441, 0
  %v8506 = vsel %vm196, %v8443, 0
  %v8508 = vsel %vm196, %v8445, 0
  %v8510 = vsel %vm196, %v8447, 0
  %v8512 = vsel %vm196, %v8449, 0
  %v8514 = vsel %vm196, %v8451, 0
  %v8516 = vsel %vm196, %v8453, 0
  %v8518 = vsel %vm196, %v8455, 0
  %v8520 = vsel %vm196, %v8457, 0
  %v8522 = vsel %vm196, %v8459, 0
  %v8524 = vsel %vm196, %v8461, 0
  %v8526 = vsel %vm196, %v8463, 0
  %v8528 = vsel %vm196, %v8465, 0
  %v8530 = vsel %vm196, %v8467, 0
  %v8532 = vsel %vm196, %v8469, 0
  %v8534 = vsel %vm196, %v8471, 0
  %v8536 = vsel %vm196, %v8473, 0
  %v8538 = vsel %vm196, %v8475, 0
  %v8540 = vsel %vm196, %v8477, 0
  %v8542 = vsel %vm196, %v8479, 0
  %v8544 = vsel %vm196, %v8481, 0
  %v8546 = vsel %vm196, %v8483, 0
  %v8548 = vsel %vm196, %v8485, 0
  %v8550 = vsel %vm196, %v8487, 0
  %v8552 = vsel %vm196, %v8489, 0
  %v8554 = vsel %vm196, %v8491, 0
  %v8556 = vsel %vm196, %v8493, 0
  %8558 = vmatpush.xpose.msra.mxu0 %v8556
  %8559 = vmatpush.xpose.msra.mxu0 %v8554
  %8560 = vmatpush.xpose.msra.mxu0 %v8552
  %8561 = vmatpush.xpose.msra.mxu0 %v8550
  %8562 = vmatpush.xpose.msra.mxu0 %v8548
  %8563 = vmatpush.xpose.msra.mxu0 %v8546
  %8564 = vmatpush.xpose.msra.mxu0 %v8544
  %8565 = vmatpush.xpose.msra.mxu0 %v8542
  %8566 = vmatpush.xpose.msra.mxu0 %v8540
  %8567 = vmatpush.xpose.msra.mxu0 %v8538
  %8568 = vmatpush.xpose.msra.mxu0 %v8536
  %8569 = vmatpush.xpose.msra.mxu0 %v8534
  %8570 = vmatpush.xpose.msra.mxu0 %v8532
  %8571 = vmatpush.xpose.msra.mxu0 %v8530
  %8572 = vmatpush.xpose.msra.mxu0 %v8528
  %8573 = vmatpush.xpose.msra.mxu0 %v8526
  %8574 = vmatmul.f32.gmra.mxu0 %v8494
  %v8575 = vpop.f32.mrf.mxu0
  %v8576 = vadd.f32 0.0, %v8575
  %8577 = vmatmul.f32.gmra.mxu0 %v8496
  %v8578 = vpop.f32.mrf.mxu0
  %v8579 = vadd.f32 0.0, %v8578
  %8580 = vmatmul.f32.gmra.mxu0 %v8498
  %v8581 = vpop.f32.mrf.mxu0
  %v8582 = vadd.f32 0.0, %v8581
  %8583 = vmatmul.f32.gmra.mxu0 %v8500
  %v8584 = vpop.f32.mrf.mxu0
  %v8585 = vadd.f32 0.0, %v8584
  %8586 = vmatmul.f32.gmra.mxu0 %v8502
  %v8587 = vpop.f32.mrf.mxu0
  %v8588 = vadd.f32 0.0, %v8587
  %8589 = vmatmul.f32.gmra.mxu0 %v8504
  %v8590 = vpop.f32.mrf.mxu0
  %v8591 = vadd.f32 0.0, %v8590
  %8592 = vmatmul.f32.gmra.mxu0 %v8506
  %v8593 = vpop.f32.mrf.mxu0
  %v8594 = vadd.f32 0.0, %v8593
  %8595 = vmatmul.f32.gmra.mxu0 %v8508
  %v8596 = vpop.f32.mrf.mxu0
  %v8597 = vadd.f32 0.0, %v8596
  %8598 = vmatmul.f32.gmra.mxu0 %v8510
  %v8599 = vpop.f32.mrf.mxu0
  %v8600 = vadd.f32 0.0, %v8599
  %8601 = vmatmul.f32.gmra.mxu0 %v8512
  %v8602 = vpop.f32.mrf.mxu0
  %v8603 = vadd.f32 0.0, %v8602
  %8604 = vmatmul.f32.gmra.mxu0 %v8514
  %v8605 = vpop.f32.mrf.mxu0
  %v8606 = vadd.f32 0.0, %v8605
  %8607 = vmatmul.f32.gmra.mxu0 %v8516
  %v8608 = vpop.f32.mrf.mxu0
  %v8609 = vadd.f32 0.0, %v8608
  %8610 = vmatmul.f32.gmra.mxu0 %v8518
  %v8611 = vpop.f32.mrf.mxu0
  %v8612 = vadd.f32 0.0, %v8611
  %8613 = vmatmul.f32.gmra.mxu0 %v8520
  %v8614 = vpop.f32.mrf.mxu0
  %v8615 = vadd.f32 0.0, %v8614
  %8616 = vmatmul.f32.gmra.mxu0 %v8522
  %v8617 = vpop.f32.mrf.mxu0
  %v8618 = vadd.f32 0.0, %v8617
  %8619 = vmatmul.f32.gmra.mxu0 %v8524
  %v8620 = vpop.f32.mrf.mxu0
  %v8621 = vadd.f32 0.0, %v8620
  %8622 = vdwg.mxu0
  %8623 = vrot.lane.b32.xlu0 %v116, 104
  %v8624 = vpop.permute.xlu0 %8623
  %8625 = vrot.lane.b32.xlu0 %v117, 104
  %v8626 = vpop.permute.xlu0 %8625
  %8627 = vrot.lane.b32.xlu0 %v118, 104
  %v8628 = vpop.permute.xlu0 %8627
  %8629 = vrot.lane.b32.xlu0 %v119, 104
  %v8630 = vpop.permute.xlu0 %8629
  %8631 = vrot.lane.b32.xlu0 %v120, 104
  %v8632 = vpop.permute.xlu0 %8631
  %8633 = vrot.lane.b32.xlu0 %v121, 104
  %v8634 = vpop.permute.xlu0 %8633
  %8635 = vrot.lane.b32.xlu0 %v122, 104
  %v8636 = vpop.permute.xlu0 %8635
  %8637 = vrot.lane.b32.xlu0 %v123, 104
  %v8638 = vpop.permute.xlu0 %8637
  %8639 = vrot.lane.b32.xlu0 %v124, 104
  %v8640 = vpop.permute.xlu0 %8639
  %8641 = vrot.lane.b32.xlu0 %v125, 104
  %v8642 = vpop.permute.xlu0 %8641
  %8643 = vrot.lane.b32.xlu0 %v126, 104
  %v8644 = vpop.permute.xlu0 %8643
  %8645 = vrot.lane.b32.xlu0 %v127, 104
  %v8646 = vpop.permute.xlu0 %8645
  %8647 = vrot.lane.b32.xlu0 %v128, 104
  %v8648 = vpop.permute.xlu0 %8647
  %8649 = vrot.lane.b32.xlu0 %v129, 104
  %v8650 = vpop.permute.xlu0 %8649
  %8651 = vrot.lane.b32.xlu0 %v130, 104
  %v8652 = vpop.permute.xlu0 %8651
  %8653 = vrot.lane.b32.xlu0 %v131, 104
  %v8654 = vpop.permute.xlu0 %8653
  %8655 = vrot.lane.b32.xlu0 %v51, 72
  %v8656 = vpop.permute.xlu0 %8655
  %8657 = vrot.lane.b32.xlu0 %v52, 72
  %v8658 = vpop.permute.xlu0 %8657
  %8659 = vrot.lane.b32.xlu0 %v53, 72
  %v8660 = vpop.permute.xlu0 %8659
  %8661 = vrot.lane.b32.xlu0 %v54, 72
  %v8662 = vpop.permute.xlu0 %8661
  %8663 = vrot.lane.b32.xlu0 %v55, 72
  %v8664 = vpop.permute.xlu0 %8663
  %8665 = vrot.lane.b32.xlu0 %v56, 72
  %v8666 = vpop.permute.xlu0 %8665
  %8667 = vrot.lane.b32.xlu0 %v57, 72
  %v8668 = vpop.permute.xlu0 %8667
  %8669 = vrot.lane.b32.xlu0 %v58, 72
  %v8670 = vpop.permute.xlu0 %8669
  %8671 = vrot.lane.b32.xlu0 %v59, 72
  %v8672 = vpop.permute.xlu0 %8671
  %8673 = vrot.lane.b32.xlu0 %v60, 72
  %v8674 = vpop.permute.xlu0 %8673
  %8675 = vrot.lane.b32.xlu0 %v61, 72
  %v8676 = vpop.permute.xlu0 %8675
  %8677 = vrot.lane.b32.xlu0 %v62, 72
  %v8678 = vpop.permute.xlu0 %8677
  %8679 = vrot.lane.b32.xlu0 %v63, 72
  %v8680 = vpop.permute.xlu0 %8679
  %8681 = vrot.lane.b32.xlu0 %v64, 72
  %v8682 = vpop.permute.xlu0 %8681
  %8683 = vrot.lane.b32.xlu0 %v65, 72
  %v8684 = vpop.permute.xlu0 %8683
  %8685 = vrot.lane.b32.xlu0 %v66, 72
  %v8686 = vpop.permute.xlu0 %8685
  %v8687 = vsel %vm196, %v8624, 0
  %v8689 = vsel %vm196, %v8626, 0
  %v8691 = vsel %vm196, %v8628, 0
  %v8693 = vsel %vm196, %v8630, 0
  %v8695 = vsel %vm196, %v8632, 0
  %v8697 = vsel %vm196, %v8634, 0
  %v8699 = vsel %vm196, %v8636, 0
  %v8701 = vsel %vm196, %v8638, 0
  %v8703 = vsel %vm196, %v8640, 0
  %v8705 = vsel %vm196, %v8642, 0
  %v8707 = vsel %vm196, %v8644, 0
  %v8709 = vsel %vm196, %v8646, 0
  %v8711 = vsel %vm196, %v8648, 0
  %v8713 = vsel %vm196, %v8650, 0
  %v8715 = vsel %vm196, %v8652, 0
  %v8717 = vsel %vm196, %v8654, 0
  %v8719 = vsel %vm196, %v8656, 0
  %v8721 = vsel %vm196, %v8658, 0
  %v8723 = vsel %vm196, %v8660, 0
  %v8725 = vsel %vm196, %v8662, 0
  %v8727 = vsel %vm196, %v8664, 0
  %v8729 = vsel %vm196, %v8666, 0
  %v8731 = vsel %vm196, %v8668, 0
  %v8733 = vsel %vm196, %v8670, 0
  %v8735 = vsel %vm196, %v8672, 0
  %v8737 = vsel %vm196, %v8674, 0
  %v8739 = vsel %vm196, %v8676, 0
  %v8741 = vsel %vm196, %v8678, 0
  %v8743 = vsel %vm196, %v8680, 0
  %v8745 = vsel %vm196, %v8682, 0
  %v8747 = vsel %vm196, %v8684, 0
  %v8749 = vsel %vm196, %v8686, 0
  %8751 = vmatpush.xpose.msra.mxu0 %v8749
  %8752 = vmatpush.xpose.msra.mxu0 %v8747
  %8753 = vmatpush.xpose.msra.mxu0 %v8745
  %8754 = vmatpush.xpose.msra.mxu0 %v8743
  %8755 = vmatpush.xpose.msra.mxu0 %v8741
  %8756 = vmatpush.xpose.msra.mxu0 %v8739
  %8757 = vmatpush.xpose.msra.mxu0 %v8737
  %8758 = vmatpush.xpose.msra.mxu0 %v8735
  %8759 = vmatpush.xpose.msra.mxu0 %v8733
  %8760 = vmatpush.xpose.msra.mxu0 %v8731
  %8761 = vmatpush.xpose.msra.mxu0 %v8729
  %8762 = vmatpush.xpose.msra.mxu0 %v8727
  %8763 = vmatpush.xpose.msra.mxu0 %v8725
  %8764 = vmatpush.xpose.msra.mxu0 %v8723
  %8765 = vmatpush.xpose.msra.mxu0 %v8721
  %8766 = vmatpush.xpose.msra.mxu0 %v8719
  %8767 = vmatmul.f32.gmra.mxu0 %v8687
  %v8768 = vpop.f32.mrf.mxu0
  %v8769 = vadd.f32 0.0, %v8768
  %8770 = vmatmul.f32.gmra.mxu0 %v8689
  %v8771 = vpop.f32.mrf.mxu0
  %v8772 = vadd.f32 0.0, %v8771
  %8773 = vmatmul.f32.gmra.mxu0 %v8691
  %v8774 = vpop.f32.mrf.mxu0
  %v8775 = vadd.f32 0.0, %v8774
  %8776 = vmatmul.f32.gmra.mxu0 %v8693
  %v8777 = vpop.f32.mrf.mxu0
  %v8778 = vadd.f32 0.0, %v8777
  %8779 = vmatmul.f32.gmra.mxu0 %v8695
  %v8780 = vpop.f32.mrf.mxu0
  %v8781 = vadd.f32 0.0, %v8780
  %8782 = vmatmul.f32.gmra.mxu0 %v8697
  %v8783 = vpop.f32.mrf.mxu0
  %v8784 = vadd.f32 0.0, %v8783
  %8785 = vmatmul.f32.gmra.mxu0 %v8699
  %v8786 = vpop.f32.mrf.mxu0
  %v8787 = vadd.f32 0.0, %v8786
  %8788 = vmatmul.f32.gmra.mxu0 %v8701
  %v8789 = vpop.f32.mrf.mxu0
  %v8790 = vadd.f32 0.0, %v8789
  %8791 = vmatmul.f32.gmra.mxu0 %v8703
  %v8792 = vpop.f32.mrf.mxu0
  %v8793 = vadd.f32 0.0, %v8792
  %8794 = vmatmul.f32.gmra.mxu0 %v8705
  %v8795 = vpop.f32.mrf.mxu0
  %v8796 = vadd.f32 0.0, %v8795
  %8797 = vmatmul.f32.gmra.mxu0 %v8707
  %v8798 = vpop.f32.mrf.mxu0
  %v8799 = vadd.f32 0.0, %v8798
  %8800 = vmatmul.f32.gmra.mxu0 %v8709
  %v8801 = vpop.f32.mrf.mxu0
  %v8802 = vadd.f32 0.0, %v8801
  %8803 = vmatmul.f32.gmra.mxu0 %v8711
  %v8804 = vpop.f32.mrf.mxu0
  %v8805 = vadd.f32 0.0, %v8804
  %8806 = vmatmul.f32.gmra.mxu0 %v8713
  %v8807 = vpop.f32.mrf.mxu0
  %v8808 = vadd.f32 0.0, %v8807
  %8809 = vmatmul.f32.gmra.mxu0 %v8715
  %v8810 = vpop.f32.mrf.mxu0
  %v8811 = vadd.f32 0.0, %v8810
  %8812 = vmatmul.f32.gmra.mxu0 %v8717
  %v8813 = vpop.f32.mrf.mxu0
  %v8814 = vadd.f32 0.0, %v8813
  %8815 = vdwg.mxu0
  %8816 = vrot.lane.b32.xlu0 %v132, 104
  %v8817 = vpop.permute.xlu0 %8816
  %8818 = vrot.lane.b32.xlu0 %v133, 104
  %v8819 = vpop.permute.xlu0 %8818
  %8820 = vrot.lane.b32.xlu0 %v134, 104
  %v8821 = vpop.permute.xlu0 %8820
  %8822 = vrot.lane.b32.xlu0 %v135, 104
  %v8823 = vpop.permute.xlu0 %8822
  %8824 = vrot.lane.b32.xlu0 %v136, 104
  %v8825 = vpop.permute.xlu0 %8824
  %8826 = vrot.lane.b32.xlu0 %v137, 104
  %v8827 = vpop.permute.xlu0 %8826
  %8828 = vrot.lane.b32.xlu0 %v138, 104
  %v8829 = vpop.permute.xlu0 %8828
  %8830 = vrot.lane.b32.xlu0 %v139, 104
  %v8831 = vpop.permute.xlu0 %8830
  %8832 = vrot.lane.b32.xlu0 %v140, 104
  %v8833 = vpop.permute.xlu0 %8832
  %8834 = vrot.lane.b32.xlu0 %v141, 104
  %v8835 = vpop.permute.xlu0 %8834
  %8836 = vrot.lane.b32.xlu0 %v142, 104
  %v8837 = vpop.permute.xlu0 %8836
  %8838 = vrot.lane.b32.xlu0 %v143, 104
  %v8839 = vpop.permute.xlu0 %8838
  %8840 = vrot.lane.b32.xlu0 %v144, 104
  %v8841 = vpop.permute.xlu0 %8840
  %8842 = vrot.lane.b32.xlu0 %v145, 104
  %v8843 = vpop.permute.xlu0 %8842
  %8844 = vrot.lane.b32.xlu0 %v146, 104
  %v8845 = vpop.permute.xlu0 %8844
  %8846 = vrot.lane.b32.xlu0 %v147, 104
  %v8847 = vpop.permute.xlu0 %8846
  %8848 = vrot.lane.b32.xlu0 %v67, 72
  %v8849 = vpop.permute.xlu0 %8848
  %8850 = vrot.lane.b32.xlu0 %v68, 72
  %v8851 = vpop.permute.xlu0 %8850
  %8852 = vrot.lane.b32.xlu0 %v69, 72
  %v8853 = vpop.permute.xlu0 %8852
  %8854 = vrot.lane.b32.xlu0 %v70, 72
  %v8855 = vpop.permute.xlu0 %8854
  %8856 = vrot.lane.b32.xlu0 %v71, 72
  %v8857 = vpop.permute.xlu0 %8856
  %8858 = vrot.lane.b32.xlu0 %v72, 72
  %v8859 = vpop.permute.xlu0 %8858
  %8860 = vrot.lane.b32.xlu0 %v73, 72
  %v8861 = vpop.permute.xlu0 %8860
  %8862 = vrot.lane.b32.xlu0 %v74, 72
  %v8863 = vpop.permute.xlu0 %8862
  %8864 = vrot.lane.b32.xlu0 %v75, 72
  %v8865 = vpop.permute.xlu0 %8864
  %8866 = vrot.lane.b32.xlu0 %v76, 72
  %v8867 = vpop.permute.xlu0 %8866
  %8868 = vrot.lane.b32.xlu0 %v77, 72
  %v8869 = vpop.permute.xlu0 %8868
  %8870 = vrot.lane.b32.xlu0 %v78, 72
  %v8871 = vpop.permute.xlu0 %8870
  %8872 = vrot.lane.b32.xlu0 %v79, 72
  %v8873 = vpop.permute.xlu0 %8872
  %8874 = vrot.lane.b32.xlu0 %v80, 72
  %v8875 = vpop.permute.xlu0 %8874
  %8876 = vrot.lane.b32.xlu0 %v81, 72
  %v8877 = vpop.permute.xlu0 %8876
  %8878 = vrot.lane.b32.xlu0 %v82, 72
  %v8879 = vpop.permute.xlu0 %8878
  %v8880 = vsel %vm196, %v8817, 0
  %v8882 = vsel %vm196, %v8819, 0
  %v8884 = vsel %vm196, %v8821, 0
  %v8886 = vsel %vm196, %v8823, 0
  %v8888 = vsel %vm196, %v8825, 0
  %v8890 = vsel %vm196, %v8827, 0
  %v8892 = vsel %vm196, %v8829, 0
  %v8894 = vsel %vm196, %v8831, 0
  %v8896 = vsel %vm196, %v8833, 0
  %v8898 = vsel %vm196, %v8835, 0
  %v8900 = vsel %vm196, %v8837, 0
  %v8902 = vsel %vm196, %v8839, 0
  %v8904 = vsel %vm196, %v8841, 0
  %v8906 = vsel %vm196, %v8843, 0
  %v8908 = vsel %vm196, %v8845, 0
  %v8910 = vsel %vm196, %v8847, 0
  %v8912 = vsel %vm196, %v8849, 0
  %v8914 = vsel %vm196, %v8851, 0
  %v8916 = vsel %vm196, %v8853, 0
  %v8918 = vsel %vm196, %v8855, 0
  %v8920 = vsel %vm196, %v8857, 0
  %v8922 = vsel %vm196, %v8859, 0
  %v8924 = vsel %vm196, %v8861, 0
  %v8926 = vsel %vm196, %v8863, 0
  %v8928 = vsel %vm196, %v8865, 0
  %v8930 = vsel %vm196, %v8867, 0
  %v8932 = vsel %vm196, %v8869, 0
  %v8934 = vsel %vm196, %v8871, 0
  %v8936 = vsel %vm196, %v8873, 0
  %v8938 = vsel %vm196, %v8875, 0
  %v8940 = vsel %vm196, %v8877, 0
  %v8942 = vsel %vm196, %v8879, 0
  %8944 = vmatpush.xpose.msra.mxu0 %v8942
  %8945 = vmatpush.xpose.msra.mxu0 %v8940
  %8946 = vmatpush.xpose.msra.mxu0 %v8938
  %8947 = vmatpush.xpose.msra.mxu0 %v8936
  %8948 = vmatpush.xpose.msra.mxu0 %v8934
  %8949 = vmatpush.xpose.msra.mxu0 %v8932
  %8950 = vmatpush.xpose.msra.mxu0 %v8930
  %8951 = vmatpush.xpose.msra.mxu0 %v8928
  %8952 = vmatpush.xpose.msra.mxu0 %v8926
  %8953 = vmatpush.xpose.msra.mxu0 %v8924
  %8954 = vmatpush.xpose.msra.mxu0 %v8922
  %8955 = vmatpush.xpose.msra.mxu0 %v8920
  %8956 = vmatpush.xpose.msra.mxu0 %v8918
  %8957 = vmatpush.xpose.msra.mxu0 %v8916
  %8958 = vmatpush.xpose.msra.mxu0 %v8914
  %8959 = vmatpush.xpose.msra.mxu0 %v8912
  %8960 = vmatmul.f32.gmra.mxu0 %v8880
  %v8961 = vpop.f32.mrf.mxu0
  %v8962 = vadd.f32 0.0, %v8961
  %8963 = vmatmul.f32.gmra.mxu0 %v8882
  %v8964 = vpop.f32.mrf.mxu0
  %v8965 = vadd.f32 0.0, %v8964
  %8966 = vmatmul.f32.gmra.mxu0 %v8884
  %v8967 = vpop.f32.mrf.mxu0
  %v8968 = vadd.f32 0.0, %v8967
  %8969 = vmatmul.f32.gmra.mxu0 %v8886
  %v8970 = vpop.f32.mrf.mxu0
  %v8971 = vadd.f32 0.0, %v8970
  %8972 = vmatmul.f32.gmra.mxu0 %v8888
  %v8973 = vpop.f32.mrf.mxu0
  %v8974 = vadd.f32 0.0, %v8973
  %8975 = vmatmul.f32.gmra.mxu0 %v8890
  %v8976 = vpop.f32.mrf.mxu0
  %v8977 = vadd.f32 0.0, %v8976
  %8978 = vmatmul.f32.gmra.mxu0 %v8892
  %v8979 = vpop.f32.mrf.mxu0
  %v8980 = vadd.f32 0.0, %v8979
  %8981 = vmatmul.f32.gmra.mxu0 %v8894
  %v8982 = vpop.f32.mrf.mxu0
  %v8983 = vadd.f32 0.0, %v8982
  %8984 = vmatmul.f32.gmra.mxu0 %v8896
  %v8985 = vpop.f32.mrf.mxu0
  %v8986 = vadd.f32 0.0, %v8985
  %8987 = vmatmul.f32.gmra.mxu0 %v8898
  %v8988 = vpop.f32.mrf.mxu0
  %v8989 = vadd.f32 0.0, %v8988
  %8990 = vmatmul.f32.gmra.mxu0 %v8900
  %v8991 = vpop.f32.mrf.mxu0
  %v8992 = vadd.f32 0.0, %v8991
  %8993 = vmatmul.f32.gmra.mxu0 %v8902
  %v8994 = vpop.f32.mrf.mxu0
  %v8995 = vadd.f32 0.0, %v8994
  %8996 = vmatmul.f32.gmra.mxu0 %v8904
  %v8997 = vpop.f32.mrf.mxu0
  %v8998 = vadd.f32 0.0, %v8997
  %8999 = vmatmul.f32.gmra.mxu0 %v8906
  %v9000 = vpop.f32.mrf.mxu0
  %v9001 = vadd.f32 0.0, %v9000
  %9002 = vmatmul.f32.gmra.mxu0 %v8908
  %v9003 = vpop.f32.mrf.mxu0
  %v9004 = vadd.f32 0.0, %v9003
  %9005 = vmatmul.f32.gmra.mxu0 %v8910
  %v9006 = vpop.f32.mrf.mxu0
  %v9007 = vadd.f32 0.0, %v9006
  %9008 = vdwg.mxu0
  %9009 = vmax.xlane.f32.xlu0 %v8383
  %v9010 = vpop.xlane.xlu0 %9009
  %9011 = vmax.xlane.f32.xlu0 %v8386
  %v9012 = vpop.xlane.xlu0 %9011
  %9013 = vmax.xlane.f32.xlu0 %v8389
  %v9014 = vpop.xlane.xlu0 %9013
  %9015 = vmax.xlane.f32.xlu0 %v8392
  %v9016 = vpop.xlane.xlu0 %9015
  %9017 = vmax.xlane.f32.xlu0 %v8395
  %v9018 = vpop.xlane.xlu0 %9017
  %9019 = vmax.xlane.f32.xlu0 %v8398
  %v9020 = vpop.xlane.xlu0 %9019
  %9021 = vmax.xlane.f32.xlu0 %v8401
  %v9022 = vpop.xlane.xlu0 %9021
  %9023 = vmax.xlane.f32.xlu0 %v8404
  %v9024 = vpop.xlane.xlu0 %9023
  %9025 = vmax.xlane.f32.xlu0 %v8407
  %v9026 = vpop.xlane.xlu0 %9025
  %9027 = vmax.xlane.f32.xlu0 %v8410
  %v9028 = vpop.xlane.xlu0 %9027
  %9029 = vmax.xlane.f32.xlu0 %v8413
  %v9030 = vpop.xlane.xlu0 %9029
  %9031 = vmax.xlane.f32.xlu0 %v8416
  %v9032 = vpop.xlane.xlu0 %9031
  %9033 = vmax.xlane.f32.xlu0 %v8419
  %v9034 = vpop.xlane.xlu0 %9033
  %9035 = vmax.xlane.f32.xlu0 %v8422
  %v9036 = vpop.xlane.xlu0 %9035
  %9037 = vmax.xlane.f32.xlu0 %v8425
  %v9038 = vpop.xlane.xlu0 %9037
  %9039 = vmax.xlane.f32.xlu0 %v8428
  %v9040 = vpop.xlane.xlu0 %9039
  %9041 = vmax.xlane.f32.xlu0 %v8576
  %v9042 = vpop.xlane.xlu0 %9041
  %9043 = vmax.xlane.f32.xlu0 %v8579
  %v9044 = vpop.xlane.xlu0 %9043
  %9045 = vmax.xlane.f32.xlu0 %v8582
  %v9046 = vpop.xlane.xlu0 %9045
  %9047 = vmax.xlane.f32.xlu0 %v8585
  %v9048 = vpop.xlane.xlu0 %9047
  %9049 = vmax.xlane.f32.xlu0 %v8588
  %v9050 = vpop.xlane.xlu0 %9049
  %9051 = vmax.xlane.f32.xlu0 %v8591
  %v9052 = vpop.xlane.xlu0 %9051
  %9053 = vmax.xlane.f32.xlu0 %v8594
  %v9054 = vpop.xlane.xlu0 %9053
  %9055 = vmax.xlane.f32.xlu0 %v8597
  %v9056 = vpop.xlane.xlu0 %9055
  %9057 = vmax.xlane.f32.xlu0 %v8600
  %v9058 = vpop.xlane.xlu0 %9057
  %9059 = vmax.xlane.f32.xlu0 %v8603
  %v9060 = vpop.xlane.xlu0 %9059
  %9061 = vmax.xlane.f32.xlu0 %v8606
  %v9062 = vpop.xlane.xlu0 %9061
  %9063 = vmax.xlane.f32.xlu0 %v8609
  %v9064 = vpop.xlane.xlu0 %9063
  %9065 = vmax.xlane.f32.xlu0 %v8612
  %v9066 = vpop.xlane.xlu0 %9065
  %9067 = vmax.xlane.f32.xlu0 %v8615
  %v9068 = vpop.xlane.xlu0 %9067
  %9069 = vmax.xlane.f32.xlu0 %v8618
  %v9070 = vpop.xlane.xlu0 %9069
  %9071 = vmax.xlane.f32.xlu0 %v8621
  %v9072 = vpop.xlane.xlu0 %9071
  %9073 = vmax.xlane.f32.xlu0 %v8769
  %v9074 = vpop.xlane.xlu0 %9073
  %9075 = vmax.xlane.f32.xlu0 %v8772
  %v9076 = vpop.xlane.xlu0 %9075
  %9077 = vmax.xlane.f32.xlu0 %v8775
  %v9078 = vpop.xlane.xlu0 %9077
  %9079 = vmax.xlane.f32.xlu0 %v8778
  %v9080 = vpop.xlane.xlu0 %9079
  %9081 = vmax.xlane.f32.xlu0 %v8781
  %v9082 = vpop.xlane.xlu0 %9081
  %9083 = vmax.xlane.f32.xlu0 %v8784
  %v9084 = vpop.xlane.xlu0 %9083
  %9085 = vmax.xlane.f32.xlu0 %v8787
  %v9086 = vpop.xlane.xlu0 %9085
  %9087 = vmax.xlane.f32.xlu0 %v8790
  %v9088 = vpop.xlane.xlu0 %9087
  %9089 = vmax.xlane.f32.xlu0 %v8793
  %v9090 = vpop.xlane.xlu0 %9089
  %9091 = vmax.xlane.f32.xlu0 %v8796
  %v9092 = vpop.xlane.xlu0 %9091
  %9093 = vmax.xlane.f32.xlu0 %v8799
  %v9094 = vpop.xlane.xlu0 %9093
  %9095 = vmax.xlane.f32.xlu0 %v8802
  %v9096 = vpop.xlane.xlu0 %9095
  %9097 = vmax.xlane.f32.xlu0 %v8805
  %v9098 = vpop.xlane.xlu0 %9097
  %9099 = vmax.xlane.f32.xlu0 %v8808
  %v9100 = vpop.xlane.xlu0 %9099
  %9101 = vmax.xlane.f32.xlu0 %v8811
  %v9102 = vpop.xlane.xlu0 %9101
  %9103 = vmax.xlane.f32.xlu0 %v8814
  %v9104 = vpop.xlane.xlu0 %9103
  %9105 = vmax.xlane.f32.xlu0 %v8962
  %v9106 = vpop.xlane.xlu0 %9105
  %9107 = vmax.xlane.f32.xlu0 %v8965
  %v9108 = vpop.xlane.xlu0 %9107
  %9109 = vmax.xlane.f32.xlu0 %v8968
  %v9110 = vpop.xlane.xlu0 %9109
  %9111 = vmax.xlane.f32.xlu0 %v8971
  %v9112 = vpop.xlane.xlu0 %9111
  %9113 = vmax.xlane.f32.xlu0 %v8974
  %v9114 = vpop.xlane.xlu0 %9113
  %9115 = vmax.xlane.f32.xlu0 %v8977
  %v9116 = vpop.xlane.xlu0 %9115
  %9117 = vmax.xlane.f32.xlu0 %v8980
  %v9118 = vpop.xlane.xlu0 %9117
  %9119 = vmax.xlane.f32.xlu0 %v8983
  %v9120 = vpop.xlane.xlu0 %9119
  %9121 = vmax.xlane.f32.xlu0 %v8986
  %v9122 = vpop.xlane.xlu0 %9121
  %9123 = vmax.xlane.f32.xlu0 %v8989
  %v9124 = vpop.xlane.xlu0 %9123
  %9125 = vmax.xlane.f32.xlu0 %v8992
  %v9126 = vpop.xlane.xlu0 %9125
  %9127 = vmax.xlane.f32.xlu0 %v8995
  %v9128 = vpop.xlane.xlu0 %9127
  %9129 = vmax.xlane.f32.xlu0 %v8998
  %v9130 = vpop.xlane.xlu0 %9129
  %9131 = vmax.xlane.f32.xlu0 %v9001
  %v9132 = vpop.xlane.xlu0 %9131
  %9133 = vmax.xlane.f32.xlu0 %v9004
  %v9134 = vpop.xlane.xlu0 %9133
  %9135 = vmax.xlane.f32.xlu0 %v9007
  %v9136 = vpop.xlane.xlu0 %9135
  %v9137 = vsub.f32 %v8383, %v9010
  %v9138 = vsub.f32 %v8386, %v9012
  %v9139 = vsub.f32 %v8389, %v9014
  %v9140 = vsub.f32 %v8392, %v9016
  %v9141 = vsub.f32 %v8395, %v9018
  %v9142 = vsub.f32 %v8398, %v9020
  %v9143 = vsub.f32 %v8401, %v9022
  %v9144 = vsub.f32 %v8404, %v9024
  %v9145 = vsub.f32 %v8407, %v9026
  %v9146 = vsub.f32 %v8410, %v9028
  %v9147 = vsub.f32 %v8413, %v9030
  %v9148 = vsub.f32 %v8416, %v9032
  %v9149 = vsub.f32 %v8419, %v9034
  %v9150 = vsub.f32 %v8422, %v9036
  %v9151 = vsub.f32 %v8425, %v9038
  %v9152 = vsub.f32 %v8428, %v9040
  %v9153 = vsub.f32 %v8576, %v9042
  %v9154 = vsub.f32 %v8579, %v9044
  %v9155 = vsub.f32 %v8582, %v9046
  %v9156 = vsub.f32 %v8585, %v9048
  %v9157 = vsub.f32 %v8588, %v9050
  %v9158 = vsub.f32 %v8591, %v9052
  %v9159 = vsub.f32 %v8594, %v9054
  %v9160 = vsub.f32 %v8597, %v9056
  %v9161 = vsub.f32 %v8600, %v9058
  %v9162 = vsub.f32 %v8603, %v9060
  %v9163 = vsub.f32 %v8606, %v9062
  %v9164 = vsub.f32 %v8609, %v9064
  %v9165 = vsub.f32 %v8612, %v9066
  %v9166 = vsub.f32 %v8615, %v9068
  %v9167 = vsub.f32 %v8618, %v9070
  %v9168 = vsub.f32 %v8621, %v9072
  %v9169 = vsub.f32 %v8769, %v9074
  %v9170 = vsub.f32 %v8772, %v9076
  %v9171 = vsub.f32 %v8775, %v9078
  %v9172 = vsub.f32 %v8778, %v9080
  %v9173 = vsub.f32 %v8781, %v9082
  %v9174 = vsub.f32 %v8784, %v9084
  %v9175 = vsub.f32 %v8787, %v9086
  %v9176 = vsub.f32 %v8790, %v9088
  %v9177 = vsub.f32 %v8793, %v9090
  %v9178 = vsub.f32 %v8796, %v9092
  %v9179 = vsub.f32 %v8799, %v9094
  %v9180 = vsub.f32 %v8802, %v9096
  %v9181 = vsub.f32 %v8805, %v9098
  %v9182 = vsub.f32 %v8808, %v9100
  %v9183 = vsub.f32 %v8811, %v9102
  %v9184 = vsub.f32 %v8814, %v9104
  %v9185 = vsub.f32 %v8962, %v9106
  %v9186 = vsub.f32 %v8965, %v9108
  %v9187 = vsub.f32 %v8968, %v9110
  %v9188 = vsub.f32 %v8971, %v9112
  %v9189 = vsub.f32 %v8974, %v9114
  %v9190 = vsub.f32 %v8977, %v9116
  %v9191 = vsub.f32 %v8980, %v9118
  %v9192 = vsub.f32 %v8983, %v9120
  %v9193 = vsub.f32 %v8986, %v9122
  %v9194 = vsub.f32 %v8989, %v9124
  %v9195 = vsub.f32 %v8992, %v9126
  %v9196 = vsub.f32 %v8995, %v9128
  %v9197 = vsub.f32 %v8998, %v9130
  %v9198 = vsub.f32 %v9001, %v9132
  %v9199 = vsub.f32 %v9004, %v9134
  %v9200 = vsub.f32 %v9007, %v9136
  %v9201 = vmul.f32 %v9137, 1.442695
  %v9202 = vpow.pop %v9201
  %v9203 = vmul.f32 %v9138, 1.442695
  %v9204 = vpow.pop %v9203
  %v9205 = vmul.f32 %v9139, 1.442695
  %v9206 = vpow.pop %v9205
  %v9207 = vmul.f32 %v9140, 1.442695
  %v9208 = vpow.pop %v9207
  %v9209 = vmul.f32 %v9141, 1.442695
  %v9210 = vpow.pop %v9209
  %v9211 = vmul.f32 %v9142, 1.442695
  %v9212 = vpow.pop %v9211
  %v9213 = vmul.f32 %v9143, 1.442695
  %v9214 = vpow.pop %v9213
  %v9215 = vmul.f32 %v9144, 1.442695
  %v9216 = vpow.pop %v9215
  %v9217 = vmul.f32 %v9145, 1.442695
  %v9218 = vpow.pop %v9217
  %v9219 = vmul.f32 %v9146, 1.442695
  %v9220 = vpow.pop %v9219
  %v9221 = vmul.f32 %v9147, 1.442695
  %v9222 = vpow.pop %v9221
  %v9223 = vmul.f32 %v9148, 1.442695
  %v9224 = vpow.pop %v9223
  %v9225 = vmul.f32 %v9149, 1.442695
  %v9226 = vpow.pop %v9225
  %v9227 = vmul.f32 %v9150, 1.442695
  %v9228 = vpow.pop %v9227
  %v9229 = vmul.f32 %v9151, 1.442695
  %v9230 = vpow.pop %v9229
  %v9231 = vmul.f32 %v9152, 1.442695
  %v9232 = vpow.pop %v9231
  %v9233 = vmul.f32 %v9153, 1.442695
  %v9234 = vpow.pop %v9233
  %v9235 = vmul.f32 %v9154, 1.442695
  %v9236 = vpow.pop %v9235
  %v9237 = vmul.f32 %v9155, 1.442695
  %v9238 = vpow.pop %v9237
  %v9239 = vmul.f32 %v9156, 1.442695
  %v9240 = vpow.pop %v9239
  %v9241 = vmul.f32 %v9157, 1.442695
  %v9242 = vpow.pop %v9241
  %v9243 = vmul.f32 %v9158, 1.442695
  %v9244 = vpow.pop %v9243
  %v9245 = vmul.f32 %v9159, 1.442695
  %v9246 = vpow.pop %v9245
  %v9247 = vmul.f32 %v9160, 1.442695
  %v9248 = vpow.pop %v9247
  %v9249 = vmul.f32 %v9161, 1.442695
  %v9250 = vpow.pop %v9249
  %v9251 = vmul.f32 %v9162, 1.442695
  %v9252 = vpow.pop %v9251
  %v9253 = vmul.f32 %v9163, 1.442695
  %v9254 = vpow.pop %v9253
  %v9255 = vmul.f32 %v9164, 1.442695
  %v9256 = vpow.pop %v9255
  %v9257 = vmul.f32 %v9165, 1.442695
  %v9258 = vpow.pop %v9257
  %v9259 = vmul.f32 %v9166, 1.442695
  %v9260 = vpow.pop %v9259
  %v9261 = vmul.f32 %v9167, 1.442695
  %v9262 = vpow.pop %v9261
  %v9263 = vmul.f32 %v9168, 1.442695
  %v9264 = vpow.pop %v9263
  %v9265 = vmul.f32 %v9169, 1.442695
  %v9266 = vpow.pop %v9265
  %v9267 = vmul.f32 %v9170, 1.442695
  %v9268 = vpow.pop %v9267
  %v9269 = vmul.f32 %v9171, 1.442695
  %v9270 = vpow.pop %v9269
  %v9271 = vmul.f32 %v9172, 1.442695
  %v9272 = vpow.pop %v9271
  %v9273 = vmul.f32 %v9173, 1.442695
  %v9274 = vpow.pop %v9273
  %v9275 = vmul.f32 %v9174, 1.442695
  %v9276 = vpow.pop %v9275
  %v9277 = vmul.f32 %v9175, 1.442695
  %v9278 = vpow.pop %v9277
  %v9279 = vmul.f32 %v9176, 1.442695
  %v9280 = vpow.pop %v9279
  %v9281 = vmul.f32 %v9177, 1.442695
  %v9282 = vpow.pop %v9281
  %v9283 = vmul.f32 %v9178, 1.442695
  %v9284 = vpow.pop %v9283
  %v9285 = vmul.f32 %v9179, 1.442695
  %v9286 = vpow.pop %v9285
  %v9287 = vmul.f32 %v9180, 1.442695
  %v9288 = vpow.pop %v9287
  %v9289 = vmul.f32 %v9181, 1.442695
  %v9290 = vpow.pop %v9289
  %v9291 = vmul.f32 %v9182, 1.442695
  %v9292 = vpow.pop %v9291
  %v9293 = vmul.f32 %v9183, 1.442695
  %v9294 = vpow.pop %v9293
  %v9295 = vmul.f32 %v9184, 1.442695
  %v9296 = vpow.pop %v9295
  %v9297 = vmul.f32 %v9185, 1.442695
  %v9298 = vpow.pop %v9297
  %v9299 = vmul.f32 %v9186, 1.442695
  %v9300 = vpow.pop %v9299
  %v9301 = vmul.f32 %v9187, 1.442695
  %v9302 = vpow.pop %v9301
  %v9303 = vmul.f32 %v9188, 1.442695
  %v9304 = vpow.pop %v9303
  %v9305 = vmul.f32 %v9189, 1.442695
  %v9306 = vpow.pop %v9305
  %v9307 = vmul.f32 %v9190, 1.442695
  %v9308 = vpow.pop %v9307
  %v9309 = vmul.f32 %v9191, 1.442695
  %v9310 = vpow.pop %v9309
  %v9311 = vmul.f32 %v9192, 1.442695
  %v9312 = vpow.pop %v9311
  %v9313 = vmul.f32 %v9193, 1.442695
  %v9314 = vpow.pop %v9313
  %v9315 = vmul.f32 %v9194, 1.442695
  %v9316 = vpow.pop %v9315
  %v9317 = vmul.f32 %v9195, 1.442695
  %v9318 = vpow.pop %v9317
  %v9319 = vmul.f32 %v9196, 1.442695
  %v9320 = vpow.pop %v9319
  %v9321 = vmul.f32 %v9197, 1.442695
  %v9322 = vpow.pop %v9321
  %v9323 = vmul.f32 %v9198, 1.442695
  %v9324 = vpow.pop %v9323
  %v9325 = vmul.f32 %v9199, 1.442695
  %v9326 = vpow.pop %v9325
  %v9327 = vmul.f32 %v9200, 1.442695
  %v9328 = vpow.pop %v9327
  %9329 = vadd.xlane.f32.xlu0 %v9202
  %v9330 = vpop.xlane.xlu0 %9329
  %9331 = vadd.xlane.f32.xlu0 %v9204
  %v9332 = vpop.xlane.xlu0 %9331
  %9333 = vadd.xlane.f32.xlu0 %v9206
  %v9334 = vpop.xlane.xlu0 %9333
  %9335 = vadd.xlane.f32.xlu0 %v9208
  %v9336 = vpop.xlane.xlu0 %9335
  %9337 = vadd.xlane.f32.xlu0 %v9210
  %v9338 = vpop.xlane.xlu0 %9337
  %9339 = vadd.xlane.f32.xlu0 %v9212
  %v9340 = vpop.xlane.xlu0 %9339
  %9341 = vadd.xlane.f32.xlu0 %v9214
  %v9342 = vpop.xlane.xlu0 %9341
  %9343 = vadd.xlane.f32.xlu0 %v9216
  %v9344 = vpop.xlane.xlu0 %9343
  %9345 = vadd.xlane.f32.xlu0 %v9218
  %v9346 = vpop.xlane.xlu0 %9345
  %9347 = vadd.xlane.f32.xlu0 %v9220
  %v9348 = vpop.xlane.xlu0 %9347
  %9349 = vadd.xlane.f32.xlu0 %v9222
  %v9350 = vpop.xlane.xlu0 %9349
  %9351 = vadd.xlane.f32.xlu0 %v9224
  %v9352 = vpop.xlane.xlu0 %9351
  %9353 = vadd.xlane.f32.xlu0 %v9226
  %v9354 = vpop.xlane.xlu0 %9353
  %9355 = vadd.xlane.f32.xlu0 %v9228
  %v9356 = vpop.xlane.xlu0 %9355
  %9357 = vadd.xlane.f32.xlu0 %v9230
  %v9358 = vpop.xlane.xlu0 %9357
  %9359 = vadd.xlane.f32.xlu0 %v9232
  %v9360 = vpop.xlane.xlu0 %9359
  %9361 = vadd.xlane.f32.xlu0 %v9234
  %v9362 = vpop.xlane.xlu0 %9361
  %9363 = vadd.xlane.f32.xlu0 %v9236
  %v9364 = vpop.xlane.xlu0 %9363
  %9365 = vadd.xlane.f32.xlu0 %v9238
  %v9366 = vpop.xlane.xlu0 %9365
  %9367 = vadd.xlane.f32.xlu0 %v9240
  %v9368 = vpop.xlane.xlu0 %9367
  %9369 = vadd.xlane.f32.xlu0 %v9242
  %v9370 = vpop.xlane.xlu0 %9369
  %9371 = vadd.xlane.f32.xlu0 %v9244
  %v9372 = vpop.xlane.xlu0 %9371
  %9373 = vadd.xlane.f32.xlu0 %v9246
  %v9374 = vpop.xlane.xlu0 %9373
  %9375 = vadd.xlane.f32.xlu0 %v9248
  %v9376 = vpop.xlane.xlu0 %9375
  %9377 = vadd.xlane.f32.xlu0 %v9250
  %v9378 = vpop.xlane.xlu0 %9377
  %9379 = vadd.xlane.f32.xlu0 %v9252
  %v9380 = vpop.xlane.xlu0 %9379
  %9381 = vadd.xlane.f32.xlu0 %v9254
  %v9382 = vpop.xlane.xlu0 %9381
  %9383 = vadd.xlane.f32.xlu0 %v9256
  %v9384 = vpop.xlane.xlu0 %9383
  %9385 = vadd.xlane.f32.xlu0 %v9258
  %v9386 = vpop.xlane.xlu0 %9385
  %9387 = vadd.xlane.f32.xlu0 %v9260
  %v9388 = vpop.xlane.xlu0 %9387
  %9389 = vadd.xlane.f32.xlu0 %v9262
  %v9390 = vpop.xlane.xlu0 %9389
  %9391 = vadd.xlane.f32.xlu0 %v9264
  %v9392 = vpop.xlane.xlu0 %9391
  %9393 = vadd.xlane.f32.xlu0 %v9266
  %v9394 = vpop.xlane.xlu0 %9393
  %9395 = vadd.xlane.f32.xlu0 %v9268
  %v9396 = vpop.xlane.xlu0 %9395
  %9397 = vadd.xlane.f32.xlu0 %v9270
  %v9398 = vpop.xlane.xlu0 %9397
  %9399 = vadd.xlane.f32.xlu0 %v9272
  %v9400 = vpop.xlane.xlu0 %9399
  %9401 = vadd.xlane.f32.xlu0 %v9274
  %v9402 = vpop.xlane.xlu0 %9401
  %9403 = vadd.xlane.f32.xlu0 %v9276
  %v9404 = vpop.xlane.xlu0 %9403
  %9405 = vadd.xlane.f32.xlu0 %v9278
  %v9406 = vpop.xlane.xlu0 %9405
  %9407 = vadd.xlane.f32.xlu0 %v9280
  %v9408 = vpop.xlane.xlu0 %9407
  %9409 = vadd.xlane.f32.xlu0 %v9282
  %v9410 = vpop.xlane.xlu0 %9409
  %9411 = vadd.xlane.f32.xlu0 %v9284
  %v9412 = vpop.xlane.xlu0 %9411
  %9413 = vadd.xlane.f32.xlu0 %v9286
  %v9414 = vpop.xlane.xlu0 %9413
  %9415 = vadd.xlane.f32.xlu0 %v9288
  %v9416 = vpop.xlane.xlu0 %9415
  %9417 = vadd.xlane.f32.xlu0 %v9290
  %v9418 = vpop.xlane.xlu0 %9417
  %9419 = vadd.xlane.f32.xlu0 %v9292
  %v9420 = vpop.xlane.xlu0 %9419
  %9421 = vadd.xlane.f32.xlu0 %v9294
  %v9422 = vpop.xlane.xlu0 %9421
  %9423 = vadd.xlane.f32.xlu0 %v9296
  %v9424 = vpop.xlane.xlu0 %9423
  %9425 = vadd.xlane.f32.xlu0 %v9298
  %v9426 = vpop.xlane.xlu0 %9425
  %9427 = vadd.xlane.f32.xlu0 %v9300
  %v9428 = vpop.xlane.xlu0 %9427
  %9429 = vadd.xlane.f32.xlu0 %v9302
  %v9430 = vpop.xlane.xlu0 %9429
  %9431 = vadd.xlane.f32.xlu0 %v9304
  %v9432 = vpop.xlane.xlu0 %9431
  %9433 = vadd.xlane.f32.xlu0 %v9306
  %v9434 = vpop.xlane.xlu0 %9433
  %9435 = vadd.xlane.f32.xlu0 %v9308
  %v9436 = vpop.xlane.xlu0 %9435
  %9437 = vadd.xlane.f32.xlu0 %v9310
  %v9438 = vpop.xlane.xlu0 %9437
  %9439 = vadd.xlane.f32.xlu0 %v9312
  %v9440 = vpop.xlane.xlu0 %9439
  %9441 = vadd.xlane.f32.xlu0 %v9314
  %v9442 = vpop.xlane.xlu0 %9441
  %9443 = vadd.xlane.f32.xlu0 %v9316
  %v9444 = vpop.xlane.xlu0 %9443
  %9445 = vadd.xlane.f32.xlu0 %v9318
  %v9446 = vpop.xlane.xlu0 %9445
  %9447 = vadd.xlane.f32.xlu0 %v9320
  %v9448 = vpop.xlane.xlu0 %9447
  %9449 = vadd.xlane.f32.xlu0 %v9322
  %v9450 = vpop.xlane.xlu0 %9449
  %9451 = vadd.xlane.f32.xlu0 %v9324
  %v9452 = vpop.xlane.xlu0 %9451
  %9453 = vadd.xlane.f32.xlu0 %v9326
  %v9454 = vpop.xlane.xlu0 %9453
  %9455 = vadd.xlane.f32.xlu0 %v9328
  %v9456 = vpop.xlane.xlu0 %9455
  %9457 = vrot.lane.b32.xlu0 %v19, 40
  %v9458 = vpop.permute.xlu0 %9457
  %9459 = vrot.lane.b32.xlu0 %v20, 40
  %v9460 = vpop.permute.xlu0 %9459
  %9461 = vrot.lane.b32.xlu0 %v21, 40
  %v9462 = vpop.permute.xlu0 %9461
  %9463 = vrot.lane.b32.xlu0 %v22, 40
  %v9464 = vpop.permute.xlu0 %9463
  %9465 = vrot.lane.b32.xlu0 %v23, 40
  %v9466 = vpop.permute.xlu0 %9465
  %9467 = vrot.lane.b32.xlu0 %v24, 40
  %v9468 = vpop.permute.xlu0 %9467
  %9469 = vrot.lane.b32.xlu0 %v25, 40
  %v9470 = vpop.permute.xlu0 %9469
  %9471 = vrot.lane.b32.xlu0 %v26, 40
  %v9472 = vpop.permute.xlu0 %9471
  %9473 = vrot.lane.b32.xlu0 %v27, 40
  %v9474 = vpop.permute.xlu0 %9473
  %9475 = vrot.lane.b32.xlu0 %v28, 40
  %v9476 = vpop.permute.xlu0 %9475
  %9477 = vrot.lane.b32.xlu0 %v29, 40
  %v9478 = vpop.permute.xlu0 %9477
  %9479 = vrot.lane.b32.xlu0 %v30, 40
  %v9480 = vpop.permute.xlu0 %9479
  %9481 = vrot.lane.b32.xlu0 %v31, 40
  %v9482 = vpop.permute.xlu0 %9481
  %9483 = vrot.lane.b32.xlu0 %v32, 40
  %v9484 = vpop.permute.xlu0 %9483
  %9485 = vrot.lane.b32.xlu0 %v33, 40
  %v9486 = vpop.permute.xlu0 %9485
  %9487 = vrot.lane.b32.xlu0 %v34, 40
  %v9488 = vpop.permute.xlu0 %9487
  %9505 = vmatpush.msra.mxu0 %v9488
  %9506 = vmatpush.msra.mxu0 %v9486
  %9507 = vmatpush.msra.mxu0 %v9484
  %9508 = vmatpush.msra.mxu0 %v9482
  %9509 = vmatpush.msra.mxu0 %v9480
  %9510 = vmatpush.msra.mxu0 %v9478
  %9511 = vmatpush.msra.mxu0 %v9476
  %9512 = vmatpush.msra.mxu0 %v9474
  %9513 = vmatpush.msra.mxu0 %v9472
  %9514 = vmatpush.msra.mxu0 %v9470
  %9515 = vmatpush.msra.mxu0 %v9468
  %9516 = vmatpush.msra.mxu0 %v9466
  %9517 = vmatpush.msra.mxu0 %v9464
  %9518 = vmatpush.msra.mxu0 %v9462
  %9519 = vmatpush.msra.mxu0 %v9460
  %9520 = vmatpush.msra.mxu0 %v9458
  %9521 = vmatmul.f32.gmra.mxu0 %v9202
  %v9522 = vpop.f32.mrf.mxu0
  %v9523 = vadd.f32 0.0, %v9522
  %9524 = vmatmul.f32.gmra.mxu0 %v9204
  %v9525 = vpop.f32.mrf.mxu0
  %v9526 = vadd.f32 0.0, %v9525
  %9527 = vmatmul.f32.gmra.mxu0 %v9206
  %v9528 = vpop.f32.mrf.mxu0
  %v9529 = vadd.f32 0.0, %v9528
  %9530 = vmatmul.f32.gmra.mxu0 %v9208
  %v9531 = vpop.f32.mrf.mxu0
  %v9532 = vadd.f32 0.0, %v9531
  %9533 = vmatmul.f32.gmra.mxu0 %v9210
  %v9534 = vpop.f32.mrf.mxu0
  %v9535 = vadd.f32 0.0, %v9534
  %9536 = vmatmul.f32.gmra.mxu0 %v9212
  %v9537 = vpop.f32.mrf.mxu0
  %v9538 = vadd.f32 0.0, %v9537
  %9539 = vmatmul.f32.gmra.mxu0 %v9214
  %v9540 = vpop.f32.mrf.mxu0
  %v9541 = vadd.f32 0.0, %v9540
  %9542 = vmatmul.f32.gmra.mxu0 %v9216
  %v9543 = vpop.f32.mrf.mxu0
  %v9544 = vadd.f32 0.0, %v9543
  %9545 = vmatmul.f32.gmra.mxu0 %v9218
  %v9546 = vpop.f32.mrf.mxu0
  %v9547 = vadd.f32 0.0, %v9546
  %9548 = vmatmul.f32.gmra.mxu0 %v9220
  %v9549 = vpop.f32.mrf.mxu0
  %v9550 = vadd.f32 0.0, %v9549
  %9551 = vmatmul.f32.gmra.mxu0 %v9222
  %v9552 = vpop.f32.mrf.mxu0
  %v9553 = vadd.f32 0.0, %v9552
  %9554 = vmatmul.f32.gmra.mxu0 %v9224
  %v9555 = vpop.f32.mrf.mxu0
  %v9556 = vadd.f32 0.0, %v9555
  %9557 = vmatmul.f32.gmra.mxu0 %v9226
  %v9558 = vpop.f32.mrf.mxu0
  %v9559 = vadd.f32 0.0, %v9558
  %9560 = vmatmul.f32.gmra.mxu0 %v9228
  %v9561 = vpop.f32.mrf.mxu0
  %v9562 = vadd.f32 0.0, %v9561
  %9563 = vmatmul.f32.gmra.mxu0 %v9230
  %v9564 = vpop.f32.mrf.mxu0
  %v9565 = vadd.f32 0.0, %v9564
  %9566 = vmatmul.f32.gmra.mxu0 %v9232
  %v9567 = vpop.f32.mrf.mxu0
  %v9568 = vadd.f32 0.0, %v9567
  %9569 = vdwg.mxu0
  %9570 = vrot.lane.b32.xlu0 %v35, 40
  %v9571 = vpop.permute.xlu0 %9570
  %9572 = vrot.lane.b32.xlu0 %v36, 40
  %v9573 = vpop.permute.xlu0 %9572
  %9574 = vrot.lane.b32.xlu0 %v37, 40
  %v9575 = vpop.permute.xlu0 %9574
  %9576 = vrot.lane.b32.xlu0 %v38, 40
  %v9577 = vpop.permute.xlu0 %9576
  %9578 = vrot.lane.b32.xlu0 %v39, 40
  %v9579 = vpop.permute.xlu0 %9578
  %9580 = vrot.lane.b32.xlu0 %v40, 40
  %v9581 = vpop.permute.xlu0 %9580
  %9582 = vrot.lane.b32.xlu0 %v41, 40
  %v9583 = vpop.permute.xlu0 %9582
  %9584 = vrot.lane.b32.xlu0 %v42, 40
  %v9585 = vpop.permute.xlu0 %9584
  %9586 = vrot.lane.b32.xlu0 %v43, 40
  %v9587 = vpop.permute.xlu0 %9586
  %9588 = vrot.lane.b32.xlu0 %v44, 40
  %v9589 = vpop.permute.xlu0 %9588
  %9590 = vrot.lane.b32.xlu0 %v45, 40
  %v9591 = vpop.permute.xlu0 %9590
  %9592 = vrot.lane.b32.xlu0 %v46, 40
  %v9593 = vpop.permute.xlu0 %9592
  %9594 = vrot.lane.b32.xlu0 %v47, 40
  %v9595 = vpop.permute.xlu0 %9594
  %9596 = vrot.lane.b32.xlu0 %v48, 40
  %v9597 = vpop.permute.xlu0 %9596
  %9598 = vrot.lane.b32.xlu0 %v49, 40
  %v9599 = vpop.permute.xlu0 %9598
  %9600 = vrot.lane.b32.xlu0 %v50, 40
  %v9601 = vpop.permute.xlu0 %9600
  %9618 = vmatpush.msra.mxu0 %v9601
  %9619 = vmatpush.msra.mxu0 %v9599
  %9620 = vmatpush.msra.mxu0 %v9597
  %9621 = vmatpush.msra.mxu0 %v9595
  %9622 = vmatpush.msra.mxu0 %v9593
  %9623 = vmatpush.msra.mxu0 %v9591
  %9624 = vmatpush.msra.mxu0 %v9589
  %9625 = vmatpush.msra.mxu0 %v9587
  %9626 = vmatpush.msra.mxu0 %v9585
  %9627 = vmatpush.msra.mxu0 %v9583
  %9628 = vmatpush.msra.mxu0 %v9581
  %9629 = vmatpush.msra.mxu0 %v9579
  %9630 = vmatpush.msra.mxu0 %v9577
  %9631 = vmatpush.msra.mxu0 %v9575
  %9632 = vmatpush.msra.mxu0 %v9573
  %9633 = vmatpush.msra.mxu0 %v9571
  %9634 = vmatmul.f32.gmra.mxu0 %v9234
  %v9635 = vpop.f32.mrf.mxu0
  %v9636 = vadd.f32 0.0, %v9635
  %9637 = vmatmul.f32.gmra.mxu0 %v9236
  %v9638 = vpop.f32.mrf.mxu0
  %v9639 = vadd.f32 0.0, %v9638
  %9640 = vmatmul.f32.gmra.mxu0 %v9238
  %v9641 = vpop.f32.mrf.mxu0
  %v9642 = vadd.f32 0.0, %v9641
  %9643 = vmatmul.f32.gmra.mxu0 %v9240
  %v9644 = vpop.f32.mrf.mxu0
  %v9645 = vadd.f32 0.0, %v9644
  %9646 = vmatmul.f32.gmra.mxu0 %v9242
  %v9647 = vpop.f32.mrf.mxu0
  %v9648 = vadd.f32 0.0, %v9647
  %9649 = vmatmul.f32.gmra.mxu0 %v9244
  %v9650 = vpop.f32.mrf.mxu0
  %v9651 = vadd.f32 0.0, %v9650
  %9652 = vmatmul.f32.gmra.mxu0 %v9246
  %v9653 = vpop.f32.mrf.mxu0
  %v9654 = vadd.f32 0.0, %v9653
  %9655 = vmatmul.f32.gmra.mxu0 %v9248
  %v9656 = vpop.f32.mrf.mxu0
  %v9657 = vadd.f32 0.0, %v9656
  %9658 = vmatmul.f32.gmra.mxu0 %v9250
  %v9659 = vpop.f32.mrf.mxu0
  %v9660 = vadd.f32 0.0, %v9659
  %9661 = vmatmul.f32.gmra.mxu0 %v9252
  %v9662 = vpop.f32.mrf.mxu0
  %v9663 = vadd.f32 0.0, %v9662
  %9664 = vmatmul.f32.gmra.mxu0 %v9254
  %v9665 = vpop.f32.mrf.mxu0
  %v9666 = vadd.f32 0.0, %v9665
  %9667 = vmatmul.f32.gmra.mxu0 %v9256
  %v9668 = vpop.f32.mrf.mxu0
  %v9669 = vadd.f32 0.0, %v9668
  %9670 = vmatmul.f32.gmra.mxu0 %v9258
  %v9671 = vpop.f32.mrf.mxu0
  %v9672 = vadd.f32 0.0, %v9671
  %9673 = vmatmul.f32.gmra.mxu0 %v9260
  %v9674 = vpop.f32.mrf.mxu0
  %v9675 = vadd.f32 0.0, %v9674
  %9676 = vmatmul.f32.gmra.mxu0 %v9262
  %v9677 = vpop.f32.mrf.mxu0
  %v9678 = vadd.f32 0.0, %v9677
  %9679 = vmatmul.f32.gmra.mxu0 %v9264
  %v9680 = vpop.f32.mrf.mxu0
  %v9681 = vadd.f32 0.0, %v9680
  %9682 = vdwg.mxu0
  %9683 = vrot.lane.b32.xlu0 %v51, 40
  %v9684 = vpop.permute.xlu0 %9683
  %9685 = vrot.lane.b32.xlu0 %v52, 40
  %v9686 = vpop.permute.xlu0 %9685
  %9687 = vrot.lane.b32.xlu0 %v53, 40
  %v9688 = vpop.permute.xlu0 %9687
  %9689 = vrot.lane.b32.xlu0 %v54, 40
  %v9690 = vpop.permute.xlu0 %9689
  %9691 = vrot.lane.b32.xlu0 %v55, 40
  %v9692 = vpop.permute.xlu0 %9691
  %9693 = vrot.lane.b32.xlu0 %v56, 40
  %v9694 = vpop.permute.xlu0 %9693
  %9695 = vrot.lane.b32.xlu0 %v57, 40
  %v9696 = vpop.permute.xlu0 %9695
  %9697 = vrot.lane.b32.xlu0 %v58, 40
  %v9698 = vpop.permute.xlu0 %9697
  %9699 = vrot.lane.b32.xlu0 %v59, 40
  %v9700 = vpop.permute.xlu0 %9699
  %9701 = vrot.lane.b32.xlu0 %v60, 40
  %v9702 = vpop.permute.xlu0 %9701
  %9703 = vrot.lane.b32.xlu0 %v61, 40
  %v9704 = vpop.permute.xlu0 %9703
  %9705 = vrot.lane.b32.xlu0 %v62, 40
  %v9706 = vpop.permute.xlu0 %9705
  %9707 = vrot.lane.b32.xlu0 %v63, 40
  %v9708 = vpop.permute.xlu0 %9707
  %9709 = vrot.lane.b32.xlu0 %v64, 40
  %v9710 = vpop.permute.xlu0 %9709
  %9711 = vrot.lane.b32.xlu0 %v65, 40
  %v9712 = vpop.permute.xlu0 %9711
  %9713 = vrot.lane.b32.xlu0 %v66, 40
  %v9714 = vpop.permute.xlu0 %9713
  %9731 = vmatpush.msra.mxu0 %v9714
  %9732 = vmatpush.msra.mxu0 %v9712
  %9733 = vmatpush.msra.mxu0 %v9710
  %9734 = vmatpush.msra.mxu0 %v9708
  %9735 = vmatpush.msra.mxu0 %v9706
  %9736 = vmatpush.msra.mxu0 %v9704
  %9737 = vmatpush.msra.mxu0 %v9702
  %9738 = vmatpush.msra.mxu0 %v9700
  %9739 = vmatpush.msra.mxu0 %v9698
  %9740 = vmatpush.msra.mxu0 %v9696
  %9741 = vmatpush.msra.mxu0 %v9694
  %9742 = vmatpush.msra.mxu0 %v9692
  %9743 = vmatpush.msra.mxu0 %v9690
  %9744 = vmatpush.msra.mxu0 %v9688
  %9745 = vmatpush.msra.mxu0 %v9686
  %9746 = vmatpush.msra.mxu0 %v9684
  %9747 = vmatmul.f32.gmra.mxu0 %v9266
  %v9748 = vpop.f32.mrf.mxu0
  %v9749 = vadd.f32 0.0, %v9748
  %9750 = vmatmul.f32.gmra.mxu0 %v9268
  %v9751 = vpop.f32.mrf.mxu0
  %v9752 = vadd.f32 0.0, %v9751
  %9753 = vmatmul.f32.gmra.mxu0 %v9270
  %v9754 = vpop.f32.mrf.mxu0
  %v9755 = vadd.f32 0.0, %v9754
  %9756 = vmatmul.f32.gmra.mxu0 %v9272
  %v9757 = vpop.f32.mrf.mxu0
  %v9758 = vadd.f32 0.0, %v9757
  %9759 = vmatmul.f32.gmra.mxu0 %v9274
  %v9760 = vpop.f32.mrf.mxu0
  %v9761 = vadd.f32 0.0, %v9760
  %9762 = vmatmul.f32.gmra.mxu0 %v9276
  %v9763 = vpop.f32.mrf.mxu0
  %v9764 = vadd.f32 0.0, %v9763
  %9765 = vmatmul.f32.gmra.mxu0 %v9278
  %v9766 = vpop.f32.mrf.mxu0
  %v9767 = vadd.f32 0.0, %v9766
  %9768 = vmatmul.f32.gmra.mxu0 %v9280
  %v9769 = vpop.f32.mrf.mxu0
  %v9770 = vadd.f32 0.0, %v9769
  %9771 = vmatmul.f32.gmra.mxu0 %v9282
  %v9772 = vpop.f32.mrf.mxu0
  %v9773 = vadd.f32 0.0, %v9772
  %9774 = vmatmul.f32.gmra.mxu0 %v9284
  %v9775 = vpop.f32.mrf.mxu0
  %v9776 = vadd.f32 0.0, %v9775
  %9777 = vmatmul.f32.gmra.mxu0 %v9286
  %v9778 = vpop.f32.mrf.mxu0
  %v9779 = vadd.f32 0.0, %v9778
  %9780 = vmatmul.f32.gmra.mxu0 %v9288
  %v9781 = vpop.f32.mrf.mxu0
  %v9782 = vadd.f32 0.0, %v9781
  %9783 = vmatmul.f32.gmra.mxu0 %v9290
  %v9784 = vpop.f32.mrf.mxu0
  %v9785 = vadd.f32 0.0, %v9784
  %9786 = vmatmul.f32.gmra.mxu0 %v9292
  %v9787 = vpop.f32.mrf.mxu0
  %v9788 = vadd.f32 0.0, %v9787
  %9789 = vmatmul.f32.gmra.mxu0 %v9294
  %v9790 = vpop.f32.mrf.mxu0
  %v9791 = vadd.f32 0.0, %v9790
  %9792 = vmatmul.f32.gmra.mxu0 %v9296
  %v9793 = vpop.f32.mrf.mxu0
  %v9794 = vadd.f32 0.0, %v9793
  %9795 = vdwg.mxu0
  %9796 = vrot.lane.b32.xlu0 %v67, 40
  %v9797 = vpop.permute.xlu0 %9796
  %9798 = vrot.lane.b32.xlu0 %v68, 40
  %v9799 = vpop.permute.xlu0 %9798
  %9800 = vrot.lane.b32.xlu0 %v69, 40
  %v9801 = vpop.permute.xlu0 %9800
  %9802 = vrot.lane.b32.xlu0 %v70, 40
  %v9803 = vpop.permute.xlu0 %9802
  %9804 = vrot.lane.b32.xlu0 %v71, 40
  %v9805 = vpop.permute.xlu0 %9804
  %9806 = vrot.lane.b32.xlu0 %v72, 40
  %v9807 = vpop.permute.xlu0 %9806
  %9808 = vrot.lane.b32.xlu0 %v73, 40
  %v9809 = vpop.permute.xlu0 %9808
  %9810 = vrot.lane.b32.xlu0 %v74, 40
  %v9811 = vpop.permute.xlu0 %9810
  %9812 = vrot.lane.b32.xlu0 %v75, 40
  %v9813 = vpop.permute.xlu0 %9812
  %9814 = vrot.lane.b32.xlu0 %v76, 40
  %v9815 = vpop.permute.xlu0 %9814
  %9816 = vrot.lane.b32.xlu0 %v77, 40
  %v9817 = vpop.permute.xlu0 %9816
  %9818 = vrot.lane.b32.xlu0 %v78, 40
  %v9819 = vpop.permute.xlu0 %9818
  %9820 = vrot.lane.b32.xlu0 %v79, 40
  %v9821 = vpop.permute.xlu0 %9820
  %9822 = vrot.lane.b32.xlu0 %v80, 40
  %v9823 = vpop.permute.xlu0 %9822
  %9824 = vrot.lane.b32.xlu0 %v81, 40
  %v9825 = vpop.permute.xlu0 %9824
  %9826 = vrot.lane.b32.xlu0 %v82, 40
  %v9827 = vpop.permute.xlu0 %9826
  %9844 = vmatpush.msra.mxu0 %v9827
  %9845 = vmatpush.msra.mxu0 %v9825
  %9846 = vmatpush.msra.mxu0 %v9823
  %9847 = vmatpush.msra.mxu0 %v9821
  %9848 = vmatpush.msra.mxu0 %v9819
  %9849 = vmatpush.msra.mxu0 %v9817
  %9850 = vmatpush.msra.mxu0 %v9815
  %9851 = vmatpush.msra.mxu0 %v9813
  %9852 = vmatpush.msra.mxu0 %v9811
  %9853 = vmatpush.msra.mxu0 %v9809
  %9854 = vmatpush.msra.mxu0 %v9807
  %9855 = vmatpush.msra.mxu0 %v9805
  %9856 = vmatpush.msra.mxu0 %v9803
  %9857 = vmatpush.msra.mxu0 %v9801
  %9858 = vmatpush.msra.mxu0 %v9799
  %9859 = vmatpush.msra.mxu0 %v9797
  %9860 = vmatmul.f32.gmra.mxu0 %v9298
  %v9861 = vpop.f32.mrf.mxu0
  %v9862 = vadd.f32 0.0, %v9861
  %9863 = vmatmul.f32.gmra.mxu0 %v9300
  %v9864 = vpop.f32.mrf.mxu0
  %v9865 = vadd.f32 0.0, %v9864
  %9866 = vmatmul.f32.gmra.mxu0 %v9302
  %v9867 = vpop.f32.mrf.mxu0
  %v9868 = vadd.f32 0.0, %v9867
  %9869 = vmatmul.f32.gmra.mxu0 %v9304
  %v9870 = vpop.f32.mrf.mxu0
  %v9871 = vadd.f32 0.0, %v9870
  %9872 = vmatmul.f32.gmra.mxu0 %v9306
  %v9873 = vpop.f32.mrf.mxu0
  %v9874 = vadd.f32 0.0, %v9873
  %9875 = vmatmul.f32.gmra.mxu0 %v9308
  %v9876 = vpop.f32.mrf.mxu0
  %v9877 = vadd.f32 0.0, %v9876
  %9878 = vmatmul.f32.gmra.mxu0 %v9310
  %v9879 = vpop.f32.mrf.mxu0
  %v9880 = vadd.f32 0.0, %v9879
  %9881 = vmatmul.f32.gmra.mxu0 %v9312
  %v9882 = vpop.f32.mrf.mxu0
  %v9883 = vadd.f32 0.0, %v9882
  %9884 = vmatmul.f32.gmra.mxu0 %v9314
  %v9885 = vpop.f32.mrf.mxu0
  %v9886 = vadd.f32 0.0, %v9885
  %9887 = vmatmul.f32.gmra.mxu0 %v9316
  %v9888 = vpop.f32.mrf.mxu0
  %v9889 = vadd.f32 0.0, %v9888
  %9890 = vmatmul.f32.gmra.mxu0 %v9318
  %v9891 = vpop.f32.mrf.mxu0
  %v9892 = vadd.f32 0.0, %v9891
  %9893 = vmatmul.f32.gmra.mxu0 %v9320
  %v9894 = vpop.f32.mrf.mxu0
  %v9895 = vadd.f32 0.0, %v9894
  %9896 = vmatmul.f32.gmra.mxu0 %v9322
  %v9897 = vpop.f32.mrf.mxu0
  %v9898 = vadd.f32 0.0, %v9897
  %9899 = vmatmul.f32.gmra.mxu0 %v9324
  %v9900 = vpop.f32.mrf.mxu0
  %v9901 = vadd.f32 0.0, %v9900
  %9902 = vmatmul.f32.gmra.mxu0 %v9326
  %v9903 = vpop.f32.mrf.mxu0
  %v9904 = vadd.f32 0.0, %v9903
  %9905 = vmatmul.f32.gmra.mxu0 %v9328
  %v9906 = vpop.f32.mrf.mxu0
  %v9907 = vadd.f32 0.0, %v9906
  %9908 = vdwg.mxu0
  %v9909 = vrcp.pop %v9330
  %v9910 = vmul.f32 %v9330, %v9909
  %v9911 = vsub.f32 1.0, %v9910
  %v9912 = vmul.f32 %v9909, %v9911
  %v9913 = vadd.f32 %v9909, %v9912
  %vm9914 = vweird.f32 %v9330
  %vm9915 = vweird.f32 %v9909
  %vm9916 = vmor %vm9914, %vm9915
  %v9917 = vsel %vm9916, %v9909, %v9913
  %v9918 = vand.u32 2147483647, %v9330
  %vm9919 = vcmp.eq.f32.partialorder %v9918, 8.507059e+37
  %v9920 = vand.u32 %v9330, 2147483648
  %v9921 = vor.u32 1.1754944e-38, %v9920
  %v9922 = vsel %vm9919, %v9921, %v9917
  %v9923 = vmul.f32 1.0, %v9922
  %v9924 = vrcp.pop %v9332
  %v9925 = vmul.f32 %v9332, %v9924
  %v9926 = vsub.f32 1.0, %v9925
  %v9927 = vmul.f32 %v9924, %v9926
  %v9928 = vadd.f32 %v9924, %v9927
  %vm9929 = vweird.f32 %v9332
  %vm9930 = vweird.f32 %v9924
  %vm9931 = vmor %vm9929, %vm9930
  %v9932 = vsel %vm9931, %v9924, %v9928
  %v9933 = vand.u32 2147483647, %v9332
  %vm9934 = vcmp.eq.f32.partialorder %v9933, 8.507059e+37
  %v9935 = vand.u32 %v9332, 2147483648
  %v9936 = vor.u32 1.1754944e-38, %v9935
  %v9937 = vsel %vm9934, %v9936, %v9932
  %v9938 = vmul.f32 1.0, %v9937
  %v9939 = vrcp.pop %v9334
  %v9940 = vmul.f32 %v9334, %v9939
  %v9941 = vsub.f32 1.0, %v9940
  %v9942 = vmul.f32 %v9939, %v9941
  %v9943 = vadd.f32 %v9939, %v9942
  %vm9944 = vweird.f32 %v9334
  %vm9945 = vweird.f32 %v9939
  %vm9946 = vmor %vm9944, %vm9945
  %v9947 = vsel %vm9946, %v9939, %v9943
  %v9948 = vand.u32 2147483647, %v9334
  %vm9949 = vcmp.eq.f32.partialorder %v9948, 8.507059e+37
  %v9950 = vand.u32 %v9334, 2147483648
  %v9951 = vor.u32 1.1754944e-38, %v9950
  %v9952 = vsel %vm9949, %v9951, %v9947
  %v9953 = vmul.f32 1.0, %v9952
  %v9954 = vrcp.pop %v9336
  %v9955 = vmul.f32 %v9336, %v9954
  %v9956 = vsub.f32 1.0, %v9955
  %v9957 = vmul.f32 %v9954, %v9956
  %v9958 = vadd.f32 %v9954, %v9957
  %vm9959 = vweird.f32 %v9336
  %vm9960 = vweird.f32 %v9954
  %vm9961 = vmor %vm9959, %vm9960
  %v9962 = vsel %vm9961, %v9954, %v9958
  %v9963 = vand.u32 2147483647, %v9336
  %vm9964 = vcmp.eq.f32.partialorder %v9963, 8.507059e+37
  %v9965 = vand.u32 %v9336, 2147483648
  %v9966 = vor.u32 1.1754944e-38, %v9965
  %v9967 = vsel %vm9964, %v9966, %v9962
  %v9968 = vmul.f32 1.0, %v9967
  %v9969 = vrcp.pop %v9338
  %v9970 = vmul.f32 %v9338, %v9969
  %v9971 = vsub.f32 1.0, %v9970
  %v9972 = vmul.f32 %v9969, %v9971
  %v9973 = vadd.f32 %v9969, %v9972
  %vm9974 = vweird.f32 %v9338
  %vm9975 = vweird.f32 %v9969
  %vm9976 = vmor %vm9974, %vm9975
  %v9977 = vsel %vm9976, %v9969, %v9973
  %v9978 = vand.u32 2147483647, %v9338
  %vm9979 = vcmp.eq.f32.partialorder %v9978, 8.507059e+37
  %v9980 = vand.u32 %v9338, 2147483648
  %v9981 = vor.u32 1.1754944e-38, %v9980
  %v9982 = vsel %vm9979, %v9981, %v9977
  %v9983 = vmul.f32 1.0, %v9982
  %v9984 = vrcp.pop %v9340
  %v9985 = vmul.f32 %v9340, %v9984
  %v9986 = vsub.f32 1.0, %v9985
  %v9987 = vmul.f32 %v9984, %v9986
  %v9988 = vadd.f32 %v9984, %v9987
  %vm9989 = vweird.f32 %v9340
  %vm9990 = vweird.f32 %v9984
  %vm9991 = vmor %vm9989, %vm9990
  %v9992 = vsel %vm9991, %v9984, %v9988
  %v9993 = vand.u32 2147483647, %v9340
  %vm9994 = vcmp.eq.f32.partialorder %v9993, 8.507059e+37
  %v9995 = vand.u32 %v9340, 2147483648
  %v9996 = vor.u32 1.1754944e-38, %v9995
  %v9997 = vsel %vm9994, %v9996, %v9992
  %v9998 = vmul.f32 1.0, %v9997
  %v9999 = vrcp.pop %v9342
  %v10000 = vmul.f32 %v9342, %v9999
  %v10001 = vsub.f32 1.0, %v10000
  %v10002 = vmul.f32 %v9999, %v10001
  %v10003 = vadd.f32 %v9999, %v10002
  %vm10004 = vweird.f32 %v9342
  %vm10005 = vweird.f32 %v9999
  %vm10006 = vmor %vm10004, %vm10005
  %v10007 = vsel %vm10006, %v9999, %v10003
  %v10008 = vand.u32 2147483647, %v9342
  %vm10009 = vcmp.eq.f32.partialorder %v10008, 8.507059e+37
  %v10010 = vand.u32 %v9342, 2147483648
  %v10011 = vor.u32 1.1754944e-38, %v10010
  %v10012 = vsel %vm10009, %v10011, %v10007
  %v10013 = vmul.f32 1.0, %v10012
  %v10014 = vrcp.pop %v9344
  %v10015 = vmul.f32 %v9344, %v10014
  %v10016 = vsub.f32 1.0, %v10015
  %v10017 = vmul.f32 %v10014, %v10016
  %v10018 = vadd.f32 %v10014, %v10017
  %vm10019 = vweird.f32 %v9344
  %vm10020 = vweird.f32 %v10014
  %vm10021 = vmor %vm10019, %vm10020
  %v10022 = vsel %vm10021, %v10014, %v10018
  %v10023 = vand.u32 2147483647, %v9344
  %vm10024 = vcmp.eq.f32.partialorder %v10023, 8.507059e+37
  %v10025 = vand.u32 %v9344, 2147483648
  %v10026 = vor.u32 1.1754944e-38, %v10025
  %v10027 = vsel %vm10024, %v10026, %v10022
  %v10028 = vmul.f32 1.0, %v10027
  %v10029 = vrcp.pop %v9346
  %v10030 = vmul.f32 %v9346, %v10029
  %v10031 = vsub.f32 1.0, %v10030
  %v10032 = vmul.f32 %v10029, %v10031
  %v10033 = vadd.f32 %v10029, %v10032
  %vm10034 = vweird.f32 %v9346
  %vm10035 = vweird.f32 %v10029
  %vm10036 = vmor %vm10034, %vm10035
  %v10037 = vsel %vm10036, %v10029, %v10033
  %v10038 = vand.u32 2147483647, %v9346
  %vm10039 = vcmp.eq.f32.partialorder %v10038, 8.507059e+37
  %v10040 = vand.u32 %v9346, 2147483648
  %v10041 = vor.u32 1.1754944e-38, %v10040
  %v10042 = vsel %vm10039, %v10041, %v10037
  %v10043 = vmul.f32 1.0, %v10042
  %v10044 = vrcp.pop %v9348
  %v10045 = vmul.f32 %v9348, %v10044
  %v10046 = vsub.f32 1.0, %v10045
  %v10047 = vmul.f32 %v10044, %v10046
  %v10048 = vadd.f32 %v10044, %v10047
  %vm10049 = vweird.f32 %v9348
  %vm10050 = vweird.f32 %v10044
  %vm10051 = vmor %vm10049, %vm10050
  %v10052 = vsel %vm10051, %v10044, %v10048
  %v10053 = vand.u32 2147483647, %v9348
  %vm10054 = vcmp.eq.f32.partialorder %v10053, 8.507059e+37
  %v10055 = vand.u32 %v9348, 2147483648
  %v10056 = vor.u32 1.1754944e-38, %v10055
  %v10057 = vsel %vm10054, %v10056, %v10052
  %v10058 = vmul.f32 1.0, %v10057
  %v10059 = vrcp.pop %v9350
  %v10060 = vmul.f32 %v9350, %v10059
  %v10061 = vsub.f32 1.0, %v10060
  %v10062 = vmul.f32 %v10059, %v10061
  %v10063 = vadd.f32 %v10059, %v10062
  %vm10064 = vweird.f32 %v9350
  %vm10065 = vweird.f32 %v10059
  %vm10066 = vmor %vm10064, %vm10065
  %v10067 = vsel %vm10066, %v10059, %v10063
  %v10068 = vand.u32 2147483647, %v9350
  %vm10069 = vcmp.eq.f32.partialorder %v10068, 8.507059e+37
  %v10070 = vand.u32 %v9350, 2147483648
  %v10071 = vor.u32 1.1754944e-38, %v10070
  %v10072 = vsel %vm10069, %v10071, %v10067
  %v10073 = vmul.f32 1.0, %v10072
  %v10074 = vrcp.pop %v9352
  %v10075 = vmul.f32 %v9352, %v10074
  %v10076 = vsub.f32 1.0, %v10075
  %v10077 = vmul.f32 %v10074, %v10076
  %v10078 = vadd.f32 %v10074, %v10077
  %vm10079 = vweird.f32 %v9352
  %vm10080 = vweird.f32 %v10074
  %vm10081 = vmor %vm10079, %vm10080
  %v10082 = vsel %vm10081, %v10074, %v10078
  %v10083 = vand.u32 2147483647, %v9352
  %vm10084 = vcmp.eq.f32.partialorder %v10083, 8.507059e+37
  %v10085 = vand.u32 %v9352, 2147483648
  %v10086 = vor.u32 1.1754944e-38, %v10085
  %v10087 = vsel %vm10084, %v10086, %v10082
  %v10088 = vmul.f32 1.0, %v10087
  %v10089 = vrcp.pop %v9354
  %v10090 = vmul.f32 %v9354, %v10089
  %v10091 = vsub.f32 1.0, %v10090
  %v10092 = vmul.f32 %v10089, %v10091
  %v10093 = vadd.f32 %v10089, %v10092
  %vm10094 = vweird.f32 %v9354
  %vm10095 = vweird.f32 %v10089
  %vm10096 = vmor %vm10094, %vm10095
  %v10097 = vsel %vm10096, %v10089, %v10093
  %v10098 = vand.u32 2147483647, %v9354
  %vm10099 = vcmp.eq.f32.partialorder %v10098, 8.507059e+37
  %v10100 = vand.u32 %v9354, 2147483648
  %v10101 = vor.u32 1.1754944e-38, %v10100
  %v10102 = vsel %vm10099, %v10101, %v10097
  %v10103 = vmul.f32 1.0, %v10102
  %v10104 = vrcp.pop %v9356
  %v10105 = vmul.f32 %v9356, %v10104
  %v10106 = vsub.f32 1.0, %v10105
  %v10107 = vmul.f32 %v10104, %v10106
  %v10108 = vadd.f32 %v10104, %v10107
  %vm10109 = vweird.f32 %v9356
  %vm10110 = vweird.f32 %v10104
  %vm10111 = vmor %vm10109, %vm10110
  %v10112 = vsel %vm10111, %v10104, %v10108
  %v10113 = vand.u32 2147483647, %v9356
  %vm10114 = vcmp.eq.f32.partialorder %v10113, 8.507059e+37
  %v10115 = vand.u32 %v9356, 2147483648
  %v10116 = vor.u32 1.1754944e-38, %v10115
  %v10117 = vsel %vm10114, %v10116, %v10112
  %v10118 = vmul.f32 1.0, %v10117
  %v10119 = vrcp.pop %v9358
  %v10120 = vmul.f32 %v9358, %v10119
  %v10121 = vsub.f32 1.0, %v10120
  %v10122 = vmul.f32 %v10119, %v10121
  %v10123 = vadd.f32 %v10119, %v10122
  %vm10124 = vweird.f32 %v9358
  %vm10125 = vweird.f32 %v10119
  %vm10126 = vmor %vm10124, %vm10125
  %v10127 = vsel %vm10126, %v10119, %v10123
  %v10128 = vand.u32 2147483647, %v9358
  %vm10129 = vcmp.eq.f32.partialorder %v10128, 8.507059e+37
  %v10130 = vand.u32 %v9358, 2147483648
  %v10131 = vor.u32 1.1754944e-38, %v10130
  %v10132 = vsel %vm10129, %v10131, %v10127
  %v10133 = vmul.f32 1.0, %v10132
  %v10134 = vrcp.pop %v9360
  %v10135 = vmul.f32 %v9360, %v10134
  %v10136 = vsub.f32 1.0, %v10135
  %v10137 = vmul.f32 %v10134, %v10136
  %v10138 = vadd.f32 %v10134, %v10137
  %vm10139 = vweird.f32 %v9360
  %vm10140 = vweird.f32 %v10134
  %vm10141 = vmor %vm10139, %vm10140
  %v10142 = vsel %vm10141, %v10134, %v10138
  %v10143 = vand.u32 2147483647, %v9360
  %vm10144 = vcmp.eq.f32.partialorder %v10143, 8.507059e+37
  %v10145 = vand.u32 %v9360, 2147483648
  %v10146 = vor.u32 1.1754944e-38, %v10145
  %v10147 = vsel %vm10144, %v10146, %v10142
  %v10148 = vmul.f32 1.0, %v10147
  %v10149 = vrcp.pop %v9362
  %v10150 = vmul.f32 %v9362, %v10149
  %v10151 = vsub.f32 1.0, %v10150
  %v10152 = vmul.f32 %v10149, %v10151
  %v10153 = vadd.f32 %v10149, %v10152
  %vm10154 = vweird.f32 %v9362
  %vm10155 = vweird.f32 %v10149
  %vm10156 = vmor %vm10154, %vm10155
  %v10157 = vsel %vm10156, %v10149, %v10153
  %v10158 = vand.u32 2147483647, %v9362
  %vm10159 = vcmp.eq.f32.partialorder %v10158, 8.507059e+37
  %v10160 = vand.u32 %v9362, 2147483648
  %v10161 = vor.u32 1.1754944e-38, %v10160
  %v10162 = vsel %vm10159, %v10161, %v10157
  %v10163 = vmul.f32 1.0, %v10162
  %v10164 = vrcp.pop %v9364
  %v10165 = vmul.f32 %v9364, %v10164
  %v10166 = vsub.f32 1.0, %v10165
  %v10167 = vmul.f32 %v10164, %v10166
  %v10168 = vadd.f32 %v10164, %v10167
  %vm10169 = vweird.f32 %v9364
  %vm10170 = vweird.f32 %v10164
  %vm10171 = vmor %vm10169, %vm10170
  %v10172 = vsel %vm10171, %v10164, %v10168
  %v10173 = vand.u32 2147483647, %v9364
  %vm10174 = vcmp.eq.f32.partialorder %v10173, 8.507059e+37
  %v10175 = vand.u32 %v9364, 2147483648
  %v10176 = vor.u32 1.1754944e-38, %v10175
  %v10177 = vsel %vm10174, %v10176, %v10172
  %v10178 = vmul.f32 1.0, %v10177
  %v10179 = vrcp.pop %v9366
  %v10180 = vmul.f32 %v9366, %v10179
  %v10181 = vsub.f32 1.0, %v10180
  %v10182 = vmul.f32 %v10179, %v10181
  %v10183 = vadd.f32 %v10179, %v10182
  %vm10184 = vweird.f32 %v9366
  %vm10185 = vweird.f32 %v10179
  %vm10186 = vmor %vm10184, %vm10185
  %v10187 = vsel %vm10186, %v10179, %v10183
  %v10188 = vand.u32 2147483647, %v9366
  %vm10189 = vcmp.eq.f32.partialorder %v10188, 8.507059e+37
  %v10190 = vand.u32 %v9366, 2147483648
  %v10191 = vor.u32 1.1754944e-38, %v10190
  %v10192 = vsel %vm10189, %v10191, %v10187
  %v10193 = vmul.f32 1.0, %v10192
  %v10194 = vrcp.pop %v9368
  %v10195 = vmul.f32 %v9368, %v10194
  %v10196 = vsub.f32 1.0, %v10195
  %v10197 = vmul.f32 %v10194, %v10196
  %v10198 = vadd.f32 %v10194, %v10197
  %vm10199 = vweird.f32 %v9368
  %vm10200 = vweird.f32 %v10194
  %vm10201 = vmor %vm10199, %vm10200
  %v10202 = vsel %vm10201, %v10194, %v10198
  %v10203 = vand.u32 2147483647, %v9368
  %vm10204 = vcmp.eq.f32.partialorder %v10203, 8.507059e+37
  %v10205 = vand.u32 %v9368, 2147483648
  %v10206 = vor.u32 1.1754944e-38, %v10205
  %v10207 = vsel %vm10204, %v10206, %v10202
  %v10208 = vmul.f32 1.0, %v10207
  %v10209 = vrcp.pop %v9370
  %v10210 = vmul.f32 %v9370, %v10209
  %v10211 = vsub.f32 1.0, %v10210
  %v10212 = vmul.f32 %v10209, %v10211
  %v10213 = vadd.f32 %v10209, %v10212
  %vm10214 = vweird.f32 %v9370
  %vm10215 = vweird.f32 %v10209
  %vm10216 = vmor %vm10214, %vm10215
  %v10217 = vsel %vm10216, %v10209, %v10213
  %v10218 = vand.u32 2147483647, %v9370
  %vm10219 = vcmp.eq.f32.partialorder %v10218, 8.507059e+37
  %v10220 = vand.u32 %v9370, 2147483648
  %v10221 = vor.u32 1.1754944e-38, %v10220
  %v10222 = vsel %vm10219, %v10221, %v10217
  %v10223 = vmul.f32 1.0, %v10222
  %v10224 = vrcp.pop %v9372
  %v10225 = vmul.f32 %v9372, %v10224
  %v10226 = vsub.f32 1.0, %v10225
  %v10227 = vmul.f32 %v10224, %v10226
  %v10228 = vadd.f32 %v10224, %v10227
  %vm10229 = vweird.f32 %v9372
  %vm10230 = vweird.f32 %v10224
  %vm10231 = vmor %vm10229, %vm10230
  %v10232 = vsel %vm10231, %v10224, %v10228
  %v10233 = vand.u32 2147483647, %v9372
  %vm10234 = vcmp.eq.f32.partialorder %v10233, 8.507059e+37
  %v10235 = vand.u32 %v9372, 2147483648
  %v10236 = vor.u32 1.1754944e-38, %v10235
  %v10237 = vsel %vm10234, %v10236, %v10232
  %v10238 = vmul.f32 1.0, %v10237
  %v10239 = vrcp.pop %v9374
  %v10240 = vmul.f32 %v9374, %v10239
  %v10241 = vsub.f32 1.0, %v10240
  %v10242 = vmul.f32 %v10239, %v10241
  %v10243 = vadd.f32 %v10239, %v10242
  %vm10244 = vweird.f32 %v9374
  %vm10245 = vweird.f32 %v10239
  %vm10246 = vmor %vm10244, %vm10245
  %v10247 = vsel %vm10246, %v10239, %v10243
  %v10248 = vand.u32 2147483647, %v9374
  %vm10249 = vcmp.eq.f32.partialorder %v10248, 8.507059e+37
  %v10250 = vand.u32 %v9374, 2147483648
  %v10251 = vor.u32 1.1754944e-38, %v10250
  %v10252 = vsel %vm10249, %v10251, %v10247
  %v10253 = vmul.f32 1.0, %v10252
  %v10254 = vrcp.pop %v9376
  %v10255 = vmul.f32 %v9376, %v10254
  %v10256 = vsub.f32 1.0, %v10255
  %v10257 = vmul.f32 %v10254, %v10256
  %v10258 = vadd.f32 %v10254, %v10257
  %vm10259 = vweird.f32 %v9376
  %vm10260 = vweird.f32 %v10254
  %vm10261 = vmor %vm10259, %vm10260
  %v10262 = vsel %vm10261, %v10254, %v10258
  %v10263 = vand.u32 2147483647, %v9376
  %vm10264 = vcmp.eq.f32.partialorder %v10263, 8.507059e+37
  %v10265 = vand.u32 %v9376, 2147483648
  %v10266 = vor.u32 1.1754944e-38, %v10265
  %v10267 = vsel %vm10264, %v10266, %v10262
  %v10268 = vmul.f32 1.0, %v10267
  %v10269 = vrcp.pop %v9378
  %v10270 = vmul.f32 %v9378, %v10269
  %v10271 = vsub.f32 1.0, %v10270
  %v10272 = vmul.f32 %v10269, %v10271
  %v10273 = vadd.f32 %v10269, %v10272
  %vm10274 = vweird.f32 %v9378
  %vm10275 = vweird.f32 %v10269
  %vm10276 = vmor %vm10274, %vm10275
  %v10277 = vsel %vm10276, %v10269, %v10273
  %v10278 = vand.u32 2147483647, %v9378
  %vm10279 = vcmp.eq.f32.partialorder %v10278, 8.507059e+37
  %v10280 = vand.u32 %v9378, 2147483648
  %v10281 = vor.u32 1.1754944e-38, %v10280
  %v10282 = vsel %vm10279, %v10281, %v10277
  %v10283 = vmul.f32 1.0, %v10282
  %v10284 = vrcp.pop %v9380
  %v10285 = vmul.f32 %v9380, %v10284
  %v10286 = vsub.f32 1.0, %v10285
  %v10287 = vmul.f32 %v10284, %v10286
  %v10288 = vadd.f32 %v10284, %v10287
  %vm10289 = vweird.f32 %v9380
  %vm10290 = vweird.f32 %v10284
  %vm10291 = vmor %vm10289, %vm10290
  %v10292 = vsel %vm10291, %v10284, %v10288
  %v10293 = vand.u32 2147483647, %v9380
  %vm10294 = vcmp.eq.f32.partialorder %v10293, 8.507059e+37
  %v10295 = vand.u32 %v9380, 2147483648
  %v10296 = vor.u32 1.1754944e-38, %v10295
  %v10297 = vsel %vm10294, %v10296, %v10292
  %v10298 = vmul.f32 1.0, %v10297
  %v10299 = vrcp.pop %v9382
  %v10300 = vmul.f32 %v9382, %v10299
  %v10301 = vsub.f32 1.0, %v10300
  %v10302 = vmul.f32 %v10299, %v10301
  %v10303 = vadd.f32 %v10299, %v10302
  %vm10304 = vweird.f32 %v9382
  %vm10305 = vweird.f32 %v10299
  %vm10306 = vmor %vm10304, %vm10305
  %v10307 = vsel %vm10306, %v10299, %v10303
  %v10308 = vand.u32 2147483647, %v9382
  %vm10309 = vcmp.eq.f32.partialorder %v10308, 8.507059e+37
  %v10310 = vand.u32 %v9382, 2147483648
  %v10311 = vor.u32 1.1754944e-38, %v10310
  %v10312 = vsel %vm10309, %v10311, %v10307
  %v10313 = vmul.f32 1.0, %v10312
  %v10314 = vrcp.pop %v9384
  %v10315 = vmul.f32 %v9384, %v10314
  %v10316 = vsub.f32 1.0, %v10315
  %v10317 = vmul.f32 %v10314, %v10316
  %v10318 = vadd.f32 %v10314, %v10317
  %vm10319 = vweird.f32 %v9384
  %vm10320 = vweird.f32 %v10314
  %vm10321 = vmor %vm10319, %vm10320
  %v10322 = vsel %vm10321, %v10314, %v10318
  %v10323 = vand.u32 2147483647, %v9384
  %vm10324 = vcmp.eq.f32.partialorder %v10323, 8.507059e+37
  %v10325 = vand.u32 %v9384, 2147483648
  %v10326 = vor.u32 1.1754944e-38, %v10325
  %v10327 = vsel %vm10324, %v10326, %v10322
  %v10328 = vmul.f32 1.0, %v10327
  %v10329 = vrcp.pop %v9386
  %v10330 = vmul.f32 %v9386, %v10329
  %v10331 = vsub.f32 1.0, %v10330
  %v10332 = vmul.f32 %v10329, %v10331
  %v10333 = vadd.f32 %v10329, %v10332
  %vm10334 = vweird.f32 %v9386
  %vm10335 = vweird.f32 %v10329
  %vm10336 = vmor %vm10334, %vm10335
  %v10337 = vsel %vm10336, %v10329, %v10333
  %v10338 = vand.u32 2147483647, %v9386
  %vm10339 = vcmp.eq.f32.partialorder %v10338, 8.507059e+37
  %v10340 = vand.u32 %v9386, 2147483648
  %v10341 = vor.u32 1.1754944e-38, %v10340
  %v10342 = vsel %vm10339, %v10341, %v10337
  %v10343 = vmul.f32 1.0, %v10342
  %v10344 = vrcp.pop %v9388
  %v10345 = vmul.f32 %v9388, %v10344
  %v10346 = vsub.f32 1.0, %v10345
  %v10347 = vmul.f32 %v10344, %v10346
  %v10348 = vadd.f32 %v10344, %v10347
  %vm10349 = vweird.f32 %v9388
  %vm10350 = vweird.f32 %v10344
  %vm10351 = vmor %vm10349, %vm10350
  %v10352 = vsel %vm10351, %v10344, %v10348
  %v10353 = vand.u32 2147483647, %v9388
  %vm10354 = vcmp.eq.f32.partialorder %v10353, 8.507059e+37
  %v10355 = vand.u32 %v9388, 2147483648
  %v10356 = vor.u32 1.1754944e-38, %v10355
  %v10357 = vsel %vm10354, %v10356, %v10352
  %v10358 = vmul.f32 1.0, %v10357
  %v10359 = vrcp.pop %v9390
  %v10360 = vmul.f32 %v9390, %v10359
  %v10361 = vsub.f32 1.0, %v10360
  %v10362 = vmul.f32 %v10359, %v10361
  %v10363 = vadd.f32 %v10359, %v10362
  %vm10364 = vweird.f32 %v9390
  %vm10365 = vweird.f32 %v10359
  %vm10366 = vmor %vm10364, %vm10365
  %v10367 = vsel %vm10366, %v10359, %v10363
  %v10368 = vand.u32 2147483647, %v9390
  %vm10369 = vcmp.eq.f32.partialorder %v10368, 8.507059e+37
  %v10370 = vand.u32 %v9390, 2147483648
  %v10371 = vor.u32 1.1754944e-38, %v10370
  %v10372 = vsel %vm10369, %v10371, %v10367
  %v10373 = vmul.f32 1.0, %v10372
  %v10374 = vrcp.pop %v9392
  %v10375 = vmul.f32 %v9392, %v10374
  %v10376 = vsub.f32 1.0, %v10375
  %v10377 = vmul.f32 %v10374, %v10376
  %v10378 = vadd.f32 %v10374, %v10377
  %vm10379 = vweird.f32 %v9392
  %vm10380 = vweird.f32 %v10374
  %vm10381 = vmor %vm10379, %vm10380
  %v10382 = vsel %vm10381, %v10374, %v10378
  %v10383 = vand.u32 2147483647, %v9392
  %vm10384 = vcmp.eq.f32.partialorder %v10383, 8.507059e+37
  %v10385 = vand.u32 %v9392, 2147483648
  %v10386 = vor.u32 1.1754944e-38, %v10385
  %v10387 = vsel %vm10384, %v10386, %v10382
  %v10388 = vmul.f32 1.0, %v10387
  %v10389 = vrcp.pop %v9394
  %v10390 = vmul.f32 %v9394, %v10389
  %v10391 = vsub.f32 1.0, %v10390
  %v10392 = vmul.f32 %v10389, %v10391
  %v10393 = vadd.f32 %v10389, %v10392
  %vm10394 = vweird.f32 %v9394
  %vm10395 = vweird.f32 %v10389
  %vm10396 = vmor %vm10394, %vm10395
  %v10397 = vsel %vm10396, %v10389, %v10393
  %v10398 = vand.u32 2147483647, %v9394
  %vm10399 = vcmp.eq.f32.partialorder %v10398, 8.507059e+37
  %v10400 = vand.u32 %v9394, 2147483648
  %v10401 = vor.u32 1.1754944e-38, %v10400
  %v10402 = vsel %vm10399, %v10401, %v10397
  %v10403 = vmul.f32 1.0, %v10402
  %v10404 = vrcp.pop %v9396
  %v10405 = vmul.f32 %v9396, %v10404
  %v10406 = vsub.f32 1.0, %v10405
  %v10407 = vmul.f32 %v10404, %v10406
  %v10408 = vadd.f32 %v10404, %v10407
  %vm10409 = vweird.f32 %v9396
  %vm10410 = vweird.f32 %v10404
  %vm10411 = vmor %vm10409, %vm10410
  %v10412 = vsel %vm10411, %v10404, %v10408
  %v10413 = vand.u32 2147483647, %v9396
  %vm10414 = vcmp.eq.f32.partialorder %v10413, 8.507059e+37
  %v10415 = vand.u32 %v9396, 2147483648
  %v10416 = vor.u32 1.1754944e-38, %v10415
  %v10417 = vsel %vm10414, %v10416, %v10412
  %v10418 = vmul.f32 1.0, %v10417
  %v10419 = vrcp.pop %v9398
  %v10420 = vmul.f32 %v9398, %v10419
  %v10421 = vsub.f32 1.0, %v10420
  %v10422 = vmul.f32 %v10419, %v10421
  %v10423 = vadd.f32 %v10419, %v10422
  %vm10424 = vweird.f32 %v9398
  %vm10425 = vweird.f32 %v10419
  %vm10426 = vmor %vm10424, %vm10425
  %v10427 = vsel %vm10426, %v10419, %v10423
  %v10428 = vand.u32 2147483647, %v9398
  %vm10429 = vcmp.eq.f32.partialorder %v10428, 8.507059e+37
  %v10430 = vand.u32 %v9398, 2147483648
  %v10431 = vor.u32 1.1754944e-38, %v10430
  %v10432 = vsel %vm10429, %v10431, %v10427
  %v10433 = vmul.f32 1.0, %v10432
  %v10434 = vrcp.pop %v9400
  %v10435 = vmul.f32 %v9400, %v10434
  %v10436 = vsub.f32 1.0, %v10435
  %v10437 = vmul.f32 %v10434, %v10436
  %v10438 = vadd.f32 %v10434, %v10437
  %vm10439 = vweird.f32 %v9400
  %vm10440 = vweird.f32 %v10434
  %vm10441 = vmor %vm10439, %vm10440
  %v10442 = vsel %vm10441, %v10434, %v10438
  %v10443 = vand.u32 2147483647, %v9400
  %vm10444 = vcmp.eq.f32.partialorder %v10443, 8.507059e+37
  %v10445 = vand.u32 %v9400, 2147483648
  %v10446 = vor.u32 1.1754944e-38, %v10445
  %v10447 = vsel %vm10444, %v10446, %v10442
  %v10448 = vmul.f32 1.0, %v10447
  %v10449 = vrcp.pop %v9402
  %v10450 = vmul.f32 %v9402, %v10449
  %v10451 = vsub.f32 1.0, %v10450
  %v10452 = vmul.f32 %v10449, %v10451
  %v10453 = vadd.f32 %v10449, %v10452
  %vm10454 = vweird.f32 %v9402
  %vm10455 = vweird.f32 %v10449
  %vm10456 = vmor %vm10454, %vm10455
  %v10457 = vsel %vm10456, %v10449, %v10453
  %v10458 = vand.u32 2147483647, %v9402
  %vm10459 = vcmp.eq.f32.partialorder %v10458, 8.507059e+37
  %v10460 = vand.u32 %v9402, 2147483648
  %v10461 = vor.u32 1.1754944e-38, %v10460
  %v10462 = vsel %vm10459, %v10461, %v10457
  %v10463 = vmul.f32 1.0, %v10462
  %v10464 = vrcp.pop %v9404
  %v10465 = vmul.f32 %v9404, %v10464
  %v10466 = vsub.f32 1.0, %v10465
  %v10467 = vmul.f32 %v10464, %v10466
  %v10468 = vadd.f32 %v10464, %v10467
  %vm10469 = vweird.f32 %v9404
  %vm10470 = vweird.f32 %v10464
  %vm10471 = vmor %vm10469, %vm10470
  %v10472 = vsel %vm10471, %v10464, %v10468
  %v10473 = vand.u32 2147483647, %v9404
  %vm10474 = vcmp.eq.f32.partialorder %v10473, 8.507059e+37
  %v10475 = vand.u32 %v9404, 2147483648
  %v10476 = vor.u32 1.1754944e-38, %v10475
  %v10477 = vsel %vm10474, %v10476, %v10472
  %v10478 = vmul.f32 1.0, %v10477
  %v10479 = vrcp.pop %v9406
  %v10480 = vmul.f32 %v9406, %v10479
  %v10481 = vsub.f32 1.0, %v10480
  %v10482 = vmul.f32 %v10479, %v10481
  %v10483 = vadd.f32 %v10479, %v10482
  %vm10484 = vweird.f32 %v9406
  %vm10485 = vweird.f32 %v10479
  %vm10486 = vmor %vm10484, %vm10485
  %v10487 = vsel %vm10486, %v10479, %v10483
  %v10488 = vand.u32 2147483647, %v9406
  %vm10489 = vcmp.eq.f32.partialorder %v10488, 8.507059e+37
  %v10490 = vand.u32 %v9406, 2147483648
  %v10491 = vor.u32 1.1754944e-38, %v10490
  %v10492 = vsel %vm10489, %v10491, %v10487
  %v10493 = vmul.f32 1.0, %v10492
  %v10494 = vrcp.pop %v9408
  %v10495 = vmul.f32 %v9408, %v10494
  %v10496 = vsub.f32 1.0, %v10495
  %v10497 = vmul.f32 %v10494, %v10496
  %v10498 = vadd.f32 %v10494, %v10497
  %vm10499 = vweird.f32 %v9408
  %vm10500 = vweird.f32 %v10494
  %vm10501 = vmor %vm10499, %vm10500
  %v10502 = vsel %vm10501, %v10494, %v10498
  %v10503 = vand.u32 2147483647, %v9408
  %vm10504 = vcmp.eq.f32.partialorder %v10503, 8.507059e+37
  %v10505 = vand.u32 %v9408, 2147483648
  %v10506 = vor.u32 1.1754944e-38, %v10505
  %v10507 = vsel %vm10504, %v10506, %v10502
  %v10508 = vmul.f32 1.0, %v10507
  %v10509 = vrcp.pop %v9410
  %v10510 = vmul.f32 %v9410, %v10509
  %v10511 = vsub.f32 1.0, %v10510
  %v10512 = vmul.f32 %v10509, %v10511
  %v10513 = vadd.f32 %v10509, %v10512
  %vm10514 = vweird.f32 %v9410
  %vm10515 = vweird.f32 %v10509
  %vm10516 = vmor %vm10514, %vm10515
  %v10517 = vsel %vm10516, %v10509, %v10513
  %v10518 = vand.u32 2147483647, %v9410
  %vm10519 = vcmp.eq.f32.partialorder %v10518, 8.507059e+37
  %v10520 = vand.u32 %v9410, 2147483648
  %v10521 = vor.u32 1.1754944e-38, %v10520
  %v10522 = vsel %vm10519, %v10521, %v10517
  %v10523 = vmul.f32 1.0, %v10522
  %v10524 = vrcp.pop %v9412
  %v10525 = vmul.f32 %v9412, %v10524
  %v10526 = vsub.f32 1.0, %v10525
  %v10527 = vmul.f32 %v10524, %v10526
  %v10528 = vadd.f32 %v10524, %v10527
  %vm10529 = vweird.f32 %v9412
  %vm10530 = vweird.f32 %v10524
  %vm10531 = vmor %vm10529, %vm10530
  %v10532 = vsel %vm10531, %v10524, %v10528
  %v10533 = vand.u32 2147483647, %v9412
  %vm10534 = vcmp.eq.f32.partialorder %v10533, 8.507059e+37
  %v10535 = vand.u32 %v9412, 2147483648
  %v10536 = vor.u32 1.1754944e-38, %v10535
  %v10537 = vsel %vm10534, %v10536, %v10532
  %v10538 = vmul.f32 1.0, %v10537
  %v10539 = vrcp.pop %v9414
  %v10540 = vmul.f32 %v9414, %v10539
  %v10541 = vsub.f32 1.0, %v10540
  %v10542 = vmul.f32 %v10539, %v10541
  %v10543 = vadd.f32 %v10539, %v10542
  %vm10544 = vweird.f32 %v9414
  %vm10545 = vweird.f32 %v10539
  %vm10546 = vmor %vm10544, %vm10545
  %v10547 = vsel %vm10546, %v10539, %v10543
  %v10548 = vand.u32 2147483647, %v9414
  %vm10549 = vcmp.eq.f32.partialorder %v10548, 8.507059e+37
  %v10550 = vand.u32 %v9414, 2147483648
  %v10551 = vor.u32 1.1754944e-38, %v10550
  %v10552 = vsel %vm10549, %v10551, %v10547
  %v10553 = vmul.f32 1.0, %v10552
  %v10554 = vrcp.pop %v9416
  %v10555 = vmul.f32 %v9416, %v10554
  %v10556 = vsub.f32 1.0, %v10555
  %v10557 = vmul.f32 %v10554, %v10556
  %v10558 = vadd.f32 %v10554, %v10557
  %vm10559 = vweird.f32 %v9416
  %vm10560 = vweird.f32 %v10554
  %vm10561 = vmor %vm10559, %vm10560
  %v10562 = vsel %vm10561, %v10554, %v10558
  %v10563 = vand.u32 2147483647, %v9416
  %vm10564 = vcmp.eq.f32.partialorder %v10563, 8.507059e+37
  %v10565 = vand.u32 %v9416, 2147483648
  %v10566 = vor.u32 1.1754944e-38, %v10565
  %v10567 = vsel %vm10564, %v10566, %v10562
  %v10568 = vmul.f32 1.0, %v10567
  %v10569 = vrcp.pop %v9418
  %v10570 = vmul.f32 %v9418, %v10569
  %v10571 = vsub.f32 1.0, %v10570
  %v10572 = vmul.f32 %v10569, %v10571
  %v10573 = vadd.f32 %v10569, %v10572
  %vm10574 = vweird.f32 %v9418
  %vm10575 = vweird.f32 %v10569
  %vm10576 = vmor %vm10574, %vm10575
  %v10577 = vsel %vm10576, %v10569, %v10573
  %v10578 = vand.u32 2147483647, %v9418
  %vm10579 = vcmp.eq.f32.partialorder %v10578, 8.507059e+37
  %v10580 = vand.u32 %v9418, 2147483648
  %v10581 = vor.u32 1.1754944e-38, %v10580
  %v10582 = vsel %vm10579, %v10581, %v10577
  %v10583 = vmul.f32 1.0, %v10582
  %v10584 = vrcp.pop %v9420
  %v10585 = vmul.f32 %v9420, %v10584
  %v10586 = vsub.f32 1.0, %v10585
  %v10587 = vmul.f32 %v10584, %v10586
  %v10588 = vadd.f32 %v10584, %v10587
  %vm10589 = vweird.f32 %v9420
  %vm10590 = vweird.f32 %v10584
  %vm10591 = vmor %vm10589, %vm10590
  %v10592 = vsel %vm10591, %v10584, %v10588
  %v10593 = vand.u32 2147483647, %v9420
  %vm10594 = vcmp.eq.f32.partialorder %v10593, 8.507059e+37
  %v10595 = vand.u32 %v9420, 2147483648
  %v10596 = vor.u32 1.1754944e-38, %v10595
  %v10597 = vsel %vm10594, %v10596, %v10592
  %v10598 = vmul.f32 1.0, %v10597
  %v10599 = vrcp.pop %v9422
  %v10600 = vmul.f32 %v9422, %v10599
  %v10601 = vsub.f32 1.0, %v10600
  %v10602 = vmul.f32 %v10599, %v10601
  %v10603 = vadd.f32 %v10599, %v10602
  %vm10604 = vweird.f32 %v9422
  %vm10605 = vweird.f32 %v10599
  %vm10606 = vmor %vm10604, %vm10605
  %v10607 = vsel %vm10606, %v10599, %v10603
  %v10608 = vand.u32 2147483647, %v9422
  %vm10609 = vcmp.eq.f32.partialorder %v10608, 8.507059e+37
  %v10610 = vand.u32 %v9422, 2147483648
  %v10611 = vor.u32 1.1754944e-38, %v10610
  %v10612 = vsel %vm10609, %v10611, %v10607
  %v10613 = vmul.f32 1.0, %v10612
  %v10614 = vrcp.pop %v9424
  %v10615 = vmul.f32 %v9424, %v10614
  %v10616 = vsub.f32 1.0, %v10615
  %v10617 = vmul.f32 %v10614, %v10616
  %v10618 = vadd.f32 %v10614, %v10617
  %vm10619 = vweird.f32 %v9424
  %vm10620 = vweird.f32 %v10614
  %vm10621 = vmor %vm10619, %vm10620
  %v10622 = vsel %vm10621, %v10614, %v10618
  %v10623 = vand.u32 2147483647, %v9424
  %vm10624 = vcmp.eq.f32.partialorder %v10623, 8.507059e+37
  %v10625 = vand.u32 %v9424, 2147483648
  %v10626 = vor.u32 1.1754944e-38, %v10625
  %v10627 = vsel %vm10624, %v10626, %v10622
  %v10628 = vmul.f32 1.0, %v10627
  %v10629 = vrcp.pop %v9426
  %v10630 = vmul.f32 %v9426, %v10629
  %v10631 = vsub.f32 1.0, %v10630
  %v10632 = vmul.f32 %v10629, %v10631
  %v10633 = vadd.f32 %v10629, %v10632
  %vm10634 = vweird.f32 %v9426
  %vm10635 = vweird.f32 %v10629
  %vm10636 = vmor %vm10634, %vm10635
  %v10637 = vsel %vm10636, %v10629, %v10633
  %v10638 = vand.u32 2147483647, %v9426
  %vm10639 = vcmp.eq.f32.partialorder %v10638, 8.507059e+37
  %v10640 = vand.u32 %v9426, 2147483648
  %v10641 = vor.u32 1.1754944e-38, %v10640
  %v10642 = vsel %vm10639, %v10641, %v10637
  %v10643 = vmul.f32 1.0, %v10642
  %v10644 = vrcp.pop %v9428
  %v10645 = vmul.f32 %v9428, %v10644
  %v10646 = vsub.f32 1.0, %v10645
  %v10647 = vmul.f32 %v10644, %v10646
  %v10648 = vadd.f32 %v10644, %v10647
  %vm10649 = vweird.f32 %v9428
  %vm10650 = vweird.f32 %v10644
  %vm10651 = vmor %vm10649, %vm10650
  %v10652 = vsel %vm10651, %v10644, %v10648
  %v10653 = vand.u32 2147483647, %v9428
  %vm10654 = vcmp.eq.f32.partialorder %v10653, 8.507059e+37
  %v10655 = vand.u32 %v9428, 2147483648
  %v10656 = vor.u32 1.1754944e-38, %v10655
  %v10657 = vsel %vm10654, %v10656, %v10652
  %v10658 = vmul.f32 1.0, %v10657
  %v10659 = vrcp.pop %v9430
  %v10660 = vmul.f32 %v9430, %v10659
  %v10661 = vsub.f32 1.0, %v10660
  %v10662 = vmul.f32 %v10659, %v10661
  %v10663 = vadd.f32 %v10659, %v10662
  %vm10664 = vweird.f32 %v9430
  %vm10665 = vweird.f32 %v10659
  %vm10666 = vmor %vm10664, %vm10665
  %v10667 = vsel %vm10666, %v10659, %v10663
  %v10668 = vand.u32 2147483647, %v9430
  %vm10669 = vcmp.eq.f32.partialorder %v10668, 8.507059e+37
  %v10670 = vand.u32 %v9430, 2147483648
  %v10671 = vor.u32 1.1754944e-38, %v10670
  %v10672 = vsel %vm10669, %v10671, %v10667
  %v10673 = vmul.f32 1.0, %v10672
  %v10674 = vrcp.pop %v9432
  %v10675 = vmul.f32 %v9432, %v10674
  %v10676 = vsub.f32 1.0, %v10675
  %v10677 = vmul.f32 %v10674, %v10676
  %v10678 = vadd.f32 %v10674, %v10677
  %vm10679 = vweird.f32 %v9432
  %vm10680 = vweird.f32 %v10674
  %vm10681 = vmor %vm10679, %vm10680
  %v10682 = vsel %vm10681, %v10674, %v10678
  %v10683 = vand.u32 2147483647, %v9432
  %vm10684 = vcmp.eq.f32.partialorder %v10683, 8.507059e+37
  %v10685 = vand.u32 %v9432, 2147483648
  %v10686 = vor.u32 1.1754944e-38, %v10685
  %v10687 = vsel %vm10684, %v10686, %v10682
  %v10688 = vmul.f32 1.0, %v10687
  %v10689 = vrcp.pop %v9434
  %v10690 = vmul.f32 %v9434, %v10689
  %v10691 = vsub.f32 1.0, %v10690
  %v10692 = vmul.f32 %v10689, %v10691
  %v10693 = vadd.f32 %v10689, %v10692
  %vm10694 = vweird.f32 %v9434
  %vm10695 = vweird.f32 %v10689
  %vm10696 = vmor %vm10694, %vm10695
  %v10697 = vsel %vm10696, %v10689, %v10693
  %v10698 = vand.u32 2147483647, %v9434
  %vm10699 = vcmp.eq.f32.partialorder %v10698, 8.507059e+37
  %v10700 = vand.u32 %v9434, 2147483648
  %v10701 = vor.u32 1.1754944e-38, %v10700
  %v10702 = vsel %vm10699, %v10701, %v10697
  %v10703 = vmul.f32 1.0, %v10702
  %v10704 = vrcp.pop %v9436
  %v10705 = vmul.f32 %v9436, %v10704
  %v10706 = vsub.f32 1.0, %v10705
  %v10707 = vmul.f32 %v10704, %v10706
  %v10708 = vadd.f32 %v10704, %v10707
  %vm10709 = vweird.f32 %v9436
  %vm10710 = vweird.f32 %v10704
  %vm10711 = vmor %vm10709, %vm10710
  %v10712 = vsel %vm10711, %v10704, %v10708
  %v10713 = vand.u32 2147483647, %v9436
  %vm10714 = vcmp.eq.f32.partialorder %v10713, 8.507059e+37
  %v10715 = vand.u32 %v9436, 2147483648
  %v10716 = vor.u32 1.1754944e-38, %v10715
  %v10717 = vsel %vm10714, %v10716, %v10712
  %v10718 = vmul.f32 1.0, %v10717
  %v10719 = vrcp.pop %v9438
  %v10720 = vmul.f32 %v9438, %v10719
  %v10721 = vsub.f32 1.0, %v10720
  %v10722 = vmul.f32 %v10719, %v10721
  %v10723 = vadd.f32 %v10719, %v10722
  %vm10724 = vweird.f32 %v9438
  %vm10725 = vweird.f32 %v10719
  %vm10726 = vmor %vm10724, %vm10725
  %v10727 = vsel %vm10726, %v10719, %v10723
  %v10728 = vand.u32 2147483647, %v9438
  %vm10729 = vcmp.eq.f32.partialorder %v10728, 8.507059e+37
  %v10730 = vand.u32 %v9438, 2147483648
  %v10731 = vor.u32 1.1754944e-38, %v10730
  %v10732 = vsel %vm10729, %v10731, %v10727
  %v10733 = vmul.f32 1.0, %v10732
  %v10734 = vrcp.pop %v9440
  %v10735 = vmul.f32 %v9440, %v10734
  %v10736 = vsub.f32 1.0, %v10735
  %v10737 = vmul.f32 %v10734, %v10736
  %v10738 = vadd.f32 %v10734, %v10737
  %vm10739 = vweird.f32 %v9440
  %vm10740 = vweird.f32 %v10734
  %vm10741 = vmor %vm10739, %vm10740
  %v10742 = vsel %vm10741, %v10734, %v10738
  %v10743 = vand.u32 2147483647, %v9440
  %vm10744 = vcmp.eq.f32.partialorder %v10743, 8.507059e+37
  %v10745 = vand.u32 %v9440, 2147483648
  %v10746 = vor.u32 1.1754944e-38, %v10745
  %v10747 = vsel %vm10744, %v10746, %v10742
  %v10748 = vmul.f32 1.0, %v10747
  %v10749 = vrcp.pop %v9442
  %v10750 = vmul.f32 %v9442, %v10749
  %v10751 = vsub.f32 1.0, %v10750
  %v10752 = vmul.f32 %v10749, %v10751
  %v10753 = vadd.f32 %v10749, %v10752
  %vm10754 = vweird.f32 %v9442
  %vm10755 = vweird.f32 %v10749
  %vm10756 = vmor %vm10754, %vm10755
  %v10757 = vsel %vm10756, %v10749, %v10753
  %v10758 = vand.u32 2147483647, %v9442
  %vm10759 = vcmp.eq.f32.partialorder %v10758, 8.507059e+37
  %v10760 = vand.u32 %v9442, 2147483648
  %v10761 = vor.u32 1.1754944e-38, %v10760
  %v10762 = vsel %vm10759, %v10761, %v10757
  %v10763 = vmul.f32 1.0, %v10762
  %v10764 = vrcp.pop %v9444
  %v10765 = vmul.f32 %v9444, %v10764
  %v10766 = vsub.f32 1.0, %v10765
  %v10767 = vmul.f32 %v10764, %v10766
  %v10768 = vadd.f32 %v10764, %v10767
  %vm10769 = vweird.f32 %v9444
  %vm10770 = vweird.f32 %v10764
  %vm10771 = vmor %vm10769, %vm10770
  %v10772 = vsel %vm10771, %v10764, %v10768
  %v10773 = vand.u32 2147483647, %v9444
  %vm10774 = vcmp.eq.f32.partialorder %v10773, 8.507059e+37
  %v10775 = vand.u32 %v9444, 2147483648
  %v10776 = vor.u32 1.1754944e-38, %v10775
  %v10777 = vsel %vm10774, %v10776, %v10772
  %v10778 = vmul.f32 1.0, %v10777
  %v10779 = vrcp.pop %v9446
  %v10780 = vmul.f32 %v9446, %v10779
  %v10781 = vsub.f32 1.0, %v10780
  %v10782 = vmul.f32 %v10779, %v10781
  %v10783 = vadd.f32 %v10779, %v10782
  %vm10784 = vweird.f32 %v9446
  %vm10785 = vweird.f32 %v10779
  %vm10786 = vmor %vm10784, %vm10785
  %v10787 = vsel %vm10786, %v10779, %v10783
  %v10788 = vand.u32 2147483647, %v9446
  %vm10789 = vcmp.eq.f32.partialorder %v10788, 8.507059e+37
  %v10790 = vand.u32 %v9446, 2147483648
  %v10791 = vor.u32 1.1754944e-38, %v10790
  %v10792 = vsel %vm10789, %v10791, %v10787
  %v10793 = vmul.f32 1.0, %v10792
  %v10794 = vrcp.pop %v9448
  %v10795 = vmul.f32 %v9448, %v10794
  %v10796 = vsub.f32 1.0, %v10795
  %v10797 = vmul.f32 %v10794, %v10796
  %v10798 = vadd.f32 %v10794, %v10797
  %vm10799 = vweird.f32 %v9448
  %vm10800 = vweird.f32 %v10794
  %vm10801 = vmor %vm10799, %vm10800
  %v10802 = vsel %vm10801, %v10794, %v10798
  %v10803 = vand.u32 2147483647, %v9448
  %vm10804 = vcmp.eq.f32.partialorder %v10803, 8.507059e+37
  %v10805 = vand.u32 %v9448, 2147483648
  %v10806 = vor.u32 1.1754944e-38, %v10805
  %v10807 = vsel %vm10804, %v10806, %v10802
  %v10808 = vmul.f32 1.0, %v10807
  %v10809 = vrcp.pop %v9450
  %v10810 = vmul.f32 %v9450, %v10809
  %v10811 = vsub.f32 1.0, %v10810
  %v10812 = vmul.f32 %v10809, %v10811
  %v10813 = vadd.f32 %v10809, %v10812
  %vm10814 = vweird.f32 %v9450
  %vm10815 = vweird.f32 %v10809
  %vm10816 = vmor %vm10814, %vm10815
  %v10817 = vsel %vm10816, %v10809, %v10813
  %v10818 = vand.u32 2147483647, %v9450
  %vm10819 = vcmp.eq.f32.partialorder %v10818, 8.507059e+37
  %v10820 = vand.u32 %v9450, 2147483648
  %v10821 = vor.u32 1.1754944e-38, %v10820
  %v10822 = vsel %vm10819, %v10821, %v10817
  %v10823 = vmul.f32 1.0, %v10822
  %v10824 = vrcp.pop %v9452
  %v10825 = vmul.f32 %v9452, %v10824
  %v10826 = vsub.f32 1.0, %v10825
  %v10827 = vmul.f32 %v10824, %v10826
  %v10828 = vadd.f32 %v10824, %v10827
  %vm10829 = vweird.f32 %v9452
  %vm10830 = vweird.f32 %v10824
  %vm10831 = vmor %vm10829, %vm10830
  %v10832 = vsel %vm10831, %v10824, %v10828
  %v10833 = vand.u32 2147483647, %v9452
  %vm10834 = vcmp.eq.f32.partialorder %v10833, 8.507059e+37
  %v10835 = vand.u32 %v9452, 2147483648
  %v10836 = vor.u32 1.1754944e-38, %v10835
  %v10837 = vsel %vm10834, %v10836, %v10832
  %v10838 = vmul.f32 1.0, %v10837
  %v10839 = vrcp.pop %v9454
  %v10840 = vmul.f32 %v9454, %v10839
  %v10841 = vsub.f32 1.0, %v10840
  %v10842 = vmul.f32 %v10839, %v10841
  %v10843 = vadd.f32 %v10839, %v10842
  %vm10844 = vweird.f32 %v9454
  %vm10845 = vweird.f32 %v10839
  %vm10846 = vmor %vm10844, %vm10845
  %v10847 = vsel %vm10846, %v10839, %v10843
  %v10848 = vand.u32 2147483647, %v9454
  %vm10849 = vcmp.eq.f32.partialorder %v10848, 8.507059e+37
  %v10850 = vand.u32 %v9454, 2147483648
  %v10851 = vor.u32 1.1754944e-38, %v10850
  %v10852 = vsel %vm10849, %v10851, %v10847
  %v10853 = vmul.f32 1.0, %v10852
  %v10854 = vrcp.pop %v9456
  %v10855 = vmul.f32 %v9456, %v10854
  %v10856 = vsub.f32 1.0, %v10855
  %v10857 = vmul.f32 %v10854, %v10856
  %v10858 = vadd.f32 %v10854, %v10857
  %vm10859 = vweird.f32 %v9456
  %vm10860 = vweird.f32 %v10854
  %vm10861 = vmor %vm10859, %vm10860
  %v10862 = vsel %vm10861, %v10854, %v10858
  %v10863 = vand.u32 2147483647, %v9456
  %vm10864 = vcmp.eq.f32.partialorder %v10863, 8.507059e+37
  %v10865 = vand.u32 %v9456, 2147483648
  %v10866 = vor.u32 1.1754944e-38, %v10865
  %v10867 = vsel %vm10864, %v10866, %v10862
  %v10868 = vmul.f32 1.0, %v10867
  %v10869 = vmul.f32 %v9523, %v9923
  %v10870 = vmul.f32 %v9526, %v9938
  %v10871 = vmul.f32 %v9529, %v9953
  %v10872 = vmul.f32 %v9532, %v9968
  %v10873 = vmul.f32 %v9535, %v9983
  %v10874 = vmul.f32 %v9538, %v9998
  %v10875 = vmul.f32 %v9541, %v10013
  %v10876 = vmul.f32 %v9544, %v10028
  %v10877 = vmul.f32 %v9547, %v10043
  %v10878 = vmul.f32 %v9550, %v10058
  %v10879 = vmul.f32 %v9553, %v10073
  %v10880 = vmul.f32 %v9556, %v10088
  %v10881 = vmul.f32 %v9559, %v10103
  %v10882 = vmul.f32 %v9562, %v10118
  %v10883 = vmul.f32 %v9565, %v10133
  %v10884 = vmul.f32 %v9568, %v10148
  %v10885 = vmul.f32 %v9636, %v10163
  %v10886 = vmul.f32 %v9639, %v10178
  %v10887 = vmul.f32 %v9642, %v10193
  %v10888 = vmul.f32 %v9645, %v10208
  %v10889 = vmul.f32 %v9648, %v10223
  %v10890 = vmul.f32 %v9651, %v10238
  %v10891 = vmul.f32 %v9654, %v10253
  %v10892 = vmul.f32 %v9657, %v10268
  %v10893 = vmul.f32 %v9660, %v10283
  %v10894 = vmul.f32 %v9663, %v10298
  %v10895 = vmul.f32 %v9666, %v10313
  %v10896 = vmul.f32 %v9669, %v10328
  %v10897 = vmul.f32 %v9672, %v10343
  %v10898 = vmul.f32 %v9675, %v10358
  %v10899 = vmul.f32 %v9678, %v10373
  %v10900 = vmul.f32 %v9681, %v10388
  %v10901 = vmul.f32 %v9749, %v10403
  %v10902 = vmul.f32 %v9752, %v10418
  %v10903 = vmul.f32 %v9755, %v10433
  %v10904 = vmul.f32 %v9758, %v10448
  %v10905 = vmul.f32 %v9761, %v10463
  %v10906 = vmul.f32 %v9764, %v10478
  %v10907 = vmul.f32 %v9767, %v10493
  %v10908 = vmul.f32 %v9770, %v10508
  %v10909 = vmul.f32 %v9773, %v10523
  %v10910 = vmul.f32 %v9776, %v10538
  %v10911 = vmul.f32 %v9779, %v10553
  %v10912 = vmul.f32 %v9782, %v10568
  %v10913 = vmul.f32 %v9785, %v10583
  %v10914 = vmul.f32 %v9788, %v10598
  %v10915 = vmul.f32 %v9791, %v10613
  %v10916 = vmul.f32 %v9794, %v10628
  %v10917 = vmul.f32 %v9862, %v10643
  %v10918 = vmul.f32 %v9865, %v10658
  %v10919 = vmul.f32 %v9868, %v10673
  %v10920 = vmul.f32 %v9871, %v10688
  %v10921 = vmul.f32 %v9874, %v10703
  %v10922 = vmul.f32 %v9877, %v10718
  %v10923 = vmul.f32 %v9880, %v10733
  %v10924 = vmul.f32 %v9883, %v10748
  %v10925 = vmul.f32 %v9886, %v10763
  %v10926 = vmul.f32 %v9889, %v10778
  %v10927 = vmul.f32 %v9892, %v10793
  %v10928 = vmul.f32 %v9895, %v10808
  %v10929 = vmul.f32 %v9898, %v10823
  %v10930 = vmul.f32 %v9901, %v10838
  %v10931 = vmul.f32 %v9904, %v10853
  %v10932 = vmul.f32 %v9907, %v10868
  %10997 = vrot.lane.b32.xlu0 %v5477, 8
  %v10998 = vpop.permute.xlu0 %10997
  %10999 = vrot.lane.b32.xlu0 %v5478, 8
  %v11000 = vpop.permute.xlu0 %10999
  %11001 = vrot.lane.b32.xlu0 %v5479, 8
  %v11002 = vpop.permute.xlu0 %11001
  %11003 = vrot.lane.b32.xlu0 %v5480, 8
  %v11004 = vpop.permute.xlu0 %11003
  %11005 = vrot.lane.b32.xlu0 %v5481, 8
  %v11006 = vpop.permute.xlu0 %11005
  %11007 = vrot.lane.b32.xlu0 %v5482, 8
  %v11008 = vpop.permute.xlu0 %11007
  %11009 = vrot.lane.b32.xlu0 %v5483, 8
  %v11010 = vpop.permute.xlu0 %11009
  %11011 = vrot.lane.b32.xlu0 %v5484, 8
  %v11012 = vpop.permute.xlu0 %11011
  %11013 = vrot.lane.b32.xlu0 %v5485, 8
  %v11014 = vpop.permute.xlu0 %11013
  %11015 = vrot.lane.b32.xlu0 %v5486, 8
  %v11016 = vpop.permute.xlu0 %11015
  %11017 = vrot.lane.b32.xlu0 %v5487, 8
  %v11018 = vpop.permute.xlu0 %11017
  %11019 = vrot.lane.b32.xlu0 %v5488, 8
  %v11020 = vpop.permute.xlu0 %11019
  %11021 = vrot.lane.b32.xlu0 %v5489, 8
  %v11022 = vpop.permute.xlu0 %11021
  %11023 = vrot.lane.b32.xlu0 %v5490, 8
  %v11024 = vpop.permute.xlu0 %11023
  %11025 = vrot.lane.b32.xlu0 %v5491, 8
  %v11026 = vpop.permute.xlu0 %11025
  %11027 = vrot.lane.b32.xlu0 %v5492, 8
  %v11028 = vpop.permute.xlu0 %11027
  %11029 = vrot.lane.b32.xlu0 %v5493, 8
  %v11030 = vpop.permute.xlu0 %11029
  %11031 = vrot.lane.b32.xlu0 %v5494, 8
  %v11032 = vpop.permute.xlu0 %11031
  %11033 = vrot.lane.b32.xlu0 %v5495, 8
  %v11034 = vpop.permute.xlu0 %11033
  %11035 = vrot.lane.b32.xlu0 %v5496, 8
  %v11036 = vpop.permute.xlu0 %11035
  %11037 = vrot.lane.b32.xlu0 %v5497, 8
  %v11038 = vpop.permute.xlu0 %11037
  %11039 = vrot.lane.b32.xlu0 %v5498, 8
  %v11040 = vpop.permute.xlu0 %11039
  %11041 = vrot.lane.b32.xlu0 %v5499, 8
  %v11042 = vpop.permute.xlu0 %11041
  %11043 = vrot.lane.b32.xlu0 %v5500, 8
  %v11044 = vpop.permute.xlu0 %11043
  %11045 = vrot.lane.b32.xlu0 %v5501, 8
  %v11046 = vpop.permute.xlu0 %11045
  %11047 = vrot.lane.b32.xlu0 %v5502, 8
  %v11048 = vpop.permute.xlu0 %11047
  %11049 = vrot.lane.b32.xlu0 %v5503, 8
  %v11050 = vpop.permute.xlu0 %11049
  %11051 = vrot.lane.b32.xlu0 %v5504, 8
  %v11052 = vpop.permute.xlu0 %11051
  %11053 = vrot.lane.b32.xlu0 %v5505, 8
  %v11054 = vpop.permute.xlu0 %11053
  %11055 = vrot.lane.b32.xlu0 %v5506, 8
  %v11056 = vpop.permute.xlu0 %11055
  %11057 = vrot.lane.b32.xlu0 %v5507, 8
  %v11058 = vpop.permute.xlu0 %11057
  %11059 = vrot.lane.b32.xlu0 %v5508, 8
  %v11060 = vpop.permute.xlu0 %11059
  %11061 = vrot.lane.b32.xlu0 %v5509, 8
  %v11062 = vpop.permute.xlu0 %11061
  %11063 = vrot.lane.b32.xlu0 %v5510, 8
  %v11064 = vpop.permute.xlu0 %11063
  %11065 = vrot.lane.b32.xlu0 %v5511, 8
  %v11066 = vpop.permute.xlu0 %11065
  %11067 = vrot.lane.b32.xlu0 %v5512, 8
  %v11068 = vpop.permute.xlu0 %11067
  %11069 = vrot.lane.b32.xlu0 %v5513, 8
  %v11070 = vpop.permute.xlu0 %11069
  %11071 = vrot.lane.b32.xlu0 %v5514, 8
  %v11072 = vpop.permute.xlu0 %11071
  %11073 = vrot.lane.b32.xlu0 %v5515, 8
  %v11074 = vpop.permute.xlu0 %11073
  %11075 = vrot.lane.b32.xlu0 %v5516, 8
  %v11076 = vpop.permute.xlu0 %11075
  %11077 = vrot.lane.b32.xlu0 %v5517, 8
  %v11078 = vpop.permute.xlu0 %11077
  %11079 = vrot.lane.b32.xlu0 %v5518, 8
  %v11080 = vpop.permute.xlu0 %11079
  %11081 = vrot.lane.b32.xlu0 %v5519, 8
  %v11082 = vpop.permute.xlu0 %11081
  %11083 = vrot.lane.b32.xlu0 %v5520, 8
  %v11084 = vpop.permute.xlu0 %11083
  %11085 = vrot.lane.b32.xlu0 %v5521, 8
  %v11086 = vpop.permute.xlu0 %11085
  %11087 = vrot.lane.b32.xlu0 %v5522, 8
  %v11088 = vpop.permute.xlu0 %11087
  %11089 = vrot.lane.b32.xlu0 %v5523, 8
  %v11090 = vpop.permute.xlu0 %11089
  %11091 = vrot.lane.b32.xlu0 %v5524, 8
  %v11092 = vpop.permute.xlu0 %11091
  %11093 = vrot.lane.b32.xlu0 %v5525, 8
  %v11094 = vpop.permute.xlu0 %11093
  %11095 = vrot.lane.b32.xlu0 %v5526, 8
  %v11096 = vpop.permute.xlu0 %11095
  %11097 = vrot.lane.b32.xlu0 %v5527, 8
  %v11098 = vpop.permute.xlu0 %11097
  %11099 = vrot.lane.b32.xlu0 %v5528, 8
  %v11100 = vpop.permute.xlu0 %11099
  %11101 = vrot.lane.b32.xlu0 %v5529, 8
  %v11102 = vpop.permute.xlu0 %11101
  %11103 = vrot.lane.b32.xlu0 %v5530, 8
  %v11104 = vpop.permute.xlu0 %11103
  %11105 = vrot.lane.b32.xlu0 %v5531, 8
  %v11106 = vpop.permute.xlu0 %11105
  %11107 = vrot.lane.b32.xlu0 %v5532, 8
  %v11108 = vpop.permute.xlu0 %11107
  %11109 = vrot.lane.b32.xlu0 %v5533, 8
  %v11110 = vpop.permute.xlu0 %11109
  %11111 = vrot.lane.b32.xlu0 %v5534, 8
  %v11112 = vpop.permute.xlu0 %11111
  %11113 = vrot.lane.b32.xlu0 %v5535, 8
  %v11114 = vpop.permute.xlu0 %11113
  %11115 = vrot.lane.b32.xlu0 %v5536, 8
  %v11116 = vpop.permute.xlu0 %11115
  %11117 = vrot.lane.b32.xlu0 %v5537, 8
  %v11118 = vpop.permute.xlu0 %11117
  %11119 = vrot.lane.b32.xlu0 %v5538, 8
  %v11120 = vpop.permute.xlu0 %11119
  %11121 = vrot.lane.b32.xlu0 %v5539, 8
  %v11122 = vpop.permute.xlu0 %11121
  %11123 = vrot.lane.b32.xlu0 %v5540, 8
  %v11124 = vpop.permute.xlu0 %11123
  %11253 = vrot.lane.b32.xlu0 %v8173, 16
  %v11254 = vpop.permute.xlu0 %11253
  %11255 = vrot.lane.b32.xlu0 %v8174, 16
  %v11256 = vpop.permute.xlu0 %11255
  %11257 = vrot.lane.b32.xlu0 %v8175, 16
  %v11258 = vpop.permute.xlu0 %11257
  %11259 = vrot.lane.b32.xlu0 %v8176, 16
  %v11260 = vpop.permute.xlu0 %11259
  %11261 = vrot.lane.b32.xlu0 %v8177, 16
  %v11262 = vpop.permute.xlu0 %11261
  %11263 = vrot.lane.b32.xlu0 %v8178, 16
  %v11264 = vpop.permute.xlu0 %11263
  %11265 = vrot.lane.b32.xlu0 %v8179, 16
  %v11266 = vpop.permute.xlu0 %11265
  %11267 = vrot.lane.b32.xlu0 %v8180, 16
  %v11268 = vpop.permute.xlu0 %11267
  %11269 = vrot.lane.b32.xlu0 %v8181, 16
  %v11270 = vpop.permute.xlu0 %11269
  %11271 = vrot.lane.b32.xlu0 %v8182, 16
  %v11272 = vpop.permute.xlu0 %11271
  %11273 = vrot.lane.b32.xlu0 %v8183, 16
  %v11274 = vpop.permute.xlu0 %11273
  %11275 = vrot.lane.b32.xlu0 %v8184, 16
  %v11276 = vpop.permute.xlu0 %11275
  %11277 = vrot.lane.b32.xlu0 %v8185, 16
  %v11278 = vpop.permute.xlu0 %11277
  %11279 = vrot.lane.b32.xlu0 %v8186, 16
  %v11280 = vpop.permute.xlu0 %11279
  %11281 = vrot.lane.b32.xlu0 %v8187, 16
  %v11282 = vpop.permute.xlu0 %11281
  %11283 = vrot.lane.b32.xlu0 %v8188, 16
  %v11284 = vpop.permute.xlu0 %11283
  %11285 = vrot.lane.b32.xlu0 %v8189, 16
  %v11286 = vpop.permute.xlu0 %11285
  %11287 = vrot.lane.b32.xlu0 %v8190, 16
  %v11288 = vpop.permute.xlu0 %11287
  %11289 = vrot.lane.b32.xlu0 %v8191, 16
  %v11290 = vpop.permute.xlu0 %11289
  %11291 = vrot.lane.b32.xlu0 %v8192, 16
  %v11292 = vpop.permute.xlu0 %11291
  %11293 = vrot.lane.b32.xlu0 %v8193, 16
  %v11294 = vpop.permute.xlu0 %11293
  %11295 = vrot.lane.b32.xlu0 %v8194, 16
  %v11296 = vpop.permute.xlu0 %11295
  %11297 = vrot.lane.b32.xlu0 %v8195, 16
  %v11298 = vpop.permute.xlu0 %11297
  %11299 = vrot.lane.b32.xlu0 %v8196, 16
  %v11300 = vpop.permute.xlu0 %11299
  %11301 = vrot.lane.b32.xlu0 %v8197, 16
  %v11302 = vpop.permute.xlu0 %11301
  %11303 = vrot.lane.b32.xlu0 %v8198, 16
  %v11304 = vpop.permute.xlu0 %11303
  %11305 = vrot.lane.b32.xlu0 %v8199, 16
  %v11306 = vpop.permute.xlu0 %11305
  %11307 = vrot.lane.b32.xlu0 %v8200, 16
  %v11308 = vpop.permute.xlu0 %11307
  %11309 = vrot.lane.b32.xlu0 %v8201, 16
  %v11310 = vpop.permute.xlu0 %11309
  %11311 = vrot.lane.b32.xlu0 %v8202, 16
  %v11312 = vpop.permute.xlu0 %11311
  %11313 = vrot.lane.b32.xlu0 %v8203, 16
  %v11314 = vpop.permute.xlu0 %11313
  %11315 = vrot.lane.b32.xlu0 %v8204, 16
  %v11316 = vpop.permute.xlu0 %11315
  %11317 = vrot.lane.b32.xlu0 %v8205, 16
  %v11318 = vpop.permute.xlu0 %11317
  %11319 = vrot.lane.b32.xlu0 %v8206, 16
  %v11320 = vpop.permute.xlu0 %11319
  %11321 = vrot.lane.b32.xlu0 %v8207, 16
  %v11322 = vpop.permute.xlu0 %11321
  %11323 = vrot.lane.b32.xlu0 %v8208, 16
  %v11324 = vpop.permute.xlu0 %11323
  %11325 = vrot.lane.b32.xlu0 %v8209, 16
  %v11326 = vpop.permute.xlu0 %11325
  %11327 = vrot.lane.b32.xlu0 %v8210, 16
  %v11328 = vpop.permute.xlu0 %11327
  %11329 = vrot.lane.b32.xlu0 %v8211, 16
  %v11330 = vpop.permute.xlu0 %11329
  %11331 = vrot.lane.b32.xlu0 %v8212, 16
  %v11332 = vpop.permute.xlu0 %11331
  %11333 = vrot.lane.b32.xlu0 %v8213, 16
  %v11334 = vpop.permute.xlu0 %11333
  %11335 = vrot.lane.b32.xlu0 %v8214, 16
  %v11336 = vpop.permute.xlu0 %11335
  %11337 = vrot.lane.b32.xlu0 %v8215, 16
  %v11338 = vpop.permute.xlu0 %11337
  %11339 = vrot.lane.b32.xlu0 %v8216, 16
  %v11340 = vpop.permute.xlu0 %11339
  %11341 = vrot.lane.b32.xlu0 %v8217, 16
  %v11342 = vpop.permute.xlu0 %11341
  %11343 = vrot.lane.b32.xlu0 %v8218, 16
  %v11344 = vpop.permute.xlu0 %11343
  %11345 = vrot.lane.b32.xlu0 %v8219, 16
  %v11346 = vpop.permute.xlu0 %11345
  %11347 = vrot.lane.b32.xlu0 %v8220, 16
  %v11348 = vpop.permute.xlu0 %11347
  %11349 = vrot.lane.b32.xlu0 %v8221, 16
  %v11350 = vpop.permute.xlu0 %11349
  %11351 = vrot.lane.b32.xlu0 %v8222, 16
  %v11352 = vpop.permute.xlu0 %11351
  %11353 = vrot.lane.b32.xlu0 %v8223, 16
  %v11354 = vpop.permute.xlu0 %11353
  %11355 = vrot.lane.b32.xlu0 %v8224, 16
  %v11356 = vpop.permute.xlu0 %11355
  %11357 = vrot.lane.b32.xlu0 %v8225, 16
  %v11358 = vpop.permute.xlu0 %11357
  %11359 = vrot.lane.b32.xlu0 %v8226, 16
  %v11360 = vpop.permute.xlu0 %11359
  %11361 = vrot.lane.b32.xlu0 %v8227, 16
  %v11362 = vpop.permute.xlu0 %11361
  %11363 = vrot.lane.b32.xlu0 %v8228, 16
  %v11364 = vpop.permute.xlu0 %11363
  %11365 = vrot.lane.b32.xlu0 %v8229, 16
  %v11366 = vpop.permute.xlu0 %11365
  %11367 = vrot.lane.b32.xlu0 %v8230, 16
  %v11368 = vpop.permute.xlu0 %11367
  %11369 = vrot.lane.b32.xlu0 %v8231, 16
  %v11370 = vpop.permute.xlu0 %11369
  %11371 = vrot.lane.b32.xlu0 %v8232, 16
  %v11372 = vpop.permute.xlu0 %11371
  %11373 = vrot.lane.b32.xlu0 %v8233, 16
  %v11374 = vpop.permute.xlu0 %11373
  %11375 = vrot.lane.b32.xlu0 %v8234, 16
  %v11376 = vpop.permute.xlu0 %11375
  %11377 = vrot.lane.b32.xlu0 %v8235, 16
  %v11378 = vpop.permute.xlu0 %11377
  %11379 = vrot.lane.b32.xlu0 %v8236, 16
  %v11380 = vpop.permute.xlu0 %11379
  %11509 = vrot.lane.b32.xlu0 %v10869, 24
  %v11510 = vpop.permute.xlu0 %11509
  %11511 = vrot.lane.b32.xlu0 %v10870, 24
  %v11512 = vpop.permute.xlu0 %11511
  %11513 = vrot.lane.b32.xlu0 %v10871, 24
  %v11514 = vpop.permute.xlu0 %11513
  %11515 = vrot.lane.b32.xlu0 %v10872, 24
  %v11516 = vpop.permute.xlu0 %11515
  %11517 = vrot.lane.b32.xlu0 %v10873, 24
  %v11518 = vpop.permute.xlu0 %11517
  %11519 = vrot.lane.b32.xlu0 %v10874, 24
  %v11520 = vpop.permute.xlu0 %11519
  %11521 = vrot.lane.b32.xlu0 %v10875, 24
  %v11522 = vpop.permute.xlu0 %11521
  %11523 = vrot.lane.b32.xlu0 %v10876, 24
  %v11524 = vpop.permute.xlu0 %11523
  %11525 = vrot.lane.b32.xlu0 %v10877, 24
  %v11526 = vpop.permute.xlu0 %11525
  %11527 = vrot.lane.b32.xlu0 %v10878, 24
  %v11528 = vpop.permute.xlu0 %11527
  %11529 = vrot.lane.b32.xlu0 %v10879, 24
  %v11530 = vpop.permute.xlu0 %11529
  %11531 = vrot.lane.b32.xlu0 %v10880, 24
  %v11532 = vpop.permute.xlu0 %11531
  %11533 = vrot.lane.b32.xlu0 %v10881, 24
  %v11534 = vpop.permute.xlu0 %11533
  %11535 = vrot.lane.b32.xlu0 %v10882, 24
  %v11536 = vpop.permute.xlu0 %11535
  %11537 = vrot.lane.b32.xlu0 %v10883, 24
  %v11538 = vpop.permute.xlu0 %11537
  %11539 = vrot.lane.b32.xlu0 %v10884, 24
  %v11540 = vpop.permute.xlu0 %11539
  %11541 = vrot.lane.b32.xlu0 %v10885, 24
  %v11542 = vpop.permute.xlu0 %11541
  %11543 = vrot.lane.b32.xlu0 %v10886, 24
  %v11544 = vpop.permute.xlu0 %11543
  %11545 = vrot.lane.b32.xlu0 %v10887, 24
  %v11546 = vpop.permute.xlu0 %11545
  %11547 = vrot.lane.b32.xlu0 %v10888, 24
  %v11548 = vpop.permute.xlu0 %11547
  %11549 = vrot.lane.b32.xlu0 %v10889, 24
  %v11550 = vpop.permute.xlu0 %11549
  %11551 = vrot.lane.b32.xlu0 %v10890, 24
  %v11552 = vpop.permute.xlu0 %11551
  %11553 = vrot.lane.b32.xlu0 %v10891, 24
  %v11554 = vpop.permute.xlu0 %11553
  %11555 = vrot.lane.b32.xlu0 %v10892, 24
  %v11556 = vpop.permute.xlu0 %11555
  %11557 = vrot.lane.b32.xlu0 %v10893, 24
  %v11558 = vpop.permute.xlu0 %11557
  %11559 = vrot.lane.b32.xlu0 %v10894, 24
  %v11560 = vpop.permute.xlu0 %11559
  %11561 = vrot.lane.b32.xlu0 %v10895, 24
  %v11562 = vpop.permute.xlu0 %11561
  %11563 = vrot.lane.b32.xlu0 %v10896, 24
  %v11564 = vpop.permute.xlu0 %11563
  %11565 = vrot.lane.b32.xlu0 %v10897, 24
  %v11566 = vpop.permute.xlu0 %11565
  %11567 = vrot.lane.b32.xlu0 %v10898, 24
  %v11568 = vpop.permute.xlu0 %11567
  %11569 = vrot.lane.b32.xlu0 %v10899, 24
  %v11570 = vpop.permute.xlu0 %11569
  %11571 = vrot.lane.b32.xlu0 %v10900, 24
  %v11572 = vpop.permute.xlu0 %11571
  %11573 = vrot.lane.b32.xlu0 %v10901, 24
  %v11574 = vpop.permute.xlu0 %11573
  %11575 = vrot.lane.b32.xlu0 %v10902, 24
  %v11576 = vpop.permute.xlu0 %11575
  %11577 = vrot.lane.b32.xlu0 %v10903, 24
  %v11578 = vpop.permute.xlu0 %11577
  %11579 = vrot.lane.b32.xlu0 %v10904, 24
  %v11580 = vpop.permute.xlu0 %11579
  %11581 = vrot.lane.b32.xlu0 %v10905, 24
  %v11582 = vpop.permute.xlu0 %11581
  %11583 = vrot.lane.b32.xlu0 %v10906, 24
  %v11584 = vpop.permute.xlu0 %11583
  %11585 = vrot.lane.b32.xlu0 %v10907, 24
  %v11586 = vpop.permute.xlu0 %11585
  %11587 = vrot.lane.b32.xlu0 %v10908, 24
  %v11588 = vpop.permute.xlu0 %11587
  %11589 = vrot.lane.b32.xlu0 %v10909, 24
  %v11590 = vpop.permute.xlu0 %11589
  %11591 = vrot.lane.b32.xlu0 %v10910, 24
  %v11592 = vpop.permute.xlu0 %11591
  %11593 = vrot.lane.b32.xlu0 %v10911, 24
  %v11594 = vpop.permute.xlu0 %11593
  %11595 = vrot.lane.b32.xlu0 %v10912, 24
  %v11596 = vpop.permute.xlu0 %11595
  %11597 = vrot.lane.b32.xlu0 %v10913, 24
  %v11598 = vpop.permute.xlu0 %11597
  %11599 = vrot.lane.b32.xlu0 %v10914, 24
  %v11600 = vpop.permute.xlu0 %11599
  %11601 = vrot.lane.b32.xlu0 %v10915, 24
  %v11602 = vpop.permute.xlu0 %11601
  %11603 = vrot.lane.b32.xlu0 %v10916, 24
  %v11604 = vpop.permute.xlu0 %11603
  %11605 = vrot.lane.b32.xlu0 %v10917, 24
  %v11606 = vpop.permute.xlu0 %11605
  %11607 = vrot.lane.b32.xlu0 %v10918, 24
  %v11608 = vpop.permute.xlu0 %11607
  %11609 = vrot.lane.b32.xlu0 %v10919, 24
  %v11610 = vpop.permute.xlu0 %11609
  %11611 = vrot.lane.b32.xlu0 %v10920, 24
  %v11612 = vpop.permute.xlu0 %11611
  %11613 = vrot.lane.b32.xlu0 %v10921, 24
  %v11614 = vpop.permute.xlu0 %11613
  %11615 = vrot.lane.b32.xlu0 %v10922, 24
  %v11616 = vpop.permute.xlu0 %11615
  %11617 = vrot.lane.b32.xlu0 %v10923, 24
  %v11618 = vpop.permute.xlu0 %11617
  %11619 = vrot.lane.b32.xlu0 %v10924, 24
  %v11620 = vpop.permute.xlu0 %11619
  %11621 = vrot.lane.b32.xlu0 %v10925, 24
  %v11622 = vpop.permute.xlu0 %11621
  %11623 = vrot.lane.b32.xlu0 %v10926, 24
  %v11624 = vpop.permute.xlu0 %11623
  %11625 = vrot.lane.b32.xlu0 %v10927, 24
  %v11626 = vpop.permute.xlu0 %11625
  %11627 = vrot.lane.b32.xlu0 %v10928, 24
  %v11628 = vpop.permute.xlu0 %11627
  %11629 = vrot.lane.b32.xlu0 %v10929, 24
  %v11630 = vpop.permute.xlu0 %11629
  %11631 = vrot.lane.b32.xlu0 %v10930, 24
  %v11632 = vpop.permute.xlu0 %11631
  %11633 = vrot.lane.b32.xlu0 %v10931, 24
  %v11634 = vpop.permute.xlu0 %11633
  %11635 = vrot.lane.b32.xlu0 %v10932, 24
  %v11636 = vpop.permute.xlu0 %11635
  %v11701 = vsel %vm196, %v2781, %v10998
  %v11702 = vsel %vm196, %v2782, %v11000
  %v11703 = vsel %vm196, %v2783, %v11002
  %v11704 = vsel %vm196, %v2784, %v11004
  %v11705 = vsel %vm196, %v2785, %v11006
  %v11706 = vsel %vm196, %v2786, %v11008
  %v11707 = vsel %vm196, %v2787, %v11010
  %v11708 = vsel %vm196, %v2788, %v11012
  %v11709 = vsel %vm196, %v2789, %v11014
  %v11710 = vsel %vm196, %v2790, %v11016
  %v11711 = vsel %vm196, %v2791, %v11018
  %v11712 = vsel %vm196, %v2792, %v11020
  %v11713 = vsel %vm196, %v2793, %v11022
  %v11714 = vsel %vm196, %v2794, %v11024
  %v11715 = vsel %vm196, %v2795, %v11026
  %v11716 = vsel %vm196, %v2796, %v11028
  %v11717 = vsel %vm196, %v2797, %v11030
  %v11718 = vsel %vm196, %v2798, %v11032
  %v11719 = vsel %vm196, %v2799, %v11034
  %v11720 = vsel %vm196, %v2800, %v11036
  %v11721 = vsel %vm196, %v2801, %v11038
  %v11722 = vsel %vm196, %v2802, %v11040
  %v11723 = vsel %vm196, %v2803, %v11042
  %v11724 = vsel %vm196, %v2804, %v11044
  %v11725 = vsel %vm196, %v2805, %v11046
  %v11726 = vsel %vm196, %v2806, %v11048
  %v11727 = vsel %vm196, %v2807, %v11050
  %v11728 = vsel %vm196, %v2808, %v11052
  %v11729 = vsel %vm196, %v2809, %v11054
  %v11730 = vsel %vm196, %v2810, %v11056
  %v11731 = vsel %vm196, %v2811, %v11058
  %v11732 = vsel %vm196, %v2812, %v11060
  %v11733 = vsel %vm196, %v2813, %v11062
  %v11734 = vsel %vm196, %v2814, %v11064
  %v11735 = vsel %vm196, %v2815, %v11066
  %v11736 = vsel %vm196, %v2816, %v11068
  %v11737 = vsel %vm196, %v2817, %v11070
  %v11738 = vsel %vm196, %v2818, %v11072
  %v11739 = vsel %vm196, %v2819, %v11074
  %v11740 = vsel %vm196, %v2820, %v11076
  %v11741 = vsel %vm196, %v2821, %v11078
  %v11742 = vsel %vm196, %v2822, %v11080
  %v11743 = vsel %vm196, %v2823, %v11082
  %v11744 = vsel %vm196, %v2824, %v11084
  %v11745 = vsel %vm196, %v2825, %v11086
  %v11746 = vsel %vm196, %v2826, %v11088
  %v11747 = vsel %vm196, %v2827, %v11090
  %v11748 = vsel %vm196, %v2828, %v11092
  %v11749 = vsel %vm196, %v2829, %v11094
  %v11750 = vsel %vm196, %v2830, %v11096
  %v11751 = vsel %vm196, %v2831, %v11098
  %v11752 = vsel %vm196, %v2832, %v11100
  %v11753 = vsel %vm196, %v2833, %v11102
  %v11754 = vsel %vm196, %v2834, %v11104
  %v11755 = vsel %vm196, %v2835, %v11106
  %v11756 = vsel %vm196, %v2836, %v11108
  %v11757 = vsel %vm196, %v2837, %v11110
  %v11758 = vsel %vm196, %v2838, %v11112
  %v11759 = vsel %vm196, %v2839, %v11114
  %v11760 = vsel %vm196, %v2840, %v11116
  %v11761 = vsel %vm196, %v2841, %v11118
  %v11762 = vsel %vm196, %v2842, %v11120
  %v11763 = vsel %vm196, %v2843, %v11122
  %v11764 = vsel %vm196, %v2844, %v11124
  %vm11765 = vcmask 130048
  %v11766 = vsel %vm11765, %v11701, %v11254
  %v11767 = vsel %vm11765, %v11702, %v11256
  %v11768 = vsel %vm11765, %v11703, %v11258
  %v11769 = vsel %vm11765, %v11704, %v11260
  %v11770 = vsel %vm11765, %v11705, %v11262
  %v11771 = vsel %vm11765, %v11706, %v11264
  %v11772 = vsel %vm11765, %v11707, %v11266
  %v11773 = vsel %vm11765, %v11708, %v11268
  %v11774 = vsel %vm11765, %v11709, %v11270
  %v11775 = vsel %vm11765, %v11710, %v11272
  %v11776 = vsel %vm11765, %v11711, %v11274
  %v11777 = vsel %vm11765, %v11712, %v11276
  %v11778 = vsel %vm11765, %v11713, %v11278
  %v11779 = vsel %vm11765, %v11714, %v11280
  %v11780 = vsel %vm11765, %v11715, %v11282
  %v11781 = vsel %vm11765, %v11716, %v11284
  %v11782 = vsel %vm11765, %v11717, %v11286
  %v11783 = vsel %vm11765, %v11718, %v11288
  %v11784 = vsel %vm11765, %v11719, %v11290
  %v11785 = vsel %vm11765, %v11720, %v11292
  %v11786 = vsel %vm11765, %v11721, %v11294
  %v11787 = vsel %vm11765, %v11722, %v11296
  %v11788 = vsel %vm11765, %v11723, %v11298
  %v11789 = vsel %vm11765, %v11724, %v11300
  %v11790 = vsel %vm11765, %v11725, %v11302
  %v11791 = vsel %vm11765, %v11726, %v11304
  %v11792 = vsel %vm11765, %v11727, %v11306
  %v11793 = vsel %vm11765, %v11728, %v11308
  %v11794 = vsel %vm11765, %v11729, %v11310
  %v11795 = vsel %vm11765, %v11730, %v11312
  %v11796 = vsel %vm11765, %v11731, %v11314
  %v11797 = vsel %vm11765, %v11732, %v11316
  %v11798 = vsel %vm11765, %v11733, %v11318
  %v11799 = vsel %vm11765, %v11734, %v11320
  %v11800 = vsel %vm11765, %v11735, %v11322
  %v11801 = vsel %vm11765, %v11736, %v11324
  %v11802 = vsel %vm11765, %v11737, %v11326
  %v11803 = vsel %vm11765, %v11738, %v11328
  %v11804 = vsel %vm11765, %v11739, %v11330
  %v11805 = vsel %vm11765, %v11740, %v11332
  %v11806 = vsel %vm11765, %v11741, %v11334
  %v11807 = vsel %vm11765, %v11742, %v11336
  %v11808 = vsel %vm11765, %v11743, %v11338
  %v11809 = vsel %vm11765, %v11744, %v11340
  %v11810 = vsel %vm11765, %v11745, %v11342
  %v11811 = vsel %vm11765, %v11746, %v11344
  %v11812 = vsel %vm11765, %v11747, %v11346
  %v11813 = vsel %vm11765, %v11748, %v11348
  %v11814 = vsel %vm11765, %v11749, %v11350
  %v11815 = vsel %vm11765, %v11750, %v11352
  %v11816 = vsel %vm11765, %v11751, %v11354
  %v11817 = vsel %vm11765, %v11752, %v11356
  %v11818 = vsel %vm11765, %v11753, %v11358
  %v11819 = vsel %vm11765, %v11754, %v11360
  %v11820 = vsel %vm11765, %v11755, %v11362
  %v11821 = vsel %vm11765, %v11756, %v11364
  %v11822 = vsel %vm11765, %v11757, %v11366
  %v11823 = vsel %vm11765, %v11758, %v11368
  %v11824 = vsel %vm11765, %v11759, %v11370
  %v11825 = vsel %vm11765, %v11760, %v11372
  %v11826 = vsel %vm11765, %v11761, %v11374
  %v11827 = vsel %vm11765, %v11762, %v11376
  %v11828 = vsel %vm11765, %v11763, %v11378
  %v11829 = vsel %vm11765, %v11764, %v11380
  %vm11830 = vcmask 195584
  %v11831 = vsel %vm11830, %v11766, %v11510
  %v11832 = vsel %vm11830, %v11767, %v11512
  %v11833 = vsel %vm11830, %v11768, %v11514
  %v11834 = vsel %vm11830, %v11769, %v11516
  %v11835 = vsel %vm11830, %v11770, %v11518
  %v11836 = vsel %vm11830, %v11771, %v11520
  %v11837 = vsel %vm11830, %v11772, %v11522
  %v11838 = vsel %vm11830, %v11773, %v11524
  %v11839 = vsel %vm11830, %v11774, %v11526
  %v11840 = vsel %vm11830, %v11775, %v11528
  %v11841 = vsel %vm11830, %v11776, %v11530
  %v11842 = vsel %vm11830, %v11777, %v11532
  %v11843 = vsel %vm11830, %v11778, %v11534
  %v11844 = vsel %vm11830, %v11779, %v11536
  %v11845 = vsel %vm11830, %v11780, %v11538
  %v11846 = vsel %vm11830, %v11781, %v11540
  %v11847 = vsel %vm11830, %v11782, %v11542
  %v11848 = vsel %vm11830, %v11783, %v11544
  %v11849 = vsel %vm11830, %v11784, %v11546
  %v11850 = vsel %vm11830, %v11785, %v11548
  %v11851 = vsel %vm11830, %v11786, %v11550
  %v11852 = vsel %vm11830, %v11787, %v11552
  %v11853 = vsel %vm11830, %v11788, %v11554
  %v11854 = vsel %vm11830, %v11789, %v11556
  %v11855 = vsel %vm11830, %v11790, %v11558
  %v11856 = vsel %vm11830, %v11791, %v11560
  %v11857 = vsel %vm11830, %v11792, %v11562
  %v11858 = vsel %vm11830, %v11793, %v11564
  %v11859 = vsel %vm11830, %v11794, %v11566
  %v11860 = vsel %vm11830, %v11795, %v11568
  %v11861 = vsel %vm11830, %v11796, %v11570
  %v11862 = vsel %vm11830, %v11797, %v11572
  %v11863 = vsel %vm11830, %v11798, %v11574
  %v11864 = vsel %vm11830, %v11799, %v11576
  %v11865 = vsel %vm11830, %v11800, %v11578
  %v11866 = vsel %vm11830, %v11801, %v11580
  %v11867 = vsel %vm11830, %v11802, %v11582
  %v11868 = vsel %vm11830, %v11803, %v11584
  %v11869 = vsel %vm11830, %v11804, %v11586
  %v11870 = vsel %vm11830, %v11805, %v11588
  %v11871 = vsel %vm11830, %v11806, %v11590
  %v11872 = vsel %vm11830, %v11807, %v11592
  %v11873 = vsel %vm11830, %v11808, %v11594
  %v11874 = vsel %vm11830, %v11809, %v11596
  %v11875 = vsel %vm11830, %v11810, %v11598
  %v11876 = vsel %vm11830, %v11811, %v11600
  %v11877 = vsel %vm11830, %v11812, %v11602
  %v11878 = vsel %vm11830, %v11813, %v11604
  %v11879 = vsel %vm11830, %v11814, %v11606
  %v11880 = vsel %vm11830, %v11815, %v11608
  %v11881 = vsel %vm11830, %v11816, %v11610
  %v11882 = vsel %vm11830, %v11817, %v11612
  %v11883 = vsel %vm11830, %v11818, %v11614
  %v11884 = vsel %vm11830, %v11819, %v11616
  %v11885 = vsel %vm11830, %v11820, %v11618
  %v11886 = vsel %vm11830, %v11821, %v11620
  %v11887 = vsel %vm11830, %v11822, %v11622
  %v11888 = vsel %vm11830, %v11823, %v11624
  %v11889 = vsel %vm11830, %v11824, %v11626
  %v11890 = vsel %vm11830, %v11825, %v11628
  %v11891 = vsel %vm11830, %v11826, %v11630
  %v11892 = vsel %vm11830, %v11827, %v11632
  %v11893 = vsel %vm11830, %v11828, %v11634
  %v11894 = vsel %vm11830, %v11829, %v11636
  %v11895 = vld [vmem:[%s1] sm:$0xff]
  %v11896 = vld [vmem:[%s1 + $0x8] sm:$0xff]
  %v11897 = vld [vmem:[%s1 + $0x10] sm:$0xff]
  %v11898 = vld [vmem:[%s1 + $0x18] sm:$0xff]
  %v11899 = vld [vmem:[%s2] sm:$0x1]
  %v11901 = vperm.slane %v11899, 0
  %vm11903 = vcmask 261120
  %v11905 = vsel %vm11903, %v11831, 0
  %v11908 = vsel %vm11903, %v11832, 0
  %v11911 = vsel %vm11903, %v11833, 0
  %v11914 = vsel %vm11903, %v11834, 0
  %v11917 = vsel %vm11903, %v11835, 0
  %v11920 = vsel %vm11903, %v11836, 0
  %v11923 = vsel %vm11903, %v11837, 0
  %v11926 = vsel %vm11903, %v11838, 0
  %v11929 = vsel %vm11903, %v11839, 0
  %v11932 = vsel %vm11903, %v11840, 0
  %v11935 = vsel %vm11903, %v11841, 0
  %v11938 = vsel %vm11903, %v11842, 0
  %v11941 = vsel %vm11903, %v11843, 0
  %v11944 = vsel %vm11903, %v11844, 0
  %v11947 = vsel %vm11903, %v11845, 0
  %v11950 = vsel %vm11903, %v11846, 0
  %v11953 = vsel %vm11903, %v11847, 0
  %v11956 = vsel %vm11903, %v11848, 0
  %v11959 = vsel %vm11903, %v11849, 0
  %v11962 = vsel %vm11903, %v11850, 0
  %v11965 = vsel %vm11903, %v11851, 0
  %v11968 = vsel %vm11903, %v11852, 0
  %v11971 = vsel %vm11903, %v11853, 0
  %v11974 = vsel %vm11903, %v11854, 0
  %v11977 = vsel %vm11903, %v11855, 0
  %v11980 = vsel %vm11903, %v11856, 0
  %v11983 = vsel %vm11903, %v11857, 0
  %v11986 = vsel %vm11903, %v11858, 0
  %v11989 = vsel %vm11903, %v11859, 0
  %v11992 = vsel %vm11903, %v11860, 0
  %v11995 = vsel %vm11903, %v11861, 0
  %v11998 = vsel %vm11903, %v11862, 0
  %v12001 = vsel %vm11903, %v11863, 0
  %v12004 = vsel %vm11903, %v11864, 0
  %v12007 = vsel %vm11903, %v11865, 0
  %v12010 = vsel %vm11903, %v11866, 0
  %v12013 = vsel %vm11903, %v11867, 0
  %v12016 = vsel %vm11903, %v11868, 0
  %v12019 = vsel %vm11903, %v11869, 0
  %v12022 = vsel %vm11903, %v11870, 0
  %v12025 = vsel %vm11903, %v11871, 0
  %v12028 = vsel %vm11903, %v11872, 0
  %v12031 = vsel %vm11903, %v11873, 0
  %v12034 = vsel %vm11903, %v11874, 0
  %v12037 = vsel %vm11903, %v11875, 0
  %v12040 = vsel %vm11903, %v11876, 0
  %v12043 = vsel %vm11903, %v11877, 0
  %v12046 = vsel %vm11903, %v11878, 0
  %v12049 = vsel %vm11903, %v11879, 0
  %v12052 = vsel %vm11903, %v11880, 0
  %v12055 = vsel %vm11903, %v11881, 0
  %v12058 = vsel %vm11903, %v11882, 0
  %v12061 = vsel %vm11903, %v11883, 0
  %v12064 = vsel %vm11903, %v11884, 0
  %v12067 = vsel %vm11903, %v11885, 0
  %v12070 = vsel %vm11903, %v11886, 0
  %v12073 = vsel %vm11903, %v11887, 0
  %v12076 = vsel %vm11903, %v11888, 0
  %v12079 = vsel %vm11903, %v11889, 0
  %v12082 = vsel %vm11903, %v11890, 0
  %v12085 = vsel %vm11903, %v11891, 0
  %v12088 = vsel %vm11903, %v11892, 0
  %v12091 = vsel %vm11903, %v11893, 0
  %v12094 = vsel %vm11903, %v11894, 0
  %12096 = vmatpush.msra.mxu0 0.0
  %12097 = vmatpush.msra.mxu0 0.0
  %12098 = vmatpush.msra.mxu0 0.0
  %12099 = vmatpush.msra.mxu0 0.0
  %12100 = vmatpush.msra.mxu0 0.0
  %12101 = vmatpush.msra.mxu0 0.0
  %12102 = vmatpush.msra.mxu0 0.0
  %12103 = vmatpush.msra.mxu0 0.0
  %12104 = vmatpush.msra.mxu0 0.0
  %12105 = vmatpush.msra.mxu0 0.0
  %12106 = vmatpush.msra.mxu0 0.0
  %12107 = vmatpush.msra.mxu0 0.0
  %12108 = vmatpush.msra.mxu0 %v11898
  %12109 = vmatpush.msra.mxu0 %v11897
  %12110 = vmatpush.msra.mxu0 %v11896
  %12111 = vmatpush.msra.mxu0 %v11895
  %12112 = vmatmul.f32.gmra.mxu0 %v11905
  %v12113 = vpop.f32.mrf.mxu0
  %v12114 = vadd.f32 %v11901, %v12113
  %12115 = vmatmul.f32.gmra.mxu0 %v11908
  %v12116 = vpop.f32.mrf.mxu0
  %v12117 = vadd.f32 %v11901, %v12116
  %12118 = vmatmul.f32.gmra.mxu0 %v11911
  %v12119 = vpop.f32.mrf.mxu0
  %v12120 = vadd.f32 %v11901, %v12119
  %12121 = vmatmul.f32.gmra.mxu0 %v11914
  %v12122 = vpop.f32.mrf.mxu0
  %v12123 = vadd.f32 %v11901, %v12122
  %12124 = vmatmul.f32.gmra.mxu0 %v11917
  %v12125 = vpop.f32.mrf.mxu0
  %v12126 = vadd.f32 %v11901, %v12125
  %12127 = vmatmul.f32.gmra.mxu0 %v11920
  %v12128 = vpop.f32.mrf.mxu0
  %v12129 = vadd.f32 %v11901, %v12128
  %12130 = vmatmul.f32.gmra.mxu0 %v11923
  %v12131 = vpop.f32.mrf.mxu0
  %v12132 = vadd.f32 %v11901, %v12131
  %12133 = vmatmul.f32.gmra.mxu0 %v11926
  %v12134 = vpop.f32.mrf.mxu0
  %v12135 = vadd.f32 %v11901, %v12134
  %12136 = vmatmul.f32.gmra.mxu0 %v11929
  %v12137 = vpop.f32.mrf.mxu0
  %v12138 = vadd.f32 %v11901, %v12137
  %12139 = vmatmul.f32.gmra.mxu0 %v11932
  %v12140 = vpop.f32.mrf.mxu0
  %v12141 = vadd.f32 %v11901, %v12140
  %12142 = vmatmul.f32.gmra.mxu0 %v11935
  %v12143 = vpop.f32.mrf.mxu0
  %v12144 = vadd.f32 %v11901, %v12143
  %12145 = vmatmul.f32.gmra.mxu0 %v11938
  %v12146 = vpop.f32.mrf.mxu0
  %v12147 = vadd.f32 %v11901, %v12146
  %12148 = vmatmul.f32.gmra.mxu0 %v11941
  %v12149 = vpop.f32.mrf.mxu0
  %v12150 = vadd.f32 %v11901, %v12149
  %12151 = vmatmul.f32.gmra.mxu0 %v11944
  %v12152 = vpop.f32.mrf.mxu0
  %v12153 = vadd.f32 %v11901, %v12152
  %12154 = vmatmul.f32.gmra.mxu0 %v11947
  %v12155 = vpop.f32.mrf.mxu0
  %v12156 = vadd.f32 %v11901, %v12155
  %12157 = vmatmul.f32.gmra.mxu0 %v11950
  %v12158 = vpop.f32.mrf.mxu0
  %v12159 = vadd.f32 %v11901, %v12158
  %12160 = vmatmul.f32.gmra.mxu0 %v11953
  %v12161 = vpop.f32.mrf.mxu0
  %v12162 = vadd.f32 %v11901, %v12161
  %12163 = vmatmul.f32.gmra.mxu0 %v11956
  %v12164 = vpop.f32.mrf.mxu0
  %v12165 = vadd.f32 %v11901, %v12164
  %12166 = vmatmul.f32.gmra.mxu0 %v11959
  %v12167 = vpop.f32.mrf.mxu0
  %v12168 = vadd.f32 %v11901, %v12167
  %12169 = vmatmul.f32.gmra.mxu0 %v11962
  %v12170 = vpop.f32.mrf.mxu0
  %v12171 = vadd.f32 %v11901, %v12170
  %12172 = vmatmul.f32.gmra.mxu0 %v11965
  %v12173 = vpop.f32.mrf.mxu0
  %v12174 = vadd.f32 %v11901, %v12173
  %12175 = vmatmul.f32.gmra.mxu0 %v11968
  %v12176 = vpop.f32.mrf.mxu0
  %v12177 = vadd.f32 %v11901, %v12176
  %12178 = vmatmul.f32.gmra.mxu0 %v11971
  %v12179 = vpop.f32.mrf.mxu0
  %v12180 = vadd.f32 %v11901, %v12179
  %12181 = vmatmul.f32.gmra.mxu0 %v11974
  %v12182 = vpop.f32.mrf.mxu0
  %v12183 = vadd.f32 %v11901, %v12182
  %12184 = vmatmul.f32.gmra.mxu0 %v11977
  %v12185 = vpop.f32.mrf.mxu0
  %v12186 = vadd.f32 %v11901, %v12185
  %12187 = vmatmul.f32.gmra.mxu0 %v11980
  %v12188 = vpop.f32.mrf.mxu0
  %v12189 = vadd.f32 %v11901, %v12188
  %12190 = vmatmul.f32.gmra.mxu0 %v11983
  %v12191 = vpop.f32.mrf.mxu0
  %v12192 = vadd.f32 %v11901, %v12191
  %12193 = vmatmul.f32.gmra.mxu0 %v11986
  %v12194 = vpop.f32.mrf.mxu0
  %v12195 = vadd.f32 %v11901, %v12194
  %12196 = vmatmul.f32.gmra.mxu0 %v11989
  %v12197 = vpop.f32.mrf.mxu0
  %v12198 = vadd.f32 %v11901, %v12197
  %12199 = vmatmul.f32.gmra.mxu0 %v11992
  %v12200 = vpop.f32.mrf.mxu0
  %v12201 = vadd.f32 %v11901, %v12200
  %12202 = vmatmul.f32.gmra.mxu0 %v11995
  %v12203 = vpop.f32.mrf.mxu0
  %v12204 = vadd.f32 %v11901, %v12203
  %12205 = vmatmul.f32.gmra.mxu0 %v11998
  %v12206 = vpop.f32.mrf.mxu0
  %v12207 = vadd.f32 %v11901, %v12206
  %12208 = vmatmul.f32.gmra.mxu0 %v12001
  %v12209 = vpop.f32.mrf.mxu0
  %v12210 = vadd.f32 %v11901, %v12209
  %12211 = vmatmul.f32.gmra.mxu0 %v12004
  %v12212 = vpop.f32.mrf.mxu0
  %v12213 = vadd.f32 %v11901, %v12212
  %12214 = vmatmul.f32.gmra.mxu0 %v12007
  %v12215 = vpop.f32.mrf.mxu0
  %v12216 = vadd.f32 %v11901, %v12215
  %12217 = vmatmul.f32.gmra.mxu0 %v12010
  %v12218 = vpop.f32.mrf.mxu0
  %v12219 = vadd.f32 %v11901, %v12218
  %12220 = vmatmul.f32.gmra.mxu0 %v12013
  %v12221 = vpop.f32.mrf.mxu0
  %v12222 = vadd.f32 %v11901, %v12221
  %12223 = vmatmul.f32.gmra.mxu0 %v12016
  %v12224 = vpop.f32.mrf.mxu0
  %v12225 = vadd.f32 %v11901, %v12224
  %12226 = vmatmul.f32.gmra.mxu0 %v12019
  %v12227 = vpop.f32.mrf.mxu0
  %v12228 = vadd.f32 %v11901, %v12227
  %12229 = vmatmul.f32.gmra.mxu0 %v12022
  %v12230 = vpop.f32.mrf.mxu0
  %v12231 = vadd.f32 %v11901, %v12230
  %12232 = vmatmul.f32.gmra.mxu0 %v12025
  %v12233 = vpop.f32.mrf.mxu0
  %v12234 = vadd.f32 %v11901, %v12233
  %12235 = vmatmul.f32.gmra.mxu0 %v12028
  %v12236 = vpop.f32.mrf.mxu0
  %v12237 = vadd.f32 %v11901, %v12236
  %12238 = vmatmul.f32.gmra.mxu0 %v12031
  %v12239 = vpop.f32.mrf.mxu0
  %v12240 = vadd.f32 %v11901, %v12239
  %12241 = vmatmul.f32.gmra.mxu0 %v12034
  %v12242 = vpop.f32.mrf.mxu0
  %v12243 = vadd.f32 %v11901, %v12242
  %12244 = vmatmul.f32.gmra.mxu0 %v12037
  %v12245 = vpop.f32.mrf.mxu0
  %v12246 = vadd.f32 %v11901, %v12245
  %12247 = vmatmul.f32.gmra.mxu0 %v12040
  %v12248 = vpop.f32.mrf.mxu0
  %v12249 = vadd.f32 %v11901, %v12248
  %12250 = vmatmul.f32.gmra.mxu0 %v12043
  %v12251 = vpop.f32.mrf.mxu0
  %v12252 = vadd.f32 %v11901, %v12251
  %12253 = vmatmul.f32.gmra.mxu0 %v12046
  %v12254 = vpop.f32.mrf.mxu0
  %v12255 = vadd.f32 %v11901, %v12254
  %12256 = vmatmul.f32.gmra.mxu0 %v12049
  %v12257 = vpop.f32.mrf.mxu0
  %v12258 = vadd.f32 %v11901, %v12257
  %12259 = vmatmul.f32.gmra.mxu0 %v12052
  %v12260 = vpop.f32.mrf.mxu0
  %v12261 = vadd.f32 %v11901, %v12260
  %12262 = vmatmul.f32.gmra.mxu0 %v12055
  %v12263 = vpop.f32.mrf.mxu0
  %v12264 = vadd.f32 %v11901, %v12263
  %12265 = vmatmul.f32.gmra.mxu0 %v12058
  %v12266 = vpop.f32.mrf.mxu0
  %v12267 = vadd.f32 %v11901, %v12266
  %12268 = vmatmul.f32.gmra.mxu0 %v12061
  %v12269 = vpop.f32.mrf.mxu0
  %v12270 = vadd.f32 %v11901, %v12269
  %12271 = vmatmul.f32.gmra.mxu0 %v12064
  %v12272 = vpop.f32.mrf.mxu0
  %v12273 = vadd.f32 %v11901, %v12272
  %12274 = vmatmul.f32.gmra.mxu0 %v12067
  %v12275 = vpop.f32.mrf.mxu0
  %v12276 = vadd.f32 %v11901, %v12275
  %12277 = vmatmul.f32.gmra.mxu0 %v12070
  %v12278 = vpop.f32.mrf.mxu0
  %v12279 = vadd.f32 %v11901, %v12278
  %12280 = vmatmul.f32.gmra.mxu0 %v12073
  %v12281 = vpop.f32.mrf.mxu0
  %v12282 = vadd.f32 %v11901, %v12281
  %12283 = vmatmul.f32.gmra.mxu0 %v12076
  %v12284 = vpop.f32.mrf.mxu0
  %v12285 = vadd.f32 %v11901, %v12284
  %12286 = vmatmul.f32.gmra.mxu0 %v12079
  %v12287 = vpop.f32.mrf.mxu0
  %v12288 = vadd.f32 %v11901, %v12287
  %12289 = vmatmul.f32.gmra.mxu0 %v12082
  %v12290 = vpop.f32.mrf.mxu0
  %v12291 = vadd.f32 %v11901, %v12290
  %12292 = vmatmul.f32.gmra.mxu0 %v12085
  %v12293 = vpop.f32.mrf.mxu0
  %v12294 = vadd.f32 %v11901, %v12293
  %12295 = vmatmul.f32.gmra.mxu0 %v12088
  %v12296 = vpop.f32.mrf.mxu0
  %v12297 = vadd.f32 %v11901, %v12296
  %12298 = vmatmul.f32.gmra.mxu0 %v12091
  %v12299 = vpop.f32.mrf.mxu0
  %v12300 = vadd.f32 %v11901, %v12299
  %12301 = vmatmul.f32.gmra.mxu0 %v12094
  %v12302 = vpop.f32.mrf.mxu0
  %v12303 = vadd.f32 %v11901, %v12302
  %12304 = vdwg.mxu0
  %12305 = vst.msk [vmem:[%s4] sm:$0xff] %vm11903, %v12114
  %12306 = vst.msk [vmem:[%s4 + $0x8] sm:$0xff] %vm11903, %v12117
  %12307 = vst.msk [vmem:[%s4 + $0x10] sm:$0xff] %vm11903, %v12120
  %12308 = vst.msk [vmem:[%s4 + $0x18] sm:$0xff] %vm11903, %v12123
  %12309 = vst.msk [vmem:[%s4 + $0x20] sm:$0xff] %vm11903, %v12126
  %12310 = vst.msk [vmem:[%s4 + $0x28] sm:$0xff] %vm11903, %v12129
  %12311 = vst.msk [vmem:[%s4 + $0x30] sm:$0xff] %vm11903, %v12132
  %12312 = vst.msk [vmem:[%s4 + $0x38] sm:$0xff] %vm11903, %v12135
  %12313 = vst.msk [vmem:[%s4 + $0x40] sm:$0xff] %vm11903, %v12138
  %12314 = vst.msk [vmem:[%s4 + $0x48] sm:$0xff] %vm11903, %v12141
  %12315 = vst.msk [vmem:[%s4 + $0x50] sm:$0xff] %vm11903, %v12144
  %12316 = vst.msk [vmem:[%s4 + $0x58] sm:$0xff] %vm11903, %v12147
  %12317 = vst.msk [vmem:[%s4 + $0x60] sm:$0xff] %vm11903, %v12150
  %12318 = vst.msk [vmem:[%s4 + $0x68] sm:$0xff] %vm11903, %v12153
  %12319 = vst.msk [vmem:[%s4 + $0x70] sm:$0xff] %vm11903, %v12156
  %12320 = vst.msk [vmem:[%s4 + $0x78] sm:$0xff] %vm11903, %v12159
  %12321 = vst.msk [vmem:[%s4 + $0x80] sm:$0xff] %vm11903, %v12162
  %12322 = vst.msk [vmem:[%s4 + $0x88] sm:$0xff] %vm11903, %v12165
  %12323 = vst.msk [vmem:[%s4 + $0x90] sm:$0xff] %vm11903, %v12168
  %12324 = vst.msk [vmem:[%s4 + $0x98] sm:$0xff] %vm11903, %v12171
  %12325 = vst.msk [vmem:[%s4 + $0xa0] sm:$0xff] %vm11903, %v12174
  %12326 = vst.msk [vmem:[%s4 + $0xa8] sm:$0xff] %vm11903, %v12177
  %12327 = vst.msk [vmem:[%s4 + $0xb0] sm:$0xff] %vm11903, %v12180
  %12328 = vst.msk [vmem:[%s4 + $0xb8] sm:$0xff] %vm11903, %v12183
  %12329 = vst.msk [vmem:[%s4 + $0xc0] sm:$0xff] %vm11903, %v12186
  %12330 = vst.msk [vmem:[%s4 + $0xc8] sm:$0xff] %vm11903, %v12189
  %12331 = vst.msk [vmem:[%s4 + $0xd0] sm:$0xff] %vm11903, %v12192
  %12332 = vst.msk [vmem:[%s4 + $0xd8] sm:$0xff] %vm11903, %v12195
  %12333 = vst.msk [vmem:[%s4 + $0xe0] sm:$0xff] %vm11903, %v12198
  %12334 = vst.msk [vmem:[%s4 + $0xe8] sm:$0xff] %vm11903, %v12201
  %12335 = vst.msk [vmem:[%s4 + $0xf0] sm:$0xff] %vm11903, %v12204
  %12336 = vst.msk [vmem:[%s4 + $0xf8] sm:$0xff] %vm11903, %v12207
  %12337 = vst.msk [vmem:[%s4 + $0x100] sm:$0xff] %vm11903, %v12210
  %12338 = vst.msk [vmem:[%s4 + $0x108] sm:$0xff] %vm11903, %v12213
  %12339 = vst.msk [vmem:[%s4 + $0x110] sm:$0xff] %vm11903, %v12216
  %12340 = vst.msk [vmem:[%s4 + $0x118] sm:$0xff] %vm11903, %v12219
  %12341 = vst.msk [vmem:[%s4 + $0x120] sm:$0xff] %vm11903, %v12222
  %12342 = vst.msk [vmem:[%s4 + $0x128] sm:$0xff] %vm11903, %v12225
  %12343 = vst.msk [vmem:[%s4 + $0x130] sm:$0xff] %vm11903, %v12228
  %12344 = vst.msk [vmem:[%s4 + $0x138] sm:$0xff] %vm11903, %v12231
  %12345 = vst.msk [vmem:[%s4 + $0x140] sm:$0xff] %vm11903, %v12234
  %12346 = vst.msk [vmem:[%s4 + $0x148] sm:$0xff] %vm11903, %v12237
  %12347 = vst.msk [vmem:[%s4 + $0x150] sm:$0xff] %vm11903, %v12240
  %12348 = vst.msk [vmem:[%s4 + $0x158] sm:$0xff] %vm11903, %v12243
  %12349 = vst.msk [vmem:[%s4 + $0x160] sm:$0xff] %vm11903, %v12246
  %12350 = vst.msk [vmem:[%s4 + $0x168] sm:$0xff] %vm11903, %v12249
  %12351 = vst.msk [vmem:[%s4 + $0x170] sm:$0xff] %vm11903, %v12252
  %12352 = vst.msk [vmem:[%s4 + $0x178] sm:$0xff] %vm11903, %v12255
  %12353 = vst.msk [vmem:[%s4 + $0x180] sm:$0xff] %vm11903, %v12258
  %12354 = vst.msk [vmem:[%s4 + $0x188] sm:$0xff] %vm11903, %v12261
  %12355 = vst.msk [vmem:[%s4 + $0x190] sm:$0xff] %vm11903, %v12264
  %12356 = vst.msk [vmem:[%s4 + $0x198] sm:$0xff] %vm11903, %v12267
  %12357 = vst.msk [vmem:[%s4 + $0x1a0] sm:$0xff] %vm11903, %v12270
  %12358 = vst.msk [vmem:[%s4 + $0x1a8] sm:$0xff] %vm11903, %v12273
  %12359 = vst.msk [vmem:[%s4 + $0x1b0] sm:$0xff] %vm11903, %v12276
  %12360 = vst.msk [vmem:[%s4 + $0x1b8] sm:$0xff] %vm11903, %v12279
  %12361 = vst.msk [vmem:[%s4 + $0x1c0] sm:$0xff] %vm11903, %v12282
  %12362 = vst.msk [vmem:[%s4 + $0x1c8] sm:$0xff] %vm11903, %v12285
  %12363 = vst.msk [vmem:[%s4 + $0x1d0] sm:$0xff] %vm11903, %v12288
  %12364 = vst.msk [vmem:[%s4 + $0x1d8] sm:$0xff] %vm11903, %v12291
  %12365 = vst.msk [vmem:[%s4 + $0x1e0] sm:$0xff] %vm11903, %v12294
  %12366 = vst.msk [vmem:[%s4 + $0x1e8] sm:$0xff] %vm11903, %v12297
  %12367 = vst.msk [vmem:[%s4 + $0x1f0] sm:$0xff] %vm11903, %v12300
  %12368 = vst.msk [vmem:[%s4 + $0x1f8] sm:$0xff] %vm11903, %v12303
  // Predicated region
  $region18: #{ac_msa.1} parent=0 // pred_check
    _
  $region19: #{ac_msa.1} parent=0 // pred_check_branch
    %12370 = sbr.rel (0) target = $region21
  $region20: #{ac_msa.1} parent=0 // pred_region
    _
  $region21: #{ac_msa.1} parent=0 // pred_fallthru
    _
  // Predicated region
  $region22: #{ac_msa.1} parent=0 // pred_check
    _
  $region23: #{ac_msa.1} parent=0 // pred_check_branch
    %12372 = sbr.rel (0) target = $region25
  $region24: #{ac_msa.1} parent=0 // pred_region
    _
  $region25: #{ac_msa.1} parent=0 // pred_fallthru
    _

</llo_original>
